<compile_context>
chip_gen: v5e
topology: v5e:2x2
jax: 0.10.0
libtpu: 0.0.40
codegen_flags: <defaults>
</compile_context>

<pallas_src>
import functools

import jax
import jax.numpy as jnp
import numpy as np
from jax import lax
from jax.experimental import pallas as pl
from jax.experimental.pallas import tpu as pltpu

EPS = 1e-5                       # InstanceNorm2d default eps
_VMEM_LIMIT = 64 * 1024 * 1024   # raise scoped VMEM limit (blocks stay small)


# ----------------------------------------------------------------------------
# Kernel 1: per-(n, c) instance-norm statistics (single pass: sum & sum^2).
# ----------------------------------------------------------------------------
def _stats_kernel(x_ref, stat_ref, acc_ref, *, inv_n):
    # x_ref: (1, th, W, C)   stat_ref: (1, 2, C)   acc_ref: VMEM (2, C) f32
    h = pl.program_id(1)

    @pl.when(h == 0)
    def _init():
        acc_ref[...] = jnp.zeros_like(acc_ref)

    _, th, W, C = x_ref.shape
    x = x_ref[0].astype(jnp.float32).reshape(th * W, C)
    acc_ref[0:1, :] += jnp.sum(x, axis=0, keepdims=True)
    acc_ref[1:2, :] += jnp.sum(x * x, axis=0, keepdims=True)

    @pl.when(h == pl.num_programs(1) - 1)
    def _finalize():
        mean = acc_ref[0:1, :] * inv_n
        var = acc_ref[1:2, :] * inv_n - mean * mean        # biased variance
        stat_ref[0, 0:1, :] = mean
        stat_ref[0, 1:2, :] = lax.rsqrt(var + EPS)


def _instance_stats(x_nhwc, tile_h):
    N, H, W, C = x_nhwc.shape
    kernel = functools.partial(_stats_kernel, inv_n=1.0 / float(H * W))
    return pl.pallas_call(
        kernel,
        out_shape=jax.ShapeDtypeStruct((N, 2, C), jnp.float32),
        grid=(N, H // tile_h),
        in_specs=[pl.BlockSpec((1, tile_h, W, C), lambda n, h: (n, h, 0, 0))],
        out_specs=pl.BlockSpec((1, 2, C), lambda n, h: (n, 0, 0)),
        scratch_shapes=[pltpu.VMEM((2, C), jnp.float32)],
        compiler_params=pltpu.CompilerParams(
            dimension_semantics=("parallel", "arbitrary"),
            vmem_limit_bytes=_VMEM_LIMIT),
    )(x_nhwc)


# ----------------------------------------------------------------------------
# Kernel 2: fused shared-conv recompute + gamma/beta conv + norm + modulation.
# ----------------------------------------------------------------------------
def _conv3x3_taps(xpad, w_ref, out_h, out_w):
    """3x3 'valid' conv on a pre-padded tile: 9 taps, bf16 matmuls, f32 acc."""
    cin = xpad.shape[-1]
    cout = w_ref.shape[-1]
    acc = jnp.zeros((out_h * out_w, cout), jnp.float32)
    for dy in range(3):
        for dx in range(3):
            tap = xpad[dy:dy + out_h, dx:dx + out_w, :].reshape(out_h * out_w, cin)
            acc += jnp.dot(tap, w_ref[dy, dx], preferred_element_type=jnp.float32)
    return acc
    # TODO(synk): im2col (9*Cin contraction in a single matmul) would fill the
    # MXU better, but needs a lane-dim concatenate with unaligned offsets.


def _spade_fused_kernel(stat_ref, x_ref, seg_ref, ws_ref, bs_ref,
                        wgb_ref, bgb_ref, out_ref):
    # stat_ref: (1, 2, C)              precomputed mean / rstd
    # x_ref:    (1, th, W, C)          feature tile to normalize
    # seg_ref:  (1, H+4, W+4, S) bf16  whole zero-padded segmap (resident per n)
    # ws_ref:   (3, 3, S, NH)    bf16  shared conv weight, bs_ref: (1, NH) f32
    # wgb_ref:  (3, 3, NH, 2C)   bf16  [gamma | beta] weight, bgb_ref: (1, 2C)
    # out_ref:  (1, th, W, C)
    _, th, W, C = out_ref.shape
    NH = ws_ref.shape[-1]
    h = pl.program_id(1)
    H = pl.num_programs(1) * th
    row0 = pl.multiple_of(h * th, th)

    # ---- shared conv + ReLU recomputed for tile rows + 1-row/col halo ----
    a_h, a_w = th + 2, W + 2
    seg_t = seg_ref[0, pl.ds(row0, th + 4), :, :]          # (th+4, W+4, S) bf16
    acc_a = _conv3x3_taps(seg_t, ws_ref, a_h, a_w)
    actv = jnp.maximum(acc_a + bs_ref[...], 0.0).reshape(a_h, a_w, NH)

    # Halo positions outside the image are the ZERO padding of the gamma/beta
    # convolutions (not extrapolated activations) -> mask them to zero.
    r_ids = lax.broadcasted_iota(jnp.int32, (a_h, a_w, 1), 0) + (row0 - 1)
    c_ids = lax.broadcasted_iota(jnp.int32, (a_h, a_w, 1), 1) - 1
    valid = (r_ids >= 0) & (r_ids < H) & (c_ids >= 0) & (c_ids < W)
    actv = jnp.where(valid, actv, 0.0).astype(jnp.bfloat16)

    # ---- gamma & beta conv fused: one matmul per tap, Cout = 2*C ----
    acc_gb = _conv3x3_taps(actv, wgb_ref, th, W)
    gb = (acc_gb + bgb_ref[...]).reshape(th, W, 2 * C)
    gamma = gb[:, :, :C]
    beta = gb[:, :, C:]

    # ---- instance norm (precomputed stats) + SPADE modulation ----
    mean = stat_ref[0, 0:1, :].reshape(1, 1, C)
    rstd = stat_ref[0, 1:2, :].reshape(1, 1, C)
    xn = (x_ref[0].astype(jnp.float32) - mean) * rstd
    out_ref[0] = (xn * (1.0 + gamma) + beta).astype(out_ref.dtype)


def _spade_apply(x_nhwc, seg_nhwc, stats, ws, bs, wgb, bgb, tile_h):
    N, H, W, C = x_nhwc.shape
    S = seg_nhwc.shape[-1]
    NH = ws.shape[-1]
    # Pad only the tiny label_nc-channel segmap (halo of 2: shared conv halo
    # of 1 + gamma/beta conv halo of 1); cast to bf16 to halve its DMA.
    seg_pad = jnp.pad(seg_nhwc, ((0, 0), (2, 2), (2, 2), (0, 0))).astype(jnp.bfloat16)
    return pl.pallas_call(
        _spade_fused_kernel,
        out_shape=jax.ShapeDtypeStruct((N, H, W, C), x_nhwc.dtype),
        grid=(N, H // tile_h),
        in_specs=[
            pl.BlockSpec((1, 2, C), lambda n, h: (n, 0, 0)),
            pl.BlockSpec((1, tile_h, W, C), lambda n, h: (n, h, 0, 0)),
            pl.BlockSpec((1, H + 4, W + 4, S), lambda n, h: (n, 0, 0, 0)),
            pl.BlockSpec((3, 3, S, NH), lambda n, h: (0, 0, 0, 0)),
            pl.BlockSpec((1, NH), lambda n, h: (0, 0)),
            pl.BlockSpec((3, 3, NH, 2 * C), lambda n, h: (0, 0, 0, 0)),
            pl.BlockSpec((1, 2 * C), lambda n, h: (0, 0)),
        ],
        out_specs=pl.BlockSpec((1, tile_h, W, C), lambda n, h: (n, h, 0, 0)),
        compiler_params=pltpu.CompilerParams(
            dimension_semantics=("parallel", "parallel"),
            vmem_limit_bytes=_VMEM_LIMIT),
    )(stats, x_nhwc, seg_pad, ws, bs, wgb, bgb)


# ----------------------------------------------------------------------------
# SPADE module (parameters + forward), NCHW at the boundary like PyTorch.
# ----------------------------------------------------------------------------
def init_spade_params(key, norm_nc, label_nc, nhidden=64):
    ks = jax.random.split(key, 6)

    def conv_init(kw, kb, cin, cout):
        fan_in = cin * 3 * 3
        bound = 1.0 / np.sqrt(fan_in)
        w = jax.random.uniform(kw, (cout, cin, 3, 3), jnp.float32, -bound, bound)
        b = jax.random.uniform(kb, (cout,), jnp.float32, -bound, bound)
        return w, b

    w_sh, b_sh = conv_init(ks[0], ks[1], label_nc, nhidden)
    w_g, b_g = conv_init(ks[2], ks[3], nhidden, norm_nc)
    w_b, b_b = conv_init(ks[4], ks[5], nhidden, norm_nc)
    return dict(w_shared=w_sh, b_shared=b_sh,
                w_gamma=w_g, b_gamma=b_g,
                w_beta=w_b, b_beta=b_b)


def _oihw_to_hwio(w):  # (Cout, Cin, 3, 3) -> (3, 3, Cin, Cout)
    return jnp.transpose(w, (2, 3, 1, 0))


def _pick_tile_h(H, max_rows=128):
    t = min(H, max_rows)
    while H % t:
        t -= 1
    return t


@functools.partial(jax.jit, static_argnames=("tile_h",))
def spade_forward(params, x_nchw, seg_nchw, *, tile_h=None):
    # TODO(synk): callers that already hold NHWC tensors could skip these two
    # full HBM transpose passes; the PyTorch-compatible boundary is kept here.
    x = jnp.transpose(x_nchw, (0, 2, 3, 1))      # NCHW -> NHWC
    seg = jnp.transpose(seg_nchw, (0, 2, 3, 1))
    N, H, W, C = x.shape
    if tile_h is None:
        tile_h = _pick_tile_h(H)
    assert H % tile_h == 0, "tile_h must divide H"

    # bf16 weights for the MXU (f32 accumulation inside the kernels).
    ws = _oihw_to_hwio(params["w_shared"]).astype(jnp.bfloat16)
    bs = params["b_shared"].reshape(1, -1).astype(jnp.float32)
    wgb = jnp.concatenate([_oihw_to_hwio(params["w_gamma"]),
                           _oihw_to_hwio(params["w_beta"])],
                          axis=-1).astype(jnp.bfloat16)          # (3,3,NH,2C)
    bgb = jnp.concatenate([params["b_gamma"], params["b_beta"]]
                          ).reshape(1, -1).astype(jnp.float32)   # (1, 2C)

    stats = _instance_stats(x, tile_h)                           # (N, 2, C)
    out = _spade_apply(x, seg, stats, ws, bs, wgb, bgb, tile_h)
    return jnp.transpose(out, (0, 3, 1, 2))                      # NHWC -> NCHW


# ----------------------------------------------------------------------------
# Plain-JAX reference (for correctness check only).
# ----------------------------------------------------------------------------
def spade_reference(params, x, seg):
    def conv(inp, w, b):
        out = lax.conv_general_dilated(
            inp, w, (1, 1), "SAME",
            dimension_numbers=("NCHW", "OIHW", "NCHW"),
            precision=lax.Precision.HIGHEST)
        return out + b[None, :, None, None]

    mean = jnp.mean(x, axis=(2, 3), keepdims=True)
    var = jnp.mean((x - mean) ** 2, axis=(2, 3), keepdims=True)
    norm = (x - mean) / jnp.sqrt(var + EPS)
    actv = jax.nn.relu(conv(seg, params["w_shared"], params["b_shared"]))
    gamma = conv(actv, params["w_gamma"], params["b_gamma"])
    beta = conv(actv, params["w_beta"], params["b_beta"])
    return norm * (1.0 + gamma) + beta


if __name__ == "__main__":
    key = jax.random.PRNGKey(0)
    k_p, k_x, k_s = jax.random.split(key, 3)

    N, norm_nc, label_nc, H, W = 2, 4, 3, 16, 16
    params = init_spade_params(k_p, norm_nc, label_nc, nhidden=64)
    x = jax.random.normal(k_x, (N, norm_nc, H, W), jnp.float32)
    segmap = jax.random.normal(k_s, (N, label_nc, H, W), jnp.float32)

    out = spade_forward(params, x, segmap, tile_h=8)   # 2 H-tiles per image
    jax.block_until_ready(out)

    ref = spade_reference(params, x, segmap)
    # bf16 conv operands (f32 accumulation) vs an f32 HIGHEST-precision
    # reference -> compare with a bf16-appropriate tolerance.
    np.testing.assert_allclose(np.asarray(out), np.asarray(ref),
                               rtol=2e-2, atol=2e-2)
    print("KERNEL_OK")
</pallas_src>

<mosaic_0001>
module attributes {stable_mosaic.version = 11 : i64} {
  func.func @_stats_kernel(%arg0: i32, %arg1: i32, %arg2: memref<1x8x16x4xf32, #tpu.memory_space<vmem>>, %arg3: memref<1x2x4xf32, #tpu.memory_space<vmem>>, %arg4: memref<2x4xf32, #tpu.memory_space<vmem>>) attributes {dimension_semantics = [#tpu.dimension_semantics<parallel>, #tpu.dimension_semantics<arbitrary>], iteration_bounds = array<i64: 2, 2>, scalar_prefetch = 0 : i64, scratch_operands = 1 : i64, tpu.core_type = #tpu.core_type<tc>, window_params = [{transform_indices = @transform_0, window_bounds = array<i64: 1, 8, 16, 4>}, {transform_indices = @transform_1, window_bounds = array<i64: 1, 2, 4>}]} {
    %c0_i32 = arith.constant 0 : i32
    %0 = arith.cmpi eq, %arg1, %c0_i32 : i32
    %1 = arith.extui %0 : i1 to i32
    %c0_i32_0 = arith.constant 0 : i32
    %2 = arith.cmpi ne, %1, %c0_i32_0 : i32
    scf.if %2 {
      %cst_13 = arith.constant 0.000000e+00 : f32
      %20 = vector.broadcast %cst_13 : f32 to vector<2x4xf32>
      %c0_14 = arith.constant 0 : index
      %c0_15 = arith.constant 0 : index
      %21 = vector.load %arg4[%c0_14, %c0_15] : memref<2x4xf32, #tpu.memory_space<vmem>>, vector<2x4xf32>
      tpu.vector_store %arg4[%c0_14, %c0_15], %20 {strides = array<i32>} : memref<2x4xf32, #tpu.memory_space<vmem>>, vector<2x4xf32>,
    } else {
    }
    %c0 = arith.constant 0 : index
    %c0_1 = arith.constant 0 : index
    %c0_2 = arith.constant 0 : index
    %c0_3 = arith.constant 0 : index
    %3 = vector.load %arg2[%c0, %c0_1, %c0_2, %c0_3] : memref<1x8x16x4xf32, #tpu.memory_space<vmem>>, vector<1x8x16x4xf32>
    %4 = vector.shape_cast %3 : vector<1x8x16x4xf32> to vector<8x16x4xf32>
    %5 = vector.shape_cast %4 : vector<8x16x4xf32> to vector<128x4xf32>
    %c0_4 = arith.constant 0 : index
    %c0_5 = arith.constant 0 : index
    %6 = vector.load %arg4[%c0_4, %c0_5] : memref<2x4xf32, #tpu.memory_space<vmem>>, vector<1x4xf32>
    %cst = arith.constant dense<0.000000e+00> : vector<4xf32>
    %7 = vector.multi_reduction <add>, %5, %cst [0] : vector<128x4xf32> to vector<4xf32>
    %8 = vector.shape_cast %7 : vector<4xf32> to vector<1x4xf32>
    %9 = arith.addf %6, %8 : vector<1x4xf32>
    %c0_6 = arith.constant 0 : index
    %c0_7 = arith.constant 0 : index
    %10 = vector.load %arg4[%c0_6, %c0_7] : memref<2x4xf32, #tpu.memory_space<vmem>>, vector<1x4xf32>
    tpu.vector_store %arg4[%c0_6, %c0_7], %9 {strides = array<i32>} : memref<2x4xf32, #tpu.memory_space<vmem>>, vector<1x4xf32>,
    %c1 = arith.constant 1 : index
    %c0_8 = arith.constant 0 : index
    %11 = vector.load %arg4[%c1, %c0_8] : memref<2x4xf32, #tpu.memory_space<vmem>>, vector<1x4xf32>
    %12 = arith.mulf %5, %5 : vector<128x4xf32>
    %cst_9 = arith.constant dense<0.000000e+00> : vector<4xf32>
    %13 = vector.multi_reduction <add>, %12, %cst_9 [0] : vector<128x4xf32> to vector<4xf32>
    %14 = vector.shape_cast %13 : vector<4xf32> to vector<1x4xf32>
    %15 = arith.addf %11, %14 : vector<1x4xf32>
    %c1_10 = arith.constant 1 : index
    %c0_11 = arith.constant 0 : index
    %16 = vector.load %arg4[%c1_10, %c0_11] : memref<2x4xf32, #tpu.memory_space<vmem>>, vector<1x4xf32>
    tpu.vector_store %arg4[%c1_10, %c0_11], %15 {strides = array<i32>} : memref<2x4xf32, #tpu.memory_space<vmem>>, vector<1x4xf32>,
    %c1_i32 = arith.constant 1 : i32
    %17 = arith.cmpi eq, %arg1, %c1_i32 : i32
    %18 = arith.extui %17 : i1 to i32
    %c0_i32_12 = arith.constant 0 : i32
    %19 = arith.cmpi ne, %18, %c0_i32_12 : i32
    scf.if %19 {
      %c0_13 = arith.constant 0 : index
      %c0_14 = arith.constant 0 : index
      %20 = vector.load %arg4[%c0_13, %c0_14] : memref<2x4xf32, #tpu.memory_space<vmem>>, vector<1x4xf32>
      %cst_15 = arith.constant 3.906250e-03 : f32
      %21 = vector.broadcast %cst_15 : f32 to vector<1x4xf32>
      %22 = arith.mulf %20, %21 : vector<1x4xf32>
      %c1_16 = arith.constant 1 : index
      %c0_17 = arith.constant 0 : index
      %23 = vector.load %arg4[%c1_16, %c0_17] : memref<2x4xf32, #tpu.memory_space<vmem>>, vector<1x4xf32>
      %cst_18 = arith.constant 3.906250e-03 : f32
      %24 = vector.broadcast %cst_18 : f32 to vector<1x4xf32>
      %25 = arith.mulf %23, %24 : vector<1x4xf32>
      %26 = arith.mulf %22, %22 : vector<1x4xf32>
      %27 = arith.subf %25, %26 : vector<1x4xf32>
      %c0_19 = arith.constant 0 : index
      %c0_20 = arith.constant 0 : index
      %c0_21 = arith.constant 0 : index
      %28 = vector.load %arg3[%c0_19, %c0_20, %c0_21] : memref<1x2x4xf32, #tpu.memory_space<vmem>>, vector<1x1x4xf32>
      %29 = vector.shape_cast %28 : vector<1x1x4xf32> to vector<1x4xf32>
      %30 = vector.shape_cast %22 : vector<1x4xf32> to vector<1x1x4xf32>
      tpu.vector_store %arg3[%c0_19, %c0_20, %c0_21], %30 {strides = array<i32>} : memref<1x2x4xf32, #tpu.memory_space<vmem>>, vector<1x1x4xf32>,
      %cst_22 = arith.constant 9.99999974E-6 : f32
      %31 = vector.broadcast %cst_22 : f32 to vector<1x4xf32>
      %32 = arith.addf %27, %31 : vector<1x4xf32>
      %33 = math.rsqrt %32 : vector<1x4xf32>
      %c0_23 = arith.constant 0 : index
      %c1_24 = arith.constant 1 : index
      %c0_25 = arith.constant 0 : index
      %34 = vector.load %arg3[%c0_23, %c1_24, %c0_25] : memref<1x2x4xf32, #tpu.memory_space<vmem>>, vector<1x1x4xf32>
      %35 = vector.shape_cast %34 : vector<1x1x4xf32> to vector<1x4xf32>
      %36 = vector.shape_cast %33 : vector<1x4xf32> to vector<1x1x4xf32>
      tpu.vector_store %arg3[%c0_23, %c1_24, %c0_25], %36 {strides = array<i32>} : memref<1x2x4xf32, #tpu.memory_space<vmem>>, vector<1x1x4xf32>,
    } else {
    }
    return
  }
  func.func @transform_0(%arg0: i32, %arg1: i32) -> (i32, i32, i32, i32) {
    %c0_i32 = arith.constant 0 : i32
    %c0_i32_0 = arith.constant 0 : i32
    %c0_i32_1 = arith.constant 0 : i32
    return %arg0, %arg1, %c0_i32, %c0_i32_0 : i32, i32, i32, i32
  }
  func.func @transform_1(%arg0: i32, %arg1: i32) -> (i32, i32, i32) {
    %c0_i32 = arith.constant 0 : i32
    %c0_i32_0 = arith.constant 0 : i32
    %c0_i32_1 = arith.constant 0 : i32
    return %arg0, %c0_i32, %c0_i32_0 : i32, i32, i32
  }
}

module attributes {stable_mosaic.version = 11 : i64} {
  func.func @_spade_fused_kernel(%arg0: i32, %arg1: i32, %arg2: memref<1x2x4xf32, #tpu.memory_space<vmem>>, %arg3: memref<1x8x16x4xf32, #tpu.memory_space<vmem>>, %arg4: memref<1x20x20x3xbf16, #tpu.memory_space<vmem>>, %arg5: memref<3x3x3x64xbf16, #tpu.memory_space<vmem>>, %arg6: memref<1x64xf32, #tpu.memory_space<vmem>>, %arg7: memref<3x3x64x8xbf16, #tpu.memory_space<vmem>>, %arg8: memref<1x8xf32, #tpu.memory_space<vmem>>, %arg9: memref<1x8x16x4xf32, #tpu.memory_space<vmem>>) attributes {dimension_semantics = [#tpu.dimension_semantics<parallel>, #tpu.dimension_semantics<parallel>], iteration_bounds = array<i64: 2, 2>, scalar_prefetch = 0 : i64, scratch_operands = 0 : i64, tpu.core_type = #tpu.core_type<tc>, window_params = [{transform_indices = @transform_0, window_bounds = array<i64: 1, 2, 4>}, {transform_indices = @transform_1, window_bounds = array<i64: 1, 8, 16, 4>}, {transform_indices = @transform_2, window_bounds = array<i64: 1, 20, 20, 3>}, {pipeline_mode = #tpu.pipeline_mode<synchronous>, transform_indices = @transform_3, window_bounds = array<i64: 3, 3, 3, 64>}, {pipeline_mode = #tpu.pipeline_mode<synchronous>, transform_indices = @transform_4, window_bounds = array<i64: 1, 64>}, {pipeline_mode = #tpu.pipeline_mode<synchronous>, transform_indices = @transform_5, window_bounds = array<i64: 3, 3, 64, 8>}, {pipeline_mode = #tpu.pipeline_mode<synchronous>, transform_indices = @transform_6, window_bounds = array<i64: 1, 8>}, {transform_indices = @transform_7, window_bounds = array<i64: 1, 8, 16, 4>}]} {
    %c8_i32 = arith.constant 8 : i32
    %0 = arith.muli %arg1, %c8_i32 : i32
    %1 = tpu.assume_multiple %0, 8 : i32
    %c0 = arith.constant 0 : index
    %2 = arith.index_cast %1 : i32 to index
    %c0_0 = arith.constant 0 : index
    %c0_1 = arith.constant 0 : index
    %3 = vector.load %arg4[%c0, %2, %c0_0, %c0_1] : memref<1x20x20x3xbf16, #tpu.memory_space<vmem>>, vector<1x12x20x3xbf16>
    %4 = vector.shape_cast %3 : vector<1x12x20x3xbf16> to vector<12x20x3xbf16>
    %cst = arith.constant 0.000000e+00 : f32
    %5 = vector.broadcast %cst : f32 to vector<180x64xf32>
    %6 = vector.extract_strided_slice %4 {offsets = [0, 0, 0], sizes = [10, 18, 3], strides = [1, 1, 1]} : vector<12x20x3xbf16> to vector<10x18x3xbf16>
    %7 = vector.shape_cast %6 : vector<10x18x3xbf16> to vector<180x3xbf16>
    %c0_2 = arith.constant 0 : index
    %c0_3 = arith.constant 0 : index
    %c0_4 = arith.constant 0 : index
    %c0_5 = arith.constant 0 : index
    %8 = vector.load %arg5[%c0_2, %c0_3, %c0_4, %c0_5] : memref<3x3x3x64xbf16, #tpu.memory_space<vmem>>, vector<1x1x3x64xbf16>
    %9 = vector.shape_cast %8 : vector<1x1x3x64xbf16> to vector<3x64xbf16>
    %cst_6 = arith.constant dense<0.000000e+00> : vector<180x64xf32>
    %10 = tpu.matmul %7, %9, %cst_6 {dimension_numbers = #tpu.dot_dimension_numbers<[1], [0], [0], [1], [0, 0, 1, 1], [], []>} : vector<180x3xbf16>, vector<3x64xbf16>, vector<180x64xf32> -> vector<180x64xf32>
    %11 = arith.addf %5, %10 : vector<180x64xf32>
    %12 = vector.extract_strided_slice %4 {offsets = [0, 1, 0], sizes = [10, 18, 3], strides = [1, 1, 1]} : vector<12x20x3xbf16> to vector<10x18x3xbf16>
    %13 = vector.shape_cast %12 : vector<10x18x3xbf16> to vector<180x3xbf16>
    %c0_7 = arith.constant 0 : index
    %c1 = arith.constant 1 : index
    %c0_8 = arith.constant 0 : index
    %c0_9 = arith.constant 0 : index
    %14 = vector.load %arg5[%c0_7, %c1, %c0_8, %c0_9] : memref<3x3x3x64xbf16, #tpu.memory_space<vmem>>, vector<1x1x3x64xbf16>
    %15 = vector.shape_cast %14 : vector<1x1x3x64xbf16> to vector<3x64xbf16>
    %cst_10 = arith.constant dense<0.000000e+00> : vector<180x64xf32>
    %16 = tpu.matmul %13, %15, %cst_10 {dimension_numbers = #tpu.dot_dimension_numbers<[1], [0], [0], [1], [0, 0, 1, 1], [], []>} : vector<180x3xbf16>, vector<3x64xbf16>, vector<180x64xf32> -> vector<180x64xf32>
    %17 = arith.addf %11, %16 : vector<180x64xf32>
    %18 = vector.extract_strided_slice %4 {offsets = [0, 2, 0], sizes = [10, 18, 3], strides = [1, 1, 1]} : vector<12x20x3xbf16> to vector<10x18x3xbf16>
    %19 = vector.shape_cast %18 : vector<10x18x3xbf16> to vector<180x3xbf16>
    %c0_11 = arith.constant 0 : index
    %c2 = arith.constant 2 : index
    %c0_12 = arith.constant 0 : index
    %c0_13 = arith.constant 0 : index
    %20 = vector.load %arg5[%c0_11, %c2, %c0_12, %c0_13] : memref<3x3x3x64xbf16, #tpu.memory_space<vmem>>, vector<1x1x3x64xbf16>
    %21 = vector.shape_cast %20 : vector<1x1x3x64xbf16> to vector<3x64xbf16>
    %cst_14 = arith.constant dense<0.000000e+00> : vector<180x64xf32>
    %22 = tpu.matmul %19, %21, %cst_14 {dimension_numbers = #tpu.dot_dimension_numbers<[1], [0], [0], [1], [0, 0, 1, 1], [], []>} : vector<180x3xbf16>, vector<3x64xbf16>, vector<180x64xf32> -> vector<180x64xf32>
    %23 = arith.addf %17, %22 : vector<180x64xf32>
    %24 = vector.extract_strided_slice %4 {offsets = [1, 0, 0], sizes = [10, 18, 3], strides = [1, 1, 1]} : vector<12x20x3xbf16> to vector<10x18x3xbf16>
    %25 = vector.shape_cast %24 : vector<10x18x3xbf16> to vector<180x3xbf16>
    %c1_15 = arith.constant 1 : index
    %c0_16 = arith.constant 0 : index
    %c0_17 = arith.constant 0 : index
    %c0_18 = arith.constant 0 : index
    %26 = vector.load %arg5[%c1_15, %c0_16, %c0_17, %c0_18] : memref<3x3x3x64xbf16, #tpu.memory_space<vmem>>, vector<1x1x3x64xbf16>
    %27 = vector.shape_cast %26 : vector<1x1x3x64xbf16> to vector<3x64xbf16>
    %cst_19 = arith.constant dense<0.000000e+00> : vector<180x64xf32>
    %28 = tpu.matmul %25, %27, %cst_19 {dimension_numbers = #tpu.dot_dimension_numbers<[1], [0], [0], [1], [0, 0, 1, 1], [], []>} : vector<180x3xbf16>, vector<3x64xbf16>, vector<180x64xf32> -> vector<180x64xf32>
    %29 = arith.addf %23, %28 : vector<180x64xf32>
    %30 = vector.extract_strided_slice %4 {offsets = [1, 1, 0], sizes = [10, 18, 3], strides = [1, 1, 1]} : vector<12x20x3xbf16> to vector<10x18x3xbf16>
    %31 = vector.shape_cast %30 : vector<10x18x3xbf16> to vector<180x3xbf16>
    %c1_20 = arith.constant 1 : index
    %c1_21 = arith.constant 1 : index
    %c0_22 = arith.constant 0 : index
    %c0_23 = arith.constant 0 : index
    %32 = vector.load %arg5[%c1_20, %c1_21, %c0_22, %c0_23] : memref<3x3x3x64xbf16, #tpu.memory_space<vmem>>, vector<1x1x3x64xbf16>
    %33 = vector.shape_cast %32 : vector<1x1x3x64xbf16> to vector<3x64xbf16>
    %cst_24 = arith.constant dense<0.000000e+00> : vector<180x64xf32>
    %34 = tpu.matmul %31, %33, %cst_24 {dimension_numbers = #tpu.dot_dimension_numbers<[1], [0], [0], [1], [0, 0, 1, 1], [], []>} : vector<180x3xbf16>, vector<3x64xbf16>, vector<180x64xf32> -> vector<180x64xf32>
    %35 = arith.addf %29, %34 : vector<180x64xf32>
    %36 = vector.extract_strided_slice %4 {offsets = [1, 2, 0], sizes = [10, 18, 3], strides = [1, 1, 1]} : vector<12x20x3xbf16> to vector<10x18x3xbf16>
    %37 = vector.shape_cast %36 : vector<10x18x3xbf16> to vector<180x3xbf16>
    %c1_25 = arith.constant 1 : index
    %c2_26 = arith.constant 2 : index
    %c0_27 = arith.constant 0 : index
    %c0_28 = arith.constant 0 : index
    %38 = vector.load %arg5[%c1_25, %c2_26, %c0_27, %c0_28] : memref<3x3x3x64xbf16, #tpu.memory_space<vmem>>, vector<1x1x3x64xbf16>
    %39 = vector.shape_cast %38 : vector<1x1x3x64xbf16> to vector<3x64xbf16>
    %cst_29 = arith.constant dense<0.000000e+00> : vector<180x64xf32>
    %40 = tpu.matmul %37, %39, %cst_29 {dimension_numbers = #tpu.dot_dimension_numbers<[1], [0], [0], [1], [0, 0, 1, 1], [], []>} : vector<180x3xbf16>, vector<3x64xbf16>, vector<180x64xf32> -> vector<180x64xf32>
    %41 = arith.addf %35, %40 : vector<180x64xf32>
    %42 = vector.extract_strided_slice %4 {offsets = [2, 0, 0], sizes = [10, 18, 3], strides = [1, 1, 1]} : vector<12x20x3xbf16> to vector<10x18x3xbf16>
    %43 = vector.shape_cast %42 : vector<10x18x3xbf16> to vector<180x3xbf16>
    %c2_30 = arith.constant 2 : index
    %c0_31 = arith.constant 0 : index
    %c0_32 = arith.constant 0 : index
    %c0_33 = arith.constant 0 : index
    %44 = vector.load %arg5[%c2_30, %c0_31, %c0_32, %c0_33] : memref<3x3x3x64xbf16, #tpu.memory_space<vmem>>, vector<1x1x3x64xbf16>
    %45 = vector.shape_cast %44 : vector<1x1x3x64xbf16> to vector<3x64xbf16>
    %cst_34 = arith.constant dense<0.000000e+00> : vector<180x64xf32>
    %46 = tpu.matmul %43, %45, %cst_34 {dimension_numbers = #tpu.dot_dimension_numbers<[1], [0], [0], [1], [0, 0, 1, 1], [], []>} : vector<180x3xbf16>, vector<3x64xbf16>, vector<180x64xf32> -> vector<180x64xf32>
    %47 = arith.addf %41, %46 : vector<180x64xf32>
    %48 = vector.extract_strided_slice %4 {offsets = [2, 1, 0], sizes = [10, 18, 3], strides = [1, 1, 1]} : vector<12x20x3xbf16> to vector<10x18x3xbf16>
    %49 = vector.shape_cast %48 : vector<10x18x3xbf16> to vector<180x3xbf16>
    %c2_35 = arith.constant 2 : index
    %c1_36 = arith.constant 1 : index
    %c0_37 = arith.constant 0 : index
    %c0_38 = arith.constant 0 : index
    %50 = vector.load %arg5[%c2_35, %c1_36, %c0_37, %c0_38] : memref<3x3x3x64xbf16, #tpu.memory_space<vmem>>, vector<1x1x3x64xbf16>
    %51 = vector.shape_cast %50 : vector<1x1x3x64xbf16> to vector<3x64xbf16>
    %cst_39 = arith.constant dense<0.000000e+00> : vector<180x64xf32>
    %52 = tpu.matmul %49, %51, %cst_39 {dimension_numbers = #tpu.dot_dimension_numbers<[1], [0], [0], [1], [0, 0, 1, 1], [], []>} : vector<180x3xbf16>, vector<3x64xbf16>, vector<180x64xf32> -> vector<180x64xf32>
    %53 = arith.addf %47, %52 : vector<180x64xf32>
    %54 = vector.extract_strided_slice %4 {offsets = [2, 2, 0], sizes = [10, 18, 3], strides = [1, 1, 1]} : vector<12x20x3xbf16> to vector<10x18x3xbf16>
    %55 = vector.shape_cast %54 : vector<10x18x3xbf16> to vector<180x3xbf16>
    %c2_40 = arith.constant 2 : index
    %c2_41 = arith.constant 2 : index
    %c0_42 = arith.constant 0 : index
    %c0_43 = arith.constant 0 : index
    %56 = vector.load %arg5[%c2_40, %c2_41, %c0_42, %c0_43] : memref<3x3x3x64xbf16, #tpu.memory_space<vmem>>, vector<1x1x3x64xbf16>
    %57 = vector.shape_cast %56 : vector<1x1x3x64xbf16> to vector<3x64xbf16>
    %cst_44 = arith.constant dense<0.000000e+00> : vector<180x64xf32>
    %58 = tpu.matmul %55, %57, %cst_44 {dimension_numbers = #tpu.dot_dimension_numbers<[1], [0], [0], [1], [0, 0, 1, 1], [], []>} : vector<180x3xbf16>, vector<3x64xbf16>, vector<180x64xf32> -> vector<180x64xf32>
    %59 = arith.addf %53, %58 : vector<180x64xf32>
    %c0_45 = arith.constant 0 : index
    %c0_46 = arith.constant 0 : index
    %60 = vector.load %arg6[%c0_45, %c0_46] : memref<1x64xf32, #tpu.memory_space<vmem>>, vector<1x64xf32>
    %61 = vector.broadcast %60 : vector<1x64xf32> to vector<180x64xf32>
    %62 = arith.addf %59, %61 : vector<180x64xf32>
    %cst_47 = arith.constant 0.000000e+00 : f32
    %63 = vector.broadcast %cst_47 : f32 to vector<180x64xf32>
    %64 = arith.maximumf %62, %63 : vector<180x64xf32>
    %65 = vector.shape_cast %64 : vector<180x64xf32> to vector<10x18x64xf32>
    %66 = tpu.iota {dimensions = array<i32: 0>} : vector<10x18x1xi32>
    %c1_i32 = arith.constant 1 : i32
    %67 = arith.subi %1, %c1_i32 : i32
    %68 = vector.broadcast %67 : i32 to vector<10x18x1xi32>
    %69 = arith.addi %66, %68 : vector<10x18x1xi32>
    %70 = tpu.iota {dimensions = array<i32: 1>} : vector<10x18x1xi32>
    %c1_i32_48 = arith.constant 1 : i32
    %71 = vector.broadcast %c1_i32_48 : i32 to vector<10x18x1xi32>
    %72 = arith.subi %70, %71 : vector<10x18x1xi32>
    %c0_i32 = arith.constant 0 : i32
    %73 = vector.broadcast %c0_i32 : i32 to vector<10x18x1xi32>
    %74 = arith.cmpi sge, %69, %73 : vector<10x18x1xi32>
    %c16_i32 = arith.constant 16 : i32
    %75 = vector.broadcast %c16_i32 : i32 to vector<10x18x1xi32>
    %76 = arith.cmpi slt, %69, %75 : vector<10x18x1xi32>
    %77 = arith.andi %74, %76 : vector<10x18x1xi1>
    %c0_i32_49 = arith.constant 0 : i32
    %78 = vector.broadcast %c0_i32_49 : i32 to vector<10x18x1xi32>
    %79 = arith.cmpi sge, %72, %78 : vector<10x18x1xi32>
    %80 = arith.andi %77, %79 : vector<10x18x1xi1>
    %c16_i32_50 = arith.constant 16 : i32
    %81 = vector.broadcast %c16_i32_50 : i32 to vector<10x18x1xi32>
    %82 = arith.cmpi slt, %72, %81 : vector<10x18x1xi32>
    %83 = arith.andi %80, %82 : vector<10x18x1xi1>
    %cst_51 = arith.constant 0.000000e+00 : f32
    %84 = vector.shape_cast %83 : vector<10x18x1xi1> to vector<10x18x1xi1>
    %85 = vector.broadcast %84 : vector<10x18x1xi1> to vector<10x18x64xi1>
    %86 = vector.broadcast %cst_51 : f32 to vector<10x18x64xf32>
    %87 = arith.select %85, %65, %86 : vector<10x18x64xi1>, vector<10x18x64xf32>
    %88 = arith.truncf %87 : vector<10x18x64xf32> to vector<10x18x64xbf16>
    %cst_52 = arith.constant 0.000000e+00 : f32
    %89 = vector.broadcast %cst_52 : f32 to vector<128x8xf32>
    %90 = vector.extract_strided_slice %88 {offsets = [0, 0, 0], sizes = [8, 16, 64], strides = [1, 1, 1]} : vector<10x18x64xbf16> to vector<8x16x64xbf16>
    %91 = vector.shape_cast %90 : vector<8x16x64xbf16> to vector<128x64xbf16>
    %c0_53 = arith.constant 0 : index
    %c0_54 = arith.constant 0 : index
    %c0_55 = arith.constant 0 : index
    %c0_56 = arith.constant 0 : index
    %92 = vector.load %arg7[%c0_53, %c0_54, %c0_55, %c0_56] : memref<3x3x64x8xbf16, #tpu.memory_space<vmem>>, vector<1x1x64x8xbf16>
    %93 = vector.shape_cast %92 : vector<1x1x64x8xbf16> to vector<64x8xbf16>
    %cst_57 = arith.constant dense<0.000000e+00> : vector<128x8xf32>
    %94 = tpu.matmul %91, %93, %cst_57 {dimension_numbers = #tpu.dot_dimension_numbers<[1], [0], [0], [1], [0, 0, 1, 1], [], []>} : vector<128x64xbf16>, vector<64x8xbf16>, vector<128x8xf32> -> vector<128x8xf32>
    %95 = arith.addf %89, %94 : vector<128x8xf32>
    %96 = vector.extract_strided_slice %88 {offsets = [0, 1, 0], sizes = [8, 16, 64], strides = [1, 1, 1]} : vector<10x18x64xbf16> to vector<8x16x64xbf16>
    %97 = vector.shape_cast %96 : vector<8x16x64xbf16> to vector<128x64xbf16>
    %c0_58 = arith.constant 0 : index
    %c1_59 = arith.constant 1 : index
    %c0_60 = arith.constant 0 : index
    %c0_61 = arith.constant 0 : index
    %98 = vector.load %arg7[%c0_58, %c1_59, %c0_60, %c0_61] : memref<3x3x64x8xbf16, #tpu.memory_space<vmem>>, vector<1x1x64x8xbf16>
    %99 = vector.shape_cast %98 : vector<1x1x64x8xbf16> to vector<64x8xbf16>
    %cst_62 = arith.constant dense<0.000000e+00> : vector<128x8xf32>
    %100 = tpu.matmul %97, %99, %cst_62 {dimension_numbers = #tpu.dot_dimension_numbers<[1], [0], [0], [1], [0, 0, 1, 1], [], []>} : vector<128x64xbf16>, vector<64x8xbf16>, vector<128x8xf32> -> vector<128x8xf32>
    %101 = arith.addf %95, %100 : vector<128x8xf32>
    %102 = vector.extract_strided_slice %88 {offsets = [0, 2, 0], sizes = [8, 16, 64], strides = [1, 1, 1]} : vector<10x18x64xbf16> to vector<8x16x64xbf16>
    %103 = vector.shape_cast %102 : vector<8x16x64xbf16> to vector<128x64xbf16>
    %c0_63 = arith.constant 0 : index
    %c2_64 = arith.constant 2 : index
    %c0_65 = arith.constant 0 : index
    %c0_66 = arith.constant 0 : index
    %104 = vector.load %arg7[%c0_63, %c2_64, %c0_65, %c0_66] : memref<3x3x64x8xbf16, #tpu.memory_space<vmem>>, vector<1x1x64x8xbf16>
    %105 = vector.shape_cast %104 : vector<1x1x64x8xbf16> to vector<64x8xbf16>
    %cst_67 = arith.constant dense<0.000000e+00> : vector<128x8xf32>
    %106 = tpu.matmul %103, %105, %cst_67 {dimension_numbers = #tpu.dot_dimension_numbers<[1], [0], [0], [1], [0, 0, 1, 1], [], []>} : vector<128x64xbf16>, vector<64x8xbf16>, vector<128x8xf32> -> vector<128x8xf32>
    %107 = arith.addf %101, %106 : vector<128x8xf32>
    %108 = vector.extract_strided_slice %88 {offsets = [1, 0, 0], sizes = [8, 16, 64], strides = [1, 1, 1]} : vector<10x18x64xbf16> to vector<8x16x64xbf16>
    %109 = vector.shape_cast %108 : vector<8x16x64xbf16> to vector<128x64xbf16>
    %c1_68 = arith.constant 1 : index
    %c0_69 = arith.constant 0 : index
    %c0_70 = arith.constant 0 : index
    %c0_71 = arith.constant 0 : index
    %110 = vector.load %arg7[%c1_68, %c0_69, %c0_70, %c0_71] : memref<3x3x64x8xbf16, #tpu.memory_space<vmem>>, vector<1x1x64x8xbf16>
    %111 = vector.shape_cast %110 : vector<1x1x64x8xbf16> to vector<64x8xbf16>
    %cst_72 = arith.constant dense<0.000000e+00> : vector<128x8xf32>
    %112 = tpu.matmul %109, %111, %cst_72 {dimension_numbers = #tpu.dot_dimension_numbers<[1], [0], [0], [1], [0, 0, 1, 1], [], []>} : vector<128x64xbf16>, vector<64x8xbf16>, vector<128x8xf32> -> vector<128x8xf32>
    %113 = arith.addf %107, %112 : vector<128x8xf32>
    %114 = vector.extract_strided_slice %88 {offsets = [1, 1, 0], sizes = [8, 16, 64], strides = [1, 1, 1]} : vector<10x18x64xbf16> to vector<8x16x64xbf16>
    %115 = vector.shape_cast %114 : vector<8x16x64xbf16> to vector<128x64xbf16>
    %c1_73 = arith.constant 1 : index
    %c1_74 = arith.constant 1 : index
    %c0_75 = arith.constant 0 : index
    %c0_76 = arith.constant 0 : index
    %116 = vector.load %arg7[%c1_73, %c1_74, %c0_75, %c0_76] : memref<3x3x64x8xbf16, #tpu.memory_space<vmem>>, vector<1x1x64x8xbf16>
    %117 = vector.shape_cast %116 : vector<1x1x64x8xbf16> to vector<64x8xbf16>
    %cst_77 = arith.constant dense<0.000000e+00> : vector<128x8xf32>
    %118 = tpu.matmul %115, %117, %cst_77 {dimension_numbers = #tpu.dot_dimension_numbers<[1], [0], [0], [1], [0, 0, 1, 1], [], []>} : vector<128x64xbf16>, vector<64x8xbf16>, vector<128x8xf32> -> vector<128x8xf32>
    %119 = arith.addf %113, %118 : vector<128x8xf32>
    %120 = vector.extract_strided_slice %88 {offsets = [1, 2, 0], sizes = [8, 16, 64], strides = [1, 1, 1]} : vector<10x18x64xbf16> to vector<8x16x64xbf16>
    %121 = vector.shape_cast %120 : vector<8x16x64xbf16> to vector<128x64xbf16>
    %c1_78 = arith.constant 1 : index
    %c2_79 = arith.constant 2 : index
    %c0_80 = arith.constant 0 : index
    %c0_81 = arith.constant 0 : index
    %122 = vector.load %arg7[%c1_78, %c2_79, %c0_80, %c0_81] : memref<3x3x64x8xbf16, #tpu.memory_space<vmem>>, vector<1x1x64x8xbf16>
    %123 = vector.shape_cast %122 : vector<1x1x64x8xbf16> to vector<64x8xbf16>
    %cst_82 = arith.constant dense<0.000000e+00> : vector<128x8xf32>
    %124 = tpu.matmul %121, %123, %cst_82 {dimension_numbers = #tpu.dot_dimension_numbers<[1], [0], [0], [1], [0, 0, 1, 1], [], []>} : vector<128x64xbf16>, vector<64x8xbf16>, vector<128x8xf32> -> vector<128x8xf32>
    %125 = arith.addf %119, %124 : vector<128x8xf32>
    %126 = vector.extract_strided_slice %88 {offsets = [2, 0, 0], sizes = [8, 16, 64], strides = [1, 1, 1]} : vector<10x18x64xbf16> to vector<8x16x64xbf16>
    %127 = vector.shape_cast %126 : vector<8x16x64xbf16> to vector<128x64xbf16>
    %c2_83 = arith.constant 2 : index
    %c0_84 = arith.constant 0 : index
    %c0_85 = arith.constant 0 : index
    %c0_86 = arith.constant 0 : index
    %128 = vector.load %arg7[%c2_83, %c0_84, %c0_85, %c0_86] : memref<3x3x64x8xbf16, #tpu.memory_space<vmem>>, vector<1x1x64x8xbf16>
    %129 = vector.shape_cast %128 : vector<1x1x64x8xbf16> to vector<64x8xbf16>
    %cst_87 = arith.constant dense<0.000000e+00> : vector<128x8xf32>
    %130 = tpu.matmul %127, %129, %cst_87 {dimension_numbers = #tpu.dot_dimension_numbers<[1], [0], [0], [1], [0, 0, 1, 1], [], []>} : vector<128x64xbf16>, vector<64x8xbf16>, vector<128x8xf32> -> vector<128x8xf32>
    %131 = arith.addf %125, %130 : vector<128x8xf32>
    %132 = vector.extract_strided_slice %88 {offsets = [2, 1, 0], sizes = [8, 16, 64], strides = [1, 1, 1]} : vector<10x18x64xbf16> to vector<8x16x64xbf16>
    %133 = vector.shape_cast %132 : vector<8x16x64xbf16> to vector<128x64xbf16>
    %c2_88 = arith.constant 2 : index
    %c1_89 = arith.constant 1 : index
    %c0_90 = arith.constant 0 : index
    %c0_91 = arith.constant 0 : index
    %134 = vector.load %arg7[%c2_88, %c1_89, %c0_90, %c0_91] : memref<3x3x64x8xbf16, #tpu.memory_space<vmem>>, vector<1x1x64x8xbf16>
    %135 = vector.shape_cast %134 : vector<1x1x64x8xbf16> to vector<64x8xbf16>
    %cst_92 = arith.constant dense<0.000000e+00> : vector<128x8xf32>
    %136 = tpu.matmul %133, %135, %cst_92 {dimension_numbers = #tpu.dot_dimension_numbers<[1], [0], [0], [1], [0, 0, 1, 1], [], []>} : vector<128x64xbf16>, vector<64x8xbf16>, vector<128x8xf32> -> vector<128x8xf32>
    %137 = arith.addf %131, %136 : vector<128x8xf32>
    %138 = vector.extract_strided_slice %88 {offsets = [2, 2, 0], sizes = [8, 16, 64], strides = [1, 1, 1]} : vector<10x18x64xbf16> to vector<8x16x64xbf16>
    %139 = vector.shape_cast %138 : vector<8x16x64xbf16> to vector<128x64xbf16>
    %c2_93 = arith.constant 2 : index
    %c2_94 = arith.constant 2 : index
    %c0_95 = arith.constant 0 : index
    %c0_96 = arith.constant 0 : index
    %140 = vector.load %arg7[%c2_93, %c2_94, %c0_95, %c0_96] : memref<3x3x64x8xbf16, #tpu.memory_space<vmem>>, vector<1x1x64x8xbf16>
    %141 = vector.shape_cast %140 : vector<1x1x64x8xbf16> to vector<64x8xbf16>
    %cst_97 = arith.constant dense<0.000000e+00> : vector<128x8xf32>
    %142 = tpu.matmul %139, %141, %cst_97 {dimension_numbers = #tpu.dot_dimension_numbers<[1], [0], [0], [1], [0, 0, 1, 1], [], []>} : vector<128x64xbf16>, vector<64x8xbf16>, vector<128x8xf32> -> vector<128x8xf32>
    %143 = arith.addf %137, %142 : vector<128x8xf32>
    %c0_98 = arith.constant 0 : index
    %c0_99 = arith.constant 0 : index
    %144 = vector.load %arg8[%c0_98, %c0_99] : memref<1x8xf32, #tpu.memory_space<vmem>>, vector<1x8xf32>
    %145 = vector.broadcast %144 : vector<1x8xf32> to vector<128x8xf32>
    %146 = arith.addf %143, %145 : vector<128x8xf32>
    %147 = vector.shape_cast %146 : vector<128x8xf32> to vector<8x16x8xf32>
    %148 = vector.extract_strided_slice %147 {offsets = [0, 0, 0], sizes = [8, 16, 4], strides = [1, 1, 1]} : vector<8x16x8xf32> to vector<8x16x4xf32>
    %149 = vector.extract_strided_slice %147 {offsets = [0, 0, 4], sizes = [8, 16, 4], strides = [1, 1, 1]} : vector<8x16x8xf32> to vector<8x16x4xf32>
    %c0_100 = arith.constant 0 : index
    %c0_101 = arith.constant 0 : index
    %c0_102 = arith.constant 0 : index
    %150 = vector.load %arg2[%c0_100, %c0_101, %c0_102] : memref<1x2x4xf32, #tpu.memory_space<vmem>>, vector<1x1x4xf32>
    %151 = vector.shape_cast %150 : vector<1x1x4xf32> to vector<1x4xf32>
    %152 = vector.shape_cast %151 : vector<1x4xf32> to vector<1x1x4xf32>
    %c0_103 = arith.constant 0 : index
    %c1_104 = arith.constant 1 : index
    %c0_105 = arith.constant 0 : index
    %153 = vector.load %arg2[%c0_103, %c1_104, %c0_105] : memref<1x2x4xf32, #tpu.memory_space<vmem>>, vector<1x1x4xf32>
    %154 = vector.shape_cast %153 : vector<1x1x4xf32> to vector<1x4xf32>
    %155 = vector.shape_cast %154 : vector<1x4xf32> to vector<1x1x4xf32>
    %c0_106 = arith.constant 0 : index
    %c0_107 = arith.constant 0 : index
    %c0_108 = arith.constant 0 : index
    %c0_109 = arith.constant 0 : index
    %156 = vector.load %arg3[%c0_106, %c0_107, %c0_108, %c0_109] : memref<1x8x16x4xf32, #tpu.memory_space<vmem>>, vector<1x8x16x4xf32>
    %157 = vector.shape_cast %156 : vector<1x8x16x4xf32> to vector<8x16x4xf32>
    %158 = vector.broadcast %152 : vector<1x1x4xf32> to vector<8x16x4xf32>
    %159 = arith.subf %157, %158 : vector<8x16x4xf32>
    %160 = vector.broadcast %155 : vector<1x1x4xf32> to vector<8x16x4xf32>
    %161 = arith.mulf %159, %160 : vector<8x16x4xf32>
    %cst_110 = arith.constant 1.000000e+00 : f32
    %162 = vector.broadcast %cst_110 : f32 to vector<8x16x4xf32>
    %163 = arith.addf %162, %148 : vector<8x16x4xf32>
    %164 = arith.mulf %161, %163 : vector<8x16x4xf32>
    %165 = arith.addf %164, %149 : vector<8x16x4xf32>
    %c0_111 = arith.constant 0 : index
    %c0_112 = arith.constant 0 : index
    %c0_113 = arith.constant 0 : index
    %c0_114 = arith.constant 0 : index
    %166 = vector.load %arg9[%c0_111, %c0_112, %c0_113, %c0_114] : memref<1x8x16x4xf32, #tpu.memory_space<vmem>>, vector<1x8x16x4xf32>
    %167 = vector.shape_cast %166 : vector<1x8x16x4xf32> to vector<8x16x4xf32>
    %168 = vector.shape_cast %165 : vector<8x16x4xf32> to vector<1x8x16x4xf32>
    tpu.vector_store %arg9[%c0_111, %c0_112, %c0_113, %c0_114], %168 {strides = array<i32>} : memref<1x8x16x4xf32, #tpu.memory_space<vmem>>, vector<1x8x16x4xf32>,
    return
  }
  func.func @transform_0(%arg0: i32, %arg1: i32) -> (i32, i32, i32) {
    %c0_i32 = arith.constant 0 : i32
    %c0_i32_0 = arith.constant 0 : i32
    %c0_i32_1 = arith.constant 0 : i32
    return %arg0, %c0_i32, %c0_i32_0 : i32, i32, i32
  }
  func.func @transform_1(%arg0: i32, %arg1: i32) -> (i32, i32, i32, i32) {
    %c0_i32 = arith.constant 0 : i32
    %c0_i32_0 = arith.constant 0 : i32
    %c0_i32_1 = arith.constant 0 : i32
    return %arg0, %arg1, %c0_i32, %c0_i32_0 : i32, i32, i32, i32
  }
  func.func @transform_2(%arg0: i32, %arg1: i32) -> (i32, i32, i32, i32) {
    %c0_i32 = arith.constant 0 : i32
    %c0_i32_0 = arith.constant 0 : i32
    %c0_i32_1 = arith.constant 0 : i32
    %c0_i32_2 = arith.constant 0 : i32
    return %arg0, %c0_i32, %c0_i32_0, %c0_i32_1 : i32, i32, i32, i32
  }
  func.func @transform_3(%arg0: i32, %arg1: i32) -> (i32, i32, i32, i32) {
    %c0_i32 = arith.constant 0 : i32
    %c0_i32_0 = arith.constant 0 : i32
    %c0_i32_1 = arith.constant 0 : i32
    %c0_i32_2 = arith.constant 0 : i32
    %c0_i32_3 = arith.constant 0 : i32
    return %c0_i32, %c0_i32_0, %c0_i32_1, %c0_i32_2 : i32, i32, i32, i32
  }
  func.func @transform_4(%arg0: i32, %arg1: i32) -> (i32, i32) {
    %c0_i32 = arith.constant 0 : i32
    %c0_i32_0 = arith.constant 0 : i32
    %c0_i32_1 = arith.constant 0 : i32
    return %c0_i32, %c0_i32_0 : i32, i32
  }
  func.func @transform_5(%arg0: i32, %arg1: i32) -> (i32, i32, i32, i32) {
    %c0_i32 = arith.constant 0 : i32
    %c0_i32_0 = arith.constant 0 : i32
    %c0_i32_1 = arith.constant 0 : i32
    %c0_i32_2 = arith.constant 0 : i32
    %c0_i32_3 = arith.constant 0 : i32
    return %c0_i32, %c0_i32_0, %c0_i32_1, %c0_i32_2 : i32, i32, i32, i32
  }
  func.func @transform_6(%arg0: i32, %arg1: i32) -> (i32, i32) {
    %c0_i32 = arith.constant 0 : i32
    %c0_i32_0 = arith.constant 0 : i32
    %c0_i32_1 = arith.constant 0 : i32
    return %c0_i32, %c0_i32_0 : i32, i32
  }
  func.func @transform_7(%arg0: i32, %arg1: i32) -> (i32, i32, i32, i32) {
    %c0_i32 = arith.constant 0 : i32
    %c0_i32_0 = arith.constant 0 : i32
    %c0_i32_1 = arith.constant 0 : i32
    return %arg0, %arg1, %c0_i32, %c0_i32_0 : i32, i32, i32, i32
  }
}

</mosaic_0001>

<llo_original>
// kernel: spade_forward.2
$region0: #{spade_forward.2}
  #allocation0 [shape = 'u32[]', space=smem, size = 0x4, offset = 0x4, fixed_abs, tag = 'smem constant byte address 0x4 - core index']
  #allocation1 [shape = 'u32[72,128]{1,0:T(1,128)}', space=vmem, size = 0x9000, scoped, tag = 'internal scratch']
  #allocation2 [shape = 'f32[2,4]{1,0:T(2,128)}', space=vmem, size = 0x400, scoped, tag = 'scratch operand']
  %s0 = inlined_call_operand.vmem [shape: f32[2,16,16,4], index: 0, kind: input, shape index: {}]
  %s1 = inlined_call_operand.vmem [shape: f32[2,2,4], index: 1, kind: output, shape index: {}]
  %s2 = sld [smem:[#allocation0]]
  $region45: #{spade_forward.2} parent=0
    _
  %s4 = ssub.s32 1, %s2
  %s5 = scalar_select 0, %s4, %s2
  loop: start=0, step=1, limit=6
  $region2: #{spade_forward.2} parent=0 // loop_pre_header
    _
  $region3: #{spade_forward.2} parent=0 // loop_header
    %s7 = sphi 0, %s11
    %p8 = scmp.ge.s32.totalorder %s7, 6
    %s14 = sphi 0, %s26
    %s15 = sphi 0, %s22
    %s16 = sphi 0, %s14
    %s17 = sphi 0, %s15
    %s18 = sphi 0, %s16
    %s19 = sphi 0, %s17
    %s31 = sphi 0, %s33
    %s34 = sphi 0, %s31
    %s35 = sphi 0, %s34
    %s51 = sphi 0, %s35
    %s57 = sphi 0, %s59
    %s60 = sphi 0, %s57
    %s61 = sphi 0, %s60
    %s77 = sphi 0, %s61
  $region4: #{spade_forward.2} parent=0 // loop_header_branch
    %10 = sbr.rel (%p8) target = $region8
  $region5: #{spade_forward.2} parent=0 // loop_body
    %s12 = ssub.s32 %s7, 1
    %s13 = ssub.s32 %s7, 2
    %s20 = sadd.s32 1, %s15
    %p21 = scmp.ge.s32.totalorder %s20, 2
    %s22 = scalar_select %p21, 0, %s20
    %s23 = sadd.s32 1, %s14
    %s24 = scalar_select %p21, %s23, %s14
    %p25 = scmp.ge.s32.totalorder %s24, 2
    %s26 = scalar_select %p25, 0, %s24
    %s27 = ssub.s32 %s14, %s26
    %s28 = ssub.s32 %s15, %s22
    %s29 = sor.u32 %s27, %s28
    %p30 = scmp.eq.s32.totalorder %s29, 0
    %s32 = sadd.s32 %s31, 1
    %s33 = scalar_select %p30, %s31, %s32
    %p36 = pneg %p30
    %p37 = scmp.eq.s32.totalorder %s7, 3
    %p38 = por %p36, %p37
    %p39 = scmp.ne.s32.totalorder %s31, %s34
    %p40 = scmp.eq.s32.totalorder %s7, 0
    %p41 = por %p39, %p40
    %p42 = scmp.ne.s32.totalorder %s31, %s34
    %p43 = scmp.eq.s32.totalorder %s12, 3
    %p44 = por %p42, %p43
    %p45 = scmp.ne.s32.totalorder %s34, %s35
    %p46 = scmp.eq.s32.totalorder %s12, 0
    %p47 = por %p45, %p46
    %p48 = scmp.ne.s32.totalorder %s34, %s35
    %p49 = scmp.eq.s32.totalorder %s13, 3
    %p50 = por %p48, %p49
    %p52 = scmp.ne.s32.totalorder %s35, %s51
    %p53 = scmp.eq.s32.totalorder %s13, 0
    %p54 = por %p52, %p53
    %s55 = ssub.s32 %s14, %s26
    %p56 = scmp.eq.s32.totalorder %s55, 0
    %s58 = sadd.s32 %s57, 1
    %s59 = scalar_select %p56, %s57, %s58
    %p62 = pneg %p56
    %p63 = scmp.eq.s32.totalorder %s7, 3
    %p64 = por %p62, %p63
    %p65 = scmp.ne.s32.totalorder %s57, %s60
    %p66 = scmp.eq.s32.totalorder %s7, 0
    %p67 = por %p65, %p66
    %p68 = scmp.ne.s32.totalorder %s57, %s60
    %p69 = scmp.eq.s32.totalorder %s12, 3
    %p70 = por %p68, %p69
    %p71 = scmp.ne.s32.totalorder %s60, %s61
    %p72 = scmp.eq.s32.totalorder %s12, 0
    %p73 = por %p71, %p72
    %p74 = scmp.ne.s32.totalorder %s60, %s61
    %p75 = scmp.eq.s32.totalorder %s13, 3
    %p76 = por %p74, %p75
    %p78 = scmp.ne.s32.totalorder %s61, %s77
    %p79 = scmp.eq.s32.totalorder %s13, 0
    %p80 = por %p78, %p79
    %p81 = scmp.le.s32.totalorder 1, %s7
    %p82 = scmp.lt.s32.totalorder %s7, 5
    %p83 = pnand %p81, %p82
    %p84 = pneg %p83
    // Predicated region
    $region9: #{spade_forward.2} parent=5 // pred_check
      _
    $region10: #{spade_forward.2} parent=5 // pred_check_branch
      %86 = sbr.rel (%p83) target = $region12
    $region11: #{spade_forward.2} parent=5 // pred_region
      %s87 = ssub.s32 %s7, 1
    $region12: #{spade_forward.2} parent=5 // pred_fallthru
      _
    %p88 = scmp.lt.s32.totalorder %s7, 4
    // Predicated region
    $region13: #{spade_forward.2} parent=5 // pred_check
      %p89 = pneg %p88
    $region14: #{spade_forward.2} parent=5 // pred_check_branch
      %91 = sbr.rel (%p89) target = $region16
    $region15: #{spade_forward.2} parent=5 // pred_region
      // Predicated region
      $region17: #{spade_forward.2} parent=15 // pred_check
        %p92 = pneg %p41
      $region18: #{spade_forward.2} parent=15 // pred_check_branch
        %94 = sbr.rel (%p92) target = $region20
      $region19: #{spade_forward.2} parent=15 // pred_region
        %s95 = smul.u32 8, %s15
        %p96 = scmp.lt.s32.totalorder %s14, 1
        %s97 = scalar_select %p96, %s14, 1
        %p98 = scmp.lt.s32.totalorder %s95, 15
        %s99 = scalar_select %p98, %s95, 15
        %s100 = smul.addr %s99, 2
        %s101 = smul.addr %s97, 32
        %s102 = sadd.s32 %s100, %s101
        %s103 = smul.addr %s102, 8
        %s104 = scalar_lea.vmem %s0, %s103
        %s105 = smul.u32 8, %s15
      $region20: #{spade_forward.2} parent=15 // pred_fallthru
        _
    $region16: #{spade_forward.2} parent=5 // pred_fallthru
      _
    %p106 = scmp.le.s32.totalorder 1, %s7
    %p107 = scmp.lt.s32.totalorder %s7, 5
    %p108 = pnand %p106, %p107
    %p109 = pneg %p108
    // Predicated region
    $region21: #{spade_forward.2} parent=5 // pred_check
      _
    $region22: #{spade_forward.2} parent=5 // pred_check_branch
      %111 = sbr.rel (%p108) target = $region24
    $region23: #{spade_forward.2} parent=5 // pred_region
      %s112 = ssub.s32 %s7, 1
      %s113 = smul.u32 8, %s17
      %p114 = scmp.lt.s32.totalorder %s16, 1
      %s115 = scalar_select %p114, %s16, 1
      %p116 = scmp.lt.s32.totalorder %s113, 15
      %s117 = scalar_select %p116, %s113, 15
      %s118 = smul.addr %s117, 2
      %s119 = smul.addr %s115, 32
      %s120 = sadd.s32 %s118, %s119
      %s121 = smul.addr %s120, 8
      %s122 = scalar_lea.vmem %s0, %s121
      %p123 = pneg %p47
      %p124 = pneg %p44
      %p125 = pneg %p73
      %p126 = pneg %p70
      %p127 = scmp.lt.s32.totalorder %s16, 1
      %s128 = scalar_select %p127, %s16, 1
      %s129 = smul.addr %s128, 2
      %s130 = scalar_lea.vmem %s1, %s129
      %s131 = smul.u32 8, %s17
      %p132 = scmp.lt.s32.totalorder %s16, 1
      %s133 = scalar_select %p132, %s16, 1
      %p134 = scmp.lt.s32.totalorder %s131, 15
      %s135 = scalar_select %p134, %s131, 15
      %s136 = smul.addr %s135, 2
      %s137 = smul.addr %s133, 32
      %s138 = sadd.s32 %s136, %s137
      %s139 = smul.addr %s138, 8
      %s140 = scalar_lea.vmem %s0, %s139
      %s141 = smul.u32 8, %s17
      %p142 = scmp.lt.s32.totalorder %s16, 1
      %s143 = scalar_select %p142, %s16, 1
      %s144 = smul.addr %s143, 2
      %s145 = scalar_lea.vmem %s1, %s144
      %p146 = scmp.eq.s32.totalorder %s17, 0
      // Predicated region
      $region25: #{spade_forward.2} parent=23 // pred_check
        %p147 = pneg %p146
      $region26: #{spade_forward.2} parent=23 // pred_check_branch
        %149 = sbr.rel (%p147) target = $region28
      $region27: #{spade_forward.2} parent=23 // pred_region
        %vm150 = vcmask 25600
        %151 = vst.msk [vmem:[#allocation2] sm:$0x3] %vm150, 0.0
      $region28: #{spade_forward.2} parent=23 // pred_fallthru
        _
      %v152 = vld [vmem:[%s140] sm:$0xff]
      %v153 = vld [vmem:[%s140 + $0x8] sm:$0xff]
      %v154 = vld [vmem:[%s140 + $0x10] sm:$0xff]
      %v155 = vld [vmem:[%s140 + $0x18] sm:$0xff]
      %v156 = vld [vmem:[%s140 + $0x20] sm:$0xff]
      %v157 = vld [vmem:[%s140 + $0x28] sm:$0xff]
      %v158 = vld [vmem:[%s140 + $0x30] sm:$0xff]
      %v159 = vld [vmem:[%s140 + $0x38] sm:$0xff]
      %v160 = vld [vmem:[%s140 + $0x40] sm:$0xff]
      %v161 = vld [vmem:[%s140 + $0x48] sm:$0xff]
      %v162 = vld [vmem:[%s140 + $0x50] sm:$0xff]
      %v163 = vld [vmem:[%s140 + $0x58] sm:$0xff]
      %v164 = vld [vmem:[%s140 + $0x60] sm:$0xff]
      %v165 = vld [vmem:[%s140 + $0x68] sm:$0xff]
      %v166 = vld [vmem:[%s140 + $0x70] sm:$0xff]
      %v167 = vld [vmem:[%s140 + $0x78] sm:$0xff]
      %v168 = vld [vmem:[#allocation2] sm:$0x1]
      %vm169 = vcmask 31744
      %v170 = vsel %vm169, %v152, 0.0
      %v171 = vsel %vm169, %v153, 0.0
      %v172 = vadd.f32 %v170, %v171
      %v173 = vsel %vm169, %v154, 0.0
      %v174 = vadd.f32 %v172, %v173
      %v175 = vsel %vm169, %v155, 0.0
      %v176 = vadd.f32 %v174, %v175
      %v177 = vsel %vm169, %v156, 0.0
      %v178 = vadd.f32 %v176, %v177
      %v179 = vsel %vm169, %v157, 0.0
      %v180 = vadd.f32 %v178, %v179
      %v181 = vsel %vm169, %v158, 0.0
      %v182 = vadd.f32 %v180, %v181
      %v183 = vsel %vm169, %v159, 0.0
      %v184 = vadd.f32 %v182, %v183
      %v185 = vsel %vm169, %v160, 0.0
      %v186 = vadd.f32 %v184, %v185
      %v187 = vsel %vm169, %v161, 0.0
      %v188 = vadd.f32 %v186, %v187
      %v189 = vsel %vm169, %v162, 0.0
      %v190 = vadd.f32 %v188, %v189
      %v191 = vsel %vm169, %v163, 0.0
      %v192 = vadd.f32 %v190, %v191
      %v193 = vsel %vm169, %v164, 0.0
      %v194 = vadd.f32 %v192, %v193
      %v195 = vsel %vm169, %v165, 0.0
      %v196 = vadd.f32 %v194, %v195
      %v197 = vsel %vm169, %v166, 0.0
      %v198 = vadd.f32 %v196, %v197
      %v199 = vsel %vm169, %v167, 0.0
      %v200 = vadd.f32 %v198, %v199
      %v201 = vrot.slane %v200, 4
      %v202 = vadd.f32 %v200, %v201
      %v203 = vrot.slane %v202, 2
      %v204 = vadd.f32 %v202, %v203
      %v205 = vrot.slane %v204, 1
      %v206 = vadd.f32 %v204, %v205
      %v207 = vadd.f32 %v168, %v206
      %vm208 = vcmask 24576
      %209 = vst.msk [vmem:[#allocation2] sm:$0x1] %vm208, %v207
      %v210 = vld [vmem:[#allocation2 + $0x1] sm:$0x1]
      %v211 = vmul.f32 %v152, %v152
      %v212 = vmul.f32 %v153, %v153
      %v213 = vmul.f32 %v154, %v154
      %v214 = vmul.f32 %v155, %v155
      %v215 = vmul.f32 %v156, %v156
      %v216 = vmul.f32 %v157, %v157
      %v217 = vmul.f32 %v158, %v158
      %v218 = vmul.f32 %v159, %v159
      %v219 = vmul.f32 %v160, %v160
      %v220 = vmul.f32 %v161, %v161
      %v221 = vmul.f32 %v162, %v162
      %v222 = vmul.f32 %v163, %v163
      %v223 = vmul.f32 %v164, %v164
      %v224 = vmul.f32 %v165, %v165
      %v225 = vmul.f32 %v166, %v166
      %v226 = vmul.f32 %v167, %v167
      %v227 = vsel %vm169, %v211, 0.0
      %v228 = vsel %vm169, %v212, 0.0
      %v229 = vadd.f32 %v227, %v228
      %v230 = vsel %vm169, %v213, 0.0
      %v231 = vadd.f32 %v229, %v230
      %v232 = vsel %vm169, %v214, 0.0
      %v233 = vadd.f32 %v231, %v232
      %v234 = vsel %vm169, %v215, 0.0
      %v235 = vadd.f32 %v233, %v234
      %v236 = vsel %vm169, %v216, 0.0
      %v237 = vadd.f32 %v235, %v236
      %v238 = vsel %vm169, %v217, 0.0
      %v239 = vadd.f32 %v237, %v238
      %v240 = vsel %vm169, %v218, 0.0
      %v241 = vadd.f32 %v239, %v240
      %v242 = vsel %vm169, %v219, 0.0
      %v243 = vadd.f32 %v241, %v242
      %v244 = vsel %vm169, %v220, 0.0
      %v245 = vadd.f32 %v243, %v244
      %v246 = vsel %vm169, %v221, 0.0
      %v247 = vadd.f32 %v245, %v246
      %v248 = vsel %vm169, %v222, 0.0
      %v249 = vadd.f32 %v247, %v248
      %v250 = vsel %vm169, %v223, 0.0
      %v251 = vadd.f32 %v249, %v250
      %v252 = vsel %vm169, %v224, 0.0
      %v253 = vadd.f32 %v251, %v252
      %v254 = vsel %vm169, %v225, 0.0
      %v255 = vadd.f32 %v253, %v254
      %v256 = vsel %vm169, %v226, 0.0
      %v257 = vadd.f32 %v255, %v256
      %v258 = vrot.slane %v257, 4
      %v259 = vadd.f32 %v257, %v258
      %v260 = vrot.slane %v259, 2
      %v261 = vadd.f32 %v259, %v260
      %v262 = vrot.slane %v261, 1
      %v263 = vadd.f32 %v261, %v262
      %v264 = vadd.f32 %v210, %v263
      %265 = vst.msk [vmem:[#allocation2 + $0x1] sm:$0x1] %vm208, %v264
      %p266 = scmp.eq.s32.totalorder %s17, 1
      // Predicated region
      $region29: #{spade_forward.2} parent=23 // pred_check
        %p267 = pneg %p266
      $region30: #{spade_forward.2} parent=23 // pred_check_branch
        %269 = sbr.rel (%p267) target = $region32
      $region31: #{spade_forward.2} parent=23 // pred_region
        %v270 = vld [vmem:[#allocation2] sm:$0x1]
        %v271 = vmul.f32 %v270, 0.00390625
        %v272 = vld [vmem:[#allocation2 + $0x1] sm:$0x1]
        %v273 = vmul.f32 %v272, 0.00390625
        %v274 = vmul.f32 %v271, %v271
        %v275 = vsub.f32 %v273, %v274
        %276 = vst.msk [vmem:[%s145] sm:$0x1] %vm208, %v271
        %v277 = vadd.f32 %v275, 1e-05
        %v278 = vrsqrt.pop %v277
        %v279 = vmul.f32 %v278, %v277
        %v280 = vmul.f32 %v279, %v278
        %v281 = vmul.f32 0.5, %v280
        %v282 = vsub.f32 1.5, %v281
        %v283 = vmul.f32 %v278, %v282
        %vm284 = vweird.f32 %v277
        %vm285 = vweird.f32 %v278
        %vm286 = vmor %vm284, %vm285
        %v287 = vsel %vm286, %v278, %v283
        %288 = vst.msk [vmem:[%s145 + $0x1] sm:$0x1] %vm208, %v287
      $region32: #{spade_forward.2} parent=23 // pred_fallthru
        _
      %p289 = scmp.lt.s32.totalorder %s16, 1
      %s290 = scalar_select %p289, %s16, 1
      %s291 = smul.addr %s290, 2
      %s292 = scalar_lea.vmem %s1, %s291
      // Predicated region
      $region33: #{spade_forward.2} parent=23 // pred_check
        %p293 = pneg %p70
      $region34: #{spade_forward.2} parent=23 // pred_check_branch
        %295 = sbr.rel (%p293) target = $region36
      $region35: #{spade_forward.2} parent=23 // pred_region
        _
      $region36: #{spade_forward.2} parent=23 // pred_fallthru
        _
    $region24: #{spade_forward.2} parent=5 // pred_fallthru
      _
    %p296 = scmp.le.s32.totalorder 2, %s7
    // Predicated region
    $region37: #{spade_forward.2} parent=5 // pred_check
      %p297 = pneg %p296
    $region38: #{spade_forward.2} parent=5 // pred_check_branch
      %299 = sbr.rel (%p297) target = $region40
    $region39: #{spade_forward.2} parent=5 // pred_region
      %s300 = ssub.s32 %s7, 2
      // Predicated region
      $region41: #{spade_forward.2} parent=39 // pred_check
        %p301 = pneg %p76
      $region42: #{spade_forward.2} parent=39 // pred_check_branch
        %303 = sbr.rel (%p301) target = $region44
      $region43: #{spade_forward.2} parent=39 // pred_region
        %p304 = scmp.lt.s32.totalorder %s18, 1
        %s305 = scalar_select %p304, %s18, 1
        %s306 = smul.addr %s305, 2
        %s307 = scalar_lea.vmem %s1, %s306
      $region44: #{spade_forward.2} parent=39 // pred_fallthru
        _
    $region40: #{spade_forward.2} parent=5 // pred_fallthru
      _
  $region6: #{spade_forward.2} parent=0 // loop_footer
    %s11 = sadd.s32 1, %s7
  $region7: #{spade_forward.2} parent=0 // loop_footer_branch
    %6 = sbr.rel target = $region3
  $region8: #{spade_forward.2} parent=0 // loop_exit
    _

// kernel: spade_forward.3
$region0: #{spade_forward.3}
  #allocation0 [shape = 'u32[]', space=smem, size = 0x4, offset = 0x4, fixed_abs, tag = 'smem constant byte address 0x4 - core index']
  #allocation1 [shape = 'u32[72,128]{1,0:T(1,128)}', space=vmem, size = 0x9000, scoped, tag = 'internal scratch']
  %s0 = inlined_call_operand.vmem [shape: f32[2,2,4], index: 0, kind: input, shape index: {}]
  %s1 = inlined_call_operand.vmem [shape: f32[2,16,16,4], index: 1, kind: input, shape index: {}]
  %s2 = inlined_call_operand.vmem [shape: bf16[2,20,20,3], index: 2, kind: input, shape index: {}]
  %s3 = inlined_call_operand.vmem [shape: bf16[3,3,3,64], index: 3, kind: input, shape index: {}]
  %s4 = inlined_call_operand.vmem [shape: f32[1,64], index: 4, kind: input, shape index: {}]
  %s5 = inlined_call_operand.vmem [shape: bf16[3,3,64,8], index: 5, kind: input, shape index: {}]
  %s6 = inlined_call_operand.vmem [shape: f32[1,8], index: 6, kind: input, shape index: {}]
  %s7 = inlined_call_operand.vmem [shape: f32[2,16,16,4], index: 7, kind: output, shape index: {}]
  %s8 = sld [smem:[#allocation0]]
  $region61: #{spade_forward.3} parent=0
    _
  %s10 = ssub.s32 1, %s8
  %s11 = scalar_select 0, %s10, %s8
  loop: start=0, step=1, limit=6
  $region2: #{spade_forward.3} parent=0 // loop_pre_header
    _
  $region3: #{spade_forward.3} parent=0 // loop_header
    %s13 = sphi 0, %s17
    %p14 = scmp.ge.s32.totalorder %s13, 6
    %s20 = sphi 0, %s32
    %s21 = sphi 0, %s28
    %s22 = sphi 0, %s20
    %s23 = sphi 0, %s21
    %s24 = sphi 0, %s22
    %s25 = sphi 0, %s23
    %s35 = sphi 0, %s37
    %s38 = sphi 0, %s35
    %s39 = sphi 0, %s38
    %s55 = sphi 0, %s39
    %s63 = sphi 0, %s65
    %s66 = sphi 0, %s63
    %s67 = sphi 0, %s66
    %s83 = sphi 0, %s67
    %s89 = sphi 0, %s91
    %s92 = sphi 0, %s89
    %s93 = sphi 0, %s92
    %s109 = sphi 0, %s93
    %s113 = sphi 0, %s113
    %s115 = sphi 0, %s113
    %s116 = sphi 0, %s115
    %s130 = sphi 0, %s116
    %s134 = sphi 0, %s134
    %s136 = sphi 0, %s134
    %s137 = sphi 0, %s136
    %s151 = sphi 0, %s137
    %s155 = sphi 0, %s155
    %s157 = sphi 0, %s155
    %s158 = sphi 0, %s157
    %s172 = sphi 0, %s158
    %s176 = sphi 0, %s176
    %s178 = sphi 0, %s176
    %s179 = sphi 0, %s178
    %s193 = sphi 0, %s179
    %s201 = sphi 0, %s203
    %s204 = sphi 0, %s201
    %s205 = sphi 0, %s204
    %s221 = sphi 0, %s205
  $region4: #{spade_forward.3} parent=0 // loop_header_branch
    %16 = sbr.rel (%p14) target = $region8
  $region5: #{spade_forward.3} parent=0 // loop_body
    %s18 = ssub.s32 %s13, 1
    %s19 = ssub.s32 %s13, 2
    %s26 = sadd.s32 1, %s21
    %p27 = scmp.ge.s32.totalorder %s26, 2
    %s28 = scalar_select %p27, 0, %s26
    %s29 = sadd.s32 1, %s20
    %s30 = scalar_select %p27, %s29, %s20
    %p31 = scmp.ge.s32.totalorder %s30, 2
    %s32 = scalar_select %p31, 0, %s30
    %s33 = ssub.s32 %s20, %s32
    %p34 = scmp.eq.s32.totalorder %s33, 0
    %s36 = sadd.s32 %s35, 1
    %s37 = scalar_select %p34, %s35, %s36
    %p40 = pneg %p34
    %p41 = scmp.eq.s32.totalorder %s13, 3
    %p42 = por %p40, %p41
    %p43 = scmp.ne.s32.totalorder %s35, %s38
    %p44 = scmp.eq.s32.totalorder %s13, 0
    %p45 = por %p43, %p44
    %p46 = scmp.ne.s32.totalorder %s35, %s38
    %p47 = scmp.eq.s32.totalorder %s18, 3
    %p48 = por %p46, %p47
    %p49 = scmp.ne.s32.totalorder %s38, %s39
    %p50 = scmp.eq.s32.totalorder %s18, 0
    %p51 = por %p49, %p50
    %p52 = scmp.ne.s32.totalorder %s38, %s39
    %p53 = scmp.eq.s32.totalorder %s19, 3
    %p54 = por %p52, %p53
    %p56 = scmp.ne.s32.totalorder %s39, %s55
    %p57 = scmp.eq.s32.totalorder %s19, 0
    %p58 = por %p56, %p57
    %s59 = ssub.s32 %s20, %s32
    %s60 = ssub.s32 %s21, %s28
    %s61 = sor.u32 %s59, %s60
    %p62 = scmp.eq.s32.totalorder %s61, 0
    %s64 = sadd.s32 %s63, 1
    %s65 = scalar_select %p62, %s63, %s64
    %p68 = pneg %p62
    %p69 = scmp.eq.s32.totalorder %s13, 3
    %p70 = por %p68, %p69
    %p71 = scmp.ne.s32.totalorder %s63, %s66
    %p72 = scmp.eq.s32.totalorder %s13, 0
    %p73 = por %p71, %p72
    %p74 = scmp.ne.s32.totalorder %s63, %s66
    %p75 = scmp.eq.s32.totalorder %s18, 3
    %p76 = por %p74, %p75
    %p77 = scmp.ne.s32.totalorder %s66, %s67
    %p78 = scmp.eq.s32.totalorder %s18, 0
    %p79 = por %p77, %p78
    %p80 = scmp.ne.s32.totalorder %s66, %s67
    %p81 = scmp.eq.s32.totalorder %s19, 3
    %p82 = por %p80, %p81
    %p84 = scmp.ne.s32.totalorder %s67, %s83
    %p85 = scmp.eq.s32.totalorder %s19, 0
    %p86 = por %p84, %p85
    %s87 = ssub.s32 %s20, %s32
    %p88 = scmp.eq.s32.totalorder %s87, 0
    %s90 = sadd.s32 %s89, 1
    %s91 = scalar_select %p88, %s89, %s90
    %p94 = pneg %p88
    %p95 = scmp.eq.s32.totalorder %s13, 3
    %p96 = por %p94, %p95
    %p97 = scmp.ne.s32.totalorder %s89, %s92
    %p98 = scmp.eq.s32.totalorder %s13, 0
    %p99 = por %p97, %p98
    %p100 = scmp.ne.s32.totalorder %s89, %s92
    %p101 = scmp.eq.s32.totalorder %s18, 3
    %p102 = por %p100, %p101
    %p103 = scmp.ne.s32.totalorder %s92, %s93
    %p104 = scmp.eq.s32.totalorder %s18, 0
    %p105 = por %p103, %p104
    %p106 = scmp.ne.s32.totalorder %s92, %s93
    %p107 = scmp.eq.s32.totalorder %s19, 3
    %p108 = por %p106, %p107
    %p110 = scmp.ne.s32.totalorder %s93, %s109
    %p111 = scmp.eq.s32.totalorder %s19, 0
    %p112 = por %p110, %p111
    %s114 = sadd.s32 %s113, 1
    %p117 = scmp.eq.s32.totalorder %s13, 3
    %p118 = scmp.ne.s32.totalorder %s113, %s115
    %p119 = scmp.eq.s32.totalorder %s13, 0
    %p120 = por %p118, %p119
    %p121 = scmp.ne.s32.totalorder %s113, %s115
    %p122 = scmp.eq.s32.totalorder %s18, 3
    %p123 = por %p121, %p122
    %p124 = scmp.ne.s32.totalorder %s115, %s116
    %p125 = scmp.eq.s32.totalorder %s18, 0
    %p126 = por %p124, %p125
    %p127 = scmp.ne.s32.totalorder %s115, %s116
    %p128 = scmp.eq.s32.totalorder %s19, 3
    %p129 = por %p127, %p128
    %p131 = scmp.ne.s32.totalorder %s116, %s130
    %p132 = scmp.eq.s32.totalorder %s19, 0
    %p133 = por %p131, %p132
    %s135 = sadd.s32 %s134, 1
    %p138 = scmp.eq.s32.totalorder %s13, 3
    %p139 = scmp.ne.s32.totalorder %s134, %s136
    %p140 = scmp.eq.s32.totalorder %s13, 0
    %p141 = por %p139, %p140
    %p142 = scmp.ne.s32.totalorder %s134, %s136
    %p143 = scmp.eq.s32.totalorder %s18, 3
    %p144 = por %p142, %p143
    %p145 = scmp.ne.s32.totalorder %s136, %s137
    %p146 = scmp.eq.s32.totalorder %s18, 0
    %p147 = por %p145, %p146
    %p148 = scmp.ne.s32.totalorder %s136, %s137
    %p149 = scmp.eq.s32.totalorder %s19, 3
    %p150 = por %p148, %p149
    %p152 = scmp.ne.s32.totalorder %s137, %s151
    %p153 = scmp.eq.s32.totalorder %s19, 0
    %p154 = por %p152, %p153
    %s156 = sadd.s32 %s155, 1
    %p159 = scmp.eq.s32.totalorder %s13, 3
    %p160 = scmp.ne.s32.totalorder %s155, %s157
    %p161 = scmp.eq.s32.totalorder %s13, 0
    %p162 = por %p160, %p161
    %p163 = scmp.ne.s32.totalorder %s155, %s157
    %p164 = scmp.eq.s32.totalorder %s18, 3
    %p165 = por %p163, %p164
    %p166 = scmp.ne.s32.totalorder %s157, %s158
    %p167 = scmp.eq.s32.totalorder %s18, 0
    %p168 = por %p166, %p167
    %p169 = scmp.ne.s32.totalorder %s157, %s158
    %p170 = scmp.eq.s32.totalorder %s19, 3
    %p171 = por %p169, %p170
    %p173 = scmp.ne.s32.totalorder %s158, %s172
    %p174 = scmp.eq.s32.totalorder %s19, 0
    %p175 = por %p173, %p174
    %s177 = sadd.s32 %s176, 1
    %p180 = scmp.eq.s32.totalorder %s13, 3
    %p181 = scmp.ne.s32.totalorder %s176, %s178
    %p182 = scmp.eq.s32.totalorder %s13, 0
    %p183 = por %p181, %p182
    %p184 = scmp.ne.s32.totalorder %s176, %s178
    %p185 = scmp.eq.s32.totalorder %s18, 3
    %p186 = por %p184, %p185
    %p187 = scmp.ne.s32.totalorder %s178, %s179
    %p188 = scmp.eq.s32.totalorder %s18, 0
    %p189 = por %p187, %p188
    %p190 = scmp.ne.s32.totalorder %s178, %s179
    %p191 = scmp.eq.s32.totalorder %s19, 3
    %p192 = por %p190, %p191
    %p194 = scmp.ne.s32.totalorder %s179, %s193
    %p195 = scmp.eq.s32.totalorder %s19, 0
    %p196 = por %p194, %p195
    %s197 = ssub.s32 %s20, %s32
    %s198 = ssub.s32 %s21, %s28
    %s199 = sor.u32 %s197, %s198
    %p200 = scmp.eq.s32.totalorder %s199, 0
    %s202 = sadd.s32 %s201, 1
    %s203 = scalar_select %p200, %s201, %s202
    %p206 = pneg %p200
    %p207 = scmp.eq.s32.totalorder %s13, 3
    %p208 = por %p206, %p207
    %p209 = scmp.ne.s32.totalorder %s201, %s204
    %p210 = scmp.eq.s32.totalorder %s13, 0
    %p211 = por %p209, %p210
    %p212 = scmp.ne.s32.totalorder %s201, %s204
    %p213 = scmp.eq.s32.totalorder %s18, 3
    %p214 = por %p212, %p213
    %p215 = scmp.ne.s32.totalorder %s204, %s205
    %p216 = scmp.eq.s32.totalorder %s18, 0
    %p217 = por %p215, %p216
    %p218 = scmp.ne.s32.totalorder %s204, %s205
    %p219 = scmp.eq.s32.totalorder %s19, 3
    %p220 = por %p218, %p219
    %p222 = scmp.ne.s32.totalorder %s205, %s221
    %p223 = scmp.eq.s32.totalorder %s19, 0
    %p224 = por %p222, %p223
    %p225 = scmp.le.s32.totalorder 1, %s13
    %p226 = scmp.lt.s32.totalorder %s13, 5
    %p227 = pnand %p225, %p226
    %p228 = pneg %p227
    // Predicated region
    $region9: #{spade_forward.3} parent=5 // pred_check
      _
    $region10: #{spade_forward.3} parent=5 // pred_check_branch
      %230 = sbr.rel (%p227) target = $region12
    $region11: #{spade_forward.3} parent=5 // pred_region
      %s231 = ssub.s32 %s13, 1
      // Predicated region
      $region13: #{spade_forward.3} parent=11 // pred_check
        %p232 = pneg %p126
      $region14: #{spade_forward.3} parent=11 // pred_check_branch
        %234 = sbr.rel (%p232) target = $region16
      $region15: #{spade_forward.3} parent=11 // pred_region
        _
      $region16: #{spade_forward.3} parent=11 // pred_fallthru
        _
      // Predicated region
      $region17: #{spade_forward.3} parent=11 // pred_check
        %p235 = pneg %p147
      $region18: #{spade_forward.3} parent=11 // pred_check_branch
        %237 = sbr.rel (%p235) target = $region20
      $region19: #{spade_forward.3} parent=11 // pred_region
        _
      $region20: #{spade_forward.3} parent=11 // pred_fallthru
        _
      // Predicated region
      $region21: #{spade_forward.3} parent=11 // pred_check
        %p238 = pneg %p168
      $region22: #{spade_forward.3} parent=11 // pred_check_branch
        %240 = sbr.rel (%p238) target = $region24
      $region23: #{spade_forward.3} parent=11 // pred_region
        _
      $region24: #{spade_forward.3} parent=11 // pred_fallthru
        _
      // Predicated region
      $region25: #{spade_forward.3} parent=11 // pred_check
        %p241 = pneg %p189
      $region26: #{spade_forward.3} parent=11 // pred_check_branch
        %243 = sbr.rel (%p241) target = $region28
      $region27: #{spade_forward.3} parent=11 // pred_region
        _
      $region28: #{spade_forward.3} parent=11 // pred_fallthru
        _
    $region12: #{spade_forward.3} parent=5 // pred_fallthru
      _
    %p244 = scmp.lt.s32.totalorder %s13, 4
    // Predicated region
    $region29: #{spade_forward.3} parent=5 // pred_check
      %p245 = pneg %p244
    $region30: #{spade_forward.3} parent=5 // pred_check_branch
      %247 = sbr.rel (%p245) target = $region32
    $region31: #{spade_forward.3} parent=5 // pred_region
      // Predicated region
      $region33: #{spade_forward.3} parent=31 // pred_check
        %p248 = pneg %p45
      $region34: #{spade_forward.3} parent=31 // pred_check_branch
        %250 = sbr.rel (%p248) target = $region36
      $region35: #{spade_forward.3} parent=31 // pred_region
        %p251 = scmp.lt.s32.totalorder %s20, 1
        %s252 = scalar_select %p251, %s20, 1
        %s253 = smul.addr %s252, 2
        %s254 = scalar_lea.vmem %s0, %s253
      $region36: #{spade_forward.3} parent=31 // pred_fallthru
        _
      // Predicated region
      $region37: #{spade_forward.3} parent=31 // pred_check
        %p255 = pneg %p73
      $region38: #{spade_forward.3} parent=31 // pred_check_branch
        %257 = sbr.rel (%p255) target = $region40
      $region39: #{spade_forward.3} parent=31 // pred_region
        %s258 = smul.u32 8, %s21
        %p259 = scmp.lt.s32.totalorder %s20, 1
        %s260 = scalar_select %p259, %s20, 1
        %p261 = scmp.lt.s32.totalorder %s258, 15
        %s262 = scalar_select %p261, %s258, 15
        %s263 = smul.addr %s262, 2
        %s264 = smul.addr %s260, 32
        %s265 = sadd.s32 %s263, %s264
        %s266 = smul.addr %s265, 8
        %s267 = scalar_lea.vmem %s1, %s266
        %s268 = smul.u32 8, %s21
      $region40: #{spade_forward.3} parent=31 // pred_fallthru
        _
      // Predicated region
      $region41: #{spade_forward.3} parent=31 // pred_check
        %p269 = pneg %p99
      $region42: #{spade_forward.3} parent=31 // pred_check_branch
        %271 = sbr.rel (%p269) target = $region44
      $region43: #{spade_forward.3} parent=31 // pred_region
        %p272 = scmp.lt.s32.totalorder %s20, 1
        %s273 = scalar_select %p272, %s20, 1
        %s274 = smul.addr %s273, 60
        %s275 = smul.addr %s274, 4
        %s276 = scalar_lea.vmem %s2, %s275
      $region44: #{spade_forward.3} parent=31 // pred_fallthru
        _
    $region32: #{spade_forward.3} parent=5 // pred_fallthru
      _
    %p277 = scmp.le.s32.totalorder 1, %s13
    %p278 = scmp.lt.s32.totalorder %s13, 5
    %p279 = pnand %p277, %p278
    %p280 = pneg %p279
    // Predicated region
    $region45: #{spade_forward.3} parent=5 // pred_check
      _
    $region46: #{spade_forward.3} parent=5 // pred_check_branch
      %282 = sbr.rel (%p279) target = $region48
    $region47: #{spade_forward.3} parent=5 // pred_region
      %s283 = ssub.s32 %s13, 1
      %p284 = scmp.lt.s32.totalorder %s22, 1
      %s285 = scalar_select %p284, %s22, 1
      %s286 = smul.addr %s285, 2
      %s287 = scalar_lea.vmem %s0, %s286
      %p288 = pneg %p51
      %p289 = pneg %p48
      %s290 = smul.u32 8, %s23
      %p291 = scmp.lt.s32.totalorder %s22, 1
      %s292 = scalar_select %p291, %s22, 1
      %p293 = scmp.lt.s32.totalorder %s290, 15
      %s294 = scalar_select %p293, %s290, 15
      %s295 = smul.addr %s294, 2
      %s296 = smul.addr %s292, 32
      %s297 = sadd.s32 %s295, %s296
      %s298 = smul.addr %s297, 8
      %s299 = scalar_lea.vmem %s1, %s298
      %p300 = pneg %p79
      %p301 = pneg %p76
      %p302 = scmp.lt.s32.totalorder %s22, 1
      %s303 = scalar_select %p302, %s22, 1
      %s304 = smul.addr %s303, 60
      %s305 = smul.addr %s304, 4
      %s306 = scalar_lea.vmem %s2, %s305
      %p307 = pneg %p105
      %p308 = pneg %p102
      %p309 = pneg %p126
      %p310 = pneg %p123
      %p311 = pneg %p147
      %p312 = pneg %p144
      %p313 = pneg %p168
      %p314 = pneg %p165
      %p315 = pneg %p189
      %p316 = pneg %p186
      %p317 = pneg %p217
      %p318 = pneg %p214
      %s319 = smul.u32 8, %s23
      %p320 = scmp.lt.s32.totalorder %s22, 1
      %s321 = scalar_select %p320, %s22, 1
      %p322 = scmp.lt.s32.totalorder %s319, 15
      %s323 = scalar_select %p322, %s319, 15
      %s324 = smul.addr %s323, 2
      %s325 = smul.addr %s321, 32
      %s326 = sadd.s32 %s324, %s325
      %s327 = smul.addr %s326, 8
      %s328 = scalar_lea.vmem %s7, %s327
      %p329 = scmp.lt.s32.totalorder %s22, 1
      %s330 = scalar_select %p329, %s22, 1
      %s331 = smul.addr %s330, 2
      %s332 = scalar_lea.vmem %s0, %s331
      %s333 = smul.u32 8, %s23
      %p334 = scmp.lt.s32.totalorder %s22, 1
      %s335 = scalar_select %p334, %s22, 1
      %p336 = scmp.lt.s32.totalorder %s333, 15
      %s337 = scalar_select %p336, %s333, 15
      %s338 = smul.addr %s337, 2
      %s339 = smul.addr %s335, 32
      %s340 = sadd.s32 %s338, %s339
      %s341 = smul.addr %s340, 8
      %s342 = scalar_lea.vmem %s1, %s341
      %s343 = smul.u32 8, %s23
      %p344 = scmp.lt.s32.totalorder %s22, 1
      %s345 = scalar_select %p344, %s22, 1
      %s346 = smul.addr %s345, 60
      %s347 = smul.addr %s346, 4
      %s348 = scalar_lea.vmem %s2, %s347
      %s349 = smul.u32 8, %s23
      %p350 = scmp.lt.s32.totalorder %s22, 1
      %s351 = scalar_select %p350, %s22, 1
      %p352 = scmp.lt.s32.totalorder %s349, 15
      %s353 = scalar_select %p352, %s349, 15
      %s354 = smul.addr %s353, 2
      %s355 = smul.addr %s351, 32
      %s356 = sadd.s32 %s354, %s355
      %s357 = smul.addr %s356, 8
      %s358 = scalar_lea.vmem %s7, %s357
      %s359 = smul.u32 8, %s23
      %s361 = smul.u32 %s23, 8
      %s362 = smul.u32 %s361, 3
      %s363 = smul.addr %s362, 4
      %s364 = scalar_lea.vmem %s348, %s363
      %v365 = vld [vmem:[%s364] sm:$0xf]
      %v366 = vld [vmem:[%s364 + $0x4] sm:$0xf]
      %v367 = vld [vmem:[%s364 + $0x8] sm:$0x3]
      %v368 = vld [vmem:[%s364 + $0xc] sm:$0xf]
      %v369 = vld [vmem:[%s364 + $0x10] sm:$0xf]
      %v370 = vld [vmem:[%s364 + $0x14] sm:$0x3]
      %v371 = vld [vmem:[%s364 + $0x18] sm:$0xf]
      %v372 = vld [vmem:[%s364 + $0x1c] sm:$0xf]
      %v373 = vld [vmem:[%s364 + $0x20] sm:$0x3]
      %v374 = vld [vmem:[%s364 + $0x24] sm:$0xf]
      %v375 = vld [vmem:[%s364 + $0x28] sm:$0xf]
      %v376 = vld [vmem:[%s364 + $0x2c] sm:$0x3]
      %v377 = vld [vmem:[%s364 + $0x30] sm:$0xf]
      %v378 = vld [vmem:[%s364 + $0x34] sm:$0xf]
      %v379 = vld [vmem:[%s364 + $0x38] sm:$0x3]
      %v380 = vld [vmem:[%s364 + $0x3c] sm:$0xf]
      %v381 = vld [vmem:[%s364 + $0x40] sm:$0xf]
      %v382 = vld [vmem:[%s364 + $0x44] sm:$0x3]
      %v383 = vld [vmem:[%s364 + $0x48] sm:$0xf]
      %v384 = vld [vmem:[%s364 + $0x4c] sm:$0xf]
      %v385 = vld [vmem:[%s364 + $0x50] sm:$0x3]
      %v386 = vld [vmem:[%s364 + $0x54] sm:$0xf]
      %v387 = vld [vmem:[%s364 + $0x58] sm:$0xf]
      %v388 = vld [vmem:[%s364 + $0x5c] sm:$0x3]
      %v389 = vld [vmem:[%s364 + $0x60] sm:$0xf]
      %v390 = vld [vmem:[%s364 + $0x64] sm:$0xf]
      %v391 = vld [vmem:[%s364 + $0x68] sm:$0x3]
      %v392 = vld [vmem:[%s364 + $0x6c] sm:$0xf]
      %v393 = vld [vmem:[%s364 + $0x70] sm:$0xf]
      %v394 = vld [vmem:[%s364 + $0x74] sm:$0x3]
      %v395 = vld [vmem:[%s364 + $0x78] sm:$0xf]
      %v396 = vld [vmem:[%s364 + $0x7c] sm:$0xf]
      %v397 = vld [vmem:[%s364 + $0x80] sm:$0x3]
      %v398 = vld [vmem:[%s364 + $0x84] sm:$0xf]
      %v399 = vld [vmem:[%s364 + $0x88] sm:$0xf]
      %v400 = vld [vmem:[%s364 + $0x8c] sm:$0x3]
      %v431 = vrot.slane %v365, 3
      %v432 = vrot.slane %v366, 3
      %v433 = vrot.slane %v367, 3
      %v434 = vrot.slane %v368, 3
      %v435 = vrot.slane %v369, 3
      %v436 = vrot.slane %v370, 3
      %v437 = vrot.slane %v371, 3
      %v438 = vrot.slane %v372, 3
      %v439 = vrot.slane %v373, 3
      %v440 = vrot.slane %v374, 3
      %v441 = vrot.slane %v375, 3
      %v442 = vrot.slane %v376, 3
      %v443 = vrot.slane %v377, 3
      %v444 = vrot.slane %v378, 3
      %v445 = vrot.slane %v379, 3
      %v446 = vrot.slane %v380, 3
      %v447 = vrot.slane %v381, 3
      %v448 = vrot.slane %v382, 3
      %v449 = vrot.slane %v383, 3
      %v450 = vrot.slane %v384, 3
      %v451 = vrot.slane %v385, 3
      %v452 = vrot.slane %v386, 3
      %v453 = vrot.slane %v387, 3
      %v454 = vrot.slane %v388, 3
      %v455 = vrot.slane %v389, 3
      %v456 = vrot.slane %v390, 3
      %v457 = vrot.slane %v391, 3
      %v458 = vrot.slane %v392, 3
      %v459 = vrot.slane %v393, 3
      %v460 = vrot.slane %v394, 3
      %vm461 = vcmask 1040384
      %v464 = vsel %vm461, %v365, %v431
      %vm465 = vcmask 1041409
      %v466 = vsel %vm465, %v365, %v431
      %v468 = vrot.slane %v466, 1
      %vm469 = vcmask 1042434
      %v470 = vsel %vm469, %v365, %v431
      %v472 = vrot.slane %v470, 2
      %vm473 = vcmask 1043459
      %v474 = vsel %vm473, %v365, %v431
      %v476 = vrot.slane %v474, 3
      %v479 = vsel %vm461, %v366, %v432
      %v480 = vsel %vm465, %v366, %v432
      %v482 = vrot.slane %v480, 1
      %v483 = vsel %vm469, %v366, %v432
      %v485 = vrot.slane %v483, 2
      %v486 = vsel %vm473, %v366, %v432
      %v488 = vrot.slane %v486, 3
      %v491 = vsel %vm461, %v367, %v433
      %v494 = vsel %vm461, %v368, %v434
      %v495 = vsel %vm465, %v368, %v434
      %v497 = vrot.slane %v495, 1
      %v498 = vsel %vm469, %v368, %v434
      %v500 = vrot.slane %v498, 2
      %v501 = vsel %vm473, %v368, %v434
      %v503 = vrot.slane %v501, 3
      %v506 = vsel %vm461, %v369, %v435
      %v507 = vsel %vm465, %v369, %v435
      %v509 = vrot.slane %v507, 1
      %v510 = vsel %vm469, %v369, %v435
      %v512 = vrot.slane %v510, 2
      %v513 = vsel %vm473, %v369, %v435
      %v515 = vrot.slane %v513, 3
      %v518 = vsel %vm461, %v370, %v436
      %v521 = vsel %vm461, %v371, %v437
      %v522 = vsel %vm465, %v371, %v437
      %v524 = vrot.slane %v522, 1
      %v525 = vsel %vm469, %v371, %v437
      %v527 = vrot.slane %v525, 2
      %v528 = vsel %vm473, %v371, %v437
      %v530 = vrot.slane %v528, 3
      %v533 = vsel %vm461, %v372, %v438
      %v534 = vsel %vm465, %v372, %v438
      %v536 = vrot.slane %v534, 1
      %v537 = vsel %vm469, %v372, %v438
      %v539 = vrot.slane %v537, 2
      %v540 = vsel %vm473, %v372, %v438
      %v542 = vrot.slane %v540, 3
      %v545 = vsel %vm461, %v373, %v439
      %v548 = vsel %vm461, %v374, %v440
      %v549 = vsel %vm465, %v374, %v440
      %v551 = vrot.slane %v549, 1
      %v552 = vsel %vm469, %v374, %v440
      %v554 = vrot.slane %v552, 2
      %v555 = vsel %vm473, %v374, %v440
      %v557 = vrot.slane %v555, 3
      %v560 = vsel %vm461, %v375, %v441
      %v561 = vsel %vm465, %v375, %v441
      %v563 = vrot.slane %v561, 1
      %v564 = vsel %vm469, %v375, %v441
      %v566 = vrot.slane %v564, 2
      %v567 = vsel %vm473, %v375, %v441
      %v569 = vrot.slane %v567, 3
      %v572 = vsel %vm461, %v376, %v442
      %v575 = vsel %vm461, %v377, %v443
      %v576 = vsel %vm465, %v377, %v443
      %v578 = vrot.slane %v576, 1
      %v579 = vsel %vm469, %v377, %v443
      %v581 = vrot.slane %v579, 2
      %v582 = vsel %vm473, %v377, %v443
      %v584 = vrot.slane %v582, 3
      %v587 = vsel %vm461, %v378, %v444
      %v588 = vsel %vm465, %v378, %v444
      %v590 = vrot.slane %v588, 1
      %v591 = vsel %vm469, %v378, %v444
      %v593 = vrot.slane %v591, 2
      %v594 = vsel %vm473, %v378, %v444
      %v596 = vrot.slane %v594, 3
      %v599 = vsel %vm461, %v379, %v445
      %v602 = vsel %vm461, %v380, %v446
      %v603 = vsel %vm465, %v380, %v446
      %v605 = vrot.slane %v603, 1
      %v606 = vsel %vm469, %v380, %v446
      %v608 = vrot.slane %v606, 2
      %v609 = vsel %vm473, %v380, %v446
      %v611 = vrot.slane %v609, 3
      %v614 = vsel %vm461, %v381, %v447
      %v615 = vsel %vm465, %v381, %v447
      %v617 = vrot.slane %v615, 1
      %v618 = vsel %vm469, %v381, %v447
      %v620 = vrot.slane %v618, 2
      %v621 = vsel %vm473, %v381, %v447
      %v623 = vrot.slane %v621, 3
      %v626 = vsel %vm461, %v382, %v448
      %v629 = vsel %vm461, %v383, %v449
      %v630 = vsel %vm465, %v383, %v449
      %v632 = vrot.slane %v630, 1
      %v633 = vsel %vm469, %v383, %v449
      %v635 = vrot.slane %v633, 2
      %v636 = vsel %vm473, %v383, %v449
      %v638 = vrot.slane %v636, 3
      %v641 = vsel %vm461, %v384, %v450
      %v642 = vsel %vm465, %v384, %v450
      %v644 = vrot.slane %v642, 1
      %v645 = vsel %vm469, %v384, %v450
      %v647 = vrot.slane %v645, 2
      %v648 = vsel %vm473, %v384, %v450
      %v650 = vrot.slane %v648, 3
      %v653 = vsel %vm461, %v385, %v451
      %v656 = vsel %vm461, %v386, %v452
      %v657 = vsel %vm465, %v386, %v452
      %v659 = vrot.slane %v657, 1
      %v660 = vsel %vm469, %v386, %v452
      %v662 = vrot.slane %v660, 2
      %v663 = vsel %vm473, %v386, %v452
      %v665 = vrot.slane %v663, 3
      %v668 = vsel %vm461, %v387, %v453
      %v669 = vsel %vm465, %v387, %v453
      %v671 = vrot.slane %v669, 1
      %v672 = vsel %vm469, %v387, %v453
      %v674 = vrot.slane %v672, 2
      %v675 = vsel %vm473, %v387, %v453
      %v677 = vrot.slane %v675, 3
      %v680 = vsel %vm461, %v388, %v454
      %v683 = vsel %vm461, %v389, %v455
      %v684 = vsel %vm465, %v389, %v455
      %v686 = vrot.slane %v684, 1
      %v687 = vsel %vm469, %v389, %v455
      %v689 = vrot.slane %v687, 2
      %v690 = vsel %vm473, %v389, %v455
      %v692 = vrot.slane %v690, 3
      %v695 = vsel %vm461, %v390, %v456
      %v696 = vsel %vm465, %v390, %v456
      %v698 = vrot.slane %v696, 1
      %v699 = vsel %vm469, %v390, %v456
      %v701 = vrot.slane %v699, 2
      %v702 = vsel %vm473, %v390, %v456
      %v704 = vrot.slane %v702, 3
      %v707 = vsel %vm461, %v391, %v457
      %v710 = vsel %vm461, %v392, %v458
      %v711 = vsel %vm465, %v392, %v458
      %v713 = vrot.slane %v711, 1
      %v714 = vsel %vm469, %v392, %v458
      %v716 = vrot.slane %v714, 2
      %v717 = vsel %vm473, %v392, %v458
      %v719 = vrot.slane %v717, 3
      %v722 = vsel %vm461, %v393, %v459
      %v723 = vsel %vm465, %v393, %v459
      %v725 = vrot.slane %v723, 1
      %v726 = vsel %vm469, %v393, %v459
      %v728 = vrot.slane %v726, 2
      %v729 = vsel %vm473, %v393, %v459
      %v731 = vrot.slane %v729, 3
      %v734 = vsel %vm461, %v394, %v460
      %v735 = vld [vmem:[%s3] sm:$0x3]
      %v736 = vsel %vm465, %v367, %v433
      %v738 = vrot.slane %v736, 1
      %v739 = vsel %vm465, %v370, %v436
      %v741 = vrot.slane %v739, 1
      %v742 = vsel %vm465, %v373, %v439
      %v744 = vrot.slane %v742, 1
      %v745 = vsel %vm465, %v376, %v442
      %v747 = vrot.slane %v745, 1
      %v748 = vsel %vm465, %v379, %v445
      %v750 = vrot.slane %v748, 1
      %v751 = vsel %vm465, %v382, %v448
      %v753 = vrot.slane %v751, 1
      %v754 = vsel %vm465, %v385, %v451
      %v756 = vrot.slane %v754, 1
      %v757 = vsel %vm465, %v388, %v454
      %v759 = vrot.slane %v757, 1
      %v760 = vsel %vm465, %v391, %v457
      %v762 = vrot.slane %v760, 1
      %v763 = vsel %vm465, %v394, %v460
      %v765 = vrot.slane %v763, 1
      %vm766 = vsmask.f32 256
      %vm767 = vsmask.f32 1284
      %vm768 = vmor %vm766, %vm767
      %vm769 = vsmask.f32 2312
      %vm770 = vmor %vm768, %vm769
      %vm771 = vsmask.f32 3340
      %vm772 = vmor %vm770, %vm771
      %vm773 = vsmask.f32 4368
      %vm774 = vmor %vm772, %vm773
      %vm775 = vsmask.f32 5396
      %vm776 = vmor %vm774, %vm775
      %vm777 = vsmask.f32 6424
      %vm778 = vmor %vm776, %vm777
      %vm779 = vsmask.f32 7452
      %vm780 = vmor %vm778, %vm779
      %v781 = vshrl.u32 %v464, 16
      %v783 = vrot.slane %v781, 7
      %v784 = vrot.slane %v783, 1
      %v786 = vshll.u32 %v468, 16
      %v788 = vsel %vm780, %v784, %v786
      %v789 = vshrl.u32 %v468, 16
      %v791 = vrot.slane %v789, 7
      %v792 = vrot.slane %v791, 1
      %v794 = vshll.u32 %v472, 16
      %v796 = vsel %vm780, %v792, %v794
      %v797 = vshrl.u32 %v472, 16
      %v799 = vrot.slane %v797, 7
      %v800 = vrot.slane %v799, 1
      %v802 = vshll.u32 %v476, 16
      %v804 = vsel %vm780, %v800, %v802
      %v805 = vshrl.u32 %v476, 16
      %v807 = vrot.slane %v805, 7
      %v808 = vrot.slane %v807, 1
      %v809 = vshll.u32 %v479, 16
      %v811 = vsel %vm780, %v808, %v809
      %v812 = vshrl.u32 %v479, 16
      %v814 = vrot.slane %v812, 7
      %v815 = vrot.slane %v814, 1
      %v817 = vshll.u32 %v482, 16
      %v819 = vsel %vm780, %v815, %v817
      %v820 = vshrl.u32 %v482, 16
      %v822 = vrot.slane %v820, 7
      %v823 = vrot.slane %v822, 1
      %v825 = vshll.u32 %v485, 16
      %v827 = vsel %vm780, %v823, %v825
      %v828 = vshrl.u32 %v485, 16
      %v830 = vrot.slane %v828, 7
      %v831 = vrot.slane %v830, 1
      %v833 = vshll.u32 %v488, 16
      %v835 = vsel %vm780, %v831, %v833
      %v836 = vshrl.u32 %v488, 16
      %v838 = vrot.slane %v836, 7
      %v839 = vrot.slane %v838, 1
      %v840 = vshll.u32 %v491, 16
      %v842 = vsel %vm780, %v839, %v840
      %v843 = vshrl.u32 %v491, 16
      %v845 = vrot.slane %v843, 7
      %v846 = vrot.slane %v845, 1
      %v848 = vshll.u32 %v738, 16
      %v850 = vsel %vm780, %v846, %v848
      %v851 = vshrl.u32 %v494, 16
      %v853 = vrot.slane %v851, 7
      %v854 = vrot.slane %v853, 1
      %v856 = vshll.u32 %v497, 16
      %v858 = vsel %vm780, %v854, %v856
      %v859 = vshrl.u32 %v497, 16
      %v861 = vrot.slane %v859, 7
      %v862 = vrot.slane %v861, 1
      %v864 = vshll.u32 %v500, 16
      %v866 = vsel %vm780, %v862, %v864
      %v867 = vshrl.u32 %v500, 16
      %v869 = vrot.slane %v867, 7
      %v870 = vrot.slane %v869, 1
      %v872 = vshll.u32 %v503, 16
      %v874 = vsel %vm780, %v870, %v872
      %v875 = vshrl.u32 %v503, 16
      %v877 = vrot.slane %v875, 7
      %v878 = vrot.slane %v877, 1
      %v879 = vshll.u32 %v506, 16
      %v881 = vsel %vm780, %v878, %v879
      %v882 = vshrl.u32 %v506, 16
      %v884 = vrot.slane %v882, 7
      %v885 = vrot.slane %v884, 1
      %v887 = vshll.u32 %v509, 16
      %v889 = vsel %vm780, %v885, %v887
      %v890 = vshrl.u32 %v509, 16
      %v892 = vrot.slane %v890, 7
      %v893 = vrot.slane %v892, 1
      %v895 = vshll.u32 %v512, 16
      %v897 = vsel %vm780, %v893, %v895
      %v898 = vshrl.u32 %v512, 16
      %v900 = vrot.slane %v898, 7
      %v901 = vrot.slane %v900, 1
      %v903 = vshll.u32 %v515, 16
      %v905 = vsel %vm780, %v901, %v903
      %v906 = vshrl.u32 %v515, 16
      %v908 = vrot.slane %v906, 7
      %v909 = vrot.slane %v908, 1
      %v910 = vshll.u32 %v518, 16
      %v912 = vsel %vm780, %v909, %v910
      %v913 = vshrl.u32 %v518, 16
      %v915 = vrot.slane %v913, 7
      %v916 = vrot.slane %v915, 1
      %v918 = vshll.u32 %v741, 16
      %v920 = vsel %vm780, %v916, %v918
      %v921 = vshrl.u32 %v521, 16
      %v923 = vrot.slane %v921, 7
      %v924 = vrot.slane %v923, 1
      %v926 = vshll.u32 %v524, 16
      %v928 = vsel %vm780, %v924, %v926
      %v929 = vshrl.u32 %v524, 16
      %v931 = vrot.slane %v929, 7
      %v932 = vrot.slane %v931, 1
      %v934 = vshll.u32 %v527, 16
      %v936 = vsel %vm780, %v932, %v934
      %v937 = vshrl.u32 %v527, 16
      %v939 = vrot.slane %v937, 7
      %v940 = vrot.slane %v939, 1
      %v942 = vshll.u32 %v530, 16
      %v944 = vsel %vm780, %v940, %v942
      %v945 = vshrl.u32 %v530, 16
      %v947 = vrot.slane %v945, 7
      %v948 = vrot.slane %v947, 1
      %v949 = vshll.u32 %v533, 16
      %v951 = vsel %vm780, %v948, %v949
      %v952 = vshrl.u32 %v533, 16
      %v954 = vrot.slane %v952, 7
      %v955 = vrot.slane %v954, 1
      %v957 = vshll.u32 %v536, 16
      %v959 = vsel %vm780, %v955, %v957
      %v960 = vshrl.u32 %v536, 16
      %v962 = vrot.slane %v960, 7
      %v963 = vrot.slane %v962, 1
      %v965 = vshll.u32 %v539, 16
      %v967 = vsel %vm780, %v963, %v965
      %v968 = vshrl.u32 %v539, 16
      %v970 = vrot.slane %v968, 7
      %v971 = vrot.slane %v970, 1
      %v973 = vshll.u32 %v542, 16
      %v975 = vsel %vm780, %v971, %v973
      %v976 = vshrl.u32 %v542, 16
      %v978 = vrot.slane %v976, 7
      %v979 = vrot.slane %v978, 1
      %v980 = vshll.u32 %v545, 16
      %v982 = vsel %vm780, %v979, %v980
      %v983 = vshrl.u32 %v545, 16
      %v985 = vrot.slane %v983, 7
      %v986 = vrot.slane %v985, 1
      %v988 = vshll.u32 %v744, 16
      %v990 = vsel %vm780, %v986, %v988
      %v991 = vshrl.u32 %v548, 16
      %v993 = vrot.slane %v991, 7
      %v994 = vrot.slane %v993, 1
      %v996 = vshll.u32 %v551, 16
      %v998 = vsel %vm780, %v994, %v996
      %v999 = vshrl.u32 %v551, 16
      %v1001 = vrot.slane %v999, 7
      %v1002 = vrot.slane %v1001, 1
      %v1004 = vshll.u32 %v554, 16
      %v1006 = vsel %vm780, %v1002, %v1004
      %v1007 = vshrl.u32 %v554, 16
      %v1009 = vrot.slane %v1007, 7
      %v1010 = vrot.slane %v1009, 1
      %v1012 = vshll.u32 %v557, 16
      %v1014 = vsel %vm780, %v1010, %v1012
      %v1015 = vshrl.u32 %v557, 16
      %v1017 = vrot.slane %v1015, 7
      %v1018 = vrot.slane %v1017, 1
      %v1019 = vshll.u32 %v560, 16
      %v1021 = vsel %vm780, %v1018, %v1019
      %v1022 = vshrl.u32 %v560, 16
      %v1024 = vrot.slane %v1022, 7
      %v1025 = vrot.slane %v1024, 1
      %v1027 = vshll.u32 %v563, 16
      %v1029 = vsel %vm780, %v1025, %v1027
      %v1030 = vshrl.u32 %v563, 16
      %v1032 = vrot.slane %v1030, 7
      %v1033 = vrot.slane %v1032, 1
      %v1035 = vshll.u32 %v566, 16
      %v1037 = vsel %vm780, %v1033, %v1035
      %v1038 = vshrl.u32 %v566, 16
      %v1040 = vrot.slane %v1038, 7
      %v1041 = vrot.slane %v1040, 1
      %v1043 = vshll.u32 %v569, 16
      %v1045 = vsel %vm780, %v1041, %v1043
      %v1046 = vshrl.u32 %v569, 16
      %v1048 = vrot.slane %v1046, 7
      %v1049 = vrot.slane %v1048, 1
      %v1050 = vshll.u32 %v572, 16
      %v1052 = vsel %vm780, %v1049, %v1050
      %v1053 = vshrl.u32 %v572, 16
      %v1055 = vrot.slane %v1053, 7
      %v1056 = vrot.slane %v1055, 1
      %v1058 = vshll.u32 %v747, 16
      %v1060 = vsel %vm780, %v1056, %v1058
      %v1061 = vshrl.u32 %v575, 16
      %v1063 = vrot.slane %v1061, 7
      %v1064 = vrot.slane %v1063, 1
      %v1066 = vshll.u32 %v578, 16
      %v1068 = vsel %vm780, %v1064, %v1066
      %v1069 = vshrl.u32 %v578, 16
      %v1071 = vrot.slane %v1069, 7
      %v1072 = vrot.slane %v1071, 1
      %v1074 = vshll.u32 %v581, 16
      %v1076 = vsel %vm780, %v1072, %v1074
      %v1077 = vshrl.u32 %v581, 16
      %v1079 = vrot.slane %v1077, 7
      %v1080 = vrot.slane %v1079, 1
      %v1082 = vshll.u32 %v584, 16
      %v1084 = vsel %vm780, %v1080, %v1082
      %v1085 = vshrl.u32 %v584, 16
      %v1087 = vrot.slane %v1085, 7
      %v1088 = vrot.slane %v1087, 1
      %v1089 = vshll.u32 %v587, 16
      %v1091 = vsel %vm780, %v1088, %v1089
      %v1092 = vshrl.u32 %v587, 16
      %v1094 = vrot.slane %v1092, 7
      %v1095 = vrot.slane %v1094, 1
      %v1097 = vshll.u32 %v590, 16
      %v1099 = vsel %vm780, %v1095, %v1097
      %v1100 = vshrl.u32 %v590, 16
      %v1102 = vrot.slane %v1100, 7
      %v1103 = vrot.slane %v1102, 1
      %v1105 = vshll.u32 %v593, 16
      %v1107 = vsel %vm780, %v1103, %v1105
      %v1108 = vshrl.u32 %v593, 16
      %v1110 = vrot.slane %v1108, 7
      %v1111 = vrot.slane %v1110, 1
      %v1113 = vshll.u32 %v596, 16
      %v1115 = vsel %vm780, %v1111, %v1113
      %v1116 = vshrl.u32 %v596, 16
      %v1118 = vrot.slane %v1116, 7
      %v1119 = vrot.slane %v1118, 1
      %v1120 = vshll.u32 %v599, 16
      %v1122 = vsel %vm780, %v1119, %v1120
      %v1123 = vshrl.u32 %v599, 16
      %v1125 = vrot.slane %v1123, 7
      %v1126 = vrot.slane %v1125, 1
      %v1128 = vshll.u32 %v750, 16
      %v1130 = vsel %vm780, %v1126, %v1128
      %v1131 = vshrl.u32 %v602, 16
      %v1133 = vrot.slane %v1131, 7
      %v1134 = vrot.slane %v1133, 1
      %v1136 = vshll.u32 %v605, 16
      %v1138 = vsel %vm780, %v1134, %v1136
      %v1139 = vshrl.u32 %v605, 16
      %v1141 = vrot.slane %v1139, 7
      %v1142 = vrot.slane %v1141, 1
      %v1144 = vshll.u32 %v608, 16
      %v1146 = vsel %vm780, %v1142, %v1144
      %v1147 = vshrl.u32 %v608, 16
      %v1149 = vrot.slane %v1147, 7
      %v1150 = vrot.slane %v1149, 1
      %v1152 = vshll.u32 %v611, 16
      %v1154 = vsel %vm780, %v1150, %v1152
      %v1155 = vshrl.u32 %v611, 16
      %v1157 = vrot.slane %v1155, 7
      %v1158 = vrot.slane %v1157, 1
      %v1159 = vshll.u32 %v614, 16
      %v1161 = vsel %vm780, %v1158, %v1159
      %v1162 = vshrl.u32 %v614, 16
      %v1164 = vrot.slane %v1162, 7
      %v1165 = vrot.slane %v1164, 1
      %v1167 = vshll.u32 %v617, 16
      %v1169 = vsel %vm780, %v1165, %v1167
      %v1170 = vshrl.u32 %v617, 16
      %v1172 = vrot.slane %v1170, 7
      %v1173 = vrot.slane %v1172, 1
      %v1175 = vshll.u32 %v620, 16
      %v1177 = vsel %vm780, %v1173, %v1175
      %v1178 = vshrl.u32 %v620, 16
      %v1180 = vrot.slane %v1178, 7
      %v1181 = vrot.slane %v1180, 1
      %v1183 = vshll.u32 %v623, 16
      %v1185 = vsel %vm780, %v1181, %v1183
      %v1186 = vshrl.u32 %v623, 16
      %v1188 = vrot.slane %v1186, 7
      %v1189 = vrot.slane %v1188, 1
      %v1190 = vshll.u32 %v626, 16
      %v1192 = vsel %vm780, %v1189, %v1190
      %v1193 = vshrl.u32 %v626, 16
      %v1195 = vrot.slane %v1193, 7
      %v1196 = vrot.slane %v1195, 1
      %v1198 = vshll.u32 %v753, 16
      %v1200 = vsel %vm780, %v1196, %v1198
      %v1201 = vshrl.u32 %v629, 16
      %v1203 = vrot.slane %v1201, 7
      %v1204 = vrot.slane %v1203, 1
      %v1206 = vshll.u32 %v632, 16
      %v1208 = vsel %vm780, %v1204, %v1206
      %v1209 = vshrl.u32 %v632, 16
      %v1211 = vrot.slane %v1209, 7
      %v1212 = vrot.slane %v1211, 1
      %v1214 = vshll.u32 %v635, 16
      %v1216 = vsel %vm780, %v1212, %v1214
      %v1217 = vshrl.u32 %v635, 16
      %v1219 = vrot.slane %v1217, 7
      %v1220 = vrot.slane %v1219, 1
      %v1222 = vshll.u32 %v638, 16
      %v1224 = vsel %vm780, %v1220, %v1222
      %v1225 = vshrl.u32 %v638, 16
      %v1227 = vrot.slane %v1225, 7
      %v1228 = vrot.slane %v1227, 1
      %v1229 = vshll.u32 %v641, 16
      %v1231 = vsel %vm780, %v1228, %v1229
      %v1232 = vshrl.u32 %v641, 16
      %v1234 = vrot.slane %v1232, 7
      %v1235 = vrot.slane %v1234, 1
      %v1237 = vshll.u32 %v644, 16
      %v1239 = vsel %vm780, %v1235, %v1237
      %v1240 = vshrl.u32 %v644, 16
      %v1242 = vrot.slane %v1240, 7
      %v1243 = vrot.slane %v1242, 1
      %v1245 = vshll.u32 %v647, 16
      %v1247 = vsel %vm780, %v1243, %v1245
      %v1248 = vshrl.u32 %v647, 16
      %v1250 = vrot.slane %v1248, 7
      %v1251 = vrot.slane %v1250, 1
      %v1253 = vshll.u32 %v650, 16
      %v1255 = vsel %vm780, %v1251, %v1253
      %v1256 = vshrl.u32 %v650, 16
      %v1258 = vrot.slane %v1256, 7
      %v1259 = vrot.slane %v1258, 1
      %v1260 = vshll.u32 %v653, 16
      %v1262 = vsel %vm780, %v1259, %v1260
      %v1263 = vshrl.u32 %v653, 16
      %v1265 = vrot.slane %v1263, 7
      %v1266 = vrot.slane %v1265, 1
      %v1268 = vshll.u32 %v756, 16
      %v1270 = vsel %vm780, %v1266, %v1268
      %v1271 = vshrl.u32 %v656, 16
      %v1273 = vrot.slane %v1271, 7
      %v1274 = vrot.slane %v1273, 1
      %v1276 = vshll.u32 %v659, 16
      %v1278 = vsel %vm780, %v1274, %v1276
      %v1279 = vshrl.u32 %v659, 16
      %v1281 = vrot.slane %v1279, 7
      %v1282 = vrot.slane %v1281, 1
      %v1284 = vshll.u32 %v662, 16
      %v1286 = vsel %vm780, %v1282, %v1284
      %v1287 = vshrl.u32 %v662, 16
      %v1289 = vrot.slane %v1287, 7
      %v1290 = vrot.slane %v1289, 1
      %v1292 = vshll.u32 %v665, 16
      %v1294 = vsel %vm780, %v1290, %v1292
      %v1295 = vshrl.u32 %v665, 16
      %v1297 = vrot.slane %v1295, 7
      %v1298 = vrot.slane %v1297, 1
      %v1299 = vshll.u32 %v668, 16
      %v1301 = vsel %vm780, %v1298, %v1299
      %v1302 = vshrl.u32 %v668, 16
      %v1304 = vrot.slane %v1302, 7
      %v1305 = vrot.slane %v1304, 1
      %v1307 = vshll.u32 %v671, 16
      %v1309 = vsel %vm780, %v1305, %v1307
      %v1310 = vshrl.u32 %v671, 16
      %v1312 = vrot.slane %v1310, 7
      %v1313 = vrot.slane %v1312, 1
      %v1315 = vshll.u32 %v674, 16
      %v1317 = vsel %vm780, %v1313, %v1315
      %v1318 = vshrl.u32 %v674, 16
      %v1320 = vrot.slane %v1318, 7
      %v1321 = vrot.slane %v1320, 1
      %v1323 = vshll.u32 %v677, 16
      %v1325 = vsel %vm780, %v1321, %v1323
      %v1326 = vshrl.u32 %v677, 16
      %v1328 = vrot.slane %v1326, 7
      %v1329 = vrot.slane %v1328, 1
      %v1330 = vshll.u32 %v680, 16
      %v1332 = vsel %vm780, %v1329, %v1330
      %v1333 = vshrl.u32 %v680, 16
      %v1335 = vrot.slane %v1333, 7
      %v1336 = vrot.slane %v1335, 1
      %v1338 = vshll.u32 %v759, 16
      %v1340 = vsel %vm780, %v1336, %v1338
      %v1341 = vshrl.u32 %v683, 16
      %v1343 = vrot.slane %v1341, 7
      %v1344 = vrot.slane %v1343, 1
      %v1346 = vshll.u32 %v686, 16
      %v1348 = vsel %vm780, %v1344, %v1346
      %v1349 = vshrl.u32 %v686, 16
      %v1351 = vrot.slane %v1349, 7
      %v1352 = vrot.slane %v1351, 1
      %v1354 = vshll.u32 %v689, 16
      %v1356 = vsel %vm780, %v1352, %v1354
      %v1357 = vshrl.u32 %v689, 16
      %v1359 = vrot.slane %v1357, 7
      %v1360 = vrot.slane %v1359, 1
      %v1362 = vshll.u32 %v692, 16
      %v1364 = vsel %vm780, %v1360, %v1362
      %v1365 = vshrl.u32 %v692, 16
      %v1367 = vrot.slane %v1365, 7
      %v1368 = vrot.slane %v1367, 1
      %v1369 = vshll.u32 %v695, 16
      %v1371 = vsel %vm780, %v1368, %v1369
      %v1372 = vshrl.u32 %v695, 16
      %v1374 = vrot.slane %v1372, 7
      %v1375 = vrot.slane %v1374, 1
      %v1377 = vshll.u32 %v698, 16
      %v1379 = vsel %vm780, %v1375, %v1377
      %v1380 = vshrl.u32 %v698, 16
      %v1382 = vrot.slane %v1380, 7
      %v1383 = vrot.slane %v1382, 1
      %v1385 = vshll.u32 %v701, 16
      %v1387 = vsel %vm780, %v1383, %v1385
      %v1388 = vshrl.u32 %v701, 16
      %v1390 = vrot.slane %v1388, 7
      %v1391 = vrot.slane %v1390, 1
      %v1393 = vshll.u32 %v704, 16
      %v1395 = vsel %vm780, %v1391, %v1393
      %v1396 = vshrl.u32 %v704, 16
      %v1398 = vrot.slane %v1396, 7
      %v1399 = vrot.slane %v1398, 1
      %v1400 = vshll.u32 %v707, 16
      %v1402 = vsel %vm780, %v1399, %v1400
      %v1403 = vshrl.u32 %v707, 16
      %v1405 = vrot.slane %v1403, 7
      %v1406 = vrot.slane %v1405, 1
      %v1408 = vshll.u32 %v762, 16
      %v1410 = vsel %vm780, %v1406, %v1408
      %v1411 = vshrl.u32 %v710, 16
      %v1413 = vrot.slane %v1411, 7
      %v1414 = vrot.slane %v1413, 1
      %v1416 = vshll.u32 %v713, 16
      %v1418 = vsel %vm780, %v1414, %v1416
      %v1419 = vshrl.u32 %v713, 16
      %v1421 = vrot.slane %v1419, 7
      %v1422 = vrot.slane %v1421, 1
      %v1424 = vshll.u32 %v716, 16
      %v1426 = vsel %vm780, %v1422, %v1424
      %v1427 = vshrl.u32 %v716, 16
      %v1429 = vrot.slane %v1427, 7
      %v1430 = vrot.slane %v1429, 1
      %v1432 = vshll.u32 %v719, 16
      %v1434 = vsel %vm780, %v1430, %v1432
      %v1435 = vshrl.u32 %v719, 16
      %v1437 = vrot.slane %v1435, 7
      %v1438 = vrot.slane %v1437, 1
      %v1439 = vshll.u32 %v722, 16
      %v1441 = vsel %vm780, %v1438, %v1439
      %v1442 = vshrl.u32 %v722, 16
      %v1444 = vrot.slane %v1442, 7
      %v1445 = vrot.slane %v1444, 1
      %v1447 = vshll.u32 %v725, 16
      %v1449 = vsel %vm780, %v1445, %v1447
      %v1450 = vshrl.u32 %v725, 16
      %v1452 = vrot.slane %v1450, 7
      %v1453 = vrot.slane %v1452, 1
      %v1455 = vshll.u32 %v728, 16
      %v1457 = vsel %vm780, %v1453, %v1455
      %v1458 = vshrl.u32 %v728, 16
      %v1460 = vrot.slane %v1458, 7
      %v1461 = vrot.slane %v1460, 1
      %v1463 = vshll.u32 %v731, 16
      %v1465 = vsel %vm780, %v1461, %v1463
      %v1466 = vshrl.u32 %v731, 16
      %v1468 = vrot.slane %v1466, 7
      %v1469 = vrot.slane %v1468, 1
      %v1470 = vshll.u32 %v734, 16
      %v1472 = vsel %vm780, %v1469, %v1470
      %v1473 = vshrl.u32 %v734, 16
      %v1475 = vrot.slane %v1473, 7
      %v1476 = vrot.slane %v1475, 1
      %v1478 = vshll.u32 %v765, 16
      %v1480 = vsel %vm780, %v1476, %v1478
      %s1481 = scalar_lea.vmem %s3, 2
      %v1482 = vld [vmem:[%s1481] sm:$0x3]
      %1484 = vst [vmem:[#allocation1] ss:$9 sm:$0xff] %v788
      %s1486 = scalar_lea.vmem [#allocation1], 1
      %1487 = vst [vmem:[%s1486] ss:$9 sm:$0xff] %v796
      %s1489 = scalar_lea.vmem [#allocation1], 2
      %1490 = vst [vmem:[%s1489] ss:$9 sm:$0xff] %v804
      %s1492 = scalar_lea.vmem [#allocation1], 3
      %1493 = vst [vmem:[%s1492] ss:$9 sm:$0xff] %v811
      %s1495 = scalar_lea.vmem [#allocation1], 4
      %1496 = vst [vmem:[%s1495] ss:$9 sm:$0xff] %v819
      %s1498 = scalar_lea.vmem [#allocation1], 5
      %1499 = vst [vmem:[%s1498] ss:$9 sm:$0xff] %v827
      %s1501 = scalar_lea.vmem [#allocation1], 6
      %1502 = vst [vmem:[%s1501] ss:$9 sm:$0xff] %v835
      %s1504 = scalar_lea.vmem [#allocation1], 7
      %1505 = vst [vmem:[%s1504] ss:$9 sm:$0xff] %v842
      %v1506 = vld [vmem:[#allocation1] sm:$0xff]
      %1508 = vst [vmem:[#allocation1] ss:$9 sm:$0xff] %v850
      %1510 = vst [vmem:[%s1486] ss:$9 sm:$0xff] %v858
      %1512 = vst [vmem:[%s1489] ss:$9 sm:$0xff] %v866
      %1514 = vst [vmem:[%s1492] ss:$9 sm:$0xff] %v874
      %1516 = vst [vmem:[%s1495] ss:$9 sm:$0xff] %v881
      %1518 = vst [vmem:[%s1498] ss:$9 sm:$0xff] %v889
      %1520 = vst [vmem:[%s1501] ss:$9 sm:$0xff] %v897
      %1522 = vst [vmem:[%s1504] ss:$9 sm:$0xff] %v905
      %v1523 = vld [vmem:[#allocation1] sm:$0xff]
      %1525 = vst [vmem:[#allocation1] ss:$9 sm:$0xff] %v912
      %1527 = vst [vmem:[%s1486] ss:$9 sm:$0xff] %v920
      %1529 = vst [vmem:[%s1489] ss:$9 sm:$0xff] %v928
      %1531 = vst [vmem:[%s1492] ss:$9 sm:$0xff] %v936
      %1533 = vst [vmem:[%s1495] ss:$9 sm:$0xff] %v944
      %1535 = vst [vmem:[%s1498] ss:$9 sm:$0xff] %v951
      %1537 = vst [vmem:[%s1501] ss:$9 sm:$0xff] %v959
      %1539 = vst [vmem:[%s1504] ss:$9 sm:$0xff] %v967
      %v1540 = vld [vmem:[#allocation1] sm:$0xff]
      %1542 = vst [vmem:[#allocation1] ss:$9 sm:$0xff] %v975
      %1544 = vst [vmem:[%s1486] ss:$9 sm:$0xff] %v982
      %1546 = vst [vmem:[%s1489] ss:$9 sm:$0xff] %v990
      %1548 = vst [vmem:[%s1492] ss:$9 sm:$0xff] %v998
      %1550 = vst [vmem:[%s1495] ss:$9 sm:$0xff] %v1006
      %1552 = vst [vmem:[%s1498] ss:$9 sm:$0xff] %v1014
      %1554 = vst [vmem:[%s1501] ss:$9 sm:$0xff] %v1021
      %1556 = vst [vmem:[%s1504] ss:$9 sm:$0xff] %v1029
      %v1557 = vld [vmem:[#allocation1] sm:$0xff]
      %1559 = vst [vmem:[#allocation1] ss:$9 sm:$0xff] %v1037
      %1561 = vst [vmem:[%s1486] ss:$9 sm:$0xff] %v1045
      %1563 = vst [vmem:[%s1489] ss:$9 sm:$0xff] %v1052
      %1565 = vst [vmem:[%s1492] ss:$9 sm:$0xff] %v1060
      %1567 = vst [vmem:[%s1495] ss:$9 sm:$0xff] %v1068
      %1569 = vst [vmem:[%s1498] ss:$9 sm:$0xff] %v1076
      %1571 = vst [vmem:[%s1501] ss:$9 sm:$0xff] %v1084
      %1573 = vst [vmem:[%s1504] ss:$9 sm:$0xff] %v1091
      %v1574 = vld [vmem:[#allocation1] sm:$0xff]
      %1576 = vst [vmem:[#allocation1] ss:$9 sm:$0xff] %v1099
      %1578 = vst [vmem:[%s1486] ss:$9 sm:$0xff] %v1107
      %1580 = vst [vmem:[%s1489] ss:$9 sm:$0xff] %v1115
      %1582 = vst [vmem:[%s1492] ss:$9 sm:$0xff] %v1122
      %1584 = vst [vmem:[%s1495] ss:$9 sm:$0xff] %v1130
      %1586 = vst [vmem:[%s1498] ss:$9 sm:$0xff] %v1138
      %1588 = vst [vmem:[%s1501] ss:$9 sm:$0xff] %v1146
      %1590 = vst [vmem:[%s1504] ss:$9 sm:$0xff] %v1154
      %v1591 = vld [vmem:[#allocation1] sm:$0xff]
      %1593 = vst [vmem:[#allocation1] ss:$9 sm:$0xff] %v1161
      %1595 = vst [vmem:[%s1486] ss:$9 sm:$0xff] %v1169
      %1597 = vst [vmem:[%s1489] ss:$9 sm:$0xff] %v1177
      %1599 = vst [vmem:[%s1492] ss:$9 sm:$0xff] %v1185
      %1601 = vst [vmem:[%s1495] ss:$9 sm:$0xff] %v1192
      %1603 = vst [vmem:[%s1498] ss:$9 sm:$0xff] %v1200
      %1605 = vst [vmem:[%s1501] ss:$9 sm:$0xff] %v1208
      %1607 = vst [vmem:[%s1504] ss:$9 sm:$0xff] %v1216
      %v1608 = vld [vmem:[#allocation1] sm:$0xff]
      %1610 = vst [vmem:[#allocation1] ss:$9 sm:$0xff] %v1224
      %1612 = vst [vmem:[%s1486] ss:$9 sm:$0xff] %v1231
      %1614 = vst [vmem:[%s1489] ss:$9 sm:$0xff] %v1239
      %1616 = vst [vmem:[%s1492] ss:$9 sm:$0xff] %v1247
      %1618 = vst [vmem:[%s1495] ss:$9 sm:$0xff] %v1255
      %1620 = vst [vmem:[%s1498] ss:$9 sm:$0xff] %v1262
      %1622 = vst [vmem:[%s1501] ss:$9 sm:$0xff] %v1270
      %1624 = vst [vmem:[%s1504] ss:$9 sm:$0xff] %v1278
      %v1625 = vld [vmem:[#allocation1] sm:$0xff]
      %1627 = vst [vmem:[#allocation1] ss:$9 sm:$0xff] %v1286
      %1629 = vst [vmem:[%s1486] ss:$9 sm:$0xff] %v1294
      %1631 = vst [vmem:[%s1489] ss:$9 sm:$0xff] %v1301
      %1633 = vst [vmem:[%s1492] ss:$9 sm:$0xff] %v1309
      %1635 = vst [vmem:[%s1495] ss:$9 sm:$0xff] %v1317
      %1637 = vst [vmem:[%s1498] ss:$9 sm:$0xff] %v1325
      %1639 = vst [vmem:[%s1501] ss:$9 sm:$0xff] %v1332
      %1641 = vst [vmem:[%s1504] ss:$9 sm:$0xff] %v1340
      %v1642 = vld [vmem:[#allocation1] sm:$0xff]
      %1644 = vst [vmem:[#allocation1] ss:$9 sm:$0xff] %v1348
      %1646 = vst [vmem:[%s1486] ss:$9 sm:$0xff] %v1356
      %1648 = vst [vmem:[%s1489] ss:$9 sm:$0xff] %v1364
      %1650 = vst [vmem:[%s1492] ss:$9 sm:$0xff] %v1371
      %1652 = vst [vmem:[%s1495] ss:$9 sm:$0xff] %v1379
      %1654 = vst [vmem:[%s1498] ss:$9 sm:$0xff] %v1387
      %1656 = vst [vmem:[%s1501] ss:$9 sm:$0xff] %v1395
      %1658 = vst [vmem:[%s1504] ss:$9 sm:$0xff] %v1402
      %v1659 = vld [vmem:[#allocation1] sm:$0xff]
      %1661 = vst [vmem:[#allocation1] ss:$9 sm:$0xff] %v1410
      %1663 = vst [vmem:[%s1486] ss:$9 sm:$0xff] %v1418
      %1665 = vst [vmem:[%s1489] ss:$9 sm:$0xff] %v1426
      %1667 = vst [vmem:[%s1492] ss:$9 sm:$0xff] %v1434
      %1669 = vst [vmem:[%s1495] ss:$9 sm:$0xff] %v1441
      %1671 = vst [vmem:[%s1498] ss:$9 sm:$0xff] %v1449
      %1673 = vst [vmem:[%s1501] ss:$9 sm:$0xff] %v1457
      %1675 = vst [vmem:[%s1504] ss:$9 sm:$0xff] %v1465
      %v1676 = vld [vmem:[#allocation1] sm:$0xff]
      %1678 = vst [vmem:[#allocation1] ss:$9 sm:$0xff] %v1472
      %1680 = vst [vmem:[%s1486] ss:$9 sm:$0xff] %v1480
      %v1681 = vld [vmem:[#allocation1] sm:$0xff]
      %vm1682 = vcmask 23552
      %v1683 = vsel %vm1682, %v1506, 0
      %v1685 = vsel %vm1682, %v1523, 0
      %v1687 = vsel %vm1682, %v1540, 0
      %v1689 = vsel %vm1682, %v1557, 0
      %v1691 = vsel %vm1682, %v1574, 0
      %v1693 = vsel %vm1682, %v1591, 0
      %v1695 = vsel %vm1682, %v1608, 0
      %v1697 = vsel %vm1682, %v1625, 0
      %v1699 = vsel %vm1682, %v1642, 0
      %v1701 = vsel %vm1682, %v1659, 0
      %v1703 = vsel %vm1682, %v1676, 0
      %v1705 = vsel %vm1682, %v1681, 0
      %vm1707 = vcmask 1041408
      %v1708 = vsel %vm461, 4294967295, 65535
      %v1709 = vsel %vm1707, %v1708, 0
      %v1711 = vand.u32 %v1482, %v1709
      %1713 = vmatpush.bf16.msra.mxu0 0
      %1714 = vmatpush.bf16.msra.mxu0 0
      %1715 = vmatpush.bf16.msra.mxu0 0
      %1716 = vmatpush.bf16.msra.mxu0 0
      %1717 = vmatpush.bf16.msra.mxu0 0
      %1718 = vmatpush.bf16.msra.mxu0 0
      %1719 = vmatpush.bf16.msra.mxu0 0
      %1720 = vmatpush.bf16.msra.mxu0 %v1711
      %1721 = vmatmul.bf16.gmra.mxu0 %v1683
      %v1722 = vpop.f32.mrf.mxu0
      %v1723 = vadd.f32 0.0, %v1722
      %v1724 = vpop.f32.mrf.mxu0
      %v1725 = vadd.f32 0.0, %v1724
      %1726 = vmatmul.bf16.gmra.mxu0 %v1685
      %v1727 = vpop.f32.mrf.mxu0
      %v1728 = vadd.f32 0.0, %v1727
      %v1729 = vpop.f32.mrf.mxu0
      %v1730 = vadd.f32 0.0, %v1729
      %1731 = vmatmul.bf16.gmra.mxu0 %v1687
      %v1732 = vpop.f32.mrf.mxu0
      %v1733 = vadd.f32 0.0, %v1732
      %v1734 = vpop.f32.mrf.mxu0
      %v1735 = vadd.f32 0.0, %v1734
      %1736 = vmatmul.bf16.gmra.mxu0 %v1689
      %v1737 = vpop.f32.mrf.mxu0
      %v1738 = vadd.f32 0.0, %v1737
      %v1739 = vpop.f32.mrf.mxu0
      %v1740 = vadd.f32 0.0, %v1739
      %1741 = vmatmul.bf16.gmra.mxu0 %v1691
      %v1742 = vpop.f32.mrf.mxu0
      %v1743 = vadd.f32 0.0, %v1742
      %v1744 = vpop.f32.mrf.mxu0
      %v1745 = vadd.f32 0.0, %v1744
      %1746 = vmatmul.bf16.gmra.mxu0 %v1693
      %v1747 = vpop.f32.mrf.mxu0
      %v1748 = vadd.f32 0.0, %v1747
      %v1749 = vpop.f32.mrf.mxu0
      %v1750 = vadd.f32 0.0, %v1749
      %1751 = vmatmul.bf16.gmra.mxu0 %v1695
      %v1752 = vpop.f32.mrf.mxu0
      %v1753 = vadd.f32 0.0, %v1752
      %v1754 = vpop.f32.mrf.mxu0
      %v1755 = vadd.f32 0.0, %v1754
      %1756 = vmatmul.bf16.gmra.mxu0 %v1697
      %v1757 = vpop.f32.mrf.mxu0
      %v1758 = vadd.f32 0.0, %v1757
      %v1759 = vpop.f32.mrf.mxu0
      %v1760 = vadd.f32 0.0, %v1759
      %1761 = vmatmul.bf16.gmra.mxu0 %v1699
      %v1762 = vpop.f32.mrf.mxu0
      %v1763 = vadd.f32 0.0, %v1762
      %v1764 = vpop.f32.mrf.mxu0
      %v1765 = vadd.f32 0.0, %v1764
      %1766 = vmatmul.bf16.gmra.mxu0 %v1701
      %v1767 = vpop.f32.mrf.mxu0
      %v1768 = vadd.f32 0.0, %v1767
      %v1769 = vpop.f32.mrf.mxu0
      %v1770 = vadd.f32 0.0, %v1769
      %1771 = vmatmul.bf16.gmra.mxu0 %v1703
      %v1772 = vpop.f32.mrf.mxu0
      %v1773 = vadd.f32 0.0, %v1772
      %v1774 = vpop.f32.mrf.mxu0
      %v1775 = vadd.f32 0.0, %v1774
      %1776 = vmatmul.bf16.gmra.mxu0 %v1705
      %v1777 = vpop.f32.mrf.mxu0
      %v1778 = vadd.f32 0.0, %v1777
      %v1779 = vpop.f32.mrf.mxu0
      %1780 = vdwg.mxu0
      %1781 = vst [vmem:[#allocation1] ss:$9 sm:$0xff] %v464
      %s1782 = scalar_lea.vmem [#allocation1], 1
      %1783 = vst [vmem:[%s1782] ss:$9 sm:$0xff] %v468
      %s1784 = scalar_lea.vmem [#allocation1], 2
      %1785 = vst [vmem:[%s1784] ss:$9 sm:$0xff] %v472
      %s1786 = scalar_lea.vmem [#allocation1], 3
      %1787 = vst [vmem:[%s1786] ss:$9 sm:$0xff] %v476
      %s1788 = scalar_lea.vmem [#allocation1], 4
      %1789 = vst [vmem:[%s1788] ss:$9 sm:$0xff] %v479
      %s1790 = scalar_lea.vmem [#allocation1], 5
      %1791 = vst [vmem:[%s1790] ss:$9 sm:$0xff] %v482
      %s1792 = scalar_lea.vmem [#allocation1], 6
      %1793 = vst [vmem:[%s1792] ss:$9 sm:$0xff] %v485
      %s1794 = scalar_lea.vmem [#allocation1], 7
      %1795 = vst [vmem:[%s1794] ss:$9 sm:$0xff] %v488
      %v1796 = vld [vmem:[#allocation1] sm:$0xff]
      %1797 = vst [vmem:[#allocation1] ss:$9 sm:$0xff] %v491
      %1798 = vst [vmem:[%s1782] ss:$9 sm:$0xff] %v494
      %1799 = vst [vmem:[%s1784] ss:$9 sm:$0xff] %v497
      %1800 = vst [vmem:[%s1786] ss:$9 sm:$0xff] %v500
      %1801 = vst [vmem:[%s1788] ss:$9 sm:$0xff] %v503
      %1802 = vst [vmem:[%s1790] ss:$9 sm:$0xff] %v506
      %1803 = vst [vmem:[%s1792] ss:$9 sm:$0xff] %v509
      %1804 = vst [vmem:[%s1794] ss:$9 sm:$0xff] %v512
      %v1805 = vld [vmem:[#allocation1] sm:$0xff]
      %1806 = vst [vmem:[#allocation1] ss:$9 sm:$0xff] %v515
      %1807 = vst [vmem:[%s1782] ss:$9 sm:$0xff] %v518
      %1808 = vst [vmem:[%s1784] ss:$9 sm:$0xff] %v521
      %1809 = vst [vmem:[%s1786] ss:$9 sm:$0xff] %v524
      %1810 = vst [vmem:[%s1788] ss:$9 sm:$0xff] %v527
      %1811 = vst [vmem:[%s1790] ss:$9 sm:$0xff] %v530
      %1812 = vst [vmem:[%s1792] ss:$9 sm:$0xff] %v533
      %1813 = vst [vmem:[%s1794] ss:$9 sm:$0xff] %v536
      %v1814 = vld [vmem:[#allocation1] sm:$0xff]
      %1815 = vst [vmem:[#allocation1] ss:$9 sm:$0xff] %v539
      %1816 = vst [vmem:[%s1782] ss:$9 sm:$0xff] %v542
      %1817 = vst [vmem:[%s1784] ss:$9 sm:$0xff] %v545
      %1818 = vst [vmem:[%s1786] ss:$9 sm:$0xff] %v548
      %1819 = vst [vmem:[%s1788] ss:$9 sm:$0xff] %v551
      %1820 = vst [vmem:[%s1790] ss:$9 sm:$0xff] %v554
      %1821 = vst [vmem:[%s1792] ss:$9 sm:$0xff] %v557
      %1822 = vst [vmem:[%s1794] ss:$9 sm:$0xff] %v560
      %v1823 = vld [vmem:[#allocation1] sm:$0xff]
      %1824 = vst [vmem:[#allocation1] ss:$9 sm:$0xff] %v563
      %1825 = vst [vmem:[%s1782] ss:$9 sm:$0xff] %v566
      %1826 = vst [vmem:[%s1784] ss:$9 sm:$0xff] %v569
      %1827 = vst [vmem:[%s1786] ss:$9 sm:$0xff] %v572
      %1828 = vst [vmem:[%s1788] ss:$9 sm:$0xff] %v575
      %1829 = vst [vmem:[%s1790] ss:$9 sm:$0xff] %v578
      %1830 = vst [vmem:[%s1792] ss:$9 sm:$0xff] %v581
      %1831 = vst [vmem:[%s1794] ss:$9 sm:$0xff] %v584
      %v1832 = vld [vmem:[#allocation1] sm:$0xff]
      %1833 = vst [vmem:[#allocation1] ss:$9 sm:$0xff] %v587
      %1834 = vst [vmem:[%s1782] ss:$9 sm:$0xff] %v590
      %1835 = vst [vmem:[%s1784] ss:$9 sm:$0xff] %v593
      %1836 = vst [vmem:[%s1786] ss:$9 sm:$0xff] %v596
      %1837 = vst [vmem:[%s1788] ss:$9 sm:$0xff] %v599
      %1838 = vst [vmem:[%s1790] ss:$9 sm:$0xff] %v602
      %1839 = vst [vmem:[%s1792] ss:$9 sm:$0xff] %v605
      %1840 = vst [vmem:[%s1794] ss:$9 sm:$0xff] %v608
      %v1841 = vld [vmem:[#allocation1] sm:$0xff]
      %1842 = vst [vmem:[#allocation1] ss:$9 sm:$0xff] %v611
      %1843 = vst [vmem:[%s1782] ss:$9 sm:$0xff] %v614
      %1844 = vst [vmem:[%s1784] ss:$9 sm:$0xff] %v617
      %1845 = vst [vmem:[%s1786] ss:$9 sm:$0xff] %v620
      %1846 = vst [vmem:[%s1788] ss:$9 sm:$0xff] %v623
      %1847 = vst [vmem:[%s1790] ss:$9 sm:$0xff] %v626
      %1848 = vst [vmem:[%s1792] ss:$9 sm:$0xff] %v629
      %1849 = vst [vmem:[%s1794] ss:$9 sm:$0xff] %v632
      %v1850 = vld [vmem:[#allocation1] sm:$0xff]
      %1851 = vst [vmem:[#allocation1] ss:$9 sm:$0xff] %v635
      %1852 = vst [vmem:[%s1782] ss:$9 sm:$0xff] %v638
      %1853 = vst [vmem:[%s1784] ss:$9 sm:$0xff] %v641
      %1854 = vst [vmem:[%s1786] ss:$9 sm:$0xff] %v644
      %1855 = vst [vmem:[%s1788] ss:$9 sm:$0xff] %v647
      %1856 = vst [vmem:[%s1790] ss:$9 sm:$0xff] %v650
      %1857 = vst [vmem:[%s1792] ss:$9 sm:$0xff] %v653
      %1858 = vst [vmem:[%s1794] ss:$9 sm:$0xff] %v656
      %v1859 = vld [vmem:[#allocation1] sm:$0xff]
      %1860 = vst [vmem:[#allocation1] ss:$9 sm:$0xff] %v659
      %1861 = vst [vmem:[%s1782] ss:$9 sm:$0xff] %v662
      %1862 = vst [vmem:[%s1784] ss:$9 sm:$0xff] %v665
      %1863 = vst [vmem:[%s1786] ss:$9 sm:$0xff] %v668
      %1864 = vst [vmem:[%s1788] ss:$9 sm:$0xff] %v671
      %1865 = vst [vmem:[%s1790] ss:$9 sm:$0xff] %v674
      %1866 = vst [vmem:[%s1792] ss:$9 sm:$0xff] %v677
      %1867 = vst [vmem:[%s1794] ss:$9 sm:$0xff] %v680
      %v1868 = vld [vmem:[#allocation1] sm:$0xff]
      %1869 = vst [vmem:[#allocation1] ss:$9 sm:$0xff] %v683
      %1870 = vst [vmem:[%s1782] ss:$9 sm:$0xff] %v686
      %1871 = vst [vmem:[%s1784] ss:$9 sm:$0xff] %v689
      %1872 = vst [vmem:[%s1786] ss:$9 sm:$0xff] %v692
      %1873 = vst [vmem:[%s1788] ss:$9 sm:$0xff] %v695
      %1874 = vst [vmem:[%s1790] ss:$9 sm:$0xff] %v698
      %1875 = vst [vmem:[%s1792] ss:$9 sm:$0xff] %v701
      %1876 = vst [vmem:[%s1794] ss:$9 sm:$0xff] %v704
      %v1877 = vld [vmem:[#allocation1] sm:$0xff]
      %1878 = vst [vmem:[#allocation1] ss:$9 sm:$0xff] %v707
      %1879 = vst [vmem:[%s1782] ss:$9 sm:$0xff] %v710
      %1880 = vst [vmem:[%s1784] ss:$9 sm:$0xff] %v713
      %1881 = vst [vmem:[%s1786] ss:$9 sm:$0xff] %v716
      %1882 = vst [vmem:[%s1788] ss:$9 sm:$0xff] %v719
      %1883 = vst [vmem:[%s1790] ss:$9 sm:$0xff] %v722
      %1884 = vst [vmem:[%s1792] ss:$9 sm:$0xff] %v725
      %1885 = vst [vmem:[%s1794] ss:$9 sm:$0xff] %v728
      %v1886 = vld [vmem:[#allocation1] sm:$0xff]
      %1887 = vst [vmem:[#allocation1] ss:$9 sm:$0xff] %v731
      %1888 = vst [vmem:[%s1782] ss:$9 sm:$0xff] %v734
      %v1889 = vld [vmem:[#allocation1] sm:$0xff]
      %v1890 = vsel %vm1682, %v1796, 0
      %v1892 = vsel %vm1682, %v1805, 0
      %v1894 = vsel %vm1682, %v1814, 0
      %v1896 = vsel %vm1682, %v1823, 0
      %v1898 = vsel %vm1682, %v1832, 0
      %v1900 = vsel %vm1682, %v1841, 0
      %v1902 = vsel %vm1682, %v1850, 0
      %v1904 = vsel %vm1682, %v1859, 0
      %v1906 = vsel %vm1682, %v1868, 0
      %v1908 = vsel %vm1682, %v1877, 0
      %v1910 = vsel %vm1682, %v1886, 0
      %v1912 = vsel %vm1682, %v1889, 0
      %v1915 = vand.u32 %v735, %v1709
      %1917 = vmatpush.bf16.msra.mxu0 0
      %1918 = vmatpush.bf16.msra.mxu0 0
      %1919 = vmatpush.bf16.msra.mxu0 0
      %1920 = vmatpush.bf16.msra.mxu0 0
      %1921 = vmatpush.bf16.msra.mxu0 0
      %1922 = vmatpush.bf16.msra.mxu0 0
      %1923 = vmatpush.bf16.msra.mxu0 0
      %1924 = vmatpush.bf16.msra.mxu0 %v1915
      %1925 = vmatmul.bf16.gmra.mxu0 %v1890
      %v1926 = vpop.f32.mrf.mxu0
      %v1927 = vadd.f32 %v1723, %v1926
      %v1928 = vpop.f32.mrf.mxu0
      %v1929 = vadd.f32 %v1725, %v1928
      %1930 = vmatmul.bf16.gmra.mxu0 %v1892
      %v1931 = vpop.f32.mrf.mxu0
      %v1932 = vadd.f32 %v1728, %v1931
      %v1933 = vpop.f32.mrf.mxu0
      %v1934 = vadd.f32 %v1730, %v1933
      %1935 = vmatmul.bf16.gmra.mxu0 %v1894
      %v1936 = vpop.f32.mrf.mxu0
      %v1937 = vadd.f32 %v1733, %v1936
      %v1938 = vpop.f32.mrf.mxu0
      %v1939 = vadd.f32 %v1735, %v1938
      %1940 = vmatmul.bf16.gmra.mxu0 %v1896
      %v1941 = vpop.f32.mrf.mxu0
      %v1942 = vadd.f32 %v1738, %v1941
      %v1943 = vpop.f32.mrf.mxu0
      %v1944 = vadd.f32 %v1740, %v1943
      %1945 = vmatmul.bf16.gmra.mxu0 %v1898
      %v1946 = vpop.f32.mrf.mxu0
      %v1947 = vadd.f32 %v1743, %v1946
      %v1948 = vpop.f32.mrf.mxu0
      %v1949 = vadd.f32 %v1745, %v1948
      %1950 = vmatmul.bf16.gmra.mxu0 %v1900
      %v1951 = vpop.f32.mrf.mxu0
      %v1952 = vadd.f32 %v1748, %v1951
      %v1953 = vpop.f32.mrf.mxu0
      %v1954 = vadd.f32 %v1750, %v1953
      %1955 = vmatmul.bf16.gmra.mxu0 %v1902
      %v1956 = vpop.f32.mrf.mxu0
      %v1957 = vadd.f32 %v1753, %v1956
      %v1958 = vpop.f32.mrf.mxu0
      %v1959 = vadd.f32 %v1755, %v1958
      %1960 = vmatmul.bf16.gmra.mxu0 %v1904
      %v1961 = vpop.f32.mrf.mxu0
      %v1962 = vadd.f32 %v1758, %v1961
      %v1963 = vpop.f32.mrf.mxu0
      %v1964 = vadd.f32 %v1760, %v1963
      %1965 = vmatmul.bf16.gmra.mxu0 %v1906
      %v1966 = vpop.f32.mrf.mxu0
      %v1967 = vadd.f32 %v1763, %v1966
      %v1968 = vpop.f32.mrf.mxu0
      %v1969 = vadd.f32 %v1765, %v1968
      %1970 = vmatmul.bf16.gmra.mxu0 %v1908
      %v1971 = vpop.f32.mrf.mxu0
      %v1972 = vadd.f32 %v1768, %v1971
      %v1973 = vpop.f32.mrf.mxu0
      %v1974 = vadd.f32 %v1770, %v1973
      %1975 = vmatmul.bf16.gmra.mxu0 %v1910
      %v1976 = vpop.f32.mrf.mxu0
      %v1977 = vadd.f32 %v1773, %v1976
      %v1978 = vpop.f32.mrf.mxu0
      %v1979 = vadd.f32 %v1775, %v1978
      %1980 = vmatmul.bf16.gmra.mxu0 %v1912
      %v1981 = vpop.f32.mrf.mxu0
      %v1982 = vadd.f32 %v1778, %v1981
      %v1983 = vpop.f32.mrf.mxu0
      %1984 = vdwg.mxu0
      %1985 = vst [vmem:[#allocation1] sm:$0xff] %v365
      %1986 = vst [vmem:[#allocation1 + $0x20] sm:$0xff] %v366
      %s1987 = scalar_lea.vmem [#allocation1], 1
      %v1988 = vld [vmem:[%s1987] ss:$4 sm:$0xff]
      %s1989 = scalar_lea.vmem [#allocation1], 2
      %v1990 = vld [vmem:[%s1989] ss:$4 sm:$0xff]
      %s1991 = scalar_lea.vmem [#allocation1], 3
      %v1992 = vld [vmem:[%s1991] ss:$4 sm:$0xff]
      %s1993 = scalar_lea.vmem [#allocation1], 32
      %v1994 = vld [vmem:[%s1993] ss:$4 sm:$0xff]
      %s1995 = scalar_lea.vmem [#allocation1], 33
      %v1996 = vld [vmem:[%s1995] ss:$4 sm:$0xff]
      %s1997 = scalar_lea.vmem [#allocation1], 34
      %v1998 = vld [vmem:[%s1997] ss:$4 sm:$0xff]
      %s1999 = scalar_lea.vmem [#allocation1], 35
      %v2000 = vld [vmem:[%s1999] ss:$4 sm:$0xff]
      %2001 = vst [vmem:[#allocation1] sm:$0xff] %v367
      %v2002 = vld [vmem:[#allocation1] ss:$4 sm:$0xff]
      %v2003 = vld [vmem:[%s1987] ss:$4 sm:$0xff]
      %2004 = vst [vmem:[#allocation1 + $0x20] sm:$0xff] %v368
      %v2005 = vld [vmem:[%s1995] ss:$4 sm:$0xff]
      %v2006 = vld [vmem:[%s1997] ss:$4 sm:$0xff]
      %v2007 = vld [vmem:[%s1999] ss:$4 sm:$0xff]
      %2008 = vst [vmem:[#allocation1] sm:$0xff] %v369
      %2009 = vst [vmem:[#allocation1 + $0x20] sm:$0xff] %v370
      %v2010 = vld [vmem:[#allocation1] ss:$4 sm:$0xff]
      %v2011 = vld [vmem:[%s1987] ss:$4 sm:$0xff]
      %v2012 = vld [vmem:[%s1989] ss:$4 sm:$0xff]
      %v2013 = vld [vmem:[%s1991] ss:$4 sm:$0xff]
      %v2014 = vld [vmem:[%s1993] ss:$4 sm:$0xff]
      %v2015 = vld [vmem:[%s1995] ss:$4 sm:$0xff]
      %2016 = vst [vmem:[#allocation1] sm:$0xff] %v371
      %2017 = vst [vmem:[#allocation1 + $0x20] sm:$0xff] %v372
      %v2018 = vld [vmem:[%s1987] ss:$4 sm:$0xff]
      %v2019 = vld [vmem:[%s1989] ss:$4 sm:$0xff]
      %v2020 = vld [vmem:[%s1991] ss:$4 sm:$0xff]
      %v2021 = vld [vmem:[%s1993] ss:$4 sm:$0xff]
      %v2022 = vld [vmem:[%s1995] ss:$4 sm:$0xff]
      %v2023 = vld [vmem:[%s1997] ss:$4 sm:$0xff]
      %v2024 = vld [vmem:[%s1999] ss:$4 sm:$0xff]
      %2025 = vst [vmem:[#allocation1] sm:$0xff] %v373
      %v2026 = vld [vmem:[#allocation1] ss:$4 sm:$0xff]
      %v2027 = vld [vmem:[%s1987] ss:$4 sm:$0xff]
      %2028 = vst [vmem:[#allocation1 + $0x20] sm:$0xff] %v374
      %v2029 = vld [vmem:[%s1995] ss:$4 sm:$0xff]
      %v2030 = vld [vmem:[%s1997] ss:$4 sm:$0xff]
      %v2031 = vld [vmem:[%s1999] ss:$4 sm:$0xff]
      %2032 = vst [vmem:[#allocation1] sm:$0xff] %v375
      %2033 = vst [vmem:[#allocation1 + $0x20] sm:$0xff] %v376
      %v2034 = vld [vmem:[#allocation1] ss:$4 sm:$0xff]
      %v2035 = vld [vmem:[%s1987] ss:$4 sm:$0xff]
      %v2036 = vld [vmem:[%s1989] ss:$4 sm:$0xff]
      %v2037 = vld [vmem:[%s1991] ss:$4 sm:$0xff]
      %v2038 = vld [vmem:[%s1993] ss:$4 sm:$0xff]
      %v2039 = vld [vmem:[%s1995] ss:$4 sm:$0xff]
      %2040 = vst [vmem:[#allocation1] sm:$0xff] %v377
      %2041 = vst [vmem:[#allocation1 + $0x20] sm:$0xff] %v378
      %v2042 = vld [vmem:[%s1987] ss:$4 sm:$0xff]
      %v2043 = vld [vmem:[%s1989] ss:$4 sm:$0xff]
      %v2044 = vld [vmem:[%s1991] ss:$4 sm:$0xff]
      %v2045 = vld [vmem:[%s1993] ss:$4 sm:$0xff]
      %v2046 = vld [vmem:[%s1995] ss:$4 sm:$0xff]
      %v2047 = vld [vmem:[%s1997] ss:$4 sm:$0xff]
      %v2048 = vld [vmem:[%s1999] ss:$4 sm:$0xff]
      %2049 = vst [vmem:[#allocation1] sm:$0xff] %v379
      %v2050 = vld [vmem:[#allocation1] ss:$4 sm:$0xff]
      %v2051 = vld [vmem:[%s1987] ss:$4 sm:$0xff]
      %2052 = vst [vmem:[#allocation1 + $0x20] sm:$0xff] %v380
      %v2053 = vld [vmem:[%s1995] ss:$4 sm:$0xff]
      %v2054 = vld [vmem:[%s1997] ss:$4 sm:$0xff]
      %v2055 = vld [vmem:[%s1999] ss:$4 sm:$0xff]
      %2056 = vst [vmem:[#allocation1] sm:$0xff] %v381
      %2057 = vst [vmem:[#allocation1 + $0x20] sm:$0xff] %v382
      %v2058 = vld [vmem:[#allocation1] ss:$4 sm:$0xff]
      %v2059 = vld [vmem:[%s1987] ss:$4 sm:$0xff]
      %v2060 = vld [vmem:[%s1989] ss:$4 sm:$0xff]
      %v2061 = vld [vmem:[%s1991] ss:$4 sm:$0xff]
      %v2062 = vld [vmem:[%s1993] ss:$4 sm:$0xff]
      %v2063 = vld [vmem:[%s1995] ss:$4 sm:$0xff]
      %2064 = vst [vmem:[#allocation1] sm:$0xff] %v383
      %2065 = vst [vmem:[#allocation1 + $0x20] sm:$0xff] %v384
      %v2066 = vld [vmem:[%s1987] ss:$4 sm:$0xff]
      %v2067 = vld [vmem:[%s1989] ss:$4 sm:$0xff]
      %v2068 = vld [vmem:[%s1991] ss:$4 sm:$0xff]
      %v2069 = vld [vmem:[%s1993] ss:$4 sm:$0xff]
      %v2070 = vld [vmem:[%s1995] ss:$4 sm:$0xff]
      %v2071 = vld [vmem:[%s1997] ss:$4 sm:$0xff]
      %v2072 = vld [vmem:[%s1999] ss:$4 sm:$0xff]
      %2073 = vst [vmem:[#allocation1] sm:$0xff] %v385
      %v2074 = vld [vmem:[#allocation1] ss:$4 sm:$0xff]
      %v2075 = vld [vmem:[%s1987] ss:$4 sm:$0xff]
      %2076 = vst [vmem:[#allocation1 + $0x20] sm:$0xff] %v386
      %v2077 = vld [vmem:[%s1995] ss:$4 sm:$0xff]
      %v2078 = vld [vmem:[%s1997] ss:$4 sm:$0xff]
      %v2079 = vld [vmem:[%s1999] ss:$4 sm:$0xff]
      %2080 = vst [vmem:[#allocation1] sm:$0xff] %v387
      %2081 = vst [vmem:[#allocation1 + $0x20] sm:$0xff] %v388
      %v2082 = vld [vmem:[#allocation1] ss:$4 sm:$0xff]
      %v2083 = vld [vmem:[%s1987] ss:$4 sm:$0xff]
      %v2084 = vld [vmem:[%s1989] ss:$4 sm:$0xff]
      %v2085 = vld [vmem:[%s1991] ss:$4 sm:$0xff]
      %v2086 = vld [vmem:[%s1993] ss:$4 sm:$0xff]
      %v2087 = vld [vmem:[%s1995] ss:$4 sm:$0xff]
      %2088 = vst [vmem:[#allocation1] sm:$0xff] %v389
      %2089 = vst [vmem:[#allocation1 + $0x20] sm:$0xff] %v390
      %v2090 = vld [vmem:[%s1987] ss:$4 sm:$0xff]
      %v2091 = vld [vmem:[%s1989] ss:$4 sm:$0xff]
      %v2092 = vld [vmem:[%s1991] ss:$4 sm:$0xff]
      %v2093 = vld [vmem:[%s1993] ss:$4 sm:$0xff]
      %v2094 = vld [vmem:[%s1995] ss:$4 sm:$0xff]
      %v2095 = vld [vmem:[%s1997] ss:$4 sm:$0xff]
      %v2096 = vld [vmem:[%s1999] ss:$4 sm:$0xff]
      %2097 = vst [vmem:[#allocation1] sm:$0xff] %v391
      %v2098 = vld [vmem:[#allocation1] ss:$4 sm:$0xff]
      %v2099 = vld [vmem:[%s1987] ss:$4 sm:$0xff]
      %2100 = vst [vmem:[#allocation1 + $0x20] sm:$0xff] %v392
      %v2101 = vld [vmem:[%s1995] ss:$4 sm:$0xff]
      %v2102 = vld [vmem:[%s1997] ss:$4 sm:$0xff]
      %v2103 = vld [vmem:[%s1999] ss:$4 sm:$0xff]
      %2104 = vst [vmem:[#allocation1] sm:$0xff] %v393
      %2105 = vst [vmem:[#allocation1 + $0x20] sm:$0xff] %v394
      %v2106 = vld [vmem:[#allocation1] ss:$4 sm:$0xff]
      %v2107 = vld [vmem:[%s1987] ss:$4 sm:$0xff]
      %v2108 = vld [vmem:[%s1989] ss:$4 sm:$0xff]
      %v2109 = vld [vmem:[%s1991] ss:$4 sm:$0xff]
      %v2110 = vld [vmem:[%s1993] ss:$4 sm:$0xff]
      %v2111 = vld [vmem:[%s1995] ss:$4 sm:$0xff]
      %s2112 = scalar_lea.vmem %s3, 4
      %v2113 = vld [vmem:[%s2112] sm:$0x3]
      %2114 = vst [vmem:[#allocation1] ss:$9 sm:$0xff] %v1988
      %s2115 = scalar_lea.vmem [#allocation1], 1
      %2116 = vst [vmem:[%s2115] ss:$9 sm:$0xff] %v1990
      %s2117 = scalar_lea.vmem [#allocation1], 2
      %2118 = vst [vmem:[%s2117] ss:$9 sm:$0xff] %v1992
      %s2119 = scalar_lea.vmem [#allocation1], 3
      %2120 = vst [vmem:[%s2119] ss:$9 sm:$0xff] %v1994
      %s2121 = scalar_lea.vmem [#allocation1], 4
      %2122 = vst [vmem:[%s2121] ss:$9 sm:$0xff] %v1996
      %s2123 = scalar_lea.vmem [#allocation1], 5
      %2124 = vst [vmem:[%s2123] ss:$9 sm:$0xff] %v1998
      %s2125 = scalar_lea.vmem [#allocation1], 6
      %2126 = vst [vmem:[%s2125] ss:$9 sm:$0xff] %v2000
      %s2127 = scalar_lea.vmem [#allocation1], 7
      %2128 = vst [vmem:[%s2127] ss:$9 sm:$0xff] %v2002
      %v2129 = vld [vmem:[#allocation1] sm:$0xff]
      %2130 = vst [vmem:[#allocation1] ss:$9 sm:$0xff] %v2003
      %2131 = vst [vmem:[%s2115] ss:$9 sm:$0xff] %v2005
      %2132 = vst [vmem:[%s2117] ss:$9 sm:$0xff] %v2006
      %2133 = vst [vmem:[%s2119] ss:$9 sm:$0xff] %v2007
      %2134 = vst [vmem:[%s2121] ss:$9 sm:$0xff] %v2010
      %2135 = vst [vmem:[%s2123] ss:$9 sm:$0xff] %v2011
      %2136 = vst [vmem:[%s2125] ss:$9 sm:$0xff] %v2012
      %2137 = vst [vmem:[%s2127] ss:$9 sm:$0xff] %v2013
      %v2138 = vld [vmem:[#allocation1] sm:$0xff]
      %2139 = vst [vmem:[#allocation1] ss:$9 sm:$0xff] %v2014
      %2140 = vst [vmem:[%s2115] ss:$9 sm:$0xff] %v2015
      %2141 = vst [vmem:[%s2117] ss:$9 sm:$0xff] %v2018
      %2142 = vst [vmem:[%s2119] ss:$9 sm:$0xff] %v2019
      %2143 = vst [vmem:[%s2121] ss:$9 sm:$0xff] %v2020
      %2144 = vst [vmem:[%s2123] ss:$9 sm:$0xff] %v2021
      %2145 = vst [vmem:[%s2125] ss:$9 sm:$0xff] %v2022
      %2146 = vst [vmem:[%s2127] ss:$9 sm:$0xff] %v2023
      %v2147 = vld [vmem:[#allocation1] sm:$0xff]
      %2148 = vst [vmem:[#allocation1] ss:$9 sm:$0xff] %v2024
      %2149 = vst [vmem:[%s2115] ss:$9 sm:$0xff] %v2026
      %2150 = vst [vmem:[%s2117] ss:$9 sm:$0xff] %v2027
      %2151 = vst [vmem:[%s2119] ss:$9 sm:$0xff] %v2029
      %2152 = vst [vmem:[%s2121] ss:$9 sm:$0xff] %v2030
      %2153 = vst [vmem:[%s2123] ss:$9 sm:$0xff] %v2031
      %2154 = vst [vmem:[%s2125] ss:$9 sm:$0xff] %v2034
      %2155 = vst [vmem:[%s2127] ss:$9 sm:$0xff] %v2035
      %v2156 = vld [vmem:[#allocation1] sm:$0xff]
      %2157 = vst [vmem:[#allocation1] ss:$9 sm:$0xff] %v2036
      %2158 = vst [vmem:[%s2115] ss:$9 sm:$0xff] %v2037
      %2159 = vst [vmem:[%s2117] ss:$9 sm:$0xff] %v2038
      %2160 = vst [vmem:[%s2119] ss:$9 sm:$0xff] %v2039
      %2161 = vst [vmem:[%s2121] ss:$9 sm:$0xff] %v2042
      %2162 = vst [vmem:[%s2123] ss:$9 sm:$0xff] %v2043
      %2163 = vst [vmem:[%s2125] ss:$9 sm:$0xff] %v2044
      %2164 = vst [vmem:[%s2127] ss:$9 sm:$0xff] %v2045
      %v2165 = vld [vmem:[#allocation1] sm:$0xff]
      %2166 = vst [vmem:[#allocation1] ss:$9 sm:$0xff] %v2046
      %2167 = vst [vmem:[%s2115] ss:$9 sm:$0xff] %v2047
      %2168 = vst [vmem:[%s2117] ss:$9 sm:$0xff] %v2048
      %2169 = vst [vmem:[%s2119] ss:$9 sm:$0xff] %v2050
      %2170 = vst [vmem:[%s2121] ss:$9 sm:$0xff] %v2051
      %2171 = vst [vmem:[%s2123] ss:$9 sm:$0xff] %v2053
      %2172 = vst [vmem:[%s2125] ss:$9 sm:$0xff] %v2054
      %2173 = vst [vmem:[%s2127] ss:$9 sm:$0xff] %v2055
      %v2174 = vld [vmem:[#allocation1] sm:$0xff]
      %2175 = vst [vmem:[#allocation1] ss:$9 sm:$0xff] %v2058
      %2176 = vst [vmem:[%s2115] ss:$9 sm:$0xff] %v2059
      %2177 = vst [vmem:[%s2117] ss:$9 sm:$0xff] %v2060
      %2178 = vst [vmem:[%s2119] ss:$9 sm:$0xff] %v2061
      %2179 = vst [vmem:[%s2121] ss:$9 sm:$0xff] %v2062
      %2180 = vst [vmem:[%s2123] ss:$9 sm:$0xff] %v2063
      %2181 = vst [vmem:[%s2125] ss:$9 sm:$0xff] %v2066
      %2182 = vst [vmem:[%s2127] ss:$9 sm:$0xff] %v2067
      %v2183 = vld [vmem:[#allocation1] sm:$0xff]
      %2184 = vst [vmem:[#allocation1] ss:$9 sm:$0xff] %v2068
      %2185 = vst [vmem:[%s2115] ss:$9 sm:$0xff] %v2069
      %2186 = vst [vmem:[%s2117] ss:$9 sm:$0xff] %v2070
      %2187 = vst [vmem:[%s2119] ss:$9 sm:$0xff] %v2071
      %2188 = vst [vmem:[%s2121] ss:$9 sm:$0xff] %v2072
      %2189 = vst [vmem:[%s2123] ss:$9 sm:$0xff] %v2074
      %2190 = vst [vmem:[%s2125] ss:$9 sm:$0xff] %v2075
      %2191 = vst [vmem:[%s2127] ss:$9 sm:$0xff] %v2077
      %v2192 = vld [vmem:[#allocation1] sm:$0xff]
      %2193 = vst [vmem:[#allocation1] ss:$9 sm:$0xff] %v2078
      %2194 = vst [vmem:[%s2115] ss:$9 sm:$0xff] %v2079
      %2195 = vst [vmem:[%s2117] ss:$9 sm:$0xff] %v2082
      %2196 = vst [vmem:[%s2119] ss:$9 sm:$0xff] %v2083
      %2197 = vst [vmem:[%s2121] ss:$9 sm:$0xff] %v2084
      %2198 = vst [vmem:[%s2123] ss:$9 sm:$0xff] %v2085
      %2199 = vst [vmem:[%s2125] ss:$9 sm:$0xff] %v2086
      %2200 = vst [vmem:[%s2127] ss:$9 sm:$0xff] %v2087
      %v2201 = vld [vmem:[#allocation1] sm:$0xff]
      %2202 = vst [vmem:[#allocation1] ss:$9 sm:$0xff] %v2090
      %2203 = vst [vmem:[%s2115] ss:$9 sm:$0xff] %v2091
      %2204 = vst [vmem:[%s2117] ss:$9 sm:$0xff] %v2092
      %2205 = vst [vmem:[%s2119] ss:$9 sm:$0xff] %v2093
      %2206 = vst [vmem:[%s2121] ss:$9 sm:$0xff] %v2094
      %2207 = vst [vmem:[%s2123] ss:$9 sm:$0xff] %v2095
      %2208 = vst [vmem:[%s2125] ss:$9 sm:$0xff] %v2096
      %2209 = vst [vmem:[%s2127] ss:$9 sm:$0xff] %v2098
      %v2210 = vld [vmem:[#allocation1] sm:$0xff]
      %2211 = vst [vmem:[#allocation1] ss:$9 sm:$0xff] %v2099
      %2212 = vst [vmem:[%s2115] ss:$9 sm:$0xff] %v2101
      %2213 = vst [vmem:[%s2117] ss:$9 sm:$0xff] %v2102
      %2214 = vst [vmem:[%s2119] ss:$9 sm:$0xff] %v2103
      %2215 = vst [vmem:[%s2121] ss:$9 sm:$0xff] %v2106
      %2216 = vst [vmem:[%s2123] ss:$9 sm:$0xff] %v2107
      %2217 = vst [vmem:[%s2125] ss:$9 sm:$0xff] %v2108
      %2218 = vst [vmem:[%s2127] ss:$9 sm:$0xff] %v2109
      %v2219 = vld [vmem:[#allocation1] sm:$0xff]
      %2220 = vst [vmem:[#allocation1] ss:$9 sm:$0xff] %v2110
      %2221 = vst [vmem:[%s2115] ss:$9 sm:$0xff] %v2111
      %v2222 = vld [vmem:[#allocation1] sm:$0xff]
      %v2223 = vsel %vm1682, %v2129, 0
      %v2225 = vsel %vm1682, %v2138, 0
      %v2227 = vsel %vm1682, %v2147, 0
      %v2229 = vsel %vm1682, %v2156, 0
      %v2231 = vsel %vm1682, %v2165, 0
      %v2233 = vsel %vm1682, %v2174, 0
      %v2235 = vsel %vm1682, %v2183, 0
      %v2237 = vsel %vm1682, %v2192, 0
      %v2239 = vsel %vm1682, %v2201, 0
      %v2241 = vsel %vm1682, %v2210, 0
      %v2243 = vsel %vm1682, %v2219, 0
      %v2245 = vsel %vm1682, %v2222, 0
      %v2248 = vand.u32 %v2113, %v1709
      %2250 = vmatpush.bf16.msra.mxu0 0
      %2251 = vmatpush.bf16.msra.mxu0 0
      %2252 = vmatpush.bf16.msra.mxu0 0
      %2253 = vmatpush.bf16.msra.mxu0 0
      %2254 = vmatpush.bf16.msra.mxu0 0
      %2255 = vmatpush.bf16.msra.mxu0 0
      %2256 = vmatpush.bf16.msra.mxu0 0
      %2257 = vmatpush.bf16.msra.mxu0 %v2248
      %2258 = vmatmul.bf16.gmra.mxu0 %v2223
      %v2259 = vpop.f32.mrf.mxu0
      %v2260 = vadd.f32 0.0, %v2259
      %v2261 = vpop.f32.mrf.mxu0
      %v2262 = vadd.f32 0.0, %v2261
      %2263 = vmatmul.bf16.gmra.mxu0 %v2225
      %v2264 = vpop.f32.mrf.mxu0
      %v2265 = vadd.f32 0.0, %v2264
      %v2266 = vpop.f32.mrf.mxu0
      %v2267 = vadd.f32 0.0, %v2266
      %2268 = vmatmul.bf16.gmra.mxu0 %v2227
      %v2269 = vpop.f32.mrf.mxu0
      %v2270 = vadd.f32 0.0, %v2269
      %v2271 = vpop.f32.mrf.mxu0
      %v2272 = vadd.f32 0.0, %v2271
      %2273 = vmatmul.bf16.gmra.mxu0 %v2229
      %v2274 = vpop.f32.mrf.mxu0
      %v2275 = vadd.f32 0.0, %v2274
      %v2276 = vpop.f32.mrf.mxu0
      %v2277 = vadd.f32 0.0, %v2276
      %2278 = vmatmul.bf16.gmra.mxu0 %v2231
      %v2279 = vpop.f32.mrf.mxu0
      %v2280 = vadd.f32 0.0, %v2279
      %v2281 = vpop.f32.mrf.mxu0
      %v2282 = vadd.f32 0.0, %v2281
      %2283 = vmatmul.bf16.gmra.mxu0 %v2233
      %v2284 = vpop.f32.mrf.mxu0
      %v2285 = vadd.f32 0.0, %v2284
      %v2286 = vpop.f32.mrf.mxu0
      %v2287 = vadd.f32 0.0, %v2286
      %2288 = vmatmul.bf16.gmra.mxu0 %v2235
      %v2289 = vpop.f32.mrf.mxu0
      %v2290 = vadd.f32 0.0, %v2289
      %v2291 = vpop.f32.mrf.mxu0
      %v2292 = vadd.f32 0.0, %v2291
      %2293 = vmatmul.bf16.gmra.mxu0 %v2237
      %v2294 = vpop.f32.mrf.mxu0
      %v2295 = vadd.f32 0.0, %v2294
      %v2296 = vpop.f32.mrf.mxu0
      %v2297 = vadd.f32 0.0, %v2296
      %2298 = vmatmul.bf16.gmra.mxu0 %v2239
      %v2299 = vpop.f32.mrf.mxu0
      %v2300 = vadd.f32 0.0, %v2299
      %v2301 = vpop.f32.mrf.mxu0
      %v2302 = vadd.f32 0.0, %v2301
      %2303 = vmatmul.bf16.gmra.mxu0 %v2241
      %v2304 = vpop.f32.mrf.mxu0
      %v2305 = vadd.f32 0.0, %v2304
      %v2306 = vpop.f32.mrf.mxu0
      %v2307 = vadd.f32 0.0, %v2306
      %2308 = vmatmul.bf16.gmra.mxu0 %v2243
      %v2309 = vpop.f32.mrf.mxu0
      %v2310 = vadd.f32 0.0, %v2309
      %v2311 = vpop.f32.mrf.mxu0
      %v2312 = vadd.f32 0.0, %v2311
      %2313 = vmatmul.bf16.gmra.mxu0 %v2245
      %v2314 = vpop.f32.mrf.mxu0
      %v2315 = vadd.f32 0.0, %v2314
      %v2316 = vpop.f32.mrf.mxu0
      %2317 = vdwg.mxu0
      %v2318 = vadd.f32 %v1927, %v2260
      %v2319 = vadd.f32 %v1929, %v2262
      %v2320 = vadd.f32 %v1932, %v2265
      %v2321 = vadd.f32 %v1934, %v2267
      %v2322 = vadd.f32 %v1937, %v2270
      %v2323 = vadd.f32 %v1939, %v2272
      %v2324 = vadd.f32 %v1942, %v2275
      %v2325 = vadd.f32 %v1944, %v2277
      %v2326 = vadd.f32 %v1947, %v2280
      %v2327 = vadd.f32 %v1949, %v2282
      %v2328 = vadd.f32 %v1952, %v2285
      %v2329 = vadd.f32 %v1954, %v2287
      %v2330 = vadd.f32 %v1957, %v2290
      %v2331 = vadd.f32 %v1959, %v2292
      %v2332 = vadd.f32 %v1962, %v2295
      %v2333 = vadd.f32 %v1964, %v2297
      %v2334 = vadd.f32 %v1967, %v2300
      %v2335 = vadd.f32 %v1969, %v2302
      %v2336 = vadd.f32 %v1972, %v2305
      %v2337 = vadd.f32 %v1974, %v2307
      %v2338 = vadd.f32 %v1977, %v2310
      %v2339 = vadd.f32 %v1979, %v2312
      %v2340 = vadd.f32 %v1982, %v2315
      %v2344 = vrot.slane %v395, 3
      %v2345 = vrot.slane %v396, 3
      %v2346 = vrot.slane %v397, 3
      %v2349 = vsel %vm461, %v395, %v2344
      %v2350 = vsel %vm465, %v395, %v2344
      %v2352 = vrot.slane %v2350, 1
      %v2353 = vsel %vm469, %v395, %v2344
      %v2355 = vrot.slane %v2353, 2
      %v2356 = vsel %vm473, %v395, %v2344
      %v2358 = vrot.slane %v2356, 3
      %v2361 = vsel %vm461, %v396, %v2345
      %v2362 = vsel %vm465, %v396, %v2345
      %v2364 = vrot.slane %v2362, 1
      %v2365 = vsel %vm469, %v396, %v2345
      %v2367 = vrot.slane %v2365, 2
      %v2368 = vsel %vm473, %v396, %v2345
      %v2370 = vrot.slane %v2368, 3
      %v2373 = vsel %vm461, %v397, %v2346
      %s2374 = scalar_lea.vmem %s3, 6
      %v2375 = vld [vmem:[%s2374] sm:$0x3]
      %2376 = vst [vmem:[#allocation1] ss:$9 sm:$0xff] %v494
      %s2377 = scalar_lea.vmem [#allocation1], 1
      %2378 = vst [vmem:[%s2377] ss:$9 sm:$0xff] %v497
      %s2379 = scalar_lea.vmem [#allocation1], 2
      %2380 = vst [vmem:[%s2379] ss:$9 sm:$0xff] %v500
      %s2381 = scalar_lea.vmem [#allocation1], 3
      %2382 = vst [vmem:[%s2381] ss:$9 sm:$0xff] %v503
      %s2383 = scalar_lea.vmem [#allocation1], 4
      %2384 = vst [vmem:[%s2383] ss:$9 sm:$0xff] %v506
      %s2385 = scalar_lea.vmem [#allocation1], 5
      %2386 = vst [vmem:[%s2385] ss:$9 sm:$0xff] %v509
      %s2387 = scalar_lea.vmem [#allocation1], 6
      %2388 = vst [vmem:[%s2387] ss:$9 sm:$0xff] %v512
      %s2389 = scalar_lea.vmem [#allocation1], 7
      %2390 = vst [vmem:[%s2389] ss:$9 sm:$0xff] %v515
      %v2391 = vld [vmem:[#allocation1] sm:$0xff]
      %2392 = vst [vmem:[#allocation1] ss:$9 sm:$0xff] %v518
      %2393 = vst [vmem:[%s2377] ss:$9 sm:$0xff] %v521
      %2394 = vst [vmem:[%s2379] ss:$9 sm:$0xff] %v524
      %2395 = vst [vmem:[%s2381] ss:$9 sm:$0xff] %v527
      %2396 = vst [vmem:[%s2383] ss:$9 sm:$0xff] %v530
      %2397 = vst [vmem:[%s2385] ss:$9 sm:$0xff] %v533
      %2398 = vst [vmem:[%s2387] ss:$9 sm:$0xff] %v536
      %2399 = vst [vmem:[%s2389] ss:$9 sm:$0xff] %v539
      %v2400 = vld [vmem:[#allocation1] sm:$0xff]
      %2401 = vst [vmem:[#allocation1] ss:$9 sm:$0xff] %v542
      %2402 = vst [vmem:[%s2377] ss:$9 sm:$0xff] %v545
      %2403 = vst [vmem:[%s2379] ss:$9 sm:$0xff] %v548
      %2404 = vst [vmem:[%s2381] ss:$9 sm:$0xff] %v551
      %2405 = vst [vmem:[%s2383] ss:$9 sm:$0xff] %v554
      %2406 = vst [vmem:[%s2385] ss:$9 sm:$0xff] %v557
      %2407 = vst [vmem:[%s2387] ss:$9 sm:$0xff] %v560
      %2408 = vst [vmem:[%s2389] ss:$9 sm:$0xff] %v563
      %v2409 = vld [vmem:[#allocation1] sm:$0xff]
      %2410 = vst [vmem:[#allocation1] ss:$9 sm:$0xff] %v566
      %2411 = vst [vmem:[%s2377] ss:$9 sm:$0xff] %v569
      %2412 = vst [vmem:[%s2379] ss:$9 sm:$0xff] %v572
      %2413 = vst [vmem:[%s2381] ss:$9 sm:$0xff] %v575
      %2414 = vst [vmem:[%s2383] ss:$9 sm:$0xff] %v578
      %2415 = vst [vmem:[%s2385] ss:$9 sm:$0xff] %v581
      %2416 = vst [vmem:[%s2387] ss:$9 sm:$0xff] %v584
      %2417 = vst [vmem:[%s2389] ss:$9 sm:$0xff] %v587
      %v2418 = vld [vmem:[#allocation1] sm:$0xff]
      %2419 = vst [vmem:[#allocation1] ss:$9 sm:$0xff] %v590
      %2420 = vst [vmem:[%s2377] ss:$9 sm:$0xff] %v593
      %2421 = vst [vmem:[%s2379] ss:$9 sm:$0xff] %v596
      %2422 = vst [vmem:[%s2381] ss:$9 sm:$0xff] %v599
      %2423 = vst [vmem:[%s2383] ss:$9 sm:$0xff] %v602
      %2424 = vst [vmem:[%s2385] ss:$9 sm:$0xff] %v605
      %2425 = vst [vmem:[%s2387] ss:$9 sm:$0xff] %v608
      %2426 = vst [vmem:[%s2389] ss:$9 sm:$0xff] %v611
      %v2427 = vld [vmem:[#allocation1] sm:$0xff]
      %2428 = vst [vmem:[#allocation1] ss:$9 sm:$0xff] %v614
      %2429 = vst [vmem:[%s2377] ss:$9 sm:$0xff] %v617
      %2430 = vst [vmem:[%s2379] ss:$9 sm:$0xff] %v620
      %2431 = vst [vmem:[%s2381] ss:$9 sm:$0xff] %v623
      %2432 = vst [vmem:[%s2383] ss:$9 sm:$0xff] %v626
      %2433 = vst [vmem:[%s2385] ss:$9 sm:$0xff] %v629
      %2434 = vst [vmem:[%s2387] ss:$9 sm:$0xff] %v632
      %2435 = vst [vmem:[%s2389] ss:$9 sm:$0xff] %v635
      %v2436 = vld [vmem:[#allocation1] sm:$0xff]
      %2437 = vst [vmem:[#allocation1] ss:$9 sm:$0xff] %v638
      %2438 = vst [vmem:[%s2377] ss:$9 sm:$0xff] %v641
      %2439 = vst [vmem:[%s2379] ss:$9 sm:$0xff] %v644
      %2440 = vst [vmem:[%s2381] ss:$9 sm:$0xff] %v647
      %2441 = vst [vmem:[%s2383] ss:$9 sm:$0xff] %v650
      %2442 = vst [vmem:[%s2385] ss:$9 sm:$0xff] %v653
      %2443 = vst [vmem:[%s2387] ss:$9 sm:$0xff] %v656
      %2444 = vst [vmem:[%s2389] ss:$9 sm:$0xff] %v659
      %v2445 = vld [vmem:[#allocation1] sm:$0xff]
      %2446 = vst [vmem:[#allocation1] ss:$9 sm:$0xff] %v662
      %2447 = vst [vmem:[%s2377] ss:$9 sm:$0xff] %v665
      %2448 = vst [vmem:[%s2379] ss:$9 sm:$0xff] %v668
      %2449 = vst [vmem:[%s2381] ss:$9 sm:$0xff] %v671
      %2450 = vst [vmem:[%s2383] ss:$9 sm:$0xff] %v674
      %2451 = vst [vmem:[%s2385] ss:$9 sm:$0xff] %v677
      %2452 = vst [vmem:[%s2387] ss:$9 sm:$0xff] %v680
      %2453 = vst [vmem:[%s2389] ss:$9 sm:$0xff] %v683
      %v2454 = vld [vmem:[#allocation1] sm:$0xff]
      %2455 = vst [vmem:[#allocation1] ss:$9 sm:$0xff] %v686
      %2456 = vst [vmem:[%s2377] ss:$9 sm:$0xff] %v689
      %2457 = vst [vmem:[%s2379] ss:$9 sm:$0xff] %v692
      %2458 = vst [vmem:[%s2381] ss:$9 sm:$0xff] %v695
      %2459 = vst [vmem:[%s2383] ss:$9 sm:$0xff] %v698
      %2460 = vst [vmem:[%s2385] ss:$9 sm:$0xff] %v701
      %2461 = vst [vmem:[%s2387] ss:$9 sm:$0xff] %v704
      %2462 = vst [vmem:[%s2389] ss:$9 sm:$0xff] %v707
      %v2463 = vld [vmem:[#allocation1] sm:$0xff]
      %2464 = vst [vmem:[#allocation1] ss:$9 sm:$0xff] %v710
      %2465 = vst [vmem:[%s2377] ss:$9 sm:$0xff] %v713
      %2466 = vst [vmem:[%s2379] ss:$9 sm:$0xff] %v716
      %2467 = vst [vmem:[%s2381] ss:$9 sm:$0xff] %v719
      %2468 = vst [vmem:[%s2383] ss:$9 sm:$0xff] %v722
      %2469 = vst [vmem:[%s2385] ss:$9 sm:$0xff] %v725
      %2470 = vst [vmem:[%s2387] ss:$9 sm:$0xff] %v728
      %2471 = vst [vmem:[%s2389] ss:$9 sm:$0xff] %v731
      %v2472 = vld [vmem:[#allocation1] sm:$0xff]
      %2473 = vst [vmem:[#allocation1] ss:$9 sm:$0xff] %v734
      %2474 = vst [vmem:[%s2377] ss:$9 sm:$0xff] %v2349
      %2476 = vst [vmem:[%s2379] ss:$9 sm:$0xff] %v2352
      %2478 = vst [vmem:[%s2381] ss:$9 sm:$0xff] %v2355
      %2480 = vst [vmem:[%s2383] ss:$9 sm:$0xff] %v2358
      %2481 = vst [vmem:[%s2385] ss:$9 sm:$0xff] %v2361
      %2483 = vst [vmem:[%s2387] ss:$9 sm:$0xff] %v2364
      %2485 = vst [vmem:[%s2389] ss:$9 sm:$0xff] %v2367
      %v2486 = vld [vmem:[#allocation1] sm:$0xff]
      %2488 = vst [vmem:[#allocation1] ss:$9 sm:$0xff] %v2370
      %2489 = vst [vmem:[%s2377] ss:$9 sm:$0xff] %v2373
      %v2490 = vld [vmem:[#allocation1] sm:$0xff]
      %v2491 = vsel %vm1682, %v2391, 0
      %v2493 = vsel %vm1682, %v2400, 0
      %v2495 = vsel %vm1682, %v2409, 0
      %v2497 = vsel %vm1682, %v2418, 0
      %v2499 = vsel %vm1682, %v2427, 0
      %v2501 = vsel %vm1682, %v2436, 0
      %v2503 = vsel %vm1682, %v2445, 0
      %v2505 = vsel %vm1682, %v2454, 0
      %v2507 = vsel %vm1682, %v2463, 0
      %v2509 = vsel %vm1682, %v2472, 0
      %v2511 = vsel %vm1682, %v2486, 0
      %v2513 = vsel %vm1682, %v2490, 0
      %v2516 = vand.u32 %v2375, %v1709
      %2518 = vmatpush.bf16.msra.mxu0 0
      %2519 = vmatpush.bf16.msra.mxu0 0
      %2520 = vmatpush.bf16.msra.mxu0 0
      %2521 = vmatpush.bf16.msra.mxu0 0
      %2522 = vmatpush.bf16.msra.mxu0 0
      %2523 = vmatpush.bf16.msra.mxu0 0
      %2524 = vmatpush.bf16.msra.mxu0 0
      %2525 = vmatpush.bf16.msra.mxu0 %v2516
      %2526 = vmatmul.bf16.gmra.mxu0 %v2491
      %v2527 = vpop.f32.mrf.mxu0
      %v2528 = vadd.f32 0.0, %v2527
      %v2529 = vpop.f32.mrf.mxu0
      %v2530 = vadd.f32 0.0, %v2529
      %2531 = vmatmul.bf16.gmra.mxu0 %v2493
      %v2532 = vpop.f32.mrf.mxu0
      %v2533 = vadd.f32 0.0, %v2532
      %v2534 = vpop.f32.mrf.mxu0
      %v2535 = vadd.f32 0.0, %v2534
      %2536 = vmatmul.bf16.gmra.mxu0 %v2495
      %v2537 = vpop.f32.mrf.mxu0
      %v2538 = vadd.f32 0.0, %v2537
      %v2539 = vpop.f32.mrf.mxu0
      %v2540 = vadd.f32 0.0, %v2539
      %2541 = vmatmul.bf16.gmra.mxu0 %v2497
      %v2542 = vpop.f32.mrf.mxu0
      %v2543 = vadd.f32 0.0, %v2542
      %v2544 = vpop.f32.mrf.mxu0
      %v2545 = vadd.f32 0.0, %v2544
      %2546 = vmatmul.bf16.gmra.mxu0 %v2499
      %v2547 = vpop.f32.mrf.mxu0
      %v2548 = vadd.f32 0.0, %v2547
      %v2549 = vpop.f32.mrf.mxu0
      %v2550 = vadd.f32 0.0, %v2549
      %2551 = vmatmul.bf16.gmra.mxu0 %v2501
      %v2552 = vpop.f32.mrf.mxu0
      %v2553 = vadd.f32 0.0, %v2552
      %v2554 = vpop.f32.mrf.mxu0
      %v2555 = vadd.f32 0.0, %v2554
      %2556 = vmatmul.bf16.gmra.mxu0 %v2503
      %v2557 = vpop.f32.mrf.mxu0
      %v2558 = vadd.f32 0.0, %v2557
      %v2559 = vpop.f32.mrf.mxu0
      %v2560 = vadd.f32 0.0, %v2559
      %2561 = vmatmul.bf16.gmra.mxu0 %v2505
      %v2562 = vpop.f32.mrf.mxu0
      %v2563 = vadd.f32 0.0, %v2562
      %v2564 = vpop.f32.mrf.mxu0
      %v2565 = vadd.f32 0.0, %v2564
      %2566 = vmatmul.bf16.gmra.mxu0 %v2507
      %v2567 = vpop.f32.mrf.mxu0
      %v2568 = vadd.f32 0.0, %v2567
      %v2569 = vpop.f32.mrf.mxu0
      %v2570 = vadd.f32 0.0, %v2569
      %2571 = vmatmul.bf16.gmra.mxu0 %v2509
      %v2572 = vpop.f32.mrf.mxu0
      %v2573 = vadd.f32 0.0, %v2572
      %v2574 = vpop.f32.mrf.mxu0
      %v2575 = vadd.f32 0.0, %v2574
      %2576 = vmatmul.bf16.gmra.mxu0 %v2511
      %v2577 = vpop.f32.mrf.mxu0
      %v2578 = vadd.f32 0.0, %v2577
      %v2579 = vpop.f32.mrf.mxu0
      %v2580 = vadd.f32 0.0, %v2579
      %2581 = vmatmul.bf16.gmra.mxu0 %v2513
      %v2582 = vpop.f32.mrf.mxu0
      %v2583 = vadd.f32 0.0, %v2582
      %v2584 = vpop.f32.mrf.mxu0
      %2585 = vdwg.mxu0
      %v2586 = vadd.f32 %v2318, %v2528
      %v2587 = vadd.f32 %v2319, %v2530
      %v2588 = vadd.f32 %v2320, %v2533
      %v2589 = vadd.f32 %v2321, %v2535
      %v2590 = vadd.f32 %v2322, %v2538
      %v2591 = vadd.f32 %v2323, %v2540
      %v2592 = vadd.f32 %v2324, %v2543
      %v2593 = vadd.f32 %v2325, %v2545
      %v2594 = vadd.f32 %v2326, %v2548
      %v2595 = vadd.f32 %v2327, %v2550
      %v2596 = vadd.f32 %v2328, %v2553
      %v2597 = vadd.f32 %v2329, %v2555
      %v2598 = vadd.f32 %v2330, %v2558
      %v2599 = vadd.f32 %v2331, %v2560
      %v2600 = vadd.f32 %v2332, %v2563
      %v2601 = vadd.f32 %v2333, %v2565
      %v2602 = vadd.f32 %v2334, %v2568
      %v2603 = vadd.f32 %v2335, %v2570
      %v2604 = vadd.f32 %v2336, %v2573
      %v2605 = vadd.f32 %v2337, %v2575
      %v2606 = vadd.f32 %v2338, %v2578
      %v2607 = vadd.f32 %v2339, %v2580
      %v2608 = vadd.f32 %v2340, %v2583
      %v2609 = vsel %vm465, %v397, %v2346
      %v2611 = vrot.slane %v2609, 1
      %v2612 = vshrl.u32 %v2349, 16
      %v2614 = vrot.slane %v2612, 7
      %v2615 = vrot.slane %v2614, 1
      %v2616 = vshll.u32 %v2352, 16
      %v2618 = vsel %vm780, %v2615, %v2616
      %v2619 = vshrl.u32 %v2352, 16
      %v2621 = vrot.slane %v2619, 7
      %v2622 = vrot.slane %v2621, 1
      %v2623 = vshll.u32 %v2355, 16
      %v2625 = vsel %vm780, %v2622, %v2623
      %v2626 = vshrl.u32 %v2355, 16
      %v2628 = vrot.slane %v2626, 7
      %v2629 = vrot.slane %v2628, 1
      %v2630 = vshll.u32 %v2358, 16
      %v2632 = vsel %vm780, %v2629, %v2630
      %v2633 = vshrl.u32 %v2358, 16
      %v2635 = vrot.slane %v2633, 7
      %v2636 = vrot.slane %v2635, 1
      %v2637 = vshll.u32 %v2361, 16
      %v2639 = vsel %vm780, %v2636, %v2637
      %v2640 = vshrl.u32 %v2361, 16
      %v2642 = vrot.slane %v2640, 7
      %v2643 = vrot.slane %v2642, 1
      %v2644 = vshll.u32 %v2364, 16
      %v2646 = vsel %vm780, %v2643, %v2644
      %v2647 = vshrl.u32 %v2364, 16
      %v2649 = vrot.slane %v2647, 7
      %v2650 = vrot.slane %v2649, 1
      %v2651 = vshll.u32 %v2367, 16
      %v2653 = vsel %vm780, %v2650, %v2651
      %v2654 = vshrl.u32 %v2367, 16
      %v2656 = vrot.slane %v2654, 7
      %v2657 = vrot.slane %v2656, 1
      %v2658 = vshll.u32 %v2370, 16
      %v2660 = vsel %vm780, %v2657, %v2658
      %v2661 = vshrl.u32 %v2370, 16
      %v2663 = vrot.slane %v2661, 7
      %v2664 = vrot.slane %v2663, 1
      %v2665 = vshll.u32 %v2373, 16
      %v2667 = vsel %vm780, %v2664, %v2665
      %v2668 = vshrl.u32 %v2373, 16
      %v2670 = vrot.slane %v2668, 7
      %v2671 = vrot.slane %v2670, 1
      %v2673 = vshll.u32 %v2611, 16
      %v2675 = vsel %vm780, %v2671, %v2673
      %s2676 = scalar_lea.vmem %s3, 8
      %v2677 = vld [vmem:[%s2676] sm:$0x3]
      %2678 = vst [vmem:[#allocation1] ss:$9 sm:$0xff] %v858
      %s2679 = scalar_lea.vmem [#allocation1], 1
      %2680 = vst [vmem:[%s2679] ss:$9 sm:$0xff] %v866
      %s2681 = scalar_lea.vmem [#allocation1], 2
      %2682 = vst [vmem:[%s2681] ss:$9 sm:$0xff] %v874
      %s2683 = scalar_lea.vmem [#allocation1], 3
      %2684 = vst [vmem:[%s2683] ss:$9 sm:$0xff] %v881
      %s2685 = scalar_lea.vmem [#allocation1], 4
      %2686 = vst [vmem:[%s2685] ss:$9 sm:$0xff] %v889
      %s2687 = scalar_lea.vmem [#allocation1], 5
      %2688 = vst [vmem:[%s2687] ss:$9 sm:$0xff] %v897
      %s2689 = scalar_lea.vmem [#allocation1], 6
      %2690 = vst [vmem:[%s2689] ss:$9 sm:$0xff] %v905
      %s2691 = scalar_lea.vmem [#allocation1], 7
      %2692 = vst [vmem:[%s2691] ss:$9 sm:$0xff] %v912
      %v2693 = vld [vmem:[#allocation1] sm:$0xff]
      %2694 = vst [vmem:[#allocation1] ss:$9 sm:$0xff] %v920
      %2695 = vst [vmem:[%s2679] ss:$9 sm:$0xff] %v928
      %2696 = vst [vmem:[%s2681] ss:$9 sm:$0xff] %v936
      %2697 = vst [vmem:[%s2683] ss:$9 sm:$0xff] %v944
      %2698 = vst [vmem:[%s2685] ss:$9 sm:$0xff] %v951
      %2699 = vst [vmem:[%s2687] ss:$9 sm:$0xff] %v959
      %2700 = vst [vmem:[%s2689] ss:$9 sm:$0xff] %v967
      %2701 = vst [vmem:[%s2691] ss:$9 sm:$0xff] %v975
      %v2702 = vld [vmem:[#allocation1] sm:$0xff]
      %2703 = vst [vmem:[#allocation1] ss:$9 sm:$0xff] %v982
      %2704 = vst [vmem:[%s2679] ss:$9 sm:$0xff] %v990
      %2705 = vst [vmem:[%s2681] ss:$9 sm:$0xff] %v998
      %2706 = vst [vmem:[%s2683] ss:$9 sm:$0xff] %v1006
      %2707 = vst [vmem:[%s2685] ss:$9 sm:$0xff] %v1014
      %2708 = vst [vmem:[%s2687] ss:$9 sm:$0xff] %v1021
      %2709 = vst [vmem:[%s2689] ss:$9 sm:$0xff] %v1029
      %2710 = vst [vmem:[%s2691] ss:$9 sm:$0xff] %v1037
      %v2711 = vld [vmem:[#allocation1] sm:$0xff]
      %2712 = vst [vmem:[#allocation1] ss:$9 sm:$0xff] %v1045
      %2713 = vst [vmem:[%s2679] ss:$9 sm:$0xff] %v1052
      %2714 = vst [vmem:[%s2681] ss:$9 sm:$0xff] %v1060
      %2715 = vst [vmem:[%s2683] ss:$9 sm:$0xff] %v1068
      %2716 = vst [vmem:[%s2685] ss:$9 sm:$0xff] %v1076
      %2717 = vst [vmem:[%s2687] ss:$9 sm:$0xff] %v1084
      %2718 = vst [vmem:[%s2689] ss:$9 sm:$0xff] %v1091
      %2719 = vst [vmem:[%s2691] ss:$9 sm:$0xff] %v1099
      %v2720 = vld [vmem:[#allocation1] sm:$0xff]
      %2721 = vst [vmem:[#allocation1] ss:$9 sm:$0xff] %v1107
      %2722 = vst [vmem:[%s2679] ss:$9 sm:$0xff] %v1115
      %2723 = vst [vmem:[%s2681] ss:$9 sm:$0xff] %v1122
      %2724 = vst [vmem:[%s2683] ss:$9 sm:$0xff] %v1130
      %2725 = vst [vmem:[%s2685] ss:$9 sm:$0xff] %v1138
      %2726 = vst [vmem:[%s2687] ss:$9 sm:$0xff] %v1146
      %2727 = vst [vmem:[%s2689] ss:$9 sm:$0xff] %v1154
      %2728 = vst [vmem:[%s2691] ss:$9 sm:$0xff] %v1161
      %v2729 = vld [vmem:[#allocation1] sm:$0xff]
      %2730 = vst [vmem:[#allocation1] ss:$9 sm:$0xff] %v1169
      %2731 = vst [vmem:[%s2679] ss:$9 sm:$0xff] %v1177
      %2732 = vst [vmem:[%s2681] ss:$9 sm:$0xff] %v1185
      %2733 = vst [vmem:[%s2683] ss:$9 sm:$0xff] %v1192
      %2734 = vst [vmem:[%s2685] ss:$9 sm:$0xff] %v1200
      %2735 = vst [vmem:[%s2687] ss:$9 sm:$0xff] %v1208
      %2736 = vst [vmem:[%s2689] ss:$9 sm:$0xff] %v1216
      %2737 = vst [vmem:[%s2691] ss:$9 sm:$0xff] %v1224
      %v2738 = vld [vmem:[#allocation1] sm:$0xff]
      %2739 = vst [vmem:[#allocation1] ss:$9 sm:$0xff] %v1231
      %2740 = vst [vmem:[%s2679] ss:$9 sm:$0xff] %v1239
      %2741 = vst [vmem:[%s2681] ss:$9 sm:$0xff] %v1247
      %2742 = vst [vmem:[%s2683] ss:$9 sm:$0xff] %v1255
      %2743 = vst [vmem:[%s2685] ss:$9 sm:$0xff] %v1262
      %2744 = vst [vmem:[%s2687] ss:$9 sm:$0xff] %v1270
      %2745 = vst [vmem:[%s2689] ss:$9 sm:$0xff] %v1278
      %2746 = vst [vmem:[%s2691] ss:$9 sm:$0xff] %v1286
      %v2747 = vld [vmem:[#allocation1] sm:$0xff]
      %2748 = vst [vmem:[#allocation1] ss:$9 sm:$0xff] %v1294
      %2749 = vst [vmem:[%s2679] ss:$9 sm:$0xff] %v1301
      %2750 = vst [vmem:[%s2681] ss:$9 sm:$0xff] %v1309
      %2751 = vst [vmem:[%s2683] ss:$9 sm:$0xff] %v1317
      %2752 = vst [vmem:[%s2685] ss:$9 sm:$0xff] %v1325
      %2753 = vst [vmem:[%s2687] ss:$9 sm:$0xff] %v1332
      %2754 = vst [vmem:[%s2689] ss:$9 sm:$0xff] %v1340
      %2755 = vst [vmem:[%s2691] ss:$9 sm:$0xff] %v1348
      %v2756 = vld [vmem:[#allocation1] sm:$0xff]
      %2757 = vst [vmem:[#allocation1] ss:$9 sm:$0xff] %v1356
      %2758 = vst [vmem:[%s2679] ss:$9 sm:$0xff] %v1364
      %2759 = vst [vmem:[%s2681] ss:$9 sm:$0xff] %v1371
      %2760 = vst [vmem:[%s2683] ss:$9 sm:$0xff] %v1379
      %2761 = vst [vmem:[%s2685] ss:$9 sm:$0xff] %v1387
      %2762 = vst [vmem:[%s2687] ss:$9 sm:$0xff] %v1395
      %2763 = vst [vmem:[%s2689] ss:$9 sm:$0xff] %v1402
      %2764 = vst [vmem:[%s2691] ss:$9 sm:$0xff] %v1410
      %v2765 = vld [vmem:[#allocation1] sm:$0xff]
      %2766 = vst [vmem:[#allocation1] ss:$9 sm:$0xff] %v1418
      %2767 = vst [vmem:[%s2679] ss:$9 sm:$0xff] %v1426
      %2768 = vst [vmem:[%s2681] ss:$9 sm:$0xff] %v1434
      %2769 = vst [vmem:[%s2683] ss:$9 sm:$0xff] %v1441
      %2770 = vst [vmem:[%s2685] ss:$9 sm:$0xff] %v1449
      %2771 = vst [vmem:[%s2687] ss:$9 sm:$0xff] %v1457
      %2772 = vst [vmem:[%s2689] ss:$9 sm:$0xff] %v1465
      %2773 = vst [vmem:[%s2691] ss:$9 sm:$0xff] %v1472
      %v2774 = vld [vmem:[#allocation1] sm:$0xff]
      %2775 = vst [vmem:[#allocation1] ss:$9 sm:$0xff] %v1480
      %2777 = vst [vmem:[%s2679] ss:$9 sm:$0xff] %v2618
      %2779 = vst [vmem:[%s2681] ss:$9 sm:$0xff] %v2625
      %2781 = vst [vmem:[%s2683] ss:$9 sm:$0xff] %v2632
      %2783 = vst [vmem:[%s2685] ss:$9 sm:$0xff] %v2639
      %2785 = vst [vmem:[%s2687] ss:$9 sm:$0xff] %v2646
      %2787 = vst [vmem:[%s2689] ss:$9 sm:$0xff] %v2653
      %2789 = vst [vmem:[%s2691] ss:$9 sm:$0xff] %v2660
      %v2790 = vld [vmem:[#allocation1] sm:$0xff]
      %2792 = vst [vmem:[#allocation1] ss:$9 sm:$0xff] %v2667
      %2794 = vst [vmem:[%s2679] ss:$9 sm:$0xff] %v2675
      %v2795 = vld [vmem:[#allocation1] sm:$0xff]
      %v2796 = vsel %vm1682, %v2693, 0
      %v2798 = vsel %vm1682, %v2702, 0
      %v2800 = vsel %vm1682, %v2711, 0
      %v2802 = vsel %vm1682, %v2720, 0
      %v2804 = vsel %vm1682, %v2729, 0
      %v2806 = vsel %vm1682, %v2738, 0
      %v2808 = vsel %vm1682, %v2747, 0
      %v2810 = vsel %vm1682, %v2756, 0
      %v2812 = vsel %vm1682, %v2765, 0
      %v2814 = vsel %vm1682, %v2774, 0
      %v2816 = vsel %vm1682, %v2790, 0
      %v2818 = vsel %vm1682, %v2795, 0
      %v2821 = vand.u32 %v2677, %v1709
      %2823 = vmatpush.bf16.msra.mxu0 0
      %2824 = vmatpush.bf16.msra.mxu0 0
      %2825 = vmatpush.bf16.msra.mxu0 0
      %2826 = vmatpush.bf16.msra.mxu0 0
      %2827 = vmatpush.bf16.msra.mxu0 0
      %2828 = vmatpush.bf16.msra.mxu0 0
      %2829 = vmatpush.bf16.msra.mxu0 0
      %2830 = vmatpush.bf16.msra.mxu0 %v2821
      %2831 = vmatmul.bf16.gmra.mxu0 %v2796
      %v2832 = vpop.f32.mrf.mxu0
      %v2833 = vadd.f32 0.0, %v2832
      %v2834 = vpop.f32.mrf.mxu0
      %v2835 = vadd.f32 0.0, %v2834
      %2836 = vmatmul.bf16.gmra.mxu0 %v2798
      %v2837 = vpop.f32.mrf.mxu0
      %v2838 = vadd.f32 0.0, %v2837
      %v2839 = vpop.f32.mrf.mxu0
      %v2840 = vadd.f32 0.0, %v2839
      %2841 = vmatmul.bf16.gmra.mxu0 %v2800
      %v2842 = vpop.f32.mrf.mxu0
      %v2843 = vadd.f32 0.0, %v2842
      %v2844 = vpop.f32.mrf.mxu0
      %v2845 = vadd.f32 0.0, %v2844
      %2846 = vmatmul.bf16.gmra.mxu0 %v2802
      %v2847 = vpop.f32.mrf.mxu0
      %v2848 = vadd.f32 0.0, %v2847
      %v2849 = vpop.f32.mrf.mxu0
      %v2850 = vadd.f32 0.0, %v2849
      %2851 = vmatmul.bf16.gmra.mxu0 %v2804
      %v2852 = vpop.f32.mrf.mxu0
      %v2853 = vadd.f32 0.0, %v2852
      %v2854 = vpop.f32.mrf.mxu0
      %v2855 = vadd.f32 0.0, %v2854
      %2856 = vmatmul.bf16.gmra.mxu0 %v2806
      %v2857 = vpop.f32.mrf.mxu0
      %v2858 = vadd.f32 0.0, %v2857
      %v2859 = vpop.f32.mrf.mxu0
      %v2860 = vadd.f32 0.0, %v2859
      %2861 = vmatmul.bf16.gmra.mxu0 %v2808
      %v2862 = vpop.f32.mrf.mxu0
      %v2863 = vadd.f32 0.0, %v2862
      %v2864 = vpop.f32.mrf.mxu0
      %v2865 = vadd.f32 0.0, %v2864
      %2866 = vmatmul.bf16.gmra.mxu0 %v2810
      %v2867 = vpop.f32.mrf.mxu0
      %v2868 = vadd.f32 0.0, %v2867
      %v2869 = vpop.f32.mrf.mxu0
      %v2870 = vadd.f32 0.0, %v2869
      %2871 = vmatmul.bf16.gmra.mxu0 %v2812
      %v2872 = vpop.f32.mrf.mxu0
      %v2873 = vadd.f32 0.0, %v2872
      %v2874 = vpop.f32.mrf.mxu0
      %v2875 = vadd.f32 0.0, %v2874
      %2876 = vmatmul.bf16.gmra.mxu0 %v2814
      %v2877 = vpop.f32.mrf.mxu0
      %v2878 = vadd.f32 0.0, %v2877
      %v2879 = vpop.f32.mrf.mxu0
      %v2880 = vadd.f32 0.0, %v2879
      %2881 = vmatmul.bf16.gmra.mxu0 %v2816
      %v2882 = vpop.f32.mrf.mxu0
      %v2883 = vadd.f32 0.0, %v2882
      %v2884 = vpop.f32.mrf.mxu0
      %v2885 = vadd.f32 0.0, %v2884
      %2886 = vmatmul.bf16.gmra.mxu0 %v2818
      %v2887 = vpop.f32.mrf.mxu0
      %v2888 = vadd.f32 0.0, %v2887
      %v2889 = vpop.f32.mrf.mxu0
      %2890 = vdwg.mxu0
      %v2891 = vadd.f32 %v2586, %v2833
      %v2892 = vadd.f32 %v2587, %v2835
      %v2893 = vadd.f32 %v2588, %v2838
      %v2894 = vadd.f32 %v2589, %v2840
      %v2895 = vadd.f32 %v2590, %v2843
      %v2896 = vadd.f32 %v2591, %v2845
      %v2897 = vadd.f32 %v2592, %v2848
      %v2898 = vadd.f32 %v2593, %v2850
      %v2899 = vadd.f32 %v2594, %v2853
      %v2900 = vadd.f32 %v2595, %v2855
      %v2901 = vadd.f32 %v2596, %v2858
      %v2902 = vadd.f32 %v2597, %v2860
      %v2903 = vadd.f32 %v2598, %v2863
      %v2904 = vadd.f32 %v2599, %v2865
      %v2905 = vadd.f32 %v2600, %v2868
      %v2906 = vadd.f32 %v2601, %v2870
      %v2907 = vadd.f32 %v2602, %v2873
      %v2908 = vadd.f32 %v2603, %v2875
      %v2909 = vadd.f32 %v2604, %v2878
      %v2910 = vadd.f32 %v2605, %v2880
      %v2911 = vadd.f32 %v2606, %v2883
      %v2912 = vadd.f32 %v2607, %v2885
      %v2913 = vadd.f32 %v2608, %v2888
      %2914 = vst [vmem:[#allocation1] sm:$0xff] %v368
      %2915 = vst [vmem:[#allocation1 + $0x20] sm:$0xff] %v369
      %s2916 = scalar_lea.vmem [#allocation1], 1
      %v2917 = vld [vmem:[%s2916] ss:$4 sm:$0xff]
      %s2918 = scalar_lea.vmem [#allocation1], 2
      %v2919 = vld [vmem:[%s2918] ss:$4 sm:$0xff]
      %s2920 = scalar_lea.vmem [#allocation1], 3
      %v2921 = vld [vmem:[%s2920] ss:$4 sm:$0xff]
      %s2922 = scalar_lea.vmem [#allocation1], 32
      %v2923 = vld [vmem:[%s2922] ss:$4 sm:$0xff]
      %s2924 = scalar_lea.vmem [#allocation1], 33
      %v2925 = vld [vmem:[%s2924] ss:$4 sm:$0xff]
      %s2926 = scalar_lea.vmem [#allocation1], 34
      %v2927 = vld [vmem:[%s2926] ss:$4 sm:$0xff]
      %s2928 = scalar_lea.vmem [#allocation1], 35
      %v2929 = vld [vmem:[%s2928] ss:$4 sm:$0xff]
      %2930 = vst [vmem:[#allocation1] sm:$0xff] %v370
      %v2931 = vld [vmem:[#allocation1] ss:$4 sm:$0xff]
      %v2932 = vld [vmem:[%s2916] ss:$4 sm:$0xff]
      %2933 = vst [vmem:[#allocation1 + $0x20] sm:$0xff] %v371
      %v2934 = vld [vmem:[%s2924] ss:$4 sm:$0xff]
      %v2935 = vld [vmem:[%s2926] ss:$4 sm:$0xff]
      %v2936 = vld [vmem:[%s2928] ss:$4 sm:$0xff]
      %2937 = vst [vmem:[#allocation1] sm:$0xff] %v372
      %2938 = vst [vmem:[#allocation1 + $0x20] sm:$0xff] %v373
      %v2939 = vld [vmem:[#allocation1] ss:$4 sm:$0xff]
      %v2940 = vld [vmem:[%s2916] ss:$4 sm:$0xff]
      %v2941 = vld [vmem:[%s2918] ss:$4 sm:$0xff]
      %v2942 = vld [vmem:[%s2920] ss:$4 sm:$0xff]
      %v2943 = vld [vmem:[%s2922] ss:$4 sm:$0xff]
      %v2944 = vld [vmem:[%s2924] ss:$4 sm:$0xff]
      %2945 = vst [vmem:[#allocation1] sm:$0xff] %v374
      %2946 = vst [vmem:[#allocation1 + $0x20] sm:$0xff] %v375
      %v2947 = vld [vmem:[%s2916] ss:$4 sm:$0xff]
      %v2948 = vld [vmem:[%s2918] ss:$4 sm:$0xff]
      %v2949 = vld [vmem:[%s2920] ss:$4 sm:$0xff]
      %v2950 = vld [vmem:[%s2922] ss:$4 sm:$0xff]
      %v2951 = vld [vmem:[%s2924] ss:$4 sm:$0xff]
      %v2952 = vld [vmem:[%s2926] ss:$4 sm:$0xff]
      %v2953 = vld [vmem:[%s2928] ss:$4 sm:$0xff]
      %2954 = vst [vmem:[#allocation1] sm:$0xff] %v376
      %v2955 = vld [vmem:[#allocation1] ss:$4 sm:$0xff]
      %v2956 = vld [vmem:[%s2916] ss:$4 sm:$0xff]
      %2957 = vst [vmem:[#allocation1 + $0x20] sm:$0xff] %v377
      %v2958 = vld [vmem:[%s2924] ss:$4 sm:$0xff]
      %v2959 = vld [vmem:[%s2926] ss:$4 sm:$0xff]
      %v2960 = vld [vmem:[%s2928] ss:$4 sm:$0xff]
      %2961 = vst [vmem:[#allocation1] sm:$0xff] %v378
      %2962 = vst [vmem:[#allocation1 + $0x20] sm:$0xff] %v379
      %v2963 = vld [vmem:[#allocation1] ss:$4 sm:$0xff]
      %v2964 = vld [vmem:[%s2916] ss:$4 sm:$0xff]
      %v2965 = vld [vmem:[%s2918] ss:$4 sm:$0xff]
      %v2966 = vld [vmem:[%s2920] ss:$4 sm:$0xff]
      %v2967 = vld [vmem:[%s2922] ss:$4 sm:$0xff]
      %v2968 = vld [vmem:[%s2924] ss:$4 sm:$0xff]
      %2969 = vst [vmem:[#allocation1] sm:$0xff] %v380
      %2970 = vst [vmem:[#allocation1 + $0x20] sm:$0xff] %v381
      %v2971 = vld [vmem:[%s2916] ss:$4 sm:$0xff]
      %v2972 = vld [vmem:[%s2918] ss:$4 sm:$0xff]
      %v2973 = vld [vmem:[%s2920] ss:$4 sm:$0xff]
      %v2974 = vld [vmem:[%s2922] ss:$4 sm:$0xff]
      %v2975 = vld [vmem:[%s2924] ss:$4 sm:$0xff]
      %v2976 = vld [vmem:[%s2926] ss:$4 sm:$0xff]
      %v2977 = vld [vmem:[%s2928] ss:$4 sm:$0xff]
      %2978 = vst [vmem:[#allocation1] sm:$0xff] %v382
      %v2979 = vld [vmem:[#allocation1] ss:$4 sm:$0xff]
      %v2980 = vld [vmem:[%s2916] ss:$4 sm:$0xff]
      %2981 = vst [vmem:[#allocation1 + $0x20] sm:$0xff] %v383
      %v2982 = vld [vmem:[%s2924] ss:$4 sm:$0xff]
      %v2983 = vld [vmem:[%s2926] ss:$4 sm:$0xff]
      %v2984 = vld [vmem:[%s2928] ss:$4 sm:$0xff]
      %2985 = vst [vmem:[#allocation1] sm:$0xff] %v384
      %2986 = vst [vmem:[#allocation1 + $0x20] sm:$0xff] %v385
      %v2987 = vld [vmem:[#allocation1] ss:$4 sm:$0xff]
      %v2988 = vld [vmem:[%s2916] ss:$4 sm:$0xff]
      %v2989 = vld [vmem:[%s2918] ss:$4 sm:$0xff]
      %v2990 = vld [vmem:[%s2920] ss:$4 sm:$0xff]
      %v2991 = vld [vmem:[%s2922] ss:$4 sm:$0xff]
      %v2992 = vld [vmem:[%s2924] ss:$4 sm:$0xff]
      %2993 = vst [vmem:[#allocation1] sm:$0xff] %v386
      %2994 = vst [vmem:[#allocation1 + $0x20] sm:$0xff] %v387
      %v2995 = vld [vmem:[%s2916] ss:$4 sm:$0xff]
      %v2996 = vld [vmem:[%s2918] ss:$4 sm:$0xff]
      %v2997 = vld [vmem:[%s2920] ss:$4 sm:$0xff]
      %v2998 = vld [vmem:[%s2922] ss:$4 sm:$0xff]
      %v2999 = vld [vmem:[%s2924] ss:$4 sm:$0xff]
      %v3000 = vld [vmem:[%s2926] ss:$4 sm:$0xff]
      %v3001 = vld [vmem:[%s2928] ss:$4 sm:$0xff]
      %3002 = vst [vmem:[#allocation1] sm:$0xff] %v388
      %v3003 = vld [vmem:[#allocation1] ss:$4 sm:$0xff]
      %v3004 = vld [vmem:[%s2916] ss:$4 sm:$0xff]
      %3005 = vst [vmem:[#allocation1 + $0x20] sm:$0xff] %v389
      %v3006 = vld [vmem:[%s2924] ss:$4 sm:$0xff]
      %v3007 = vld [vmem:[%s2926] ss:$4 sm:$0xff]
      %v3008 = vld [vmem:[%s2928] ss:$4 sm:$0xff]
      %3009 = vst [vmem:[#allocation1] sm:$0xff] %v390
      %3010 = vst [vmem:[#allocation1 + $0x20] sm:$0xff] %v391
      %v3011 = vld [vmem:[#allocation1] ss:$4 sm:$0xff]
      %v3012 = vld [vmem:[%s2916] ss:$4 sm:$0xff]
      %v3013 = vld [vmem:[%s2918] ss:$4 sm:$0xff]
      %v3014 = vld [vmem:[%s2920] ss:$4 sm:$0xff]
      %v3015 = vld [vmem:[%s2922] ss:$4 sm:$0xff]
      %v3016 = vld [vmem:[%s2924] ss:$4 sm:$0xff]
      %3017 = vst [vmem:[#allocation1] sm:$0xff] %v392
      %3018 = vst [vmem:[#allocation1 + $0x20] sm:$0xff] %v393
      %v3019 = vld [vmem:[%s2916] ss:$4 sm:$0xff]
      %v3020 = vld [vmem:[%s2918] ss:$4 sm:$0xff]
      %v3021 = vld [vmem:[%s2920] ss:$4 sm:$0xff]
      %v3022 = vld [vmem:[%s2922] ss:$4 sm:$0xff]
      %v3023 = vld [vmem:[%s2924] ss:$4 sm:$0xff]
      %v3024 = vld [vmem:[%s2926] ss:$4 sm:$0xff]
      %v3025 = vld [vmem:[%s2928] ss:$4 sm:$0xff]
      %3026 = vst [vmem:[#allocation1] sm:$0xff] %v394
      %v3027 = vld [vmem:[#allocation1] ss:$4 sm:$0xff]
      %v3028 = vld [vmem:[%s2916] ss:$4 sm:$0xff]
      %3029 = vst [vmem:[#allocation1 + $0x20] sm:$0xff] %v395
      %v3030 = vld [vmem:[%s2924] ss:$4 sm:$0xff]
      %v3031 = vld [vmem:[%s2926] ss:$4 sm:$0xff]
      %v3032 = vld [vmem:[%s2928] ss:$4 sm:$0xff]
      %3033 = vst [vmem:[#allocation1] sm:$0xff] %v396
      %3034 = vst [vmem:[#allocation1 + $0x20] sm:$0xff] %v397
      %v3035 = vld [vmem:[#allocation1] ss:$4 sm:$0xff]
      %v3036 = vld [vmem:[%s2916] ss:$4 sm:$0xff]
      %v3037 = vld [vmem:[%s2918] ss:$4 sm:$0xff]
      %v3038 = vld [vmem:[%s2920] ss:$4 sm:$0xff]
      %v3039 = vld [vmem:[%s2922] ss:$4 sm:$0xff]
      %v3040 = vld [vmem:[%s2924] ss:$4 sm:$0xff]
      %s3041 = scalar_lea.vmem %s3, 10
      %v3042 = vld [vmem:[%s3041] sm:$0x3]
      %3043 = vst [vmem:[#allocation1] ss:$9 sm:$0xff] %v2917
      %s3044 = scalar_lea.vmem [#allocation1], 1
      %3045 = vst [vmem:[%s3044] ss:$9 sm:$0xff] %v2919
      %s3046 = scalar_lea.vmem [#allocation1], 2
      %3047 = vst [vmem:[%s3046] ss:$9 sm:$0xff] %v2921
      %s3048 = scalar_lea.vmem [#allocation1], 3
      %3049 = vst [vmem:[%s3048] ss:$9 sm:$0xff] %v2923
      %s3050 = scalar_lea.vmem [#allocation1], 4
      %3051 = vst [vmem:[%s3050] ss:$9 sm:$0xff] %v2925
      %s3052 = scalar_lea.vmem [#allocation1], 5
      %3053 = vst [vmem:[%s3052] ss:$9 sm:$0xff] %v2927
      %s3054 = scalar_lea.vmem [#allocation1], 6
      %3055 = vst [vmem:[%s3054] ss:$9 sm:$0xff] %v2929
      %s3056 = scalar_lea.vmem [#allocation1], 7
      %3057 = vst [vmem:[%s3056] ss:$9 sm:$0xff] %v2931
      %v3058 = vld [vmem:[#allocation1] sm:$0xff]
      %3059 = vst [vmem:[#allocation1] ss:$9 sm:$0xff] %v2932
      %3060 = vst [vmem:[%s3044] ss:$9 sm:$0xff] %v2934
      %3061 = vst [vmem:[%s3046] ss:$9 sm:$0xff] %v2935
      %3062 = vst [vmem:[%s3048] ss:$9 sm:$0xff] %v2936
      %3063 = vst [vmem:[%s3050] ss:$9 sm:$0xff] %v2939
      %3064 = vst [vmem:[%s3052] ss:$9 sm:$0xff] %v2940
      %3065 = vst [vmem:[%s3054] ss:$9 sm:$0xff] %v2941
      %3066 = vst [vmem:[%s3056] ss:$9 sm:$0xff] %v2942
      %v3067 = vld [vmem:[#allocation1] sm:$0xff]
      %3068 = vst [vmem:[#allocation1] ss:$9 sm:$0xff] %v2943
      %3069 = vst [vmem:[%s3044] ss:$9 sm:$0xff] %v2944
      %3070 = vst [vmem:[%s3046] ss:$9 sm:$0xff] %v2947
      %3071 = vst [vmem:[%s3048] ss:$9 sm:$0xff] %v2948
      %3072 = vst [vmem:[%s3050] ss:$9 sm:$0xff] %v2949
      %3073 = vst [vmem:[%s3052] ss:$9 sm:$0xff] %v2950
      %3074 = vst [vmem:[%s3054] ss:$9 sm:$0xff] %v2951
      %3075 = vst [vmem:[%s3056] ss:$9 sm:$0xff] %v2952
      %v3076 = vld [vmem:[#allocation1] sm:$0xff]
      %3077 = vst [vmem:[#allocation1] ss:$9 sm:$0xff] %v2953
      %3078 = vst [vmem:[%s3044] ss:$9 sm:$0xff] %v2955
      %3079 = vst [vmem:[%s3046] ss:$9 sm:$0xff] %v2956
      %3080 = vst [vmem:[%s3048] ss:$9 sm:$0xff] %v2958
      %3081 = vst [vmem:[%s3050] ss:$9 sm:$0xff] %v2959
      %3082 = vst [vmem:[%s3052] ss:$9 sm:$0xff] %v2960
      %3083 = vst [vmem:[%s3054] ss:$9 sm:$0xff] %v2963
      %3084 = vst [vmem:[%s3056] ss:$9 sm:$0xff] %v2964
      %v3085 = vld [vmem:[#allocation1] sm:$0xff]
      %3086 = vst [vmem:[#allocation1] ss:$9 sm:$0xff] %v2965
      %3087 = vst [vmem:[%s3044] ss:$9 sm:$0xff] %v2966
      %3088 = vst [vmem:[%s3046] ss:$9 sm:$0xff] %v2967
      %3089 = vst [vmem:[%s3048] ss:$9 sm:$0xff] %v2968
      %3090 = vst [vmem:[%s3050] ss:$9 sm:$0xff] %v2971
      %3091 = vst [vmem:[%s3052] ss:$9 sm:$0xff] %v2972
      %3092 = vst [vmem:[%s3054] ss:$9 sm:$0xff] %v2973
      %3093 = vst [vmem:[%s3056] ss:$9 sm:$0xff] %v2974
      %v3094 = vld [vmem:[#allocation1] sm:$0xff]
      %3095 = vst [vmem:[#allocation1] ss:$9 sm:$0xff] %v2975
      %3096 = vst [vmem:[%s3044] ss:$9 sm:$0xff] %v2976
      %3097 = vst [vmem:[%s3046] ss:$9 sm:$0xff] %v2977
      %3098 = vst [vmem:[%s3048] ss:$9 sm:$0xff] %v2979
      %3099 = vst [vmem:[%s3050] ss:$9 sm:$0xff] %v2980
      %3100 = vst [vmem:[%s3052] ss:$9 sm:$0xff] %v2982
      %3101 = vst [vmem:[%s3054] ss:$9 sm:$0xff] %v2983
      %3102 = vst [vmem:[%s3056] ss:$9 sm:$0xff] %v2984
      %v3103 = vld [vmem:[#allocation1] sm:$0xff]
      %3104 = vst [vmem:[#allocation1] ss:$9 sm:$0xff] %v2987
      %3105 = vst [vmem:[%s3044] ss:$9 sm:$0xff] %v2988
      %3106 = vst [vmem:[%s3046] ss:$9 sm:$0xff] %v2989
      %3107 = vst [vmem:[%s3048] ss:$9 sm:$0xff] %v2990
      %3108 = vst [vmem:[%s3050] ss:$9 sm:$0xff] %v2991
      %3109 = vst [vmem:[%s3052] ss:$9 sm:$0xff] %v2992
      %3110 = vst [vmem:[%s3054] ss:$9 sm:$0xff] %v2995
      %3111 = vst [vmem:[%s3056] ss:$9 sm:$0xff] %v2996
      %v3112 = vld [vmem:[#allocation1] sm:$0xff]
      %3113 = vst [vmem:[#allocation1] ss:$9 sm:$0xff] %v2997
      %3114 = vst [vmem:[%s3044] ss:$9 sm:$0xff] %v2998
      %3115 = vst [vmem:[%s3046] ss:$9 sm:$0xff] %v2999
      %3116 = vst [vmem:[%s3048] ss:$9 sm:$0xff] %v3000
      %3117 = vst [vmem:[%s3050] ss:$9 sm:$0xff] %v3001
      %3118 = vst [vmem:[%s3052] ss:$9 sm:$0xff] %v3003
      %3119 = vst [vmem:[%s3054] ss:$9 sm:$0xff] %v3004
      %3120 = vst [vmem:[%s3056] ss:$9 sm:$0xff] %v3006
      %v3121 = vld [vmem:[#allocation1] sm:$0xff]
      %3122 = vst [vmem:[#allocation1] ss:$9 sm:$0xff] %v3007
      %3123 = vst [vmem:[%s3044] ss:$9 sm:$0xff] %v3008
      %3124 = vst [vmem:[%s3046] ss:$9 sm:$0xff] %v3011
      %3125 = vst [vmem:[%s3048] ss:$9 sm:$0xff] %v3012
      %3126 = vst [vmem:[%s3050] ss:$9 sm:$0xff] %v3013
      %3127 = vst [vmem:[%s3052] ss:$9 sm:$0xff] %v3014
      %3128 = vst [vmem:[%s3054] ss:$9 sm:$0xff] %v3015
      %3129 = vst [vmem:[%s3056] ss:$9 sm:$0xff] %v3016
      %v3130 = vld [vmem:[#allocation1] sm:$0xff]
      %3131 = vst [vmem:[#allocation1] ss:$9 sm:$0xff] %v3019
      %3132 = vst [vmem:[%s3044] ss:$9 sm:$0xff] %v3020
      %3133 = vst [vmem:[%s3046] ss:$9 sm:$0xff] %v3021
      %3134 = vst [vmem:[%s3048] ss:$9 sm:$0xff] %v3022
      %3135 = vst [vmem:[%s3050] ss:$9 sm:$0xff] %v3023
      %3136 = vst [vmem:[%s3052] ss:$9 sm:$0xff] %v3024
      %3137 = vst [vmem:[%s3054] ss:$9 sm:$0xff] %v3025
      %3138 = vst [vmem:[%s3056] ss:$9 sm:$0xff] %v3027
      %v3139 = vld [vmem:[#allocation1] sm:$0xff]
      %3140 = vst [vmem:[#allocation1] ss:$9 sm:$0xff] %v3028
      %3141 = vst [vmem:[%s3044] ss:$9 sm:$0xff] %v3030
      %3142 = vst [vmem:[%s3046] ss:$9 sm:$0xff] %v3031
      %3143 = vst [vmem:[%s3048] ss:$9 sm:$0xff] %v3032
      %3144 = vst [vmem:[%s3050] ss:$9 sm:$0xff] %v3035
      %3145 = vst [vmem:[%s3052] ss:$9 sm:$0xff] %v3036
      %3146 = vst [vmem:[%s3054] ss:$9 sm:$0xff] %v3037
      %3147 = vst [vmem:[%s3056] ss:$9 sm:$0xff] %v3038
      %v3148 = vld [vmem:[#allocation1] sm:$0xff]
      %3149 = vst [vmem:[#allocation1] ss:$9 sm:$0xff] %v3039
      %3150 = vst [vmem:[%s3044] ss:$9 sm:$0xff] %v3040
      %v3151 = vld [vmem:[#allocation1] sm:$0xff]
      %v3152 = vsel %vm1682, %v3058, 0
      %v3154 = vsel %vm1682, %v3067, 0
      %v3156 = vsel %vm1682, %v3076, 0
      %v3158 = vsel %vm1682, %v3085, 0
      %v3160 = vsel %vm1682, %v3094, 0
      %v3162 = vsel %vm1682, %v3103, 0
      %v3164 = vsel %vm1682, %v3112, 0
      %v3166 = vsel %vm1682, %v3121, 0
      %v3168 = vsel %vm1682, %v3130, 0
      %v3170 = vsel %vm1682, %v3139, 0
      %v3172 = vsel %vm1682, %v3148, 0
      %v3174 = vsel %vm1682, %v3151, 0
      %v3177 = vand.u32 %v3042, %v1709
      %3179 = vmatpush.bf16.msra.mxu0 0
      %3180 = vmatpush.bf16.msra.mxu0 0
      %3181 = vmatpush.bf16.msra.mxu0 0
      %3182 = vmatpush.bf16.msra.mxu0 0
      %3183 = vmatpush.bf16.msra.mxu0 0
      %3184 = vmatpush.bf16.msra.mxu0 0
      %3185 = vmatpush.bf16.msra.mxu0 0
      %3186 = vmatpush.bf16.msra.mxu0 %v3177
      %3187 = vmatmul.bf16.gmra.mxu0 %v3152
      %v3188 = vpop.f32.mrf.mxu0
      %v3189 = vadd.f32 0.0, %v3188
      %v3190 = vpop.f32.mrf.mxu0
      %v3191 = vadd.f32 0.0, %v3190
      %3192 = vmatmul.bf16.gmra.mxu0 %v3154
      %v3193 = vpop.f32.mrf.mxu0
      %v3194 = vadd.f32 0.0, %v3193
      %v3195 = vpop.f32.mrf.mxu0
      %v3196 = vadd.f32 0.0, %v3195
      %3197 = vmatmul.bf16.gmra.mxu0 %v3156
      %v3198 = vpop.f32.mrf.mxu0
      %v3199 = vadd.f32 0.0, %v3198
      %v3200 = vpop.f32.mrf.mxu0
      %v3201 = vadd.f32 0.0, %v3200
      %3202 = vmatmul.bf16.gmra.mxu0 %v3158
      %v3203 = vpop.f32.mrf.mxu0
      %v3204 = vadd.f32 0.0, %v3203
      %v3205 = vpop.f32.mrf.mxu0
      %v3206 = vadd.f32 0.0, %v3205
      %3207 = vmatmul.bf16.gmra.mxu0 %v3160
      %v3208 = vpop.f32.mrf.mxu0
      %v3209 = vadd.f32 0.0, %v3208
      %v3210 = vpop.f32.mrf.mxu0
      %v3211 = vadd.f32 0.0, %v3210
      %3212 = vmatmul.bf16.gmra.mxu0 %v3162
      %v3213 = vpop.f32.mrf.mxu0
      %v3214 = vadd.f32 0.0, %v3213
      %v3215 = vpop.f32.mrf.mxu0
      %v3216 = vadd.f32 0.0, %v3215
      %3217 = vmatmul.bf16.gmra.mxu0 %v3164
      %v3218 = vpop.f32.mrf.mxu0
      %v3219 = vadd.f32 0.0, %v3218
      %v3220 = vpop.f32.mrf.mxu0
      %v3221 = vadd.f32 0.0, %v3220
      %3222 = vmatmul.bf16.gmra.mxu0 %v3166
      %v3223 = vpop.f32.mrf.mxu0
      %v3224 = vadd.f32 0.0, %v3223
      %v3225 = vpop.f32.mrf.mxu0
      %v3226 = vadd.f32 0.0, %v3225
      %3227 = vmatmul.bf16.gmra.mxu0 %v3168
      %v3228 = vpop.f32.mrf.mxu0
      %v3229 = vadd.f32 0.0, %v3228
      %v3230 = vpop.f32.mrf.mxu0
      %v3231 = vadd.f32 0.0, %v3230
      %3232 = vmatmul.bf16.gmra.mxu0 %v3170
      %v3233 = vpop.f32.mrf.mxu0
      %v3234 = vadd.f32 0.0, %v3233
      %v3235 = vpop.f32.mrf.mxu0
      %v3236 = vadd.f32 0.0, %v3235
      %3237 = vmatmul.bf16.gmra.mxu0 %v3172
      %v3238 = vpop.f32.mrf.mxu0
      %v3239 = vadd.f32 0.0, %v3238
      %v3240 = vpop.f32.mrf.mxu0
      %v3241 = vadd.f32 0.0, %v3240
      %3242 = vmatmul.bf16.gmra.mxu0 %v3174
      %v3243 = vpop.f32.mrf.mxu0
      %v3244 = vadd.f32 0.0, %v3243
      %v3245 = vpop.f32.mrf.mxu0
      %3246 = vdwg.mxu0
      %v3247 = vadd.f32 %v2891, %v3189
      %v3248 = vadd.f32 %v2892, %v3191
      %v3249 = vadd.f32 %v2893, %v3194
      %v3250 = vadd.f32 %v2894, %v3196
      %v3251 = vadd.f32 %v2895, %v3199
      %v3252 = vadd.f32 %v2896, %v3201
      %v3253 = vadd.f32 %v2897, %v3204
      %v3254 = vadd.f32 %v2898, %v3206
      %v3255 = vadd.f32 %v2899, %v3209
      %v3256 = vadd.f32 %v2900, %v3211
      %v3257 = vadd.f32 %v2901, %v3214
      %v3258 = vadd.f32 %v2902, %v3216
      %v3259 = vadd.f32 %v2903, %v3219
      %v3260 = vadd.f32 %v2904, %v3221
      %v3261 = vadd.f32 %v2905, %v3224
      %v3262 = vadd.f32 %v2906, %v3226
      %v3263 = vadd.f32 %v2907, %v3229
      %v3264 = vadd.f32 %v2908, %v3231
      %v3265 = vadd.f32 %v2909, %v3234
      %v3266 = vadd.f32 %v2910, %v3236
      %v3267 = vadd.f32 %v2911, %v3239
      %v3268 = vadd.f32 %v2912, %v3241
      %v3269 = vadd.f32 %v2913, %v3244
      %v3273 = vrot.slane %v398, 3
      %v3274 = vrot.slane %v399, 3
      %v3275 = vrot.slane %v400, 3
      %v3278 = vsel %vm461, %v398, %v3273
      %v3279 = vsel %vm465, %v398, %v3273
      %v3281 = vrot.slane %v3279, 1
      %v3282 = vsel %vm469, %v398, %v3273
      %v3284 = vrot.slane %v3282, 2
      %v3285 = vsel %vm473, %v398, %v3273
      %v3287 = vrot.slane %v3285, 3
      %v3290 = vsel %vm461, %v399, %v3274
      %v3291 = vsel %vm465, %v399, %v3274
      %v3293 = vrot.slane %v3291, 1
      %v3294 = vsel %vm469, %v399, %v3274
      %v3296 = vrot.slane %v3294, 2
      %v3297 = vsel %vm473, %v399, %v3274
      %v3299 = vrot.slane %v3297, 3
      %v3302 = vsel %vm461, %v400, %v3275
      %s3303 = scalar_lea.vmem %s3, 12
      %v3304 = vld [vmem:[%s3303] sm:$0x3]
      %3305 = vst [vmem:[#allocation1] ss:$9 sm:$0xff] %v521
      %s3306 = scalar_lea.vmem [#allocation1], 1
      %3307 = vst [vmem:[%s3306] ss:$9 sm:$0xff] %v524
      %s3308 = scalar_lea.vmem [#allocation1], 2
      %3309 = vst [vmem:[%s3308] ss:$9 sm:$0xff] %v527
      %s3310 = scalar_lea.vmem [#allocation1], 3
      %3311 = vst [vmem:[%s3310] ss:$9 sm:$0xff] %v530
      %s3312 = scalar_lea.vmem [#allocation1], 4
      %3313 = vst [vmem:[%s3312] ss:$9 sm:$0xff] %v533
      %s3314 = scalar_lea.vmem [#allocation1], 5
      %3315 = vst [vmem:[%s3314] ss:$9 sm:$0xff] %v536
      %s3316 = scalar_lea.vmem [#allocation1], 6
      %3317 = vst [vmem:[%s3316] ss:$9 sm:$0xff] %v539
      %s3318 = scalar_lea.vmem [#allocation1], 7
      %3319 = vst [vmem:[%s3318] ss:$9 sm:$0xff] %v542
      %v3320 = vld [vmem:[#allocation1] sm:$0xff]
      %3321 = vst [vmem:[#allocation1] ss:$9 sm:$0xff] %v545
      %3322 = vst [vmem:[%s3306] ss:$9 sm:$0xff] %v548
      %3323 = vst [vmem:[%s3308] ss:$9 sm:$0xff] %v551
      %3324 = vst [vmem:[%s3310] ss:$9 sm:$0xff] %v554
      %3325 = vst [vmem:[%s3312] ss:$9 sm:$0xff] %v557
      %3326 = vst [vmem:[%s3314] ss:$9 sm:$0xff] %v560
      %3327 = vst [vmem:[%s3316] ss:$9 sm:$0xff] %v563
      %3328 = vst [vmem:[%s3318] ss:$9 sm:$0xff] %v566
      %v3329 = vld [vmem:[#allocation1] sm:$0xff]
      %3330 = vst [vmem:[#allocation1] ss:$9 sm:$0xff] %v569
      %3331 = vst [vmem:[%s3306] ss:$9 sm:$0xff] %v572
      %3332 = vst [vmem:[%s3308] ss:$9 sm:$0xff] %v575
      %3333 = vst [vmem:[%s3310] ss:$9 sm:$0xff] %v578
      %3334 = vst [vmem:[%s3312] ss:$9 sm:$0xff] %v581
      %3335 = vst [vmem:[%s3314] ss:$9 sm:$0xff] %v584
      %3336 = vst [vmem:[%s3316] ss:$9 sm:$0xff] %v587
      %3337 = vst [vmem:[%s3318] ss:$9 sm:$0xff] %v590
      %v3338 = vld [vmem:[#allocation1] sm:$0xff]
      %3339 = vst [vmem:[#allocation1] ss:$9 sm:$0xff] %v593
      %3340 = vst [vmem:[%s3306] ss:$9 sm:$0xff] %v596
      %3341 = vst [vmem:[%s3308] ss:$9 sm:$0xff] %v599
      %3342 = vst [vmem:[%s3310] ss:$9 sm:$0xff] %v602
      %3343 = vst [vmem:[%s3312] ss:$9 sm:$0xff] %v605
      %3344 = vst [vmem:[%s3314] ss:$9 sm:$0xff] %v608
      %3345 = vst [vmem:[%s3316] ss:$9 sm:$0xff] %v611
      %3346 = vst [vmem:[%s3318] ss:$9 sm:$0xff] %v614
      %v3347 = vld [vmem:[#allocation1] sm:$0xff]
      %3348 = vst [vmem:[#allocation1] ss:$9 sm:$0xff] %v617
      %3349 = vst [vmem:[%s3306] ss:$9 sm:$0xff] %v620
      %3350 = vst [vmem:[%s3308] ss:$9 sm:$0xff] %v623
      %3351 = vst [vmem:[%s3310] ss:$9 sm:$0xff] %v626
      %3352 = vst [vmem:[%s3312] ss:$9 sm:$0xff] %v629
      %3353 = vst [vmem:[%s3314] ss:$9 sm:$0xff] %v632
      %3354 = vst [vmem:[%s3316] ss:$9 sm:$0xff] %v635
      %3355 = vst [vmem:[%s3318] ss:$9 sm:$0xff] %v638
      %v3356 = vld [vmem:[#allocation1] sm:$0xff]
      %3357 = vst [vmem:[#allocation1] ss:$9 sm:$0xff] %v641
      %3358 = vst [vmem:[%s3306] ss:$9 sm:$0xff] %v644
      %3359 = vst [vmem:[%s3308] ss:$9 sm:$0xff] %v647
      %3360 = vst [vmem:[%s3310] ss:$9 sm:$0xff] %v650
      %3361 = vst [vmem:[%s3312] ss:$9 sm:$0xff] %v653
      %3362 = vst [vmem:[%s3314] ss:$9 sm:$0xff] %v656
      %3363 = vst [vmem:[%s3316] ss:$9 sm:$0xff] %v659
      %3364 = vst [vmem:[%s3318] ss:$9 sm:$0xff] %v662
      %v3365 = vld [vmem:[#allocation1] sm:$0xff]
      %3366 = vst [vmem:[#allocation1] ss:$9 sm:$0xff] %v665
      %3367 = vst [vmem:[%s3306] ss:$9 sm:$0xff] %v668
      %3368 = vst [vmem:[%s3308] ss:$9 sm:$0xff] %v671
      %3369 = vst [vmem:[%s3310] ss:$9 sm:$0xff] %v674
      %3370 = vst [vmem:[%s3312] ss:$9 sm:$0xff] %v677
      %3371 = vst [vmem:[%s3314] ss:$9 sm:$0xff] %v680
      %3372 = vst [vmem:[%s3316] ss:$9 sm:$0xff] %v683
      %3373 = vst [vmem:[%s3318] ss:$9 sm:$0xff] %v686
      %v3374 = vld [vmem:[#allocation1] sm:$0xff]
      %3375 = vst [vmem:[#allocation1] ss:$9 sm:$0xff] %v689
      %3376 = vst [vmem:[%s3306] ss:$9 sm:$0xff] %v692
      %3377 = vst [vmem:[%s3308] ss:$9 sm:$0xff] %v695
      %3378 = vst [vmem:[%s3310] ss:$9 sm:$0xff] %v698
      %3379 = vst [vmem:[%s3312] ss:$9 sm:$0xff] %v701
      %3380 = vst [vmem:[%s3314] ss:$9 sm:$0xff] %v704
      %3381 = vst [vmem:[%s3316] ss:$9 sm:$0xff] %v707
      %3382 = vst [vmem:[%s3318] ss:$9 sm:$0xff] %v710
      %v3383 = vld [vmem:[#allocation1] sm:$0xff]
      %3384 = vst [vmem:[#allocation1] ss:$9 sm:$0xff] %v713
      %3385 = vst [vmem:[%s3306] ss:$9 sm:$0xff] %v716
      %3386 = vst [vmem:[%s3308] ss:$9 sm:$0xff] %v719
      %3387 = vst [vmem:[%s3310] ss:$9 sm:$0xff] %v722
      %3388 = vst [vmem:[%s3312] ss:$9 sm:$0xff] %v725
      %3389 = vst [vmem:[%s3314] ss:$9 sm:$0xff] %v728
      %3390 = vst [vmem:[%s3316] ss:$9 sm:$0xff] %v731
      %3391 = vst [vmem:[%s3318] ss:$9 sm:$0xff] %v734
      %v3392 = vld [vmem:[#allocation1] sm:$0xff]
      %3393 = vst [vmem:[#allocation1] ss:$9 sm:$0xff] %v2349
      %3394 = vst [vmem:[%s3306] ss:$9 sm:$0xff] %v2352
      %3395 = vst [vmem:[%s3308] ss:$9 sm:$0xff] %v2355
      %3396 = vst [vmem:[%s3310] ss:$9 sm:$0xff] %v2358
      %3397 = vst [vmem:[%s3312] ss:$9 sm:$0xff] %v2361
      %3398 = vst [vmem:[%s3314] ss:$9 sm:$0xff] %v2364
      %3399 = vst [vmem:[%s3316] ss:$9 sm:$0xff] %v2367
      %3400 = vst [vmem:[%s3318] ss:$9 sm:$0xff] %v2370
      %v3401 = vld [vmem:[#allocation1] sm:$0xff]
      %3402 = vst [vmem:[#allocation1] ss:$9 sm:$0xff] %v2373
      %3403 = vst [vmem:[%s3306] ss:$9 sm:$0xff] %v3278
      %3405 = vst [vmem:[%s3308] ss:$9 sm:$0xff] %v3281
      %3407 = vst [vmem:[%s3310] ss:$9 sm:$0xff] %v3284
      %3409 = vst [vmem:[%s3312] ss:$9 sm:$0xff] %v3287
      %3410 = vst [vmem:[%s3314] ss:$9 sm:$0xff] %v3290
      %3412 = vst [vmem:[%s3316] ss:$9 sm:$0xff] %v3293
      %3414 = vst [vmem:[%s3318] ss:$9 sm:$0xff] %v3296
      %v3415 = vld [vmem:[#allocation1] sm:$0xff]
      %3417 = vst [vmem:[#allocation1] ss:$9 sm:$0xff] %v3299
      %3418 = vst [vmem:[%s3306] ss:$9 sm:$0xff] %v3302
      %v3419 = vld [vmem:[#allocation1] sm:$0xff]
      %v3420 = vsel %vm1682, %v3320, 0
      %v3422 = vsel %vm1682, %v3329, 0
      %v3424 = vsel %vm1682, %v3338, 0
      %v3426 = vsel %vm1682, %v3347, 0
      %v3428 = vsel %vm1682, %v3356, 0
      %v3430 = vsel %vm1682, %v3365, 0
      %v3432 = vsel %vm1682, %v3374, 0
      %v3434 = vsel %vm1682, %v3383, 0
      %v3436 = vsel %vm1682, %v3392, 0
      %v3438 = vsel %vm1682, %v3401, 0
      %v3440 = vsel %vm1682, %v3415, 0
      %v3442 = vsel %vm1682, %v3419, 0
      %v3445 = vand.u32 %v3304, %v1709
      %3447 = vmatpush.bf16.msra.mxu0 0
      %3448 = vmatpush.bf16.msra.mxu0 0
      %3449 = vmatpush.bf16.msra.mxu0 0
      %3450 = vmatpush.bf16.msra.mxu0 0
      %3451 = vmatpush.bf16.msra.mxu0 0
      %3452 = vmatpush.bf16.msra.mxu0 0
      %3453 = vmatpush.bf16.msra.mxu0 0
      %3454 = vmatpush.bf16.msra.mxu0 %v3445
      %3455 = vmatmul.bf16.gmra.mxu0 %v3420
      %v3456 = vpop.f32.mrf.mxu0
      %v3457 = vadd.f32 0.0, %v3456
      %v3458 = vpop.f32.mrf.mxu0
      %v3459 = vadd.f32 0.0, %v3458
      %3460 = vmatmul.bf16.gmra.mxu0 %v3422
      %v3461 = vpop.f32.mrf.mxu0
      %v3462 = vadd.f32 0.0, %v3461
      %v3463 = vpop.f32.mrf.mxu0
      %v3464 = vadd.f32 0.0, %v3463
      %3465 = vmatmul.bf16.gmra.mxu0 %v3424
      %v3466 = vpop.f32.mrf.mxu0
      %v3467 = vadd.f32 0.0, %v3466
      %v3468 = vpop.f32.mrf.mxu0
      %v3469 = vadd.f32 0.0, %v3468
      %3470 = vmatmul.bf16.gmra.mxu0 %v3426
      %v3471 = vpop.f32.mrf.mxu0
      %v3472 = vadd.f32 0.0, %v3471
      %v3473 = vpop.f32.mrf.mxu0
      %v3474 = vadd.f32 0.0, %v3473
      %3475 = vmatmul.bf16.gmra.mxu0 %v3428
      %v3476 = vpop.f32.mrf.mxu0
      %v3477 = vadd.f32 0.0, %v3476
      %v3478 = vpop.f32.mrf.mxu0
      %v3479 = vadd.f32 0.0, %v3478
      %3480 = vmatmul.bf16.gmra.mxu0 %v3430
      %v3481 = vpop.f32.mrf.mxu0
      %v3482 = vadd.f32 0.0, %v3481
      %v3483 = vpop.f32.mrf.mxu0
      %v3484 = vadd.f32 0.0, %v3483
      %3485 = vmatmul.bf16.gmra.mxu0 %v3432
      %v3486 = vpop.f32.mrf.mxu0
      %v3487 = vadd.f32 0.0, %v3486
      %v3488 = vpop.f32.mrf.mxu0
      %v3489 = vadd.f32 0.0, %v3488
      %3490 = vmatmul.bf16.gmra.mxu0 %v3434
      %v3491 = vpop.f32.mrf.mxu0
      %v3492 = vadd.f32 0.0, %v3491
      %v3493 = vpop.f32.mrf.mxu0
      %v3494 = vadd.f32 0.0, %v3493
      %3495 = vmatmul.bf16.gmra.mxu0 %v3436
      %v3496 = vpop.f32.mrf.mxu0
      %v3497 = vadd.f32 0.0, %v3496
      %v3498 = vpop.f32.mrf.mxu0
      %v3499 = vadd.f32 0.0, %v3498
      %3500 = vmatmul.bf16.gmra.mxu0 %v3438
      %v3501 = vpop.f32.mrf.mxu0
      %v3502 = vadd.f32 0.0, %v3501
      %v3503 = vpop.f32.mrf.mxu0
      %v3504 = vadd.f32 0.0, %v3503
      %3505 = vmatmul.bf16.gmra.mxu0 %v3440
      %v3506 = vpop.f32.mrf.mxu0
      %v3507 = vadd.f32 0.0, %v3506
      %v3508 = vpop.f32.mrf.mxu0
      %v3509 = vadd.f32 0.0, %v3508
      %3510 = vmatmul.bf16.gmra.mxu0 %v3442
      %v3511 = vpop.f32.mrf.mxu0
      %v3512 = vadd.f32 0.0, %v3511
      %v3513 = vpop.f32.mrf.mxu0
      %3514 = vdwg.mxu0
      %v3515 = vadd.f32 %v3247, %v3457
      %v3516 = vadd.f32 %v3248, %v3459
      %v3517 = vadd.f32 %v3249, %v3462
      %v3518 = vadd.f32 %v3250, %v3464
      %v3519 = vadd.f32 %v3251, %v3467
      %v3520 = vadd.f32 %v3252, %v3469
      %v3521 = vadd.f32 %v3253, %v3472
      %v3522 = vadd.f32 %v3254, %v3474
      %v3523 = vadd.f32 %v3255, %v3477
      %v3524 = vadd.f32 %v3256, %v3479
      %v3525 = vadd.f32 %v3257, %v3482
      %v3526 = vadd.f32 %v3258, %v3484
      %v3527 = vadd.f32 %v3259, %v3487
      %v3528 = vadd.f32 %v3260, %v3489
      %v3529 = vadd.f32 %v3261, %v3492
      %v3530 = vadd.f32 %v3262, %v3494
      %v3531 = vadd.f32 %v3263, %v3497
      %v3532 = vadd.f32 %v3264, %v3499
      %v3533 = vadd.f32 %v3265, %v3502
      %v3534 = vadd.f32 %v3266, %v3504
      %v3535 = vadd.f32 %v3267, %v3507
      %v3536 = vadd.f32 %v3268, %v3509
      %v3537 = vadd.f32 %v3269, %v3512
      %v3538 = vsel %vm465, %v400, %v3275
      %v3540 = vrot.slane %v3538, 1
      %v3541 = vshrl.u32 %v3278, 16
      %v3543 = vrot.slane %v3541, 7
      %v3544 = vrot.slane %v3543, 1
      %v3545 = vshll.u32 %v3281, 16
      %v3547 = vsel %vm780, %v3544, %v3545
      %v3548 = vshrl.u32 %v3281, 16
      %v3550 = vrot.slane %v3548, 7
      %v3551 = vrot.slane %v3550, 1
      %v3552 = vshll.u32 %v3284, 16
      %v3554 = vsel %vm780, %v3551, %v3552
      %v3555 = vshrl.u32 %v3284, 16
      %v3557 = vrot.slane %v3555, 7
      %v3558 = vrot.slane %v3557, 1
      %v3559 = vshll.u32 %v3287, 16
      %v3561 = vsel %vm780, %v3558, %v3559
      %v3562 = vshrl.u32 %v3287, 16
      %v3564 = vrot.slane %v3562, 7
      %v3565 = vrot.slane %v3564, 1
      %v3566 = vshll.u32 %v3290, 16
      %v3568 = vsel %vm780, %v3565, %v3566
      %v3569 = vshrl.u32 %v3290, 16
      %v3571 = vrot.slane %v3569, 7
      %v3572 = vrot.slane %v3571, 1
      %v3573 = vshll.u32 %v3293, 16
      %v3575 = vsel %vm780, %v3572, %v3573
      %v3576 = vshrl.u32 %v3293, 16
      %v3578 = vrot.slane %v3576, 7
      %v3579 = vrot.slane %v3578, 1
      %v3580 = vshll.u32 %v3296, 16
      %v3582 = vsel %vm780, %v3579, %v3580
      %v3583 = vshrl.u32 %v3296, 16
      %v3585 = vrot.slane %v3583, 7
      %v3586 = vrot.slane %v3585, 1
      %v3587 = vshll.u32 %v3299, 16
      %v3589 = vsel %vm780, %v3586, %v3587
      %v3590 = vshrl.u32 %v3299, 16
      %v3592 = vrot.slane %v3590, 7
      %v3593 = vrot.slane %v3592, 1
      %v3594 = vshll.u32 %v3302, 16
      %v3596 = vsel %vm780, %v3593, %v3594
      %v3597 = vshrl.u32 %v3302, 16
      %v3599 = vrot.slane %v3597, 7
      %v3600 = vrot.slane %v3599, 1
      %v3602 = vshll.u32 %v3540, 16
      %v3604 = vsel %vm780, %v3600, %v3602
      %s3605 = scalar_lea.vmem %s3, 14
      %v3606 = vld [vmem:[%s3605] sm:$0x3]
      %3607 = vst [vmem:[#allocation1] ss:$9 sm:$0xff] %v928
      %s3608 = scalar_lea.vmem [#allocation1], 1
      %3609 = vst [vmem:[%s3608] ss:$9 sm:$0xff] %v936
      %s3610 = scalar_lea.vmem [#allocation1], 2
      %3611 = vst [vmem:[%s3610] ss:$9 sm:$0xff] %v944
      %s3612 = scalar_lea.vmem [#allocation1], 3
      %3613 = vst [vmem:[%s3612] ss:$9 sm:$0xff] %v951
      %s3614 = scalar_lea.vmem [#allocation1], 4
      %3615 = vst [vmem:[%s3614] ss:$9 sm:$0xff] %v959
      %s3616 = scalar_lea.vmem [#allocation1], 5
      %3617 = vst [vmem:[%s3616] ss:$9 sm:$0xff] %v967
      %s3618 = scalar_lea.vmem [#allocation1], 6
      %3619 = vst [vmem:[%s3618] ss:$9 sm:$0xff] %v975
      %s3620 = scalar_lea.vmem [#allocation1], 7
      %3621 = vst [vmem:[%s3620] ss:$9 sm:$0xff] %v982
      %v3622 = vld [vmem:[#allocation1] sm:$0xff]
      %3623 = vst [vmem:[#allocation1] ss:$9 sm:$0xff] %v990
      %3624 = vst [vmem:[%s3608] ss:$9 sm:$0xff] %v998
      %3625 = vst [vmem:[%s3610] ss:$9 sm:$0xff] %v1006
      %3626 = vst [vmem:[%s3612] ss:$9 sm:$0xff] %v1014
      %3627 = vst [vmem:[%s3614] ss:$9 sm:$0xff] %v1021
      %3628 = vst [vmem:[%s3616] ss:$9 sm:$0xff] %v1029
      %3629 = vst [vmem:[%s3618] ss:$9 sm:$0xff] %v1037
      %3630 = vst [vmem:[%s3620] ss:$9 sm:$0xff] %v1045
      %v3631 = vld [vmem:[#allocation1] sm:$0xff]
      %3632 = vst [vmem:[#allocation1] ss:$9 sm:$0xff] %v1052
      %3633 = vst [vmem:[%s3608] ss:$9 sm:$0xff] %v1060
      %3634 = vst [vmem:[%s3610] ss:$9 sm:$0xff] %v1068
      %3635 = vst [vmem:[%s3612] ss:$9 sm:$0xff] %v1076
      %3636 = vst [vmem:[%s3614] ss:$9 sm:$0xff] %v1084
      %3637 = vst [vmem:[%s3616] ss:$9 sm:$0xff] %v1091
      %3638 = vst [vmem:[%s3618] ss:$9 sm:$0xff] %v1099
      %3639 = vst [vmem:[%s3620] ss:$9 sm:$0xff] %v1107
      %v3640 = vld [vmem:[#allocation1] sm:$0xff]
      %3641 = vst [vmem:[#allocation1] ss:$9 sm:$0xff] %v1115
      %3642 = vst [vmem:[%s3608] ss:$9 sm:$0xff] %v1122
      %3643 = vst [vmem:[%s3610] ss:$9 sm:$0xff] %v1130
      %3644 = vst [vmem:[%s3612] ss:$9 sm:$0xff] %v1138
      %3645 = vst [vmem:[%s3614] ss:$9 sm:$0xff] %v1146
      %3646 = vst [vmem:[%s3616] ss:$9 sm:$0xff] %v1154
      %3647 = vst [vmem:[%s3618] ss:$9 sm:$0xff] %v1161
      %3648 = vst [vmem:[%s3620] ss:$9 sm:$0xff] %v1169
      %v3649 = vld [vmem:[#allocation1] sm:$0xff]
      %3650 = vst [vmem:[#allocation1] ss:$9 sm:$0xff] %v1177
      %3651 = vst [vmem:[%s3608] ss:$9 sm:$0xff] %v1185
      %3652 = vst [vmem:[%s3610] ss:$9 sm:$0xff] %v1192
      %3653 = vst [vmem:[%s3612] ss:$9 sm:$0xff] %v1200
      %3654 = vst [vmem:[%s3614] ss:$9 sm:$0xff] %v1208
      %3655 = vst [vmem:[%s3616] ss:$9 sm:$0xff] %v1216
      %3656 = vst [vmem:[%s3618] ss:$9 sm:$0xff] %v1224
      %3657 = vst [vmem:[%s3620] ss:$9 sm:$0xff] %v1231
      %v3658 = vld [vmem:[#allocation1] sm:$0xff]
      %3659 = vst [vmem:[#allocation1] ss:$9 sm:$0xff] %v1239
      %3660 = vst [vmem:[%s3608] ss:$9 sm:$0xff] %v1247
      %3661 = vst [vmem:[%s3610] ss:$9 sm:$0xff] %v1255
      %3662 = vst [vmem:[%s3612] ss:$9 sm:$0xff] %v1262
      %3663 = vst [vmem:[%s3614] ss:$9 sm:$0xff] %v1270
      %3664 = vst [vmem:[%s3616] ss:$9 sm:$0xff] %v1278
      %3665 = vst [vmem:[%s3618] ss:$9 sm:$0xff] %v1286
      %3666 = vst [vmem:[%s3620] ss:$9 sm:$0xff] %v1294
      %v3667 = vld [vmem:[#allocation1] sm:$0xff]
      %3668 = vst [vmem:[#allocation1] ss:$9 sm:$0xff] %v1301
      %3669 = vst [vmem:[%s3608] ss:$9 sm:$0xff] %v1309
      %3670 = vst [vmem:[%s3610] ss:$9 sm:$0xff] %v1317
      %3671 = vst [vmem:[%s3612] ss:$9 sm:$0xff] %v1325
      %3672 = vst [vmem:[%s3614] ss:$9 sm:$0xff] %v1332
      %3673 = vst [vmem:[%s3616] ss:$9 sm:$0xff] %v1340
      %3674 = vst [vmem:[%s3618] ss:$9 sm:$0xff] %v1348
      %3675 = vst [vmem:[%s3620] ss:$9 sm:$0xff] %v1356
      %v3676 = vld [vmem:[#allocation1] sm:$0xff]
      %3677 = vst [vmem:[#allocation1] ss:$9 sm:$0xff] %v1364
      %3678 = vst [vmem:[%s3608] ss:$9 sm:$0xff] %v1371
      %3679 = vst [vmem:[%s3610] ss:$9 sm:$0xff] %v1379
      %3680 = vst [vmem:[%s3612] ss:$9 sm:$0xff] %v1387
      %3681 = vst [vmem:[%s3614] ss:$9 sm:$0xff] %v1395
      %3682 = vst [vmem:[%s3616] ss:$9 sm:$0xff] %v1402
      %3683 = vst [vmem:[%s3618] ss:$9 sm:$0xff] %v1410
      %3684 = vst [vmem:[%s3620] ss:$9 sm:$0xff] %v1418
      %v3685 = vld [vmem:[#allocation1] sm:$0xff]
      %3686 = vst [vmem:[#allocation1] ss:$9 sm:$0xff] %v1426
      %3687 = vst [vmem:[%s3608] ss:$9 sm:$0xff] %v1434
      %3688 = vst [vmem:[%s3610] ss:$9 sm:$0xff] %v1441
      %3689 = vst [vmem:[%s3612] ss:$9 sm:$0xff] %v1449
      %3690 = vst [vmem:[%s3614] ss:$9 sm:$0xff] %v1457
      %3691 = vst [vmem:[%s3616] ss:$9 sm:$0xff] %v1465
      %3692 = vst [vmem:[%s3618] ss:$9 sm:$0xff] %v1472
      %3693 = vst [vmem:[%s3620] ss:$9 sm:$0xff] %v1480
      %v3694 = vld [vmem:[#allocation1] sm:$0xff]
      %3695 = vst [vmem:[#allocation1] ss:$9 sm:$0xff] %v2618
      %3696 = vst [vmem:[%s3608] ss:$9 sm:$0xff] %v2625
      %3697 = vst [vmem:[%s3610] ss:$9 sm:$0xff] %v2632
      %3698 = vst [vmem:[%s3612] ss:$9 sm:$0xff] %v2639
      %3699 = vst [vmem:[%s3614] ss:$9 sm:$0xff] %v2646
      %3700 = vst [vmem:[%s3616] ss:$9 sm:$0xff] %v2653
      %3701 = vst [vmem:[%s3618] ss:$9 sm:$0xff] %v2660
      %3702 = vst [vmem:[%s3620] ss:$9 sm:$0xff] %v2667
      %v3703 = vld [vmem:[#allocation1] sm:$0xff]
      %3704 = vst [vmem:[#allocation1] ss:$9 sm:$0xff] %v2675
      %3706 = vst [vmem:[%s3608] ss:$9 sm:$0xff] %v3547
      %3708 = vst [vmem:[%s3610] ss:$9 sm:$0xff] %v3554
      %3710 = vst [vmem:[%s3612] ss:$9 sm:$0xff] %v3561
      %3712 = vst [vmem:[%s3614] ss:$9 sm:$0xff] %v3568
      %3714 = vst [vmem:[%s3616] ss:$9 sm:$0xff] %v3575
      %3716 = vst [vmem:[%s3618] ss:$9 sm:$0xff] %v3582
      %3718 = vst [vmem:[%s3620] ss:$9 sm:$0xff] %v3589
      %v3719 = vld [vmem:[#allocation1] sm:$0xff]
      %3721 = vst [vmem:[#allocation1] ss:$9 sm:$0xff] %v3596
      %3723 = vst [vmem:[%s3608] ss:$9 sm:$0xff] %v3604
      %v3724 = vld [vmem:[#allocation1] sm:$0xff]
      %v3725 = vsel %vm1682, %v3622, 0
      %v3727 = vsel %vm1682, %v3631, 0
      %v3729 = vsel %vm1682, %v3640, 0
      %v3731 = vsel %vm1682, %v3649, 0
      %v3733 = vsel %vm1682, %v3658, 0
      %v3735 = vsel %vm1682, %v3667, 0
      %v3737 = vsel %vm1682, %v3676, 0
      %v3739 = vsel %vm1682, %v3685, 0
      %v3741 = vsel %vm1682, %v3694, 0
      %v3743 = vsel %vm1682, %v3703, 0
      %v3745 = vsel %vm1682, %v3719, 0
      %v3747 = vsel %vm1682, %v3724, 0
      %v3750 = vand.u32 %v3606, %v1709
      %3752 = vmatpush.bf16.msra.mxu0 0
      %3753 = vmatpush.bf16.msra.mxu0 0
      %3754 = vmatpush.bf16.msra.mxu0 0
      %3755 = vmatpush.bf16.msra.mxu0 0
      %3756 = vmatpush.bf16.msra.mxu0 0
      %3757 = vmatpush.bf16.msra.mxu0 0
      %3758 = vmatpush.bf16.msra.mxu0 0
      %3759 = vmatpush.bf16.msra.mxu0 %v3750
      %3760 = vmatmul.bf16.gmra.mxu0 %v3725
      %v3761 = vpop.f32.mrf.mxu0
      %v3762 = vadd.f32 0.0, %v3761
      %v3763 = vpop.f32.mrf.mxu0
      %v3764 = vadd.f32 0.0, %v3763
      %3765 = vmatmul.bf16.gmra.mxu0 %v3727
      %v3766 = vpop.f32.mrf.mxu0
      %v3767 = vadd.f32 0.0, %v3766
      %v3768 = vpop.f32.mrf.mxu0
      %v3769 = vadd.f32 0.0, %v3768
      %3770 = vmatmul.bf16.gmra.mxu0 %v3729
      %v3771 = vpop.f32.mrf.mxu0
      %v3772 = vadd.f32 0.0, %v3771
      %v3773 = vpop.f32.mrf.mxu0
      %v3774 = vadd.f32 0.0, %v3773
      %3775 = vmatmul.bf16.gmra.mxu0 %v3731
      %v3776 = vpop.f32.mrf.mxu0
      %v3777 = vadd.f32 0.0, %v3776
      %v3778 = vpop.f32.mrf.mxu0
      %v3779 = vadd.f32 0.0, %v3778
      %3780 = vmatmul.bf16.gmra.mxu0 %v3733
      %v3781 = vpop.f32.mrf.mxu0
      %v3782 = vadd.f32 0.0, %v3781
      %v3783 = vpop.f32.mrf.mxu0
      %v3784 = vadd.f32 0.0, %v3783
      %3785 = vmatmul.bf16.gmra.mxu0 %v3735
      %v3786 = vpop.f32.mrf.mxu0
      %v3787 = vadd.f32 0.0, %v3786
      %v3788 = vpop.f32.mrf.mxu0
      %v3789 = vadd.f32 0.0, %v3788
      %3790 = vmatmul.bf16.gmra.mxu0 %v3737
      %v3791 = vpop.f32.mrf.mxu0
      %v3792 = vadd.f32 0.0, %v3791
      %v3793 = vpop.f32.mrf.mxu0
      %v3794 = vadd.f32 0.0, %v3793
      %3795 = vmatmul.bf16.gmra.mxu0 %v3739
      %v3796 = vpop.f32.mrf.mxu0
      %v3797 = vadd.f32 0.0, %v3796
      %v3798 = vpop.f32.mrf.mxu0
      %v3799 = vadd.f32 0.0, %v3798
      %3800 = vmatmul.bf16.gmra.mxu0 %v3741
      %v3801 = vpop.f32.mrf.mxu0
      %v3802 = vadd.f32 0.0, %v3801
      %v3803 = vpop.f32.mrf.mxu0
      %v3804 = vadd.f32 0.0, %v3803
      %3805 = vmatmul.bf16.gmra.mxu0 %v3743
      %v3806 = vpop.f32.mrf.mxu0
      %v3807 = vadd.f32 0.0, %v3806
      %v3808 = vpop.f32.mrf.mxu0
      %v3809 = vadd.f32 0.0, %v3808
      %3810 = vmatmul.bf16.gmra.mxu0 %v3745
      %v3811 = vpop.f32.mrf.mxu0
      %v3812 = vadd.f32 0.0, %v3811
      %v3813 = vpop.f32.mrf.mxu0
      %v3814 = vadd.f32 0.0, %v3813
      %3815 = vmatmul.bf16.gmra.mxu0 %v3747
      %v3816 = vpop.f32.mrf.mxu0
      %v3817 = vadd.f32 0.0, %v3816
      %v3818 = vpop.f32.mrf.mxu0
      %3819 = vdwg.mxu0
      %v3820 = vadd.f32 %v3515, %v3762
      %v3821 = vadd.f32 %v3516, %v3764
      %v3822 = vadd.f32 %v3517, %v3767
      %v3823 = vadd.f32 %v3518, %v3769
      %v3824 = vadd.f32 %v3519, %v3772
      %v3825 = vadd.f32 %v3520, %v3774
      %v3826 = vadd.f32 %v3521, %v3777
      %v3827 = vadd.f32 %v3522, %v3779
      %v3828 = vadd.f32 %v3523, %v3782
      %v3829 = vadd.f32 %v3524, %v3784
      %v3830 = vadd.f32 %v3525, %v3787
      %v3831 = vadd.f32 %v3526, %v3789
      %v3832 = vadd.f32 %v3527, %v3792
      %v3833 = vadd.f32 %v3528, %v3794
      %v3834 = vadd.f32 %v3529, %v3797
      %v3835 = vadd.f32 %v3530, %v3799
      %v3836 = vadd.f32 %v3531, %v3802
      %v3837 = vadd.f32 %v3532, %v3804
      %v3838 = vadd.f32 %v3533, %v3807
      %v3839 = vadd.f32 %v3534, %v3809
      %v3840 = vadd.f32 %v3535, %v3812
      %v3841 = vadd.f32 %v3536, %v3814
      %v3842 = vadd.f32 %v3537, %v3817
      %3843 = vst [vmem:[#allocation1] sm:$0xff] %v371
      %3844 = vst [vmem:[#allocation1 + $0x20] sm:$0xff] %v372
      %s3845 = scalar_lea.vmem [#allocation1], 1
      %v3846 = vld [vmem:[%s3845] ss:$4 sm:$0xff]
      %s3847 = scalar_lea.vmem [#allocation1], 2
      %v3848 = vld [vmem:[%s3847] ss:$4 sm:$0xff]
      %s3849 = scalar_lea.vmem [#allocation1], 3
      %v3850 = vld [vmem:[%s3849] ss:$4 sm:$0xff]
      %s3851 = scalar_lea.vmem [#allocation1], 32
      %v3852 = vld [vmem:[%s3851] ss:$4 sm:$0xff]
      %s3853 = scalar_lea.vmem [#allocation1], 33
      %v3854 = vld [vmem:[%s3853] ss:$4 sm:$0xff]
      %s3855 = scalar_lea.vmem [#allocation1], 34
      %v3856 = vld [vmem:[%s3855] ss:$4 sm:$0xff]
      %s3857 = scalar_lea.vmem [#allocation1], 35
      %v3858 = vld [vmem:[%s3857] ss:$4 sm:$0xff]
      %3859 = vst [vmem:[#allocation1] sm:$0xff] %v373
      %v3860 = vld [vmem:[#allocation1] ss:$4 sm:$0xff]
      %v3861 = vld [vmem:[%s3845] ss:$4 sm:$0xff]
      %3862 = vst [vmem:[#allocation1 + $0x20] sm:$0xff] %v374
      %v3863 = vld [vmem:[%s3853] ss:$4 sm:$0xff]
      %v3864 = vld [vmem:[%s3855] ss:$4 sm:$0xff]
      %v3865 = vld [vmem:[%s3857] ss:$4 sm:$0xff]
      %3866 = vst [vmem:[#allocation1] sm:$0xff] %v375
      %3867 = vst [vmem:[#allocation1 + $0x20] sm:$0xff] %v376
      %v3868 = vld [vmem:[#allocation1] ss:$4 sm:$0xff]
      %v3869 = vld [vmem:[%s3845] ss:$4 sm:$0xff]
      %v3870 = vld [vmem:[%s3847] ss:$4 sm:$0xff]
      %v3871 = vld [vmem:[%s3849] ss:$4 sm:$0xff]
      %v3872 = vld [vmem:[%s3851] ss:$4 sm:$0xff]
      %v3873 = vld [vmem:[%s3853] ss:$4 sm:$0xff]
      %3874 = vst [vmem:[#allocation1] sm:$0xff] %v377
      %3875 = vst [vmem:[#allocation1 + $0x20] sm:$0xff] %v378
      %v3876 = vld [vmem:[%s3845] ss:$4 sm:$0xff]
      %v3877 = vld [vmem:[%s3847] ss:$4 sm:$0xff]
      %v3878 = vld [vmem:[%s3849] ss:$4 sm:$0xff]
      %v3879 = vld [vmem:[%s3851] ss:$4 sm:$0xff]
      %v3880 = vld [vmem:[%s3853] ss:$4 sm:$0xff]
      %v3881 = vld [vmem:[%s3855] ss:$4 sm:$0xff]
      %v3882 = vld [vmem:[%s3857] ss:$4 sm:$0xff]
      %3883 = vst [vmem:[#allocation1] sm:$0xff] %v379
      %v3884 = vld [vmem:[#allocation1] ss:$4 sm:$0xff]
      %v3885 = vld [vmem:[%s3845] ss:$4 sm:$0xff]
      %3886 = vst [vmem:[#allocation1 + $0x20] sm:$0xff] %v380
      %v3887 = vld [vmem:[%s3853] ss:$4 sm:$0xff]
      %v3888 = vld [vmem:[%s3855] ss:$4 sm:$0xff]
      %v3889 = vld [vmem:[%s3857] ss:$4 sm:$0xff]
      %3890 = vst [vmem:[#allocation1] sm:$0xff] %v381
      %3891 = vst [vmem:[#allocation1 + $0x20] sm:$0xff] %v382
      %v3892 = vld [vmem:[#allocation1] ss:$4 sm:$0xff]
      %v3893 = vld [vmem:[%s3845] ss:$4 sm:$0xff]
      %v3894 = vld [vmem:[%s3847] ss:$4 sm:$0xff]
      %v3895 = vld [vmem:[%s3849] ss:$4 sm:$0xff]
      %v3896 = vld [vmem:[%s3851] ss:$4 sm:$0xff]
      %v3897 = vld [vmem:[%s3853] ss:$4 sm:$0xff]
      %3898 = vst [vmem:[#allocation1] sm:$0xff] %v383
      %3899 = vst [vmem:[#allocation1 + $0x20] sm:$0xff] %v384
      %v3900 = vld [vmem:[%s3845] ss:$4 sm:$0xff]
      %v3901 = vld [vmem:[%s3847] ss:$4 sm:$0xff]
      %v3902 = vld [vmem:[%s3849] ss:$4 sm:$0xff]
      %v3903 = vld [vmem:[%s3851] ss:$4 sm:$0xff]
      %v3904 = vld [vmem:[%s3853] ss:$4 sm:$0xff]
      %v3905 = vld [vmem:[%s3855] ss:$4 sm:$0xff]
      %v3906 = vld [vmem:[%s3857] ss:$4 sm:$0xff]
      %3907 = vst [vmem:[#allocation1] sm:$0xff] %v385
      %v3908 = vld [vmem:[#allocation1] ss:$4 sm:$0xff]
      %v3909 = vld [vmem:[%s3845] ss:$4 sm:$0xff]
      %3910 = vst [vmem:[#allocation1 + $0x20] sm:$0xff] %v386
      %v3911 = vld [vmem:[%s3853] ss:$4 sm:$0xff]
      %v3912 = vld [vmem:[%s3855] ss:$4 sm:$0xff]
      %v3913 = vld [vmem:[%s3857] ss:$4 sm:$0xff]
      %3914 = vst [vmem:[#allocation1] sm:$0xff] %v387
      %3915 = vst [vmem:[#allocation1 + $0x20] sm:$0xff] %v388
      %v3916 = vld [vmem:[#allocation1] ss:$4 sm:$0xff]
      %v3917 = vld [vmem:[%s3845] ss:$4 sm:$0xff]
      %v3918 = vld [vmem:[%s3847] ss:$4 sm:$0xff]
      %v3919 = vld [vmem:[%s3849] ss:$4 sm:$0xff]
      %v3920 = vld [vmem:[%s3851] ss:$4 sm:$0xff]
      %v3921 = vld [vmem:[%s3853] ss:$4 sm:$0xff]
      %3922 = vst [vmem:[#allocation1] sm:$0xff] %v389
      %3923 = vst [vmem:[#allocation1 + $0x20] sm:$0xff] %v390
      %v3924 = vld [vmem:[%s3845] ss:$4 sm:$0xff]
      %v3925 = vld [vmem:[%s3847] ss:$4 sm:$0xff]
      %v3926 = vld [vmem:[%s3849] ss:$4 sm:$0xff]
      %v3927 = vld [vmem:[%s3851] ss:$4 sm:$0xff]
      %v3928 = vld [vmem:[%s3853] ss:$4 sm:$0xff]
      %v3929 = vld [vmem:[%s3855] ss:$4 sm:$0xff]
      %v3930 = vld [vmem:[%s3857] ss:$4 sm:$0xff]
      %3931 = vst [vmem:[#allocation1] sm:$0xff] %v391
      %v3932 = vld [vmem:[#allocation1] ss:$4 sm:$0xff]
      %v3933 = vld [vmem:[%s3845] ss:$4 sm:$0xff]
      %3934 = vst [vmem:[#allocation1 + $0x20] sm:$0xff] %v392
      %v3935 = vld [vmem:[%s3853] ss:$4 sm:$0xff]
      %v3936 = vld [vmem:[%s3855] ss:$4 sm:$0xff]
      %v3937 = vld [vmem:[%s3857] ss:$4 sm:$0xff]
      %3938 = vst [vmem:[#allocation1] sm:$0xff] %v393
      %3939 = vst [vmem:[#allocation1 + $0x20] sm:$0xff] %v394
      %v3940 = vld [vmem:[#allocation1] ss:$4 sm:$0xff]
      %v3941 = vld [vmem:[%s3845] ss:$4 sm:$0xff]
      %v3942 = vld [vmem:[%s3847] ss:$4 sm:$0xff]
      %v3943 = vld [vmem:[%s3849] ss:$4 sm:$0xff]
      %v3944 = vld [vmem:[%s3851] ss:$4 sm:$0xff]
      %v3945 = vld [vmem:[%s3853] ss:$4 sm:$0xff]
      %3946 = vst [vmem:[#allocation1] sm:$0xff] %v395
      %3947 = vst [vmem:[#allocation1 + $0x20] sm:$0xff] %v396
      %v3948 = vld [vmem:[%s3845] ss:$4 sm:$0xff]
      %v3949 = vld [vmem:[%s3847] ss:$4 sm:$0xff]
      %v3950 = vld [vmem:[%s3849] ss:$4 sm:$0xff]
      %v3951 = vld [vmem:[%s3851] ss:$4 sm:$0xff]
      %v3952 = vld [vmem:[%s3853] ss:$4 sm:$0xff]
      %v3953 = vld [vmem:[%s3855] ss:$4 sm:$0xff]
      %v3954 = vld [vmem:[%s3857] ss:$4 sm:$0xff]
      %3955 = vst [vmem:[#allocation1] sm:$0xff] %v397
      %v3956 = vld [vmem:[#allocation1] ss:$4 sm:$0xff]
      %v3957 = vld [vmem:[%s3845] ss:$4 sm:$0xff]
      %3958 = vst [vmem:[#allocation1 + $0x20] sm:$0xff] %v398
      %v3959 = vld [vmem:[%s3853] ss:$4 sm:$0xff]
      %v3960 = vld [vmem:[%s3855] ss:$4 sm:$0xff]
      %v3961 = vld [vmem:[%s3857] ss:$4 sm:$0xff]
      %3962 = vst [vmem:[#allocation1] sm:$0xff] %v399
      %3963 = vst [vmem:[#allocation1 + $0x20] sm:$0xff] %v400
      %v3964 = vld [vmem:[#allocation1] ss:$4 sm:$0xff]
      %v3965 = vld [vmem:[%s3845] ss:$4 sm:$0xff]
      %v3966 = vld [vmem:[%s3847] ss:$4 sm:$0xff]
      %v3967 = vld [vmem:[%s3849] ss:$4 sm:$0xff]
      %v3968 = vld [vmem:[%s3851] ss:$4 sm:$0xff]
      %v3969 = vld [vmem:[%s3853] ss:$4 sm:$0xff]
      %s3970 = scalar_lea.vmem %s3, 16
      %v3971 = vld [vmem:[%s3970] sm:$0x3]
      %3972 = vst [vmem:[#allocation1] ss:$9 sm:$0xff] %v3846
      %s3973 = scalar_lea.vmem [#allocation1], 1
      %3974 = vst [vmem:[%s3973] ss:$9 sm:$0xff] %v3848
      %s3975 = scalar_lea.vmem [#allocation1], 2
      %3976 = vst [vmem:[%s3975] ss:$9 sm:$0xff] %v3850
      %s3977 = scalar_lea.vmem [#allocation1], 3
      %3978 = vst [vmem:[%s3977] ss:$9 sm:$0xff] %v3852
      %s3979 = scalar_lea.vmem [#allocation1], 4
      %3980 = vst [vmem:[%s3979] ss:$9 sm:$0xff] %v3854
      %s3981 = scalar_lea.vmem [#allocation1], 5
      %3982 = vst [vmem:[%s3981] ss:$9 sm:$0xff] %v3856
      %s3983 = scalar_lea.vmem [#allocation1], 6
      %3984 = vst [vmem:[%s3983] ss:$9 sm:$0xff] %v3858
      %s3985 = scalar_lea.vmem [#allocation1], 7
      %3986 = vst [vmem:[%s3985] ss:$9 sm:$0xff] %v3860
      %v3987 = vld [vmem:[#allocation1] sm:$0xff]
      %3988 = vst [vmem:[#allocation1] ss:$9 sm:$0xff] %v3861
      %3989 = vst [vmem:[%s3973] ss:$9 sm:$0xff] %v3863
      %3990 = vst [vmem:[%s3975] ss:$9 sm:$0xff] %v3864
      %3991 = vst [vmem:[%s3977] ss:$9 sm:$0xff] %v3865
      %3992 = vst [vmem:[%s3979] ss:$9 sm:$0xff] %v3868
      %3993 = vst [vmem:[%s3981] ss:$9 sm:$0xff] %v3869
      %3994 = vst [vmem:[%s3983] ss:$9 sm:$0xff] %v3870
      %3995 = vst [vmem:[%s3985] ss:$9 sm:$0xff] %v3871
      %v3996 = vld [vmem:[#allocation1] sm:$0xff]
      %3997 = vst [vmem:[#allocation1] ss:$9 sm:$0xff] %v3872
      %3998 = vst [vmem:[%s3973] ss:$9 sm:$0xff] %v3873
      %3999 = vst [vmem:[%s3975] ss:$9 sm:$0xff] %v3876
      %4000 = vst [vmem:[%s3977] ss:$9 sm:$0xff] %v3877
      %4001 = vst [vmem:[%s3979] ss:$9 sm:$0xff] %v3878
      %4002 = vst [vmem:[%s3981] ss:$9 sm:$0xff] %v3879
      %4003 = vst [vmem:[%s3983] ss:$9 sm:$0xff] %v3880
      %4004 = vst [vmem:[%s3985] ss:$9 sm:$0xff] %v3881
      %v4005 = vld [vmem:[#allocation1] sm:$0xff]
      %4006 = vst [vmem:[#allocation1] ss:$9 sm:$0xff] %v3882
      %4007 = vst [vmem:[%s3973] ss:$9 sm:$0xff] %v3884
      %4008 = vst [vmem:[%s3975] ss:$9 sm:$0xff] %v3885
      %4009 = vst [vmem:[%s3977] ss:$9 sm:$0xff] %v3887
      %4010 = vst [vmem:[%s3979] ss:$9 sm:$0xff] %v3888
      %4011 = vst [vmem:[%s3981] ss:$9 sm:$0xff] %v3889
      %4012 = vst [vmem:[%s3983] ss:$9 sm:$0xff] %v3892
      %4013 = vst [vmem:[%s3985] ss:$9 sm:$0xff] %v3893
      %v4014 = vld [vmem:[#allocation1] sm:$0xff]
      %4015 = vst [vmem:[#allocation1] ss:$9 sm:$0xff] %v3894
      %4016 = vst [vmem:[%s3973] ss:$9 sm:$0xff] %v3895
      %4017 = vst [vmem:[%s3975] ss:$9 sm:$0xff] %v3896
      %4018 = vst [vmem:[%s3977] ss:$9 sm:$0xff] %v3897
      %4019 = vst [vmem:[%s3979] ss:$9 sm:$0xff] %v3900
      %4020 = vst [vmem:[%s3981] ss:$9 sm:$0xff] %v3901
      %4021 = vst [vmem:[%s3983] ss:$9 sm:$0xff] %v3902
      %4022 = vst [vmem:[%s3985] ss:$9 sm:$0xff] %v3903
      %v4023 = vld [vmem:[#allocation1] sm:$0xff]
      %4024 = vst [vmem:[#allocation1] ss:$9 sm:$0xff] %v3904
      %4025 = vst [vmem:[%s3973] ss:$9 sm:$0xff] %v3905
      %4026 = vst [vmem:[%s3975] ss:$9 sm:$0xff] %v3906
      %4027 = vst [vmem:[%s3977] ss:$9 sm:$0xff] %v3908
      %4028 = vst [vmem:[%s3979] ss:$9 sm:$0xff] %v3909
      %4029 = vst [vmem:[%s3981] ss:$9 sm:$0xff] %v3911
      %4030 = vst [vmem:[%s3983] ss:$9 sm:$0xff] %v3912
      %4031 = vst [vmem:[%s3985] ss:$9 sm:$0xff] %v3913
      %v4032 = vld [vmem:[#allocation1] sm:$0xff]
      %4033 = vst [vmem:[#allocation1] ss:$9 sm:$0xff] %v3916
      %4034 = vst [vmem:[%s3973] ss:$9 sm:$0xff] %v3917
      %4035 = vst [vmem:[%s3975] ss:$9 sm:$0xff] %v3918
      %4036 = vst [vmem:[%s3977] ss:$9 sm:$0xff] %v3919
      %4037 = vst [vmem:[%s3979] ss:$9 sm:$0xff] %v3920
      %4038 = vst [vmem:[%s3981] ss:$9 sm:$0xff] %v3921
      %4039 = vst [vmem:[%s3983] ss:$9 sm:$0xff] %v3924
      %4040 = vst [vmem:[%s3985] ss:$9 sm:$0xff] %v3925
      %v4041 = vld [vmem:[#allocation1] sm:$0xff]
      %4042 = vst [vmem:[#allocation1] ss:$9 sm:$0xff] %v3926
      %4043 = vst [vmem:[%s3973] ss:$9 sm:$0xff] %v3927
      %4044 = vst [vmem:[%s3975] ss:$9 sm:$0xff] %v3928
      %4045 = vst [vmem:[%s3977] ss:$9 sm:$0xff] %v3929
      %4046 = vst [vmem:[%s3979] ss:$9 sm:$0xff] %v3930
      %4047 = vst [vmem:[%s3981] ss:$9 sm:$0xff] %v3932
      %4048 = vst [vmem:[%s3983] ss:$9 sm:$0xff] %v3933
      %4049 = vst [vmem:[%s3985] ss:$9 sm:$0xff] %v3935
      %v4050 = vld [vmem:[#allocation1] sm:$0xff]
      %4051 = vst [vmem:[#allocation1] ss:$9 sm:$0xff] %v3936
      %4052 = vst [vmem:[%s3973] ss:$9 sm:$0xff] %v3937
      %4053 = vst [vmem:[%s3975] ss:$9 sm:$0xff] %v3940
      %4054 = vst [vmem:[%s3977] ss:$9 sm:$0xff] %v3941
      %4055 = vst [vmem:[%s3979] ss:$9 sm:$0xff] %v3942
      %4056 = vst [vmem:[%s3981] ss:$9 sm:$0xff] %v3943
      %4057 = vst [vmem:[%s3983] ss:$9 sm:$0xff] %v3944
      %4058 = vst [vmem:[%s3985] ss:$9 sm:$0xff] %v3945
      %v4059 = vld [vmem:[#allocation1] sm:$0xff]
      %4060 = vst [vmem:[#allocation1] ss:$9 sm:$0xff] %v3948
      %4061 = vst [vmem:[%s3973] ss:$9 sm:$0xff] %v3949
      %4062 = vst [vmem:[%s3975] ss:$9 sm:$0xff] %v3950
      %4063 = vst [vmem:[%s3977] ss:$9 sm:$0xff] %v3951
      %4064 = vst [vmem:[%s3979] ss:$9 sm:$0xff] %v3952
      %4065 = vst [vmem:[%s3981] ss:$9 sm:$0xff] %v3953
      %4066 = vst [vmem:[%s3983] ss:$9 sm:$0xff] %v3954
      %4067 = vst [vmem:[%s3985] ss:$9 sm:$0xff] %v3956
      %v4068 = vld [vmem:[#allocation1] sm:$0xff]
      %4069 = vst [vmem:[#allocation1] ss:$9 sm:$0xff] %v3957
      %4070 = vst [vmem:[%s3973] ss:$9 sm:$0xff] %v3959
      %4071 = vst [vmem:[%s3975] ss:$9 sm:$0xff] %v3960
      %4072 = vst [vmem:[%s3977] ss:$9 sm:$0xff] %v3961
      %4073 = vst [vmem:[%s3979] ss:$9 sm:$0xff] %v3964
      %4074 = vst [vmem:[%s3981] ss:$9 sm:$0xff] %v3965
      %4075 = vst [vmem:[%s3983] ss:$9 sm:$0xff] %v3966
      %4076 = vst [vmem:[%s3985] ss:$9 sm:$0xff] %v3967
      %v4077 = vld [vmem:[#allocation1] sm:$0xff]
      %4078 = vst [vmem:[#allocation1] ss:$9 sm:$0xff] %v3968
      %4079 = vst [vmem:[%s3973] ss:$9 sm:$0xff] %v3969
      %v4080 = vld [vmem:[#allocation1] sm:$0xff]
      %v4081 = vsel %vm1682, %v3987, 0
      %v4083 = vsel %vm1682, %v3996, 0
      %v4085 = vsel %vm1682, %v4005, 0
      %v4087 = vsel %vm1682, %v4014, 0
      %v4089 = vsel %vm1682, %v4023, 0
      %v4091 = vsel %vm1682, %v4032, 0
      %v4093 = vsel %vm1682, %v4041, 0
      %v4095 = vsel %vm1682, %v4050, 0
      %v4097 = vsel %vm1682, %v4059, 0
      %v4099 = vsel %vm1682, %v4068, 0
      %v4101 = vsel %vm1682, %v4077, 0
      %v4103 = vsel %vm1682, %v4080, 0
      %v4106 = vand.u32 %v3971, %v1709
      %4108 = vmatpush.bf16.msra.mxu0 0
      %4109 = vmatpush.bf16.msra.mxu0 0
      %4110 = vmatpush.bf16.msra.mxu0 0
      %4111 = vmatpush.bf16.msra.mxu0 0
      %4112 = vmatpush.bf16.msra.mxu0 0
      %4113 = vmatpush.bf16.msra.mxu0 0
      %4114 = vmatpush.bf16.msra.mxu0 0
      %4115 = vmatpush.bf16.msra.mxu0 %v4106
      %4116 = vmatmul.bf16.gmra.mxu0 %v4081
      %v4117 = vpop.f32.mrf.mxu0
      %v4118 = vadd.f32 0.0, %v4117
      %v4119 = vpop.f32.mrf.mxu0
      %v4120 = vadd.f32 0.0, %v4119
      %4121 = vmatmul.bf16.gmra.mxu0 %v4083
      %v4122 = vpop.f32.mrf.mxu0
      %v4123 = vadd.f32 0.0, %v4122
      %v4124 = vpop.f32.mrf.mxu0
      %v4125 = vadd.f32 0.0, %v4124
      %4126 = vmatmul.bf16.gmra.mxu0 %v4085
      %v4127 = vpop.f32.mrf.mxu0
      %v4128 = vadd.f32 0.0, %v4127
      %v4129 = vpop.f32.mrf.mxu0
      %v4130 = vadd.f32 0.0, %v4129
      %4131 = vmatmul.bf16.gmra.mxu0 %v4087
      %v4132 = vpop.f32.mrf.mxu0
      %v4133 = vadd.f32 0.0, %v4132
      %v4134 = vpop.f32.mrf.mxu0
      %v4135 = vadd.f32 0.0, %v4134
      %4136 = vmatmul.bf16.gmra.mxu0 %v4089
      %v4137 = vpop.f32.mrf.mxu0
      %v4138 = vadd.f32 0.0, %v4137
      %v4139 = vpop.f32.mrf.mxu0
      %v4140 = vadd.f32 0.0, %v4139
      %4141 = vmatmul.bf16.gmra.mxu0 %v4091
      %v4142 = vpop.f32.mrf.mxu0
      %v4143 = vadd.f32 0.0, %v4142
      %v4144 = vpop.f32.mrf.mxu0
      %v4145 = vadd.f32 0.0, %v4144
      %4146 = vmatmul.bf16.gmra.mxu0 %v4093
      %v4147 = vpop.f32.mrf.mxu0
      %v4148 = vadd.f32 0.0, %v4147
      %v4149 = vpop.f32.mrf.mxu0
      %v4150 = vadd.f32 0.0, %v4149
      %4151 = vmatmul.bf16.gmra.mxu0 %v4095
      %v4152 = vpop.f32.mrf.mxu0
      %v4153 = vadd.f32 0.0, %v4152
      %v4154 = vpop.f32.mrf.mxu0
      %v4155 = vadd.f32 0.0, %v4154
      %4156 = vmatmul.bf16.gmra.mxu0 %v4097
      %v4157 = vpop.f32.mrf.mxu0
      %v4158 = vadd.f32 0.0, %v4157
      %v4159 = vpop.f32.mrf.mxu0
      %v4160 = vadd.f32 0.0, %v4159
      %4161 = vmatmul.bf16.gmra.mxu0 %v4099
      %v4162 = vpop.f32.mrf.mxu0
      %v4163 = vadd.f32 0.0, %v4162
      %v4164 = vpop.f32.mrf.mxu0
      %v4165 = vadd.f32 0.0, %v4164
      %4166 = vmatmul.bf16.gmra.mxu0 %v4101
      %v4167 = vpop.f32.mrf.mxu0
      %v4168 = vadd.f32 0.0, %v4167
      %v4169 = vpop.f32.mrf.mxu0
      %v4170 = vadd.f32 0.0, %v4169
      %4171 = vmatmul.bf16.gmra.mxu0 %v4103
      %v4172 = vpop.f32.mrf.mxu0
      %v4173 = vadd.f32 0.0, %v4172
      %v4174 = vpop.f32.mrf.mxu0
      %4175 = vdwg.mxu0
      %v4176 = vadd.f32 %v3820, %v4118
      %v4177 = vadd.f32 %v3821, %v4120
      %v4178 = vadd.f32 %v3822, %v4123
      %v4179 = vadd.f32 %v3823, %v4125
      %v4180 = vadd.f32 %v3824, %v4128
      %v4181 = vadd.f32 %v3825, %v4130
      %v4182 = vadd.f32 %v3826, %v4133
      %v4183 = vadd.f32 %v3827, %v4135
      %v4184 = vadd.f32 %v3828, %v4138
      %v4185 = vadd.f32 %v3829, %v4140
      %v4186 = vadd.f32 %v3830, %v4143
      %v4187 = vadd.f32 %v3831, %v4145
      %v4188 = vadd.f32 %v3832, %v4148
      %v4189 = vadd.f32 %v3833, %v4150
      %v4190 = vadd.f32 %v3834, %v4153
      %v4191 = vadd.f32 %v3835, %v4155
      %v4192 = vadd.f32 %v3836, %v4158
      %v4193 = vadd.f32 %v3837, %v4160
      %v4194 = vadd.f32 %v3838, %v4163
      %v4195 = vadd.f32 %v3839, %v4165
      %v4196 = vadd.f32 %v3840, %v4168
      %v4197 = vadd.f32 %v3841, %v4170
      %v4198 = vadd.f32 %v3842, %v4173
      %v4199 = vld [vmem:[%s4] sm:$0x1]
      %v4201 = vperm.slane %v4199, 0
      %v4203 = vadd.f32 %v4176, %v4201
      %v4204 = vadd.f32 %v4177, %v4201
      %v4205 = vadd.f32 %v4178, %v4201
      %v4206 = vadd.f32 %v4179, %v4201
      %v4207 = vadd.f32 %v4180, %v4201
      %v4208 = vadd.f32 %v4181, %v4201
      %v4209 = vadd.f32 %v4182, %v4201
      %v4210 = vadd.f32 %v4183, %v4201
      %v4211 = vadd.f32 %v4184, %v4201
      %v4212 = vadd.f32 %v4185, %v4201
      %v4213 = vadd.f32 %v4186, %v4201
      %v4214 = vadd.f32 %v4187, %v4201
      %v4215 = vadd.f32 %v4188, %v4201
      %v4216 = vadd.f32 %v4189, %v4201
      %v4217 = vadd.f32 %v4190, %v4201
      %v4218 = vadd.f32 %v4191, %v4201
      %v4219 = vadd.f32 %v4192, %v4201
      %v4220 = vadd.f32 %v4193, %v4201
      %v4221 = vadd.f32 %v4194, %v4201
      %v4222 = vadd.f32 %v4195, %v4201
      %v4223 = vadd.f32 %v4196, %v4201
      %v4224 = vadd.f32 %v4197, %v4201
      %v4225 = vadd.f32 %v4198, %v4201
      %v4226 = vmax.f32 %v4203, 0.0
      %v4227 = vmax.f32 %v4204, 0.0
      %v4228 = vmax.f32 %v4205, 0.0
      %v4229 = vmax.f32 %v4206, 0.0
      %v4230 = vmax.f32 %v4207, 0.0
      %v4231 = vmax.f32 %v4208, 0.0
      %v4232 = vmax.f32 %v4209, 0.0
      %v4233 = vmax.f32 %v4210, 0.0
      %v4234 = vmax.f32 %v4211, 0.0
      %v4235 = vmax.f32 %v4212, 0.0
      %v4236 = vmax.f32 %v4213, 0.0
      %v4237 = vmax.f32 %v4214, 0.0
      %v4238 = vmax.f32 %v4215, 0.0
      %v4239 = vmax.f32 %v4216, 0.0
      %v4240 = vmax.f32 %v4217, 0.0
      %v4241 = vmax.f32 %v4218, 0.0
      %v4242 = vmax.f32 %v4219, 0.0
      %v4243 = vmax.f32 %v4220, 0.0
      %v4244 = vmax.f32 %v4221, 0.0
      %v4245 = vmax.f32 %v4222, 0.0
      %v4246 = vmax.f32 %v4223, 0.0
      %v4247 = vmax.f32 %v4224, 0.0
      %v4248 = vmax.f32 %v4225, 0.0
      %v4272 = vrot.slane %v4226, 2
      %v4273 = vrot.slane %v4226, 4
      %v4274 = vrot.slane %v4226, 6
      %v4275 = vrot.slane %v4227, 2
      %v4276 = vrot.slane %v4227, 4
      %v4277 = vrot.slane %v4227, 6
      %v4278 = vrot.slane %v4228, 2
      %v4279 = vrot.slane %v4228, 4
      %v4280 = vrot.slane %v4228, 6
      %v4281 = vrot.slane %v4229, 2
      %v4282 = vrot.slane %v4229, 4
      %v4283 = vrot.slane %v4229, 6
      %v4284 = vrot.slane %v4230, 2
      %v4285 = vrot.slane %v4230, 4
      %v4286 = vrot.slane %v4230, 6
      %v4287 = vrot.slane %v4231, 2
      %v4288 = vrot.slane %v4231, 4
      %v4289 = vrot.slane %v4231, 6
      %v4290 = vrot.slane %v4232, 2
      %v4291 = vrot.slane %v4232, 4
      %v4292 = vrot.slane %v4232, 6
      %v4293 = vrot.slane %v4233, 2
      %v4294 = vrot.slane %v4233, 4
      %v4295 = vrot.slane %v4233, 6
      %v4296 = vrot.slane %v4234, 2
      %v4297 = vrot.slane %v4234, 4
      %v4298 = vrot.slane %v4234, 6
      %v4299 = vrot.slane %v4235, 2
      %v4300 = vrot.slane %v4235, 4
      %v4301 = vrot.slane %v4235, 6
      %v4302 = vrot.slane %v4236, 2
      %v4303 = vrot.slane %v4236, 4
      %v4304 = vrot.slane %v4236, 6
      %v4305 = vrot.slane %v4237, 2
      %v4306 = vrot.slane %v4237, 4
      %v4307 = vrot.slane %v4237, 6
      %v4308 = vrot.slane %v4238, 2
      %v4309 = vrot.slane %v4238, 4
      %v4310 = vrot.slane %v4238, 6
      %v4311 = vrot.slane %v4239, 2
      %v4312 = vrot.slane %v4239, 4
      %v4313 = vrot.slane %v4239, 6
      %v4314 = vrot.slane %v4240, 2
      %v4315 = vrot.slane %v4240, 4
      %v4316 = vrot.slane %v4240, 6
      %v4317 = vrot.slane %v4241, 2
      %v4318 = vrot.slane %v4241, 4
      %v4319 = vrot.slane %v4241, 6
      %v4320 = vrot.slane %v4242, 2
      %v4321 = vrot.slane %v4242, 4
      %v4322 = vrot.slane %v4242, 6
      %v4323 = vrot.slane %v4243, 2
      %v4324 = vrot.slane %v4243, 4
      %v4325 = vrot.slane %v4243, 6
      %v4326 = vrot.slane %v4244, 2
      %v4327 = vrot.slane %v4244, 4
      %v4328 = vrot.slane %v4244, 6
      %v4329 = vrot.slane %v4245, 2
      %v4330 = vrot.slane %v4245, 4
      %v4331 = vrot.slane %v4245, 6
      %v4332 = vrot.slane %v4246, 2
      %v4333 = vrot.slane %v4246, 4
      %v4334 = vrot.slane %v4246, 6
      %v4335 = vrot.slane %v4247, 2
      %v4336 = vrot.slane %v4247, 4
      %v4337 = vrot.slane %v4247, 6
      %v4338 = vrot.slane %v4248, 2
      %s4339 = ssub.s32 %s361, 1
      %v4340 = vstv %s4339
      %v4341 = vadd.s32 %v4340, 1
      %v4342 = vadd.s32 %v4340, 2
      %v4343 = vadd.s32 %v4340, 3
      %v4344 = vadd.s32 %v4340, 4
      %v4345 = vadd.s32 %v4340, 5
      %v4346 = vadd.s32 %v4340, 6
      %v4347 = vadd.s32 %v4340, 7
      %v4348 = vadd.s32 %v4340, 8
      %v4349 = vadd.s32 %v4340, 9
      %v4350 = vlaneseq
      %v4351 = vshrl.u32 %v4350, 7
      %v4352 = vadd.s32 %v4351, 8
      %v4353 = vadd.s32 %v4351, 16
      %v4354 = vsub.s32 %v4351, 1
      %v4355 = vsub.s32 %v4352, 1
      %v4356 = vsub.s32 %v4353, 1
      %vm4357 = vcmp.ge.s32.totalorder %v4340, 0
      %vm4358 = vcmp.ge.s32.totalorder %v4341, 0
      %vm4359 = vcmp.ge.s32.totalorder %v4342, 0
      %vm4360 = vcmp.ge.s32.totalorder %v4343, 0
      %vm4361 = vcmp.ge.s32.totalorder %v4344, 0
      %vm4362 = vcmp.ge.s32.totalorder %v4345, 0
      %vm4363 = vcmp.ge.s32.totalorder %v4346, 0
      %vm4364 = vcmp.ge.s32.totalorder %v4347, 0
      %vm4365 = vcmp.ge.s32.totalorder %v4348, 0
      %vm4366 = vcmp.ge.s32.totalorder %v4349, 0
      %vm4367 = vcmp.lt.s32.totalorder %v4340, 16
      %vm4368 = vcmp.lt.s32.totalorder %v4341, 16
      %vm4369 = vcmp.lt.s32.totalorder %v4342, 16
      %vm4370 = vcmp.lt.s32.totalorder %v4343, 16
      %vm4371 = vcmp.lt.s32.totalorder %v4344, 16
      %vm4372 = vcmp.lt.s32.totalorder %v4345, 16
      %vm4373 = vcmp.lt.s32.totalorder %v4346, 16
      %vm4374 = vcmp.lt.s32.totalorder %v4347, 16
      %vm4375 = vcmp.lt.s32.totalorder %v4348, 16
      %vm4376 = vcmp.lt.s32.totalorder %v4349, 16
      %vm4377 = vmand %vm4357, %vm4367
      %vm4378 = vmand %vm4358, %vm4368
      %vm4379 = vmand %vm4359, %vm4369
      %vm4380 = vmand %vm4360, %vm4370
      %vm4381 = vmand %vm4361, %vm4371
      %vm4382 = vmand %vm4362, %vm4372
      %vm4383 = vmand %vm4363, %vm4373
      %vm4384 = vmand %vm4364, %vm4374
      %vm4385 = vmand %vm4365, %vm4375
      %vm4386 = vmand %vm4366, %vm4376
      %vm4387 = vcmp.ge.s32.totalorder %v4354, 0
      %vm4388 = vcmp.ge.s32.totalorder %v4355, 0
      %vm4389 = vcmp.ge.s32.totalorder %v4356, 0
      %vm4390 = vmand %vm4377, %vm4387
      %vm4391 = vmand %vm4377, %vm4388
      %vm4392 = vmand %vm4377, %vm4389
      %vm4393 = vmand %vm4378, %vm4387
      %vm4394 = vmand %vm4378, %vm4388
      %vm4395 = vmand %vm4378, %vm4389
      %vm4396 = vmand %vm4379, %vm4387
      %vm4397 = vmand %vm4379, %vm4388
      %vm4398 = vmand %vm4379, %vm4389
      %vm4399 = vmand %vm4380, %vm4387
      %vm4400 = vmand %vm4380, %vm4388
      %vm4401 = vmand %vm4380, %vm4389
      %vm4402 = vmand %vm4381, %vm4387
      %vm4403 = vmand %vm4381, %vm4388
      %vm4404 = vmand %vm4381, %vm4389
      %vm4405 = vmand %vm4382, %vm4387
      %vm4406 = vmand %vm4382, %vm4388
      %vm4407 = vmand %vm4382, %vm4389
      %vm4408 = vmand %vm4383, %vm4387
      %vm4409 = vmand %vm4383, %vm4388
      %vm4410 = vmand %vm4383, %vm4389
      %vm4411 = vmand %vm4384, %vm4387
      %vm4412 = vmand %vm4384, %vm4388
      %vm4413 = vmand %vm4384, %vm4389
      %vm4414 = vmand %vm4385, %vm4387
      %vm4415 = vmand %vm4385, %vm4388
      %vm4416 = vmand %vm4385, %vm4389
      %vm4417 = vmand %vm4386, %vm4387
      %vm4418 = vmand %vm4386, %vm4388
      %vm4419 = vmand %vm4386, %vm4389
      %vm4420 = vcmp.lt.s32.totalorder %v4354, 16
      %vm4421 = vcmp.lt.s32.totalorder %v4355, 16
      %vm4422 = vcmp.lt.s32.totalorder %v4356, 16
      %vm4423 = vmand %vm4390, %vm4420
      %vm4424 = vmand %vm4391, %vm4421
      %vm4425 = vmand %vm4392, %vm4422
      %vm4426 = vmand %vm4393, %vm4420
      %vm4427 = vmand %vm4394, %vm4421
      %vm4428 = vmand %vm4395, %vm4422
      %vm4429 = vmand %vm4396, %vm4420
      %vm4430 = vmand %vm4397, %vm4421
      %vm4431 = vmand %vm4398, %vm4422
      %vm4432 = vmand %vm4399, %vm4420
      %vm4433 = vmand %vm4400, %vm4421
      %vm4434 = vmand %vm4401, %vm4422
      %vm4435 = vmand %vm4402, %vm4420
      %vm4436 = vmand %vm4403, %vm4421
      %vm4437 = vmand %vm4404, %vm4422
      %vm4438 = vmand %vm4405, %vm4420
      %vm4439 = vmand %vm4406, %vm4421
      %vm4440 = vmand %vm4407, %vm4422
      %vm4441 = vmand %vm4408, %vm4420
      %vm4442 = vmand %vm4409, %vm4421
      %vm4443 = vmand %vm4410, %vm4422
      %vm4444 = vmand %vm4411, %vm4420
      %vm4445 = vmand %vm4412, %vm4421
      %vm4446 = vmand %vm4413, %vm4422
      %vm4447 = vmand %vm4414, %vm4420
      %vm4448 = vmand %vm4415, %vm4421
      %vm4449 = vmand %vm4416, %vm4422
      %vm4450 = vmand %vm4417, %vm4420
      %vm4451 = vmand %vm4418, %vm4421
      %vm4452 = vmand %vm4419, %vm4422
      %v4453 = vsel %vm4423, 1, 0
      %v4454 = vsel %vm4424, 1, 0
      %v4455 = vsel %vm4425, 1, 0
      %v4456 = vsel %vm4426, 1, 0
      %v4457 = vsel %vm4427, 1, 0
      %v4458 = vsel %vm4428, 1, 0
      %v4459 = vsel %vm4429, 1, 0
      %v4460 = vsel %vm4430, 1, 0
      %v4461 = vsel %vm4431, 1, 0
      %v4462 = vsel %vm4432, 1, 0
      %v4463 = vsel %vm4433, 1, 0
      %v4464 = vsel %vm4434, 1, 0
      %v4465 = vsel %vm4435, 1, 0
      %v4466 = vsel %vm4436, 1, 0
      %v4467 = vsel %vm4437, 1, 0
      %v4468 = vsel %vm4438, 1, 0
      %v4469 = vsel %vm4439, 1, 0
      %v4470 = vsel %vm4440, 1, 0
      %v4471 = vsel %vm4441, 1, 0
      %v4472 = vsel %vm4442, 1, 0
      %v4473 = vsel %vm4443, 1, 0
      %v4474 = vsel %vm4444, 1, 0
      %v4475 = vsel %vm4445, 1, 0
      %v4476 = vsel %vm4446, 1, 0
      %v4477 = vsel %vm4447, 1, 0
      %v4478 = vsel %vm4448, 1, 0
      %v4479 = vsel %vm4449, 1, 0
      %v4480 = vsel %vm4450, 1, 0
      %v4481 = vsel %vm4451, 1, 0
      %v4482 = vsel %vm4452, 1, 0
      %vm4483 = vcmp.eq.s32.totalorder %v4453, 1
      %vm4484 = vcmp.eq.s32.totalorder %v4454, 1
      %vm4485 = vcmp.eq.s32.totalorder %v4455, 1
      %vm4486 = vcmp.eq.s32.totalorder %v4456, 1
      %vm4487 = vcmp.eq.s32.totalorder %v4457, 1
      %vm4488 = vcmp.eq.s32.totalorder %v4458, 1
      %vm4489 = vcmp.eq.s32.totalorder %v4459, 1
      %vm4490 = vcmp.eq.s32.totalorder %v4460, 1
      %vm4491 = vcmp.eq.s32.totalorder %v4461, 1
      %vm4492 = vcmp.eq.s32.totalorder %v4462, 1
      %vm4493 = vcmp.eq.s32.totalorder %v4463, 1
      %vm4494 = vcmp.eq.s32.totalorder %v4464, 1
      %vm4495 = vcmp.eq.s32.totalorder %v4465, 1
      %vm4496 = vcmp.eq.s32.totalorder %v4466, 1
      %vm4497 = vcmp.eq.s32.totalorder %v4467, 1
      %vm4498 = vcmp.eq.s32.totalorder %v4468, 1
      %vm4499 = vcmp.eq.s32.totalorder %v4469, 1
      %vm4500 = vcmp.eq.s32.totalorder %v4470, 1
      %vm4501 = vcmp.eq.s32.totalorder %v4471, 1
      %vm4502 = vcmp.eq.s32.totalorder %v4472, 1
      %vm4503 = vcmp.eq.s32.totalorder %v4473, 1
      %vm4504 = vcmp.eq.s32.totalorder %v4474, 1
      %vm4505 = vcmp.eq.s32.totalorder %v4475, 1
      %vm4506 = vcmp.eq.s32.totalorder %v4476, 1
      %vm4507 = vcmp.eq.s32.totalorder %v4477, 1
      %vm4508 = vcmp.eq.s32.totalorder %v4478, 1
      %vm4509 = vcmp.eq.s32.totalorder %v4479, 1
      %vm4510 = vcmp.eq.s32.totalorder %v4480, 1
      %vm4511 = vcmp.eq.s32.totalorder %v4481, 1
      %vm4512 = vcmp.eq.s32.totalorder %v4482, 1
      %4513 = vst [vmem:[#allocation1] ss:$4 sm:$0xff] %v4226
      %s4514 = scalar_lea.vmem [#allocation1], 1
      %4515 = vst [vmem:[%s4514] ss:$4 sm:$0xff] %v4272
      %s4516 = scalar_lea.vmem [#allocation1], 2
      %4517 = vst [vmem:[%s4516] ss:$4 sm:$0xff] %v4273
      %s4518 = scalar_lea.vmem [#allocation1], 3
      %4519 = vst [vmem:[%s4518] ss:$4 sm:$0xff] %v4274
      %s4520 = scalar_lea.vmem [#allocation1], 32
      %4521 = vst [vmem:[%s4520] ss:$4 sm:$0xff] %v4227
      %s4522 = scalar_lea.vmem [#allocation1], 33
      %4523 = vst [vmem:[%s4522] ss:$4 sm:$0xff] %v4275
      %s4524 = scalar_lea.vmem [#allocation1], 34
      %4525 = vst [vmem:[%s4524] ss:$4 sm:$0xff] %v4276
      %s4526 = scalar_lea.vmem [#allocation1], 35
      %4527 = vst [vmem:[%s4526] ss:$4 sm:$0xff] %v4277
      %v4528 = vld.sshfl [vmem:[#allocation1] sm:$0xff pattern:$0x73625140]
      %v4529 = vld.sshfl [vmem:[#allocation1 + $0x20] sm:$0xff pattern:$0x73625140]
      %4530 = vst [vmem:[#allocation1] ss:$4 sm:$0xff] %v4228
      %v4531 = vld.sshfl [vmem:[#allocation1] sm:$0xff pattern:$0x73625140]
      %4532 = vst [vmem:[%s4520] ss:$4 sm:$0xff] %v4278
      %4533 = vst [vmem:[%s4522] ss:$4 sm:$0xff] %v4279
      %4534 = vst [vmem:[%s4524] ss:$4 sm:$0xff] %v4280
      %4535 = vst [vmem:[%s4526] ss:$4 sm:$0xff] %v4229
      %v4536 = vld.sshfl [vmem:[#allocation1 + $0x20] sm:$0xff pattern:$0x73625140]
      %4537 = vst [vmem:[#allocation1] ss:$4 sm:$0xff] %v4281
      %4538 = vst [vmem:[%s4514] ss:$4 sm:$0xff] %v4282
      %4539 = vst [vmem:[%s4516] ss:$4 sm:$0xff] %v4283
      %4540 = vst [vmem:[%s4518] ss:$4 sm:$0xff] %v4230
      %4541 = vst [vmem:[%s4520] ss:$4 sm:$0xff] %v4284
      %v4542 = vld.sshfl [vmem:[#allocation1] sm:$0xff pattern:$0x73625140]
      %v4543 = vld.sshfl [vmem:[#allocation1 + $0x20] sm:$0xff pattern:$0x73625140]
      %4544 = vst [vmem:[#allocation1] ss:$4 sm:$0xff] %v4285
      %4545 = vst [vmem:[%s4514] ss:$4 sm:$0xff] %v4286
      %4546 = vst [vmem:[%s4516] ss:$4 sm:$0xff] %v4231
      %4547 = vst [vmem:[%s4518] ss:$4 sm:$0xff] %v4287
      %4548 = vst [vmem:[%s4520] ss:$4 sm:$0xff] %v4288
      %4549 = vst [vmem:[%s4522] ss:$4 sm:$0xff] %v4289
      %4550 = vst [vmem:[%s4524] ss:$4 sm:$0xff] %v4232
      %4551 = vst [vmem:[%s4526] ss:$4 sm:$0xff] %v4290
      %v4552 = vld.sshfl [vmem:[#allocation1] sm:$0xff pattern:$0x73625140]
      %v4553 = vld.sshfl [vmem:[#allocation1 + $0x20] sm:$0xff pattern:$0x73625140]
      %4554 = vst [vmem:[#allocation1] ss:$4 sm:$0xff] %v4291
      %v4555 = vld.sshfl [vmem:[#allocation1] sm:$0xff pattern:$0x73625140]
      %4556 = vst [vmem:[%s4520] ss:$4 sm:$0xff] %v4292
      %4557 = vst [vmem:[%s4522] ss:$4 sm:$0xff] %v4233
      %4558 = vst [vmem:[%s4524] ss:$4 sm:$0xff] %v4293
      %4559 = vst [vmem:[%s4526] ss:$4 sm:$0xff] %v4294
      %v4560 = vld.sshfl [vmem:[#allocation1 + $0x20] sm:$0xff pattern:$0x73625140]
      %4561 = vst [vmem:[#allocation1] ss:$4 sm:$0xff] %v4295
      %4562 = vst [vmem:[%s4514] ss:$4 sm:$0xff] %v4234
      %4563 = vst [vmem:[%s4516] ss:$4 sm:$0xff] %v4296
      %4564 = vst [vmem:[%s4518] ss:$4 sm:$0xff] %v4297
      %4565 = vst [vmem:[%s4520] ss:$4 sm:$0xff] %v4298
      %v4566 = vld.sshfl [vmem:[#allocation1] sm:$0xff pattern:$0x73625140]
      %v4567 = vld.sshfl [vmem:[#allocation1 + $0x20] sm:$0xff pattern:$0x73625140]
      %4568 = vst [vmem:[#allocation1] ss:$4 sm:$0xff] %v4235
      %4569 = vst [vmem:[%s4514] ss:$4 sm:$0xff] %v4299
      %4570 = vst [vmem:[%s4516] ss:$4 sm:$0xff] %v4300
      %4571 = vst [vmem:[%s4518] ss:$4 sm:$0xff] %v4301
      %4572 = vst [vmem:[%s4520] ss:$4 sm:$0xff] %v4236
      %4573 = vst [vmem:[%s4522] ss:$4 sm:$0xff] %v4302
      %4574 = vst [vmem:[%s4524] ss:$4 sm:$0xff] %v4303
      %4575 = vst [vmem:[%s4526] ss:$4 sm:$0xff] %v4304
      %v4576 = vld.sshfl [vmem:[#allocation1] sm:$0xff pattern:$0x73625140]
      %v4577 = vld.sshfl [vmem:[#allocation1 + $0x20] sm:$0xff pattern:$0x73625140]
      %4578 = vst [vmem:[#allocation1] ss:$4 sm:$0xff] %v4237
      %v4579 = vld.sshfl [vmem:[#allocation1] sm:$0xff pattern:$0x73625140]
      %4580 = vst [vmem:[%s4520] ss:$4 sm:$0xff] %v4305
      %4581 = vst [vmem:[%s4522] ss:$4 sm:$0xff] %v4306
      %4582 = vst [vmem:[%s4524] ss:$4 sm:$0xff] %v4307
      %4583 = vst [vmem:[%s4526] ss:$4 sm:$0xff] %v4238
      %v4584 = vld.sshfl [vmem:[#allocation1 + $0x20] sm:$0xff pattern:$0x73625140]
      %4585 = vst [vmem:[#allocation1] ss:$4 sm:$0xff] %v4308
      %4586 = vst [vmem:[%s4514] ss:$4 sm:$0xff] %v4309
      %4587 = vst [vmem:[%s4516] ss:$4 sm:$0xff] %v4310
      %4588 = vst [vmem:[%s4518] ss:$4 sm:$0xff] %v4239
      %4589 = vst [vmem:[%s4520] ss:$4 sm:$0xff] %v4311
      %v4590 = vld.sshfl [vmem:[#allocation1] sm:$0xff pattern:$0x73625140]
      %v4591 = vld.sshfl [vmem:[#allocation1 + $0x20] sm:$0xff pattern:$0x73625140]
      %4592 = vst [vmem:[#allocation1] ss:$4 sm:$0xff] %v4312
      %4593 = vst [vmem:[%s4514] ss:$4 sm:$0xff] %v4313
      %4594 = vst [vmem:[%s4516] ss:$4 sm:$0xff] %v4240
      %4595 = vst [vmem:[%s4518] ss:$4 sm:$0xff] %v4314
      %4596 = vst [vmem:[%s4520] ss:$4 sm:$0xff] %v4315
      %4597 = vst [vmem:[%s4522] ss:$4 sm:$0xff] %v4316
      %4598 = vst [vmem:[%s4524] ss:$4 sm:$0xff] %v4241
      %4599 = vst [vmem:[%s4526] ss:$4 sm:$0xff] %v4317
      %v4600 = vld.sshfl [vmem:[#allocation1] sm:$0xff pattern:$0x73625140]
      %v4601 = vld.sshfl [vmem:[#allocation1 + $0x20] sm:$0xff pattern:$0x73625140]
      %4602 = vst [vmem:[#allocation1] ss:$4 sm:$0xff] %v4318
      %v4603 = vld.sshfl [vmem:[#allocation1] sm:$0xff pattern:$0x73625140]
      %4604 = vst [vmem:[%s4520] ss:$4 sm:$0xff] %v4319
      %4605 = vst [vmem:[%s4522] ss:$4 sm:$0xff] %v4242
      %4606 = vst [vmem:[%s4524] ss:$4 sm:$0xff] %v4320
      %4607 = vst [vmem:[%s4526] ss:$4 sm:$0xff] %v4321
      %v4608 = vld.sshfl [vmem:[#allocation1 + $0x20] sm:$0xff pattern:$0x73625140]
      %4609 = vst [vmem:[#allocation1] ss:$4 sm:$0xff] %v4322
      %4610 = vst [vmem:[%s4514] ss:$4 sm:$0xff] %v4243
      %4611 = vst [vmem:[%s4516] ss:$4 sm:$0xff] %v4323
      %4612 = vst [vmem:[%s4518] ss:$4 sm:$0xff] %v4324
      %4613 = vst [vmem:[%s4520] ss:$4 sm:$0xff] %v4325
      %v4614 = vld.sshfl [vmem:[#allocation1] sm:$0xff pattern:$0x73625140]
      %v4615 = vld.sshfl [vmem:[#allocation1 + $0x20] sm:$0xff pattern:$0x73625140]
      %4616 = vst [vmem:[#allocation1] ss:$4 sm:$0xff] %v4244
      %4617 = vst [vmem:[%s4514] ss:$4 sm:$0xff] %v4326
      %4618 = vst [vmem:[%s4516] ss:$4 sm:$0xff] %v4327
      %4619 = vst [vmem:[%s4518] ss:$4 sm:$0xff] %v4328
      %4620 = vst [vmem:[%s4520] ss:$4 sm:$0xff] %v4245
      %4621 = vst [vmem:[%s4522] ss:$4 sm:$0xff] %v4329
      %4622 = vst [vmem:[%s4524] ss:$4 sm:$0xff] %v4330
      %4623 = vst [vmem:[%s4526] ss:$4 sm:$0xff] %v4331
      %v4624 = vld.sshfl [vmem:[#allocation1] sm:$0xff pattern:$0x73625140]
      %v4625 = vld.sshfl [vmem:[#allocation1 + $0x20] sm:$0xff pattern:$0x73625140]
      %4626 = vst [vmem:[#allocation1] ss:$4 sm:$0xff] %v4246
      %v4627 = vld.sshfl [vmem:[#allocation1] sm:$0xff pattern:$0x73625140]
      %4628 = vst [vmem:[%s4520] ss:$4 sm:$0xff] %v4332
      %4629 = vst [vmem:[%s4522] ss:$4 sm:$0xff] %v4333
      %4630 = vst [vmem:[%s4524] ss:$4 sm:$0xff] %v4334
      %4631 = vst [vmem:[%s4526] ss:$4 sm:$0xff] %v4247
      %v4632 = vld.sshfl [vmem:[#allocation1 + $0x20] sm:$0xff pattern:$0x73625140]
      %4633 = vst [vmem:[#allocation1] ss:$4 sm:$0xff] %v4335
      %4634 = vst [vmem:[%s4514] ss:$4 sm:$0xff] %v4336
      %4635 = vst [vmem:[%s4516] ss:$4 sm:$0xff] %v4337
      %4636 = vst [vmem:[%s4518] ss:$4 sm:$0xff] %v4248
      %4637 = vst [vmem:[%s4520] ss:$4 sm:$0xff] %v4338
      %v4638 = vld.sshfl [vmem:[#allocation1] sm:$0xff pattern:$0x73625140]
      %v4639 = vld.sshfl [vmem:[#allocation1 + $0x20] sm:$0xff pattern:$0x73625140]
      %v4670 = vsel %vm4483, %v4528, 0.0
      %v4671 = vsel %vm4484, %v4529, 0.0
      %v4672 = vsel %vm4485, %v4531, 0.0
      %v4673 = vsel %vm4486, %v4536, 0.0
      %v4674 = vsel %vm4487, %v4542, 0.0
      %v4675 = vsel %vm4488, %v4543, 0.0
      %v4676 = vsel %vm4489, %v4552, 0.0
      %v4677 = vsel %vm4490, %v4553, 0.0
      %v4678 = vsel %vm4491, %v4555, 0.0
      %v4679 = vsel %vm4492, %v4560, 0.0
      %v4680 = vsel %vm4493, %v4566, 0.0
      %v4681 = vsel %vm4494, %v4567, 0.0
      %v4682 = vsel %vm4495, %v4576, 0.0
      %v4683 = vsel %vm4496, %v4577, 0.0
      %v4684 = vsel %vm4497, %v4579, 0.0
      %v4685 = vsel %vm4498, %v4584, 0.0
      %v4686 = vsel %vm4499, %v4590, 0.0
      %v4687 = vsel %vm4500, %v4591, 0.0
      %v4688 = vsel %vm4501, %v4600, 0.0
      %v4689 = vsel %vm4502, %v4601, 0.0
      %v4690 = vsel %vm4503, %v4603, 0.0
      %v4691 = vsel %vm4504, %v4608, 0.0
      %v4692 = vsel %vm4505, %v4614, 0.0
      %v4693 = vsel %vm4506, %v4615, 0.0
      %v4694 = vsel %vm4507, %v4624, 0.0
      %v4695 = vsel %vm4508, %v4625, 0.0
      %v4696 = vsel %vm4509, %v4627, 0.0
      %v4697 = vsel %vm4510, %v4632, 0.0
      %v4698 = vsel %vm4511, %v4638, 0.0
      %v4699 = vsel %vm4512, %v4639, 0.0
      %v4700 = vpack.c.bf16 %v4670, %v4670
      %v4701 = vpack.c.bf16 %v4671, %v4671
      %v4702 = vpack.c.bf16 %v4672, %v4672
      %v4703 = vpack.c.bf16 %v4673, %v4673
      %v4704 = vpack.c.bf16 %v4674, %v4674
      %v4705 = vpack.c.bf16 %v4675, %v4675
      %v4706 = vpack.c.bf16 %v4676, %v4676
      %v4707 = vpack.c.bf16 %v4677, %v4677
      %v4708 = vpack.c.bf16 %v4678, %v4678
      %v4709 = vpack.c.bf16 %v4679, %v4679
      %v4710 = vpack.c.bf16 %v4680, %v4680
      %v4711 = vpack.c.bf16 %v4681, %v4681
      %v4712 = vpack.c.bf16 %v4682, %v4682
      %v4713 = vpack.c.bf16 %v4683, %v4683
      %v4714 = vpack.c.bf16 %v4684, %v4684
      %v4715 = vpack.c.bf16 %v4685, %v4685
      %v4716 = vpack.c.bf16 %v4686, %v4686
      %v4717 = vpack.c.bf16 %v4687, %v4687
      %v4718 = vpack.c.bf16 %v4688, %v4688
      %v4719 = vpack.c.bf16 %v4689, %v4689
      %v4720 = vpack.c.bf16 %v4690, %v4690
      %v4721 = vpack.c.bf16 %v4691, %v4691
      %v4722 = vpack.c.bf16 %v4692, %v4692
      %v4723 = vpack.c.bf16 %v4693, %v4693
      %v4724 = vpack.c.bf16 %v4694, %v4694
      %v4725 = vpack.c.bf16 %v4695, %v4695
      %v4726 = vpack.c.bf16 %v4696, %v4696
      %v4727 = vpack.c.bf16 %v4697, %v4697
      %v4728 = vpack.c.bf16 %v4698, %v4698
      %v4729 = vpack.c.bf16 %v4699, %v4699
      %v4730 = vld [vmem:[%s5] sm:$0xf]
      %v4731 = vld [vmem:[%s5 + $0x4] sm:$0xf]
      %v4732 = vld [vmem:[%s5 + $0x8] sm:$0xf]
      %v4733 = vld [vmem:[%s5 + $0xc] sm:$0xf]
      %v4734 = vld [vmem:[%s5 + $0x10] sm:$0xf]
      %v4735 = vld [vmem:[%s5 + $0x14] sm:$0xf]
      %v4736 = vld [vmem:[%s5 + $0x18] sm:$0xf]
      %v4737 = vld [vmem:[%s5 + $0x1c] sm:$0xf]
      %vm4738 = vsmask.f32 3328
      %vm4739 = vsmask.f32 7440
      %vm4740 = vmor %vm4738, %vm4739
      %v4742 = vshrl.u32 %v4700, 16
      %v4744 = vrot.slane %v4742, 4
      %v4745 = vshll.u32 %v4700, 16
      %v4747 = vrot.slane %v4745, 5
      %v4748 = vor.u32 %v4744, %v4747
      %v4749 = vrot.slane %v4748, 4
      %v4751 = vshll.u32 %v4701, 16
      %v4753 = vrot.slane %v4751, 5
      %v4754 = vsel %vm4740, %v4749, %v4753
      %v4755 = vshrl.u32 %v4701, 16
      %v4757 = vrot.slane %v4755, 4
      %v4758 = vor.u32 %v4757, %v4753
      %v4759 = vrot.slane %v4758, 4
      %v4761 = vshll.u32 %v4702, 16
      %v4763 = vrot.slane %v4761, 5
      %v4764 = vsel %vm4740, %v4759, %v4763
      %v4766 = vshrl.u32 %v4703, 16
      %v4768 = vrot.slane %v4766, 4
      %v4769 = vshll.u32 %v4703, 16
      %v4771 = vrot.slane %v4769, 5
      %v4772 = vor.u32 %v4768, %v4771
      %v4773 = vrot.slane %v4772, 4
      %v4775 = vshll.u32 %v4704, 16
      %v4777 = vrot.slane %v4775, 5
      %v4778 = vsel %vm4740, %v4773, %v4777
      %v4779 = vshrl.u32 %v4704, 16
      %v4781 = vrot.slane %v4779, 4
      %v4782 = vor.u32 %v4781, %v4777
      %v4783 = vrot.slane %v4782, 4
      %v4785 = vshll.u32 %v4705, 16
      %v4787 = vrot.slane %v4785, 5
      %v4788 = vsel %vm4740, %v4783, %v4787
      %v4790 = vshrl.u32 %v4706, 16
      %v4792 = vrot.slane %v4790, 4
      %v4793 = vshll.u32 %v4706, 16
      %v4795 = vrot.slane %v4793, 5
      %v4796 = vor.u32 %v4792, %v4795
      %v4797 = vrot.slane %v4796, 4
      %v4799 = vshll.u32 %v4707, 16
      %v4801 = vrot.slane %v4799, 5
      %v4802 = vsel %vm4740, %v4797, %v4801
      %v4803 = vshrl.u32 %v4707, 16
      %v4805 = vrot.slane %v4803, 4
      %v4806 = vor.u32 %v4805, %v4801
      %v4807 = vrot.slane %v4806, 4
      %v4809 = vshll.u32 %v4708, 16
      %v4811 = vrot.slane %v4809, 5
      %v4812 = vsel %vm4740, %v4807, %v4811
      %v4814 = vshrl.u32 %v4709, 16
      %v4816 = vrot.slane %v4814, 4
      %v4817 = vshll.u32 %v4709, 16
      %v4819 = vrot.slane %v4817, 5
      %v4820 = vor.u32 %v4816, %v4819
      %v4821 = vrot.slane %v4820, 4
      %v4823 = vshll.u32 %v4710, 16
      %v4825 = vrot.slane %v4823, 5
      %v4826 = vsel %vm4740, %v4821, %v4825
      %v4827 = vshrl.u32 %v4710, 16
      %v4829 = vrot.slane %v4827, 4
      %v4830 = vor.u32 %v4829, %v4825
      %v4831 = vrot.slane %v4830, 4
      %v4833 = vshll.u32 %v4711, 16
      %v4835 = vrot.slane %v4833, 5
      %v4836 = vsel %vm4740, %v4831, %v4835
      %v4838 = vshrl.u32 %v4712, 16
      %v4840 = vrot.slane %v4838, 4
      %v4841 = vshll.u32 %v4712, 16
      %v4843 = vrot.slane %v4841, 5
      %v4844 = vor.u32 %v4840, %v4843
      %v4845 = vrot.slane %v4844, 4
      %v4847 = vshll.u32 %v4713, 16
      %v4849 = vrot.slane %v4847, 5
      %v4850 = vsel %vm4740, %v4845, %v4849
      %v4851 = vshrl.u32 %v4713, 16
      %v4853 = vrot.slane %v4851, 4
      %v4854 = vor.u32 %v4853, %v4849
      %v4855 = vrot.slane %v4854, 4
      %v4857 = vshll.u32 %v4714, 16
      %v4859 = vrot.slane %v4857, 5
      %v4860 = vsel %vm4740, %v4855, %v4859
      %v4862 = vshrl.u32 %v4715, 16
      %v4864 = vrot.slane %v4862, 4
      %v4865 = vshll.u32 %v4715, 16
      %v4867 = vrot.slane %v4865, 5
      %v4868 = vor.u32 %v4864, %v4867
      %v4869 = vrot.slane %v4868, 4
      %v4871 = vshll.u32 %v4716, 16
      %v4873 = vrot.slane %v4871, 5
      %v4874 = vsel %vm4740, %v4869, %v4873
      %v4875 = vshrl.u32 %v4716, 16
      %v4877 = vrot.slane %v4875, 4
      %v4878 = vor.u32 %v4877, %v4873
      %v4879 = vrot.slane %v4878, 4
      %v4881 = vshll.u32 %v4717, 16
      %v4883 = vrot.slane %v4881, 5
      %v4884 = vsel %vm4740, %v4879, %v4883
      %v4886 = vshrl.u32 %v4718, 16
      %v4888 = vrot.slane %v4886, 4
      %v4889 = vshll.u32 %v4718, 16
      %v4891 = vrot.slane %v4889, 5
      %v4892 = vor.u32 %v4888, %v4891
      %v4893 = vrot.slane %v4892, 4
      %v4895 = vshll.u32 %v4719, 16
      %v4897 = vrot.slane %v4895, 5
      %v4898 = vsel %vm4740, %v4893, %v4897
      %v4899 = vshrl.u32 %v4719, 16
      %v4901 = vrot.slane %v4899, 4
      %v4902 = vor.u32 %v4901, %v4897
      %v4903 = vrot.slane %v4902, 4
      %v4905 = vshll.u32 %v4720, 16
      %v4907 = vrot.slane %v4905, 5
      %v4908 = vsel %vm4740, %v4903, %v4907
      %v4910 = vshrl.u32 %v4721, 16
      %v4912 = vrot.slane %v4910, 4
      %v4913 = vshll.u32 %v4721, 16
      %v4915 = vrot.slane %v4913, 5
      %v4916 = vor.u32 %v4912, %v4915
      %v4917 = vrot.slane %v4916, 4
      %v4919 = vshll.u32 %v4722, 16
      %v4921 = vrot.slane %v4919, 5
      %v4922 = vsel %vm4740, %v4917, %v4921
      %v4923 = vshrl.u32 %v4722, 16
      %v4925 = vrot.slane %v4923, 4
      %v4926 = vor.u32 %v4925, %v4921
      %v4927 = vrot.slane %v4926, 4
      %v4929 = vshll.u32 %v4723, 16
      %v4931 = vrot.slane %v4929, 5
      %v4932 = vsel %vm4740, %v4927, %v4931
      %s4933 = scalar_lea.vmem %s5, 32
      %v4934 = vld [vmem:[%s4933] sm:$0xf]
      %v4935 = vld [vmem:[%s4933 + $0x4] sm:$0xf]
      %v4936 = vld [vmem:[%s4933 + $0x8] sm:$0xf]
      %v4937 = vld [vmem:[%s4933 + $0xc] sm:$0xf]
      %v4938 = vld [vmem:[%s4933 + $0x10] sm:$0xf]
      %v4939 = vld [vmem:[%s4933 + $0x14] sm:$0xf]
      %v4940 = vld [vmem:[%s4933 + $0x18] sm:$0xf]
      %v4941 = vld [vmem:[%s4933 + $0x1c] sm:$0xf]
      %v4942 = vunpack.c.l.b16 %v4754
      %v4943 = vunpack.c.l.b16 %v4764
      %v4944 = vunpack.c.l.b16 %v4778
      %v4945 = vunpack.c.l.b16 %v4788
      %v4946 = vunpack.c.l.b16 %v4802
      %v4947 = vunpack.c.l.b16 %v4812
      %v4948 = vunpack.c.l.b16 %v4826
      %v4949 = vunpack.c.l.b16 %v4836
      %v4950 = vunpack.c.l.b16 %v4850
      %v4951 = vunpack.c.l.b16 %v4860
      %v4952 = vunpack.c.l.b16 %v4874
      %v4953 = vunpack.c.l.b16 %v4884
      %v4954 = vunpack.c.l.b16 %v4898
      %v4955 = vunpack.c.l.b16 %v4908
      %v4956 = vunpack.c.l.b16 %v4922
      %v4957 = vunpack.c.l.b16 %v4932
      %v4958 = vpack.c.b16 %v4943, %v4942
      %v4959 = vpack.c.b16 %v4945, %v4944
      %v4960 = vpack.c.b16 %v4947, %v4946
      %v4961 = vpack.c.b16 %v4949, %v4948
      %v4962 = vpack.c.b16 %v4951, %v4950
      %v4963 = vpack.c.b16 %v4953, %v4952
      %v4964 = vpack.c.b16 %v4955, %v4954
      %v4965 = vpack.c.b16 %v4957, %v4956
      %v4974 = vunpack.c.l.b16 %v4934
      %v4975 = vunpack.c.l.b16 %v4935
      %v4976 = vunpack.c.l.b16 %v4936
      %v4977 = vunpack.c.l.b16 %v4937
      %v4978 = vunpack.c.l.b16 %v4938
      %v4979 = vunpack.c.l.b16 %v4939
      %v4980 = vunpack.c.l.b16 %v4940
      %v4981 = vunpack.c.l.b16 %v4941
      %v4982 = vpack.c.b16 %v4975, %v4974
      %v4983 = vpack.c.b16 %v4977, %v4976
      %v4984 = vpack.c.b16 %v4979, %v4978
      %v4985 = vpack.c.b16 %v4981, %v4980
      %vm4990 = vcmask 523264
      %v4992 = vsel %vm4990, %v4958, 0
      %v4995 = vsel %vm4990, %v4959, 0
      %v4998 = vsel %vm4990, %v4960, 0
      %v5001 = vsel %vm4990, %v4961, 0
      %v5004 = vsel %vm4990, %v4962, 0
      %v5007 = vsel %vm4990, %v4963, 0
      %v5010 = vsel %vm4990, %v4964, 0
      %v5013 = vsel %vm4990, %v4965, 0
      %5015 = vmatpush.bf16.msra.mxu0 0
      %5016 = vmatpush.bf16.msra.mxu0 0
      %5017 = vmatpush.bf16.msra.mxu0 0
      %5018 = vmatpush.bf16.msra.mxu0 0
      %5019 = vmatpush.bf16.msra.mxu0 %v4985
      %5020 = vmatpush.bf16.msra.mxu0 %v4984
      %5021 = vmatpush.bf16.msra.mxu0 %v4983
      %5022 = vmatpush.bf16.msra.mxu0 %v4982
      %5023 = vmatmul.bf16.gmra.mxu0 %v4992
      %v5024 = vpop.f32.mrf.mxu0
      %v5025 = vadd.f32 0.0, %v5024
      %v5026 = vpop.f32.mrf.mxu0
      %v5027 = vadd.f32 0.0, %v5026
      %5028 = vmatmul.bf16.gmra.mxu0 %v4995
      %v5029 = vpop.f32.mrf.mxu0
      %v5030 = vadd.f32 0.0, %v5029
      %v5031 = vpop.f32.mrf.mxu0
      %v5032 = vadd.f32 0.0, %v5031
      %5033 = vmatmul.bf16.gmra.mxu0 %v4998
      %v5034 = vpop.f32.mrf.mxu0
      %v5035 = vadd.f32 0.0, %v5034
      %v5036 = vpop.f32.mrf.mxu0
      %v5037 = vadd.f32 0.0, %v5036
      %5038 = vmatmul.bf16.gmra.mxu0 %v5001
      %v5039 = vpop.f32.mrf.mxu0
      %v5040 = vadd.f32 0.0, %v5039
      %v5041 = vpop.f32.mrf.mxu0
      %v5042 = vadd.f32 0.0, %v5041
      %5043 = vmatmul.bf16.gmra.mxu0 %v5004
      %v5044 = vpop.f32.mrf.mxu0
      %v5045 = vadd.f32 0.0, %v5044
      %v5046 = vpop.f32.mrf.mxu0
      %v5047 = vadd.f32 0.0, %v5046
      %5048 = vmatmul.bf16.gmra.mxu0 %v5007
      %v5049 = vpop.f32.mrf.mxu0
      %v5050 = vadd.f32 0.0, %v5049
      %v5051 = vpop.f32.mrf.mxu0
      %v5052 = vadd.f32 0.0, %v5051
      %5053 = vmatmul.bf16.gmra.mxu0 %v5010
      %v5054 = vpop.f32.mrf.mxu0
      %v5055 = vadd.f32 0.0, %v5054
      %v5056 = vpop.f32.mrf.mxu0
      %v5057 = vadd.f32 0.0, %v5056
      %5058 = vmatmul.bf16.gmra.mxu0 %v5013
      %v5059 = vpop.f32.mrf.mxu0
      %v5060 = vadd.f32 0.0, %v5059
      %v5061 = vpop.f32.mrf.mxu0
      %v5062 = vadd.f32 0.0, %v5061
      %5063 = vdwg.mxu0
      %v5080 = vunpack.c.l.b16 %v4700
      %v5081 = vunpack.c.l.b16 %v4701
      %v5082 = vunpack.c.l.b16 %v4703
      %v5083 = vunpack.c.l.b16 %v4704
      %v5084 = vunpack.c.l.b16 %v4706
      %v5085 = vunpack.c.l.b16 %v4707
      %v5086 = vunpack.c.l.b16 %v4709
      %v5087 = vunpack.c.l.b16 %v4710
      %v5088 = vunpack.c.l.b16 %v4712
      %v5089 = vunpack.c.l.b16 %v4713
      %v5090 = vunpack.c.l.b16 %v4715
      %v5091 = vunpack.c.l.b16 %v4716
      %v5092 = vunpack.c.l.b16 %v4718
      %v5093 = vunpack.c.l.b16 %v4719
      %v5094 = vunpack.c.l.b16 %v4721
      %v5095 = vunpack.c.l.b16 %v4722
      %v5096 = vpack.c.b16 %v5081, %v5080
      %v5097 = vpack.c.b16 %v5083, %v5082
      %v5098 = vpack.c.b16 %v5085, %v5084
      %v5099 = vpack.c.b16 %v5087, %v5086
      %v5100 = vpack.c.b16 %v5089, %v5088
      %v5101 = vpack.c.b16 %v5091, %v5090
      %v5102 = vpack.c.b16 %v5093, %v5092
      %v5103 = vpack.c.b16 %v5095, %v5094
      %v5112 = vunpack.c.l.b16 %v4730
      %v5113 = vunpack.c.l.b16 %v4731
      %v5114 = vunpack.c.l.b16 %v4732
      %v5115 = vunpack.c.l.b16 %v4733
      %v5116 = vunpack.c.l.b16 %v4734
      %v5117 = vunpack.c.l.b16 %v4735
      %v5118 = vunpack.c.l.b16 %v4736
      %v5119 = vunpack.c.l.b16 %v4737
      %v5120 = vpack.c.b16 %v5113, %v5112
      %v5121 = vpack.c.b16 %v5115, %v5114
      %v5122 = vpack.c.b16 %v5117, %v5116
      %v5123 = vpack.c.b16 %v5119, %v5118
      %v5129 = vsel %vm4990, %v5096, 0
      %v5132 = vsel %vm4990, %v5097, 0
      %v5135 = vsel %vm4990, %v5098, 0
      %v5138 = vsel %vm4990, %v5099, 0
      %v5141 = vsel %vm4990, %v5100, 0
      %v5144 = vsel %vm4990, %v5101, 0
      %v5147 = vsel %vm4990, %v5102, 0
      %v5150 = vsel %vm4990, %v5103, 0
      %5152 = vmatpush.bf16.msra.mxu0 0
      %5153 = vmatpush.bf16.msra.mxu0 0
      %5154 = vmatpush.bf16.msra.mxu0 0
      %5155 = vmatpush.bf16.msra.mxu0 0
      %5156 = vmatpush.bf16.msra.mxu0 %v5123
      %5157 = vmatpush.bf16.msra.mxu0 %v5122
      %5158 = vmatpush.bf16.msra.mxu0 %v5121
      %5159 = vmatpush.bf16.msra.mxu0 %v5120
      %5160 = vmatmul.bf16.gmra.mxu0 %v5129
      %v5161 = vpop.f32.mrf.mxu0
      %v5162 = vadd.f32 %v5025, %v5161
      %v5163 = vpop.f32.mrf.mxu0
      %v5164 = vadd.f32 %v5027, %v5163
      %5165 = vmatmul.bf16.gmra.mxu0 %v5132
      %v5166 = vpop.f32.mrf.mxu0
      %v5167 = vadd.f32 %v5030, %v5166
      %v5168 = vpop.f32.mrf.mxu0
      %v5169 = vadd.f32 %v5032, %v5168
      %5170 = vmatmul.bf16.gmra.mxu0 %v5135
      %v5171 = vpop.f32.mrf.mxu0
      %v5172 = vadd.f32 %v5035, %v5171
      %v5173 = vpop.f32.mrf.mxu0
      %v5174 = vadd.f32 %v5037, %v5173
      %5175 = vmatmul.bf16.gmra.mxu0 %v5138
      %v5176 = vpop.f32.mrf.mxu0
      %v5177 = vadd.f32 %v5040, %v5176
      %v5178 = vpop.f32.mrf.mxu0
      %v5179 = vadd.f32 %v5042, %v5178
      %5180 = vmatmul.bf16.gmra.mxu0 %v5141
      %v5181 = vpop.f32.mrf.mxu0
      %v5182 = vadd.f32 %v5045, %v5181
      %v5183 = vpop.f32.mrf.mxu0
      %v5184 = vadd.f32 %v5047, %v5183
      %5185 = vmatmul.bf16.gmra.mxu0 %v5144
      %v5186 = vpop.f32.mrf.mxu0
      %v5187 = vadd.f32 %v5050, %v5186
      %v5188 = vpop.f32.mrf.mxu0
      %v5189 = vadd.f32 %v5052, %v5188
      %5190 = vmatmul.bf16.gmra.mxu0 %v5147
      %v5191 = vpop.f32.mrf.mxu0
      %v5192 = vadd.f32 %v5055, %v5191
      %v5193 = vpop.f32.mrf.mxu0
      %v5194 = vadd.f32 %v5057, %v5193
      %5195 = vmatmul.bf16.gmra.mxu0 %v5150
      %v5196 = vpop.f32.mrf.mxu0
      %v5197 = vadd.f32 %v5060, %v5196
      %v5198 = vpop.f32.mrf.mxu0
      %v5199 = vadd.f32 %v5062, %v5198
      %5200 = vdwg.mxu0
      %vm5209 = vcmask 1042432
      %vm5210 = vcmask 1046532
      %vm5211 = vmor %vm5209, %vm5210
      %v5212 = vrot.slane %v4700, 5
      %v5213 = vrot.slane %v5212, 4
      %v5214 = vrot.slane %v4701, 5
      %v5215 = vsel %vm5211, %v5213, %v5214
      %v5216 = vrot.slane %v5214, 4
      %v5217 = vrot.slane %v4702, 5
      %v5218 = vsel %vm5211, %v5216, %v5217
      %v5219 = vrot.slane %v4703, 5
      %v5220 = vrot.slane %v5219, 4
      %v5221 = vrot.slane %v4704, 5
      %v5222 = vsel %vm5211, %v5220, %v5221
      %v5223 = vrot.slane %v5221, 4
      %v5224 = vrot.slane %v4705, 5
      %v5225 = vsel %vm5211, %v5223, %v5224
      %v5226 = vrot.slane %v4706, 5
      %v5227 = vrot.slane %v5226, 4
      %v5228 = vrot.slane %v4707, 5
      %v5229 = vsel %vm5211, %v5227, %v5228
      %v5230 = vrot.slane %v5228, 4
      %v5231 = vrot.slane %v4708, 5
      %v5232 = vsel %vm5211, %v5230, %v5231
      %v5233 = vrot.slane %v4709, 5
      %v5234 = vrot.slane %v5233, 4
      %v5235 = vrot.slane %v4710, 5
      %v5236 = vsel %vm5211, %v5234, %v5235
      %v5237 = vrot.slane %v5235, 4
      %v5238 = vrot.slane %v4711, 5
      %v5239 = vsel %vm5211, %v5237, %v5238
      %v5240 = vrot.slane %v4712, 5
      %v5241 = vrot.slane %v5240, 4
      %v5242 = vrot.slane %v4713, 5
      %v5243 = vsel %vm5211, %v5241, %v5242
      %v5244 = vrot.slane %v5242, 4
      %v5245 = vrot.slane %v4714, 5
      %v5246 = vsel %vm5211, %v5244, %v5245
      %v5247 = vrot.slane %v4715, 5
      %v5248 = vrot.slane %v5247, 4
      %v5249 = vrot.slane %v4716, 5
      %v5250 = vsel %vm5211, %v5248, %v5249
      %v5251 = vrot.slane %v5249, 4
      %v5252 = vrot.slane %v4717, 5
      %v5253 = vsel %vm5211, %v5251, %v5252
      %v5254 = vrot.slane %v4718, 5
      %v5255 = vrot.slane %v5254, 4
      %v5256 = vrot.slane %v4719, 5
      %v5257 = vsel %vm5211, %v5255, %v5256
      %v5258 = vrot.slane %v5256, 4
      %v5259 = vrot.slane %v4720, 5
      %v5260 = vsel %vm5211, %v5258, %v5259
      %v5261 = vrot.slane %v4721, 5
      %v5262 = vrot.slane %v5261, 4
      %v5263 = vrot.slane %v4722, 5
      %v5264 = vsel %vm5211, %v5262, %v5263
      %v5265 = vrot.slane %v5263, 4
      %v5266 = vrot.slane %v4723, 5
      %v5267 = vsel %vm5211, %v5265, %v5266
      %s5268 = scalar_lea.vmem %s5, 64
      %v5269 = vld [vmem:[%s5268] sm:$0xf]
      %v5270 = vld [vmem:[%s5268 + $0x4] sm:$0xf]
      %v5271 = vld [vmem:[%s5268 + $0x8] sm:$0xf]
      %v5272 = vld [vmem:[%s5268 + $0xc] sm:$0xf]
      %v5273 = vld [vmem:[%s5268 + $0x10] sm:$0xf]
      %v5274 = vld [vmem:[%s5268 + $0x14] sm:$0xf]
      %v5275 = vld [vmem:[%s5268 + $0x18] sm:$0xf]
      %v5276 = vld [vmem:[%s5268 + $0x1c] sm:$0xf]
      %v5277 = vunpack.c.l.b16 %v5215
      %v5278 = vunpack.c.l.b16 %v5218
      %v5279 = vunpack.c.l.b16 %v5222
      %v5280 = vunpack.c.l.b16 %v5225
      %v5281 = vunpack.c.l.b16 %v5229
      %v5282 = vunpack.c.l.b16 %v5232
      %v5283 = vunpack.c.l.b16 %v5236
      %v5284 = vunpack.c.l.b16 %v5239
      %v5285 = vunpack.c.l.b16 %v5243
      %v5286 = vunpack.c.l.b16 %v5246
      %v5287 = vunpack.c.l.b16 %v5250
      %v5288 = vunpack.c.l.b16 %v5253
      %v5289 = vunpack.c.l.b16 %v5257
      %v5290 = vunpack.c.l.b16 %v5260
      %v5291 = vunpack.c.l.b16 %v5264
      %v5292 = vunpack.c.l.b16 %v5267
      %v5293 = vpack.c.b16 %v5278, %v5277
      %v5294 = vpack.c.b16 %v5280, %v5279
      %v5295 = vpack.c.b16 %v5282, %v5281
      %v5296 = vpack.c.b16 %v5284, %v5283
      %v5297 = vpack.c.b16 %v5286, %v5285
      %v5298 = vpack.c.b16 %v5288, %v5287
      %v5299 = vpack.c.b16 %v5290, %v5289
      %v5300 = vpack.c.b16 %v5292, %v5291
      %v5309 = vunpack.c.l.b16 %v5269
      %v5310 = vunpack.c.l.b16 %v5270
      %v5311 = vunpack.c.l.b16 %v5271
      %v5312 = vunpack.c.l.b16 %v5272
      %v5313 = vunpack.c.l.b16 %v5273
      %v5314 = vunpack.c.l.b16 %v5274
      %v5315 = vunpack.c.l.b16 %v5275
      %v5316 = vunpack.c.l.b16 %v5276
      %v5317 = vpack.c.b16 %v5310, %v5309
      %v5318 = vpack.c.b16 %v5312, %v5311
      %v5319 = vpack.c.b16 %v5314, %v5313
      %v5320 = vpack.c.b16 %v5316, %v5315
      %v5326 = vsel %vm4990, %v5293, 0
      %v5329 = vsel %vm4990, %v5294, 0
      %v5332 = vsel %vm4990, %v5295, 0
      %v5335 = vsel %vm4990, %v5296, 0
      %v5338 = vsel %vm4990, %v5297, 0
      %v5341 = vsel %vm4990, %v5298, 0
      %v5344 = vsel %vm4990, %v5299, 0
      %v5347 = vsel %vm4990, %v5300, 0
      %5349 = vmatpush.bf16.msra.mxu0 0
      %5350 = vmatpush.bf16.msra.mxu0 0
      %5351 = vmatpush.bf16.msra.mxu0 0
      %5352 = vmatpush.bf16.msra.mxu0 0
      %5353 = vmatpush.bf16.msra.mxu0 %v5320
      %5354 = vmatpush.bf16.msra.mxu0 %v5319
      %5355 = vmatpush.bf16.msra.mxu0 %v5318
      %5356 = vmatpush.bf16.msra.mxu0 %v5317
      %5357 = vmatmul.bf16.gmra.mxu0 %v5326
      %v5358 = vpop.f32.mrf.mxu0
      %v5359 = vadd.f32 0.0, %v5358
      %v5360 = vpop.f32.mrf.mxu0
      %v5361 = vadd.f32 0.0, %v5360
      %5362 = vmatmul.bf16.gmra.mxu0 %v5329
      %v5363 = vpop.f32.mrf.mxu0
      %v5364 = vadd.f32 0.0, %v5363
      %v5365 = vpop.f32.mrf.mxu0
      %v5366 = vadd.f32 0.0, %v5365
      %5367 = vmatmul.bf16.gmra.mxu0 %v5332
      %v5368 = vpop.f32.mrf.mxu0
      %v5369 = vadd.f32 0.0, %v5368
      %v5370 = vpop.f32.mrf.mxu0
      %v5371 = vadd.f32 0.0, %v5370
      %5372 = vmatmul.bf16.gmra.mxu0 %v5335
      %v5373 = vpop.f32.mrf.mxu0
      %v5374 = vadd.f32 0.0, %v5373
      %v5375 = vpop.f32.mrf.mxu0
      %v5376 = vadd.f32 0.0, %v5375
      %5377 = vmatmul.bf16.gmra.mxu0 %v5338
      %v5378 = vpop.f32.mrf.mxu0
      %v5379 = vadd.f32 0.0, %v5378
      %v5380 = vpop.f32.mrf.mxu0
      %v5381 = vadd.f32 0.0, %v5380
      %5382 = vmatmul.bf16.gmra.mxu0 %v5341
      %v5383 = vpop.f32.mrf.mxu0
      %v5384 = vadd.f32 0.0, %v5383
      %v5385 = vpop.f32.mrf.mxu0
      %v5386 = vadd.f32 0.0, %v5385
      %5387 = vmatmul.bf16.gmra.mxu0 %v5344
      %v5388 = vpop.f32.mrf.mxu0
      %v5389 = vadd.f32 0.0, %v5388
      %v5390 = vpop.f32.mrf.mxu0
      %v5391 = vadd.f32 0.0, %v5390
      %5392 = vmatmul.bf16.gmra.mxu0 %v5347
      %v5393 = vpop.f32.mrf.mxu0
      %v5394 = vadd.f32 0.0, %v5393
      %v5395 = vpop.f32.mrf.mxu0
      %v5396 = vadd.f32 0.0, %v5395
      %5397 = vdwg.mxu0
      %v5398 = vadd.f32 %v5162, %v5359
      %v5399 = vadd.f32 %v5164, %v5361
      %v5400 = vadd.f32 %v5167, %v5364
      %v5401 = vadd.f32 %v5169, %v5366
      %v5402 = vadd.f32 %v5172, %v5369
      %v5403 = vadd.f32 %v5174, %v5371
      %v5404 = vadd.f32 %v5177, %v5374
      %v5405 = vadd.f32 %v5179, %v5376
      %v5406 = vadd.f32 %v5182, %v5379
      %v5407 = vadd.f32 %v5184, %v5381
      %v5408 = vadd.f32 %v5187, %v5384
      %v5409 = vadd.f32 %v5189, %v5386
      %v5410 = vadd.f32 %v5192, %v5389
      %v5411 = vadd.f32 %v5194, %v5391
      %v5412 = vadd.f32 %v5197, %v5394
      %v5413 = vadd.f32 %v5199, %v5396
      %s5414 = scalar_lea.vmem %s5, 96
      %v5415 = vld [vmem:[%s5414] sm:$0xf]
      %v5416 = vld [vmem:[%s5414 + $0x4] sm:$0xf]
      %v5417 = vld [vmem:[%s5414 + $0x8] sm:$0xf]
      %v5418 = vld [vmem:[%s5414 + $0xc] sm:$0xf]
      %v5419 = vld [vmem:[%s5414 + $0x10] sm:$0xf]
      %v5420 = vld [vmem:[%s5414 + $0x14] sm:$0xf]
      %v5421 = vld [vmem:[%s5414 + $0x18] sm:$0xf]
      %v5422 = vld [vmem:[%s5414 + $0x1c] sm:$0xf]
      %v5425 = vunpack.c.l.b16 %v4724
      %v5426 = vunpack.c.l.b16 %v4725
      %v5427 = vpack.c.b16 %v5426, %v5425
      %v5436 = vunpack.c.l.b16 %v5415
      %v5437 = vunpack.c.l.b16 %v5416
      %v5438 = vunpack.c.l.b16 %v5417
      %v5439 = vunpack.c.l.b16 %v5418
      %v5440 = vunpack.c.l.b16 %v5419
      %v5441 = vunpack.c.l.b16 %v5420
      %v5442 = vunpack.c.l.b16 %v5421
      %v5443 = vunpack.c.l.b16 %v5422
      %v5444 = vpack.c.b16 %v5437, %v5436
      %v5445 = vpack.c.b16 %v5439, %v5438
      %v5446 = vpack.c.b16 %v5441, %v5440
      %v5447 = vpack.c.b16 %v5443, %v5442
      %v5453 = vsel %vm4990, %v5427, 0
      %5455 = vmatpush.bf16.msra.mxu0 0
      %5456 = vmatpush.bf16.msra.mxu0 0
      %5457 = vmatpush.bf16.msra.mxu0 0
      %5458 = vmatpush.bf16.msra.mxu0 0
      %5459 = vmatpush.bf16.msra.mxu0 %v5447
      %5460 = vmatpush.bf16.msra.mxu0 %v5446
      %5461 = vmatpush.bf16.msra.mxu0 %v5445
      %5462 = vmatpush.bf16.msra.mxu0 %v5444
      %5463 = vmatmul.bf16.gmra.mxu0 %v5132
      %v5464 = vpop.f32.mrf.mxu0
      %v5465 = vadd.f32 0.0, %v5464
      %v5466 = vpop.f32.mrf.mxu0
      %v5467 = vadd.f32 0.0, %v5466
      %5468 = vmatmul.bf16.gmra.mxu0 %v5135
      %v5469 = vpop.f32.mrf.mxu0
      %v5470 = vadd.f32 0.0, %v5469
      %v5471 = vpop.f32.mrf.mxu0
      %v5472 = vadd.f32 0.0, %v5471
      %5473 = vmatmul.bf16.gmra.mxu0 %v5138
      %v5474 = vpop.f32.mrf.mxu0
      %v5475 = vadd.f32 0.0, %v5474
      %v5476 = vpop.f32.mrf.mxu0
      %v5477 = vadd.f32 0.0, %v5476
      %5478 = vmatmul.bf16.gmra.mxu0 %v5141
      %v5479 = vpop.f32.mrf.mxu0
      %v5480 = vadd.f32 0.0, %v5479
      %v5481 = vpop.f32.mrf.mxu0
      %v5482 = vadd.f32 0.0, %v5481
      %5483 = vmatmul.bf16.gmra.mxu0 %v5144
      %v5484 = vpop.f32.mrf.mxu0
      %v5485 = vadd.f32 0.0, %v5484
      %v5486 = vpop.f32.mrf.mxu0
      %v5487 = vadd.f32 0.0, %v5486
      %5488 = vmatmul.bf16.gmra.mxu0 %v5147
      %v5489 = vpop.f32.mrf.mxu0
      %v5490 = vadd.f32 0.0, %v5489
      %v5491 = vpop.f32.mrf.mxu0
      %v5492 = vadd.f32 0.0, %v5491
      %5493 = vmatmul.bf16.gmra.mxu0 %v5150
      %v5494 = vpop.f32.mrf.mxu0
      %v5495 = vadd.f32 0.0, %v5494
      %v5496 = vpop.f32.mrf.mxu0
      %v5497 = vadd.f32 0.0, %v5496
      %5498 = vmatmul.bf16.gmra.mxu0 %v5453
      %v5499 = vpop.f32.mrf.mxu0
      %v5500 = vadd.f32 0.0, %v5499
      %v5501 = vpop.f32.mrf.mxu0
      %v5502 = vadd.f32 0.0, %v5501
      %5503 = vdwg.mxu0
      %v5504 = vadd.f32 %v5398, %v5465
      %v5505 = vadd.f32 %v5399, %v5467
      %v5506 = vadd.f32 %v5400, %v5470
      %v5507 = vadd.f32 %v5401, %v5472
      %v5508 = vadd.f32 %v5402, %v5475
      %v5509 = vadd.f32 %v5403, %v5477
      %v5510 = vadd.f32 %v5404, %v5480
      %v5511 = vadd.f32 %v5405, %v5482
      %v5512 = vadd.f32 %v5406, %v5485
      %v5513 = vadd.f32 %v5407, %v5487
      %v5514 = vadd.f32 %v5408, %v5490
      %v5515 = vadd.f32 %v5409, %v5492
      %v5516 = vadd.f32 %v5410, %v5495
      %v5517 = vadd.f32 %v5411, %v5497
      %v5518 = vadd.f32 %v5412, %v5500
      %v5519 = vadd.f32 %v5413, %v5502
      %v5521 = vshrl.u32 %v4724, 16
      %v5523 = vrot.slane %v5521, 4
      %v5524 = vshll.u32 %v4724, 16
      %v5526 = vrot.slane %v5524, 5
      %v5527 = vor.u32 %v5523, %v5526
      %v5528 = vrot.slane %v5527, 4
      %v5530 = vshll.u32 %v4725, 16
      %v5532 = vrot.slane %v5530, 5
      %v5533 = vsel %vm4740, %v5528, %v5532
      %v5534 = vshrl.u32 %v4725, 16
      %v5536 = vrot.slane %v5534, 4
      %v5537 = vor.u32 %v5536, %v5532
      %v5538 = vrot.slane %v5537, 4
      %v5540 = vshll.u32 %v4726, 16
      %v5542 = vrot.slane %v5540, 5
      %v5543 = vsel %vm4740, %v5538, %v5542
      %s5544 = scalar_lea.vmem %s5, 128
      %v5545 = vld [vmem:[%s5544] sm:$0xf]
      %v5546 = vld [vmem:[%s5544 + $0x4] sm:$0xf]
      %v5547 = vld [vmem:[%s5544 + $0x8] sm:$0xf]
      %v5548 = vld [vmem:[%s5544 + $0xc] sm:$0xf]
      %v5549 = vld [vmem:[%s5544 + $0x10] sm:$0xf]
      %v5550 = vld [vmem:[%s5544 + $0x14] sm:$0xf]
      %v5551 = vld [vmem:[%s5544 + $0x18] sm:$0xf]
      %v5552 = vld [vmem:[%s5544 + $0x1c] sm:$0xf]
      %v5553 = vunpack.c.l.b16 %v5533
      %v5554 = vunpack.c.l.b16 %v5543
      %v5555 = vpack.c.b16 %v5554, %v5553
      %v5564 = vunpack.c.l.b16 %v5545
      %v5565 = vunpack.c.l.b16 %v5546
      %v5566 = vunpack.c.l.b16 %v5547
      %v5567 = vunpack.c.l.b16 %v5548
      %v5568 = vunpack.c.l.b16 %v5549
      %v5569 = vunpack.c.l.b16 %v5550
      %v5570 = vunpack.c.l.b16 %v5551
      %v5571 = vunpack.c.l.b16 %v5552
      %v5572 = vpack.c.b16 %v5565, %v5564
      %v5573 = vpack.c.b16 %v5567, %v5566
      %v5574 = vpack.c.b16 %v5569, %v5568
      %v5575 = vpack.c.b16 %v5571, %v5570
      %v5581 = vsel %vm4990, %v5555, 0
      %5583 = vmatpush.bf16.msra.mxu0 0
      %5584 = vmatpush.bf16.msra.mxu0 0
      %5585 = vmatpush.bf16.msra.mxu0 0
      %5586 = vmatpush.bf16.msra.mxu0 0
      %5587 = vmatpush.bf16.msra.mxu0 %v5575
      %5588 = vmatpush.bf16.msra.mxu0 %v5574
      %5589 = vmatpush.bf16.msra.mxu0 %v5573
      %5590 = vmatpush.bf16.msra.mxu0 %v5572
      %5591 = vmatmul.bf16.gmra.mxu0 %v4995
      %v5592 = vpop.f32.mrf.mxu0
      %v5593 = vadd.f32 0.0, %v5592
      %v5594 = vpop.f32.mrf.mxu0
      %v5595 = vadd.f32 0.0, %v5594
      %5596 = vmatmul.bf16.gmra.mxu0 %v4998
      %v5597 = vpop.f32.mrf.mxu0
      %v5598 = vadd.f32 0.0, %v5597
      %v5599 = vpop.f32.mrf.mxu0
      %v5600 = vadd.f32 0.0, %v5599
      %5601 = vmatmul.bf16.gmra.mxu0 %v5001
      %v5602 = vpop.f32.mrf.mxu0
      %v5603 = vadd.f32 0.0, %v5602
      %v5604 = vpop.f32.mrf.mxu0
      %v5605 = vadd.f32 0.0, %v5604
      %5606 = vmatmul.bf16.gmra.mxu0 %v5004
      %v5607 = vpop.f32.mrf.mxu0
      %v5608 = vadd.f32 0.0, %v5607
      %v5609 = vpop.f32.mrf.mxu0
      %v5610 = vadd.f32 0.0, %v5609
      %5611 = vmatmul.bf16.gmra.mxu0 %v5007
      %v5612 = vpop.f32.mrf.mxu0
      %v5613 = vadd.f32 0.0, %v5612
      %v5614 = vpop.f32.mrf.mxu0
      %v5615 = vadd.f32 0.0, %v5614
      %5616 = vmatmul.bf16.gmra.mxu0 %v5010
      %v5617 = vpop.f32.mrf.mxu0
      %v5618 = vadd.f32 0.0, %v5617
      %v5619 = vpop.f32.mrf.mxu0
      %v5620 = vadd.f32 0.0, %v5619
      %5621 = vmatmul.bf16.gmra.mxu0 %v5013
      %v5622 = vpop.f32.mrf.mxu0
      %v5623 = vadd.f32 0.0, %v5622
      %v5624 = vpop.f32.mrf.mxu0
      %v5625 = vadd.f32 0.0, %v5624
      %5626 = vmatmul.bf16.gmra.mxu0 %v5581
      %v5627 = vpop.f32.mrf.mxu0
      %v5628 = vadd.f32 0.0, %v5627
      %v5629 = vpop.f32.mrf.mxu0
      %v5630 = vadd.f32 0.0, %v5629
      %5631 = vdwg.mxu0
      %v5632 = vadd.f32 %v5504, %v5593
      %v5633 = vadd.f32 %v5505, %v5595
      %v5634 = vadd.f32 %v5506, %v5598
      %v5635 = vadd.f32 %v5507, %v5600
      %v5636 = vadd.f32 %v5508, %v5603
      %v5637 = vadd.f32 %v5509, %v5605
      %v5638 = vadd.f32 %v5510, %v5608
      %v5639 = vadd.f32 %v5511, %v5610
      %v5640 = vadd.f32 %v5512, %v5613
      %v5641 = vadd.f32 %v5513, %v5615
      %v5642 = vadd.f32 %v5514, %v5618
      %v5643 = vadd.f32 %v5515, %v5620
      %v5644 = vadd.f32 %v5516, %v5623
      %v5645 = vadd.f32 %v5517, %v5625
      %v5646 = vadd.f32 %v5518, %v5628
      %v5647 = vadd.f32 %v5519, %v5630
      %v5649 = vrot.slane %v4724, 5
      %v5650 = vrot.slane %v5649, 4
      %v5651 = vrot.slane %v4725, 5
      %v5652 = vsel %vm5211, %v5650, %v5651
      %v5653 = vrot.slane %v5651, 4
      %v5654 = vrot.slane %v4726, 5
      %v5655 = vsel %vm5211, %v5653, %v5654
      %s5656 = scalar_lea.vmem %s5, 160
      %v5657 = vld [vmem:[%s5656] sm:$0xf]
      %v5658 = vld [vmem:[%s5656 + $0x4] sm:$0xf]
      %v5659 = vld [vmem:[%s5656 + $0x8] sm:$0xf]
      %v5660 = vld [vmem:[%s5656 + $0xc] sm:$0xf]
      %v5661 = vld [vmem:[%s5656 + $0x10] sm:$0xf]
      %v5662 = vld [vmem:[%s5656 + $0x14] sm:$0xf]
      %v5663 = vld [vmem:[%s5656 + $0x18] sm:$0xf]
      %v5664 = vld [vmem:[%s5656 + $0x1c] sm:$0xf]
      %v5665 = vunpack.c.l.b16 %v5652
      %v5666 = vunpack.c.l.b16 %v5655
      %v5667 = vpack.c.b16 %v5666, %v5665
      %v5676 = vunpack.c.l.b16 %v5657
      %v5677 = vunpack.c.l.b16 %v5658
      %v5678 = vunpack.c.l.b16 %v5659
      %v5679 = vunpack.c.l.b16 %v5660
      %v5680 = vunpack.c.l.b16 %v5661
      %v5681 = vunpack.c.l.b16 %v5662
      %v5682 = vunpack.c.l.b16 %v5663
      %v5683 = vunpack.c.l.b16 %v5664
      %v5684 = vpack.c.b16 %v5677, %v5676
      %v5685 = vpack.c.b16 %v5679, %v5678
      %v5686 = vpack.c.b16 %v5681, %v5680
      %v5687 = vpack.c.b16 %v5683, %v5682
      %v5693 = vsel %vm4990, %v5667, 0
      %5695 = vmatpush.bf16.msra.mxu0 0
      %5696 = vmatpush.bf16.msra.mxu0 0
      %5697 = vmatpush.bf16.msra.mxu0 0
      %5698 = vmatpush.bf16.msra.mxu0 0
      %5699 = vmatpush.bf16.msra.mxu0 %v5687
      %5700 = vmatpush.bf16.msra.mxu0 %v5686
      %5701 = vmatpush.bf16.msra.mxu0 %v5685
      %5702 = vmatpush.bf16.msra.mxu0 %v5684
      %5703 = vmatmul.bf16.gmra.mxu0 %v5329
      %v5704 = vpop.f32.mrf.mxu0
      %v5705 = vadd.f32 0.0, %v5704
      %v5706 = vpop.f32.mrf.mxu0
      %v5707 = vadd.f32 0.0, %v5706
      %5708 = vmatmul.bf16.gmra.mxu0 %v5332
      %v5709 = vpop.f32.mrf.mxu0
      %v5710 = vadd.f32 0.0, %v5709
      %v5711 = vpop.f32.mrf.mxu0
      %v5712 = vadd.f32 0.0, %v5711
      %5713 = vmatmul.bf16.gmra.mxu0 %v5335
      %v5714 = vpop.f32.mrf.mxu0
      %v5715 = vadd.f32 0.0, %v5714
      %v5716 = vpop.f32.mrf.mxu0
      %v5717 = vadd.f32 0.0, %v5716
      %5718 = vmatmul.bf16.gmra.mxu0 %v5338
      %v5719 = vpop.f32.mrf.mxu0
      %v5720 = vadd.f32 0.0, %v5719
      %v5721 = vpop.f32.mrf.mxu0
      %v5722 = vadd.f32 0.0, %v5721
      %5723 = vmatmul.bf16.gmra.mxu0 %v5341
      %v5724 = vpop.f32.mrf.mxu0
      %v5725 = vadd.f32 0.0, %v5724
      %v5726 = vpop.f32.mrf.mxu0
      %v5727 = vadd.f32 0.0, %v5726
      %5728 = vmatmul.bf16.gmra.mxu0 %v5344
      %v5729 = vpop.f32.mrf.mxu0
      %v5730 = vadd.f32 0.0, %v5729
      %v5731 = vpop.f32.mrf.mxu0
      %v5732 = vadd.f32 0.0, %v5731
      %5733 = vmatmul.bf16.gmra.mxu0 %v5347
      %v5734 = vpop.f32.mrf.mxu0
      %v5735 = vadd.f32 0.0, %v5734
      %v5736 = vpop.f32.mrf.mxu0
      %v5737 = vadd.f32 0.0, %v5736
      %5738 = vmatmul.bf16.gmra.mxu0 %v5693
      %v5739 = vpop.f32.mrf.mxu0
      %v5740 = vadd.f32 0.0, %v5739
      %v5741 = vpop.f32.mrf.mxu0
      %v5742 = vadd.f32 0.0, %v5741
      %5743 = vdwg.mxu0
      %v5744 = vadd.f32 %v5632, %v5705
      %v5745 = vadd.f32 %v5633, %v5707
      %v5746 = vadd.f32 %v5634, %v5710
      %v5747 = vadd.f32 %v5635, %v5712
      %v5748 = vadd.f32 %v5636, %v5715
      %v5749 = vadd.f32 %v5637, %v5717
      %v5750 = vadd.f32 %v5638, %v5720
      %v5751 = vadd.f32 %v5639, %v5722
      %v5752 = vadd.f32 %v5640, %v5725
      %v5753 = vadd.f32 %v5641, %v5727
      %v5754 = vadd.f32 %v5642, %v5730
      %v5755 = vadd.f32 %v5643, %v5732
      %v5756 = vadd.f32 %v5644, %v5735
      %v5757 = vadd.f32 %v5645, %v5737
      %v5758 = vadd.f32 %v5646, %v5740
      %v5759 = vadd.f32 %v5647, %v5742
      %s5760 = scalar_lea.vmem %s5, 192
      %v5761 = vld [vmem:[%s5760] sm:$0xf]
      %v5762 = vld [vmem:[%s5760 + $0x4] sm:$0xf]
      %v5763 = vld [vmem:[%s5760 + $0x8] sm:$0xf]
      %v5764 = vld [vmem:[%s5760 + $0xc] sm:$0xf]
      %v5765 = vld [vmem:[%s5760 + $0x10] sm:$0xf]
      %v5766 = vld [vmem:[%s5760 + $0x14] sm:$0xf]
      %v5767 = vld [vmem:[%s5760 + $0x18] sm:$0xf]
      %v5768 = vld [vmem:[%s5760 + $0x1c] sm:$0xf]
      %v5771 = vunpack.c.l.b16 %v4727
      %v5772 = vunpack.c.l.b16 %v4728
      %v5773 = vpack.c.b16 %v5772, %v5771
      %v5782 = vunpack.c.l.b16 %v5761
      %v5783 = vunpack.c.l.b16 %v5762
      %v5784 = vunpack.c.l.b16 %v5763
      %v5785 = vunpack.c.l.b16 %v5764
      %v5786 = vunpack.c.l.b16 %v5765
      %v5787 = vunpack.c.l.b16 %v5766
      %v5788 = vunpack.c.l.b16 %v5767
      %v5789 = vunpack.c.l.b16 %v5768
      %v5790 = vpack.c.b16 %v5783, %v5782
      %v5791 = vpack.c.b16 %v5785, %v5784
      %v5792 = vpack.c.b16 %v5787, %v5786
      %v5793 = vpack.c.b16 %v5789, %v5788
      %v5799 = vsel %vm4990, %v5773, 0
      %5801 = vmatpush.bf16.msra.mxu0 0
      %5802 = vmatpush.bf16.msra.mxu0 0
      %5803 = vmatpush.bf16.msra.mxu0 0
      %5804 = vmatpush.bf16.msra.mxu0 0
      %5805 = vmatpush.bf16.msra.mxu0 %v5793
      %5806 = vmatpush.bf16.msra.mxu0 %v5792
      %5807 = vmatpush.bf16.msra.mxu0 %v5791
      %5808 = vmatpush.bf16.msra.mxu0 %v5790
      %5809 = vmatmul.bf16.gmra.mxu0 %v5135
      %v5810 = vpop.f32.mrf.mxu0
      %v5811 = vadd.f32 0.0, %v5810
      %v5812 = vpop.f32.mrf.mxu0
      %v5813 = vadd.f32 0.0, %v5812
      %5814 = vmatmul.bf16.gmra.mxu0 %v5138
      %v5815 = vpop.f32.mrf.mxu0
      %v5816 = vadd.f32 0.0, %v5815
      %v5817 = vpop.f32.mrf.mxu0
      %v5818 = vadd.f32 0.0, %v5817
      %5819 = vmatmul.bf16.gmra.mxu0 %v5141
      %v5820 = vpop.f32.mrf.mxu0
      %v5821 = vadd.f32 0.0, %v5820
      %v5822 = vpop.f32.mrf.mxu0
      %v5823 = vadd.f32 0.0, %v5822
      %5824 = vmatmul.bf16.gmra.mxu0 %v5144
      %v5825 = vpop.f32.mrf.mxu0
      %v5826 = vadd.f32 0.0, %v5825
      %v5827 = vpop.f32.mrf.mxu0
      %v5828 = vadd.f32 0.0, %v5827
      %5829 = vmatmul.bf16.gmra.mxu0 %v5147
      %v5830 = vpop.f32.mrf.mxu0
      %v5831 = vadd.f32 0.0, %v5830
      %v5832 = vpop.f32.mrf.mxu0
      %v5833 = vadd.f32 0.0, %v5832
      %5834 = vmatmul.bf16.gmra.mxu0 %v5150
      %v5835 = vpop.f32.mrf.mxu0
      %v5836 = vadd.f32 0.0, %v5835
      %v5837 = vpop.f32.mrf.mxu0
      %v5838 = vadd.f32 0.0, %v5837
      %5839 = vmatmul.bf16.gmra.mxu0 %v5453
      %v5840 = vpop.f32.mrf.mxu0
      %v5841 = vadd.f32 0.0, %v5840
      %v5842 = vpop.f32.mrf.mxu0
      %v5843 = vadd.f32 0.0, %v5842
      %5844 = vmatmul.bf16.gmra.mxu0 %v5799
      %v5845 = vpop.f32.mrf.mxu0
      %v5846 = vadd.f32 0.0, %v5845
      %v5847 = vpop.f32.mrf.mxu0
      %v5848 = vadd.f32 0.0, %v5847
      %5849 = vdwg.mxu0
      %v5850 = vadd.f32 %v5744, %v5811
      %v5851 = vadd.f32 %v5745, %v5813
      %v5852 = vadd.f32 %v5746, %v5816
      %v5853 = vadd.f32 %v5747, %v5818
      %v5854 = vadd.f32 %v5748, %v5821
      %v5855 = vadd.f32 %v5749, %v5823
      %v5856 = vadd.f32 %v5750, %v5826
      %v5857 = vadd.f32 %v5751, %v5828
      %v5858 = vadd.f32 %v5752, %v5831
      %v5859 = vadd.f32 %v5753, %v5833
      %v5860 = vadd.f32 %v5754, %v5836
      %v5861 = vadd.f32 %v5755, %v5838
      %v5862 = vadd.f32 %v5756, %v5841
      %v5863 = vadd.f32 %v5757, %v5843
      %v5864 = vadd.f32 %v5758, %v5846
      %v5865 = vadd.f32 %v5759, %v5848
      %v5867 = vshrl.u32 %v4727, 16
      %v5869 = vrot.slane %v5867, 4
      %v5870 = vshll.u32 %v4727, 16
      %v5872 = vrot.slane %v5870, 5
      %v5873 = vor.u32 %v5869, %v5872
      %v5874 = vrot.slane %v5873, 4
      %v5876 = vshll.u32 %v4728, 16
      %v5878 = vrot.slane %v5876, 5
      %v5879 = vsel %vm4740, %v5874, %v5878
      %v5880 = vshrl.u32 %v4728, 16
      %v5882 = vrot.slane %v5880, 4
      %v5883 = vor.u32 %v5882, %v5878
      %v5884 = vrot.slane %v5883, 4
      %v5886 = vshll.u32 %v4729, 16
      %v5888 = vrot.slane %v5886, 5
      %v5889 = vsel %vm4740, %v5884, %v5888
      %s5890 = scalar_lea.vmem %s5, 224
      %v5891 = vld [vmem:[%s5890] sm:$0xf]
      %v5892 = vld [vmem:[%s5890 + $0x4] sm:$0xf]
      %v5893 = vld [vmem:[%s5890 + $0x8] sm:$0xf]
      %v5894 = vld [vmem:[%s5890 + $0xc] sm:$0xf]
      %v5895 = vld [vmem:[%s5890 + $0x10] sm:$0xf]
      %v5896 = vld [vmem:[%s5890 + $0x14] sm:$0xf]
      %v5897 = vld [vmem:[%s5890 + $0x18] sm:$0xf]
      %v5898 = vld [vmem:[%s5890 + $0x1c] sm:$0xf]
      %v5899 = vunpack.c.l.b16 %v5879
      %v5900 = vunpack.c.l.b16 %v5889
      %v5901 = vpack.c.b16 %v5900, %v5899
      %v5910 = vunpack.c.l.b16 %v5891
      %v5911 = vunpack.c.l.b16 %v5892
      %v5912 = vunpack.c.l.b16 %v5893
      %v5913 = vunpack.c.l.b16 %v5894
      %v5914 = vunpack.c.l.b16 %v5895
      %v5915 = vunpack.c.l.b16 %v5896
      %v5916 = vunpack.c.l.b16 %v5897
      %v5917 = vunpack.c.l.b16 %v5898
      %v5918 = vpack.c.b16 %v5911, %v5910
      %v5919 = vpack.c.b16 %v5913, %v5912
      %v5920 = vpack.c.b16 %v5915, %v5914
      %v5921 = vpack.c.b16 %v5917, %v5916
      %v5927 = vsel %vm4990, %v5901, 0
      %5929 = vmatpush.bf16.msra.mxu0 0
      %5930 = vmatpush.bf16.msra.mxu0 0
      %5931 = vmatpush.bf16.msra.mxu0 0
      %5932 = vmatpush.bf16.msra.mxu0 0
      %5933 = vmatpush.bf16.msra.mxu0 %v5921
      %5934 = vmatpush.bf16.msra.mxu0 %v5920
      %5935 = vmatpush.bf16.msra.mxu0 %v5919
      %5936 = vmatpush.bf16.msra.mxu0 %v5918
      %5937 = vmatmul.bf16.gmra.mxu0 %v4998
      %v5938 = vpop.f32.mrf.mxu0
      %v5939 = vadd.f32 0.0, %v5938
      %v5940 = vpop.f32.mrf.mxu0
      %v5941 = vadd.f32 0.0, %v5940
      %5942 = vmatmul.bf16.gmra.mxu0 %v5001
      %v5943 = vpop.f32.mrf.mxu0
      %v5944 = vadd.f32 0.0, %v5943
      %v5945 = vpop.f32.mrf.mxu0
      %v5946 = vadd.f32 0.0, %v5945
      %5947 = vmatmul.bf16.gmra.mxu0 %v5004
      %v5948 = vpop.f32.mrf.mxu0
      %v5949 = vadd.f32 0.0, %v5948
      %v5950 = vpop.f32.mrf.mxu0
      %v5951 = vadd.f32 0.0, %v5950
      %5952 = vmatmul.bf16.gmra.mxu0 %v5007
      %v5953 = vpop.f32.mrf.mxu0
      %v5954 = vadd.f32 0.0, %v5953
      %v5955 = vpop.f32.mrf.mxu0
      %v5956 = vadd.f32 0.0, %v5955
      %5957 = vmatmul.bf16.gmra.mxu0 %v5010
      %v5958 = vpop.f32.mrf.mxu0
      %v5959 = vadd.f32 0.0, %v5958
      %v5960 = vpop.f32.mrf.mxu0
      %v5961 = vadd.f32 0.0, %v5960
      %5962 = vmatmul.bf16.gmra.mxu0 %v5013
      %v5963 = vpop.f32.mrf.mxu0
      %v5964 = vadd.f32 0.0, %v5963
      %v5965 = vpop.f32.mrf.mxu0
      %v5966 = vadd.f32 0.0, %v5965
      %5967 = vmatmul.bf16.gmra.mxu0 %v5581
      %v5968 = vpop.f32.mrf.mxu0
      %v5969 = vadd.f32 0.0, %v5968
      %v5970 = vpop.f32.mrf.mxu0
      %v5971 = vadd.f32 0.0, %v5970
      %5972 = vmatmul.bf16.gmra.mxu0 %v5927
      %v5973 = vpop.f32.mrf.mxu0
      %v5974 = vadd.f32 0.0, %v5973
      %v5975 = vpop.f32.mrf.mxu0
      %v5976 = vadd.f32 0.0, %v5975
      %5977 = vdwg.mxu0
      %v5978 = vadd.f32 %v5850, %v5939
      %v5979 = vadd.f32 %v5851, %v5941
      %v5980 = vadd.f32 %v5852, %v5944
      %v5981 = vadd.f32 %v5853, %v5946
      %v5982 = vadd.f32 %v5854, %v5949
      %v5983 = vadd.f32 %v5855, %v5951
      %v5984 = vadd.f32 %v5856, %v5954
      %v5985 = vadd.f32 %v5857, %v5956
      %v5986 = vadd.f32 %v5858, %v5959
      %v5987 = vadd.f32 %v5859, %v5961
      %v5988 = vadd.f32 %v5860, %v5964
      %v5989 = vadd.f32 %v5861, %v5966
      %v5990 = vadd.f32 %v5862, %v5969
      %v5991 = vadd.f32 %v5863, %v5971
      %v5992 = vadd.f32 %v5864, %v5974
      %v5993 = vadd.f32 %v5865, %v5976
      %v5995 = vrot.slane %v4727, 5
      %v5996 = vrot.slane %v5995, 4
      %v5997 = vrot.slane %v4728, 5
      %v5998 = vsel %vm5211, %v5996, %v5997
      %v5999 = vrot.slane %v5997, 4
      %v6000 = vrot.slane %v4729, 5
      %v6001 = vsel %vm5211, %v5999, %v6000
      %s6002 = scalar_lea.vmem %s5, 256
      %v6003 = vld [vmem:[%s6002] sm:$0xf]
      %v6004 = vld [vmem:[%s6002 + $0x4] sm:$0xf]
      %v6005 = vld [vmem:[%s6002 + $0x8] sm:$0xf]
      %v6006 = vld [vmem:[%s6002 + $0xc] sm:$0xf]
      %v6007 = vld [vmem:[%s6002 + $0x10] sm:$0xf]
      %v6008 = vld [vmem:[%s6002 + $0x14] sm:$0xf]
      %v6009 = vld [vmem:[%s6002 + $0x18] sm:$0xf]
      %v6010 = vld [vmem:[%s6002 + $0x1c] sm:$0xf]
      %v6011 = vunpack.c.l.b16 %v5998
      %v6012 = vunpack.c.l.b16 %v6001
      %v6013 = vpack.c.b16 %v6012, %v6011
      %v6022 = vunpack.c.l.b16 %v6003
      %v6023 = vunpack.c.l.b16 %v6004
      %v6024 = vunpack.c.l.b16 %v6005
      %v6025 = vunpack.c.l.b16 %v6006
      %v6026 = vunpack.c.l.b16 %v6007
      %v6027 = vunpack.c.l.b16 %v6008
      %v6028 = vunpack.c.l.b16 %v6009
      %v6029 = vunpack.c.l.b16 %v6010
      %v6030 = vpack.c.b16 %v6023, %v6022
      %v6031 = vpack.c.b16 %v6025, %v6024
      %v6032 = vpack.c.b16 %v6027, %v6026
      %v6033 = vpack.c.b16 %v6029, %v6028
      %v6039 = vsel %vm4990, %v6013, 0
      %6041 = vmatpush.bf16.msra.mxu0 0
      %6042 = vmatpush.bf16.msra.mxu0 0
      %6043 = vmatpush.bf16.msra.mxu0 0
      %6044 = vmatpush.bf16.msra.mxu0 0
      %6045 = vmatpush.bf16.msra.mxu0 %v6033
      %6046 = vmatpush.bf16.msra.mxu0 %v6032
      %6047 = vmatpush.bf16.msra.mxu0 %v6031
      %6048 = vmatpush.bf16.msra.mxu0 %v6030
      %6049 = vmatmul.bf16.gmra.mxu0 %v5332
      %v6050 = vpop.f32.mrf.mxu0
      %v6051 = vadd.f32 0.0, %v6050
      %v6052 = vpop.f32.mrf.mxu0
      %v6053 = vadd.f32 0.0, %v6052
      %6054 = vmatmul.bf16.gmra.mxu0 %v5335
      %v6055 = vpop.f32.mrf.mxu0
      %v6056 = vadd.f32 0.0, %v6055
      %v6057 = vpop.f32.mrf.mxu0
      %v6058 = vadd.f32 0.0, %v6057
      %6059 = vmatmul.bf16.gmra.mxu0 %v5338
      %v6060 = vpop.f32.mrf.mxu0
      %v6061 = vadd.f32 0.0, %v6060
      %v6062 = vpop.f32.mrf.mxu0
      %v6063 = vadd.f32 0.0, %v6062
      %6064 = vmatmul.bf16.gmra.mxu0 %v5341
      %v6065 = vpop.f32.mrf.mxu0
      %v6066 = vadd.f32 0.0, %v6065
      %v6067 = vpop.f32.mrf.mxu0
      %v6068 = vadd.f32 0.0, %v6067
      %6069 = vmatmul.bf16.gmra.mxu0 %v5344
      %v6070 = vpop.f32.mrf.mxu0
      %v6071 = vadd.f32 0.0, %v6070
      %v6072 = vpop.f32.mrf.mxu0
      %v6073 = vadd.f32 0.0, %v6072
      %6074 = vmatmul.bf16.gmra.mxu0 %v5347
      %v6075 = vpop.f32.mrf.mxu0
      %v6076 = vadd.f32 0.0, %v6075
      %v6077 = vpop.f32.mrf.mxu0
      %v6078 = vadd.f32 0.0, %v6077
      %6079 = vmatmul.bf16.gmra.mxu0 %v5693
      %v6080 = vpop.f32.mrf.mxu0
      %v6081 = vadd.f32 0.0, %v6080
      %v6082 = vpop.f32.mrf.mxu0
      %v6083 = vadd.f32 0.0, %v6082
      %6084 = vmatmul.bf16.gmra.mxu0 %v6039
      %v6085 = vpop.f32.mrf.mxu0
      %v6086 = vadd.f32 0.0, %v6085
      %v6087 = vpop.f32.mrf.mxu0
      %v6088 = vadd.f32 0.0, %v6087
      %6089 = vdwg.mxu0
      %v6090 = vadd.f32 %v5978, %v6051
      %v6091 = vadd.f32 %v5979, %v6053
      %v6092 = vadd.f32 %v5980, %v6056
      %v6093 = vadd.f32 %v5981, %v6058
      %v6094 = vadd.f32 %v5982, %v6061
      %v6095 = vadd.f32 %v5983, %v6063
      %v6096 = vadd.f32 %v5984, %v6066
      %v6097 = vadd.f32 %v5985, %v6068
      %v6098 = vadd.f32 %v5986, %v6071
      %v6099 = vadd.f32 %v5987, %v6073
      %v6100 = vadd.f32 %v5988, %v6076
      %v6101 = vadd.f32 %v5989, %v6078
      %v6102 = vadd.f32 %v5990, %v6081
      %v6103 = vadd.f32 %v5991, %v6083
      %v6104 = vadd.f32 %v5992, %v6086
      %v6105 = vadd.f32 %v5993, %v6088
      %v6106 = vld [vmem:[%s6] sm:$0x1]
      %v6108 = vperm.slane %v6106, 0
      %v6110 = vadd.f32 %v6090, %v6108
      %v6111 = vadd.f32 %v6091, %v6108
      %v6112 = vadd.f32 %v6092, %v6108
      %v6113 = vadd.f32 %v6093, %v6108
      %v6114 = vadd.f32 %v6094, %v6108
      %v6115 = vadd.f32 %v6095, %v6108
      %v6116 = vadd.f32 %v6096, %v6108
      %v6117 = vadd.f32 %v6097, %v6108
      %v6118 = vadd.f32 %v6098, %v6108
      %v6119 = vadd.f32 %v6099, %v6108
      %v6120 = vadd.f32 %v6100, %v6108
      %v6121 = vadd.f32 %v6101, %v6108
      %v6122 = vadd.f32 %v6102, %v6108
      %v6123 = vadd.f32 %v6103, %v6108
      %v6124 = vadd.f32 %v6104, %v6108
      %v6125 = vadd.f32 %v6105, %v6108
      %v6126 = vld [vmem:[%s332] sm:$0x1]
      %v6127 = vld [vmem:[%s332 + $0x1] sm:$0x1]
      %v6128 = vld [vmem:[%s342] sm:$0xff]
      %v6129 = vld [vmem:[%s342 + $0x8] sm:$0xff]
      %v6130 = vld [vmem:[%s342 + $0x10] sm:$0xff]
      %v6131 = vld [vmem:[%s342 + $0x18] sm:$0xff]
      %v6132 = vld [vmem:[%s342 + $0x20] sm:$0xff]
      %v6133 = vld [vmem:[%s342 + $0x28] sm:$0xff]
      %v6134 = vld [vmem:[%s342 + $0x30] sm:$0xff]
      %v6135 = vld [vmem:[%s342 + $0x38] sm:$0xff]
      %v6136 = vld [vmem:[%s342 + $0x40] sm:$0xff]
      %v6137 = vld [vmem:[%s342 + $0x48] sm:$0xff]
      %v6138 = vld [vmem:[%s342 + $0x50] sm:$0xff]
      %v6139 = vld [vmem:[%s342 + $0x58] sm:$0xff]
      %v6140 = vld [vmem:[%s342 + $0x60] sm:$0xff]
      %v6141 = vld [vmem:[%s342 + $0x68] sm:$0xff]
      %v6142 = vld [vmem:[%s342 + $0x70] sm:$0xff]
      %v6143 = vld [vmem:[%s342 + $0x78] sm:$0xff]
      %v6144 = vperm.slane %v6126, 0
      %v6145 = vsub.f32 %v6128, %v6144
      %v6146 = vsub.f32 %v6129, %v6144
      %v6147 = vsub.f32 %v6130, %v6144
      %v6148 = vsub.f32 %v6131, %v6144
      %v6149 = vsub.f32 %v6132, %v6144
      %v6150 = vsub.f32 %v6133, %v6144
      %v6151 = vsub.f32 %v6134, %v6144
      %v6152 = vsub.f32 %v6135, %v6144
      %v6153 = vsub.f32 %v6136, %v6144
      %v6154 = vsub.f32 %v6137, %v6144
      %v6155 = vsub.f32 %v6138, %v6144
      %v6156 = vsub.f32 %v6139, %v6144
      %v6157 = vsub.f32 %v6140, %v6144
      %v6158 = vsub.f32 %v6141, %v6144
      %v6159 = vsub.f32 %v6142, %v6144
      %v6160 = vsub.f32 %v6143, %v6144
      %v6161 = vperm.slane %v6127, 0
      %v6162 = vmul.f32 %v6145, %v6161
      %v6163 = vmul.f32 %v6146, %v6161
      %v6164 = vmul.f32 %v6147, %v6161
      %v6165 = vmul.f32 %v6148, %v6161
      %v6166 = vmul.f32 %v6149, %v6161
      %v6167 = vmul.f32 %v6150, %v6161
      %v6168 = vmul.f32 %v6151, %v6161
      %v6169 = vmul.f32 %v6152, %v6161
      %v6170 = vmul.f32 %v6153, %v6161
      %v6171 = vmul.f32 %v6154, %v6161
      %v6172 = vmul.f32 %v6155, %v6161
      %v6173 = vmul.f32 %v6156, %v6161
      %v6174 = vmul.f32 %v6157, %v6161
      %v6175 = vmul.f32 %v6158, %v6161
      %v6176 = vmul.f32 %v6159, %v6161
      %v6177 = vmul.f32 %v6160, %v6161
      %v6178 = vadd.f32 %v6110, 1.0
      %v6179 = vadd.f32 %v6111, 1.0
      %v6180 = vadd.f32 %v6112, 1.0
      %v6181 = vadd.f32 %v6113, 1.0
      %v6182 = vadd.f32 %v6114, 1.0
      %v6183 = vadd.f32 %v6115, 1.0
      %v6184 = vadd.f32 %v6116, 1.0
      %v6185 = vadd.f32 %v6117, 1.0
      %v6186 = vadd.f32 %v6118, 1.0
      %v6187 = vadd.f32 %v6119, 1.0
      %v6188 = vadd.f32 %v6120, 1.0
      %v6189 = vadd.f32 %v6121, 1.0
      %v6190 = vadd.f32 %v6122, 1.0
      %v6191 = vadd.f32 %v6123, 1.0
      %v6192 = vadd.f32 %v6124, 1.0
      %v6193 = vadd.f32 %v6125, 1.0
      %v6194 = vmul.f32 %v6162, %v6178
      %v6195 = vmul.f32 %v6163, %v6179
      %v6196 = vmul.f32 %v6164, %v6180
      %v6197 = vmul.f32 %v6165, %v6181
      %v6198 = vmul.f32 %v6166, %v6182
      %v6199 = vmul.f32 %v6167, %v6183
      %v6200 = vmul.f32 %v6168, %v6184
      %v6201 = vmul.f32 %v6169, %v6185
      %v6202 = vmul.f32 %v6170, %v6186
      %v6203 = vmul.f32 %v6171, %v6187
      %v6204 = vmul.f32 %v6172, %v6188
      %v6205 = vmul.f32 %v6173, %v6189
      %v6206 = vmul.f32 %v6174, %v6190
      %v6207 = vmul.f32 %v6175, %v6191
      %v6208 = vmul.f32 %v6176, %v6192
      %v6209 = vmul.f32 %v6177, %v6193
      %6226 = vrot.lane.b32.xlu0 %v6110, 124
      %v6227 = vpop.permute.xlu0 %6226
      %6228 = vrot.lane.b32.xlu0 %v6111, 124
      %v6229 = vpop.permute.xlu0 %6228
      %6230 = vrot.lane.b32.xlu0 %v6112, 124
      %v6231 = vpop.permute.xlu0 %6230
      %6232 = vrot.lane.b32.xlu0 %v6113, 124
      %v6233 = vpop.permute.xlu0 %6232
      %6234 = vrot.lane.b32.xlu0 %v6114, 124
      %v6235 = vpop.permute.xlu0 %6234
      %6236 = vrot.lane.b32.xlu0 %v6115, 124
      %v6237 = vpop.permute.xlu0 %6236
      %6238 = vrot.lane.b32.xlu0 %v6116, 124
      %v6239 = vpop.permute.xlu0 %6238
      %6240 = vrot.lane.b32.xlu0 %v6117, 124
      %v6241 = vpop.permute.xlu0 %6240
      %6242 = vrot.lane.b32.xlu0 %v6118, 124
      %v6243 = vpop.permute.xlu0 %6242
      %6244 = vrot.lane.b32.xlu0 %v6119, 124
      %v6245 = vpop.permute.xlu0 %6244
      %6246 = vrot.lane.b32.xlu0 %v6120, 124
      %v6247 = vpop.permute.xlu0 %6246
      %6248 = vrot.lane.b32.xlu0 %v6121, 124
      %v6249 = vpop.permute.xlu0 %6248
      %6250 = vrot.lane.b32.xlu0 %v6122, 124
      %v6251 = vpop.permute.xlu0 %6250
      %6252 = vrot.lane.b32.xlu0 %v6123, 124
      %v6253 = vpop.permute.xlu0 %6252
      %6254 = vrot.lane.b32.xlu0 %v6124, 124
      %v6255 = vpop.permute.xlu0 %6254
      %6256 = vrot.lane.b32.xlu0 %v6125, 124
      %v6257 = vpop.permute.xlu0 %6256
      %v6274 = vadd.f32 %v6194, %v6227
      %v6275 = vadd.f32 %v6195, %v6229
      %v6276 = vadd.f32 %v6196, %v6231
      %v6277 = vadd.f32 %v6197, %v6233
      %v6278 = vadd.f32 %v6198, %v6235
      %v6279 = vadd.f32 %v6199, %v6237
      %v6280 = vadd.f32 %v6200, %v6239
      %v6281 = vadd.f32 %v6201, %v6241
      %v6282 = vadd.f32 %v6202, %v6243
      %v6283 = vadd.f32 %v6203, %v6245
      %v6284 = vadd.f32 %v6204, %v6247
      %v6285 = vadd.f32 %v6205, %v6249
      %v6286 = vadd.f32 %v6206, %v6251
      %v6287 = vadd.f32 %v6207, %v6253
      %v6288 = vadd.f32 %v6208, %v6255
      %v6289 = vadd.f32 %v6209, %v6257
      %vm6290 = vcmask 31744
      %6291 = vst.msk [vmem:[%s358] sm:$0xff] %vm6290, %v6274
      %6292 = vst.msk [vmem:[%s358 + $0x8] sm:$0xff] %vm6290, %v6275
      %6293 = vst.msk [vmem:[%s358 + $0x10] sm:$0xff] %vm6290, %v6276
      %6294 = vst.msk [vmem:[%s358 + $0x18] sm:$0xff] %vm6290, %v6277
      %6295 = vst.msk [vmem:[%s358 + $0x20] sm:$0xff] %vm6290, %v6278
      %6296 = vst.msk [vmem:[%s358 + $0x28] sm:$0xff] %vm6290, %v6279
      %6297 = vst.msk [vmem:[%s358 + $0x30] sm:$0xff] %vm6290, %v6280
      %6298 = vst.msk [vmem:[%s358 + $0x38] sm:$0xff] %vm6290, %v6281
      %6299 = vst.msk [vmem:[%s358 + $0x40] sm:$0xff] %vm6290, %v6282
      %6300 = vst.msk [vmem:[%s358 + $0x48] sm:$0xff] %vm6290, %v6283
      %6301 = vst.msk [vmem:[%s358 + $0x50] sm:$0xff] %vm6290, %v6284
      %6302 = vst.msk [vmem:[%s358 + $0x58] sm:$0xff] %vm6290, %v6285
      %6303 = vst.msk [vmem:[%s358 + $0x60] sm:$0xff] %vm6290, %v6286
      %6304 = vst.msk [vmem:[%s358 + $0x68] sm:$0xff] %vm6290, %v6287
      %6305 = vst.msk [vmem:[%s358 + $0x70] sm:$0xff] %vm6290, %v6288
      %6306 = vst.msk [vmem:[%s358 + $0x78] sm:$0xff] %vm6290, %v6289
      %s6307 = smul.u32 8, %s23
      %p6308 = scmp.lt.s32.totalorder %s22, 1
      %s6309 = scalar_select %p6308, %s22, 1
      %p6310 = scmp.lt.s32.totalorder %s6307, 15
      %s6311 = scalar_select %p6310, %s6307, 15
      %s6312 = smul.addr %s6311, 2
      %s6313 = smul.addr %s6309, 32
      %s6314 = sadd.s32 %s6312, %s6313
      %s6315 = smul.addr %s6314, 8
      %s6316 = scalar_lea.vmem %s7, %s6315
      // Predicated region
      $region49: #{spade_forward.3} parent=47 // pred_check
        %p6317 = pneg %p214
      $region50: #{spade_forward.3} parent=47 // pred_check_branch
        %6319 = sbr.rel (%p6317) target = $region52
      $region51: #{spade_forward.3} parent=47 // pred_region
        %s6320 = smul.u32 8, %s23
      $region52: #{spade_forward.3} parent=47 // pred_fallthru
        _
    $region48: #{spade_forward.3} parent=5 // pred_fallthru
      _
    %p6321 = scmp.le.s32.totalorder 2, %s13
    // Predicated region
    $region53: #{spade_forward.3} parent=5 // pred_check
      %p6322 = pneg %p6321
    $region54: #{spade_forward.3} parent=5 // pred_check_branch
      %6324 = sbr.rel (%p6322) target = $region56
    $region55: #{spade_forward.3} parent=5 // pred_region
      %s6325 = ssub.s32 %s13, 2
      // Predicated region
      $region57: #{spade_forward.3} parent=55 // pred_check
        %p6326 = pneg %p220
      $region58: #{spade_forward.3} parent=55 // pred_check_branch
        %6328 = sbr.rel (%p6326) target = $region60
      $region59: #{spade_forward.3} parent=55 // pred_region
        %s6329 = smul.u32 8, %s25
        %p6330 = scmp.lt.s32.totalorder %s24, 1
        %s6331 = scalar_select %p6330, %s24, 1
        %p6332 = scmp.lt.s32.totalorder %s6329, 15
        %s6333 = scalar_select %p6332, %s6329, 15
        %s6334 = smul.addr %s6333, 2
        %s6335 = smul.addr %s6331, 32
        %s6336 = sadd.s32 %s6334, %s6335
        %s6337 = smul.addr %s6336, 8
        %s6338 = scalar_lea.vmem %s7, %s6337
      $region60: #{spade_forward.3} parent=55 // pred_fallthru
        _
    $region56: #{spade_forward.3} parent=5 // pred_fallthru
      _
  $region6: #{spade_forward.3} parent=0 // loop_footer
    %s17 = sadd.s32 1, %s13
  $region7: #{spade_forward.3} parent=0 // loop_footer_branch
    %12 = sbr.rel target = $region3
  $region8: #{spade_forward.3} parent=0 // loop_exit
    _

</llo_original>
